<compile_context>
chip_gen: v7x
topology: tpu7x:2x2x1
jax: 0.10.0
libtpu: 0.0.40
codegen_flags: <defaults>
</compile_context>

<pallas_src>
import jax
import jax.numpy as jnp
import numpy as np
from jax.experimental import pallas as pl
from jax.experimental.pallas import tpu as pltpu


# ----------------------------------------------------------------------------
# Elementwise helpers (f32 on VPU/EUP).
# ----------------------------------------------------------------------------
def _sigmoid(x):
    # sigmoid(x) == 0.5 * tanh(0.5 * x) + 0.5 : one EUP op instead of exp+div.
    return 0.5 * jnp.tanh(0.5 * x) + 0.5


def _lstm_cell(gates, c_prev, hidden_p):
    """gates: (TB, 4*Hp) pre-activations, gate order i|f|g|o, each Hp lanes."""
    i_g = _sigmoid(gates[:, 0 * hidden_p:1 * hidden_p])
    f_g = _sigmoid(gates[:, 1 * hidden_p:2 * hidden_p])
    g_g = jnp.tanh(gates[:, 2 * hidden_p:3 * hidden_p])
    o_g = _sigmoid(gates[:, 3 * hidden_p:4 * hidden_p])
    c_new = f_g * c_prev + i_g * g_g
    h_new = o_g * jnp.tanh(c_new)
    return h_new, c_new


def _round_up(x, m):
    return ((x + m - 1) // m) * m


# ----------------------------------------------------------------------------
# Fused kernel: layer-0 input projection + stacked LSTM recurrence + Linear.
#   grid = (B // batch_tile, T // chunk); time innermost & "arbitrary",
#   batch "parallel".  h/c for every layer live in VMEM scratch and carry
#   across the time-chunk grid steps.
# ----------------------------------------------------------------------------
def _make_stacked_kernel(num_layers, hidden_p, chunk, out_dim, out_is_2d):
    G = 4 * hidden_p

    def kernel(*refs):
        x_ref, w_ih0_ref, b0_ref, w_hh0_ref = refs[0], refs[1], refs[2], refs[3]
        idx = 4
        deep = []
        for _ in range(1, num_layers):
            deep.append((refs[idx], refs[idx + 1], refs[idx + 2]))
            idx += 3
        w_fc_ref, b_fc_ref = refs[idx], refs[idx + 1]
        y_ref = refs[idx + 2]
        h_scr = refs[idx + 3]      # (L, TB, Hp) f32
        c_scr = refs[idx + 4]      # (L, TB, Hp) f32
        gx_scr = refs[idx + 5]     # (TB, chunk, 4Hp) f32
        hseq_scr = refs[idx + 6]   # (TB, chunk, Hp) f32

        tb = x_ref.shape[0]
        d_in = x_ref.shape[2]
        t = pl.program_id(1)
        mdt = w_hh0_ref.dtype      # MXU operand dtype (f32 or bf16)

        @pl.when(t == 0)
        def _():
            h_scr[...] = jnp.zeros_like(h_scr)
            c_scr[...] = jnp.zeros_like(c_scr)

        # --- chunk-hoisted layer-0 input projection: one big MXU matmul ---
        # Parked in VMEM scratch (NOT vregs); sliced per timestep below.
        x2 = x_ref[...].astype(mdt).reshape(tb * chunk, d_in)
        gx = jnp.dot(x2, w_ih0_ref[...],
                     preferred_element_type=jnp.float32) + b0_ref[...]
        gx_scr[...] = gx.reshape(tb, chunk, G)

        hs = [h_scr[l] for l in range(num_layers)]
        cs = [c_scr[l] for l in range(num_layers)]

        for tt in range(chunk):    # static unroll over the time chunk
            # layer 0: x-projection precomputed; only h @ W_hh per step.
            gates = gx_scr[:, tt, :] + jnp.dot(
                hs[0].astype(mdt), w_hh0_ref[...],
                preferred_element_type=jnp.float32)
            hs[0], cs[0] = _lstm_cell(gates, cs[0], hidden_p)
            h_below = hs[0]

            # layers 1..L-1: two accumulating dots (no per-step concat copies).
            for l in range(1, num_layers):
                w_ih_ref, w_hh_ref, b_ref = deep[l - 1]
                gates = (jnp.dot(h_below.astype(mdt), w_ih_ref[...],
                                 preferred_element_type=jnp.float32)
                         + jnp.dot(hs[l].astype(mdt), w_hh_ref[...],
                                   preferred_element_type=jnp.float32)
                         + b_ref[...])
                hs[l], cs[l] = _lstm_cell(gates, cs[l], hidden_p)
                h_below = hs[l]

            # lane-dense (TB, Hp) store of the top-layer hidden state.
            hseq_scr[:, tt, :] = h_below

        # write carried state back once per grid step.
        for l in range(num_layers):
            h_scr[l] = hs[l]
            c_scr[l] = cs[l]

        # --- batched Linear epilogue: ONE reduce/matmul + ONE store per chunk ---
        h_seq = hseq_scr[...]                                   # (TB, chunk, Hp) f32
        if out_is_2d:
            # out_dim == 1: y[b, t] = sum_h h * w + b  (VPU mul + XLU lane reduce),
            # stored as a lane-dense (TB, chunk) block.
            w_row = w_fc_ref[...].astype(jnp.float32).reshape(1, 1, hidden_p)
            y = jnp.sum(h_seq * w_row, axis=-1) + b_fc_ref[...]
            y_ref[...] = y.astype(y_ref.dtype)
        else:
            h2 = h_seq.astype(mdt).reshape(tb * chunk, hidden_p)
            y2 = jnp.dot(h2, w_fc_ref[...],
                         preferred_element_type=jnp.float32) + b_fc_ref[...]
            y_ref[...] = y2.reshape(tb, chunk, out_dim).astype(y_ref.dtype)

    return kernel


def _vmem_limit_bytes(d_in, hidden_p, out_dim, num_layers, batch_tile, chunk,
                      mxu_itemsize):
    """Explicit scoped-VMEM budget (weights conservatively counted 2x-buffered)."""
    w_bytes = ((d_in * 4 * hidden_p
                + (2 * num_layers - 1) * hidden_p * 4 * hidden_p
                + hidden_p * out_dim) * mxu_itemsize
               + (num_layers * 4 * hidden_p + out_dim) * 4)
    io_bytes = (2 * batch_tile * chunk * d_in * 4
                + 2 * batch_tile * chunk * max(out_dim, 1) * 4)
    scratch_bytes = (2 * num_layers * batch_tile * hidden_p
                     + batch_tile * chunk * 4 * hidden_p
                     + batch_tile * chunk * hidden_p) * 4
    est = 2 * w_bytes + io_bytes + scratch_bytes
    # Clamp to 48 MiB so the limit is always legal on v7x (64 MiB physical);
    # on v5e/v6e (128 MiB physical) this can be raised for very large models.
    return int(min(max(est + (8 << 20), 24 << 20), 48 << 20))


def _stacked_lstm_fc(x, kp, *, hidden_p, out_dim, chunk, batch_tile, mxu_dtype):
    """x: (Bp, T, D) padded input.  Returns (Bp, T) if out_dim==1 else (Bp, T, out_dim)."""
    Bp, T, D = x.shape
    num_layers = 1 + len(kp["deep"])
    out_is_2d = (out_dim == 1)
    G = 4 * hidden_p

    kernel = _make_stacked_kernel(num_layers, hidden_p, chunk, out_dim, out_is_2d)

    inputs = [x, kp["w_ih0"], kp["b0"], kp["w_hh0"]]
    in_specs = [
        pl.BlockSpec((batch_tile, chunk, D), lambda b, t: (b, t, 0)),
        pl.BlockSpec((D, G), lambda b, t: (0, 0)),
        pl.BlockSpec((1, G), lambda b, t: (0, 0)),
        pl.BlockSpec((hidden_p, G), lambda b, t: (0, 0)),
    ]
    for (w_ih, w_hh, b) in kp["deep"]:
        inputs += [w_ih, w_hh, b]
        in_specs += [
            pl.BlockSpec((hidden_p, G), lambda b, t: (0, 0)),
            pl.BlockSpec((hidden_p, G), lambda b, t: (0, 0)),
            pl.BlockSpec((1, G), lambda b, t: (0, 0)),
        ]
    inputs += [kp["w_fc"], kp["b_fc"]]
    if out_is_2d:
        in_specs += [pl.BlockSpec((1, hidden_p), lambda b, t: (0, 0)),
                     pl.BlockSpec((1, 1), lambda b, t: (0, 0))]
        out_shape = jax.ShapeDtypeStruct((Bp, T), jnp.float32)
        out_specs = pl.BlockSpec((batch_tile, chunk), lambda b, t: (b, t))
    else:
        in_specs += [pl.BlockSpec((hidden_p, out_dim), lambda b, t: (0, 0)),
                     pl.BlockSpec((1, out_dim), lambda b, t: (0, 0))]
        out_shape = jax.ShapeDtypeStruct((Bp, T, out_dim), jnp.float32)
        out_specs = pl.BlockSpec((batch_tile, chunk, out_dim), lambda b, t: (b, t, 0))

    scratch_shapes = [
        pltpu.VMEM((num_layers, batch_tile, hidden_p), jnp.float32),  # h carry
        pltpu.VMEM((num_layers, batch_tile, hidden_p), jnp.float32),  # c carry
        pltpu.VMEM((batch_tile, chunk, G), jnp.float32),              # gx per chunk
        pltpu.VMEM((batch_tile, chunk, hidden_p), jnp.float32),       # h_seq per chunk
    ]

    vmem_limit = _vmem_limit_bytes(D, hidden_p, out_dim, num_layers,
                                   batch_tile, chunk, np.dtype(mxu_dtype).itemsize)

    return pl.pallas_call(
        kernel,
        out_shape=out_shape,
        grid_spec=pltpu.PrefetchScalarGridSpec(
            num_scalar_prefetch=0,
            grid=(Bp // batch_tile, T // chunk),
            in_specs=in_specs,
            out_specs=out_specs,
            scratch_shapes=scratch_shapes,
        ),
        compiler_params=pltpu.CompilerParams(
            # batch shards are independent (v7x: 2 TCs); time is a recurrence
            # whose h/c carry lives in scratch -> keep time innermost/"arbitrary".
            dimension_semantics=("parallel", "arbitrary"),
            vmem_limit_bytes=vmem_limit,
        ),
    )(*inputs)


# ----------------------------------------------------------------------------
# Parameter handling (PyTorch layout -> kernel layout, lane-aligned gates).
# ----------------------------------------------------------------------------
def init_params(key, input_dim, hidden_dim, num_layers, output_dim):
    """PyTorch-style init: uniform(-1/sqrt(H), 1/sqrt(H)), PyTorch weight layout."""
    bound = 1.0 / np.sqrt(hidden_dim)
    layers = []
    in_dim = input_dim
    for _ in range(num_layers):
        key, k1, k2, k3, k4 = jax.random.split(key, 5)
        layers.append({
            "w_ih": jax.random.uniform(k1, (4 * hidden_dim, in_dim), jnp.float32, -bound, bound),
            "w_hh": jax.random.uniform(k2, (4 * hidden_dim, hidden_dim), jnp.float32, -bound, bound),
            "b_ih": jax.random.uniform(k3, (4 * hidden_dim,), jnp.float32, -bound, bound),
            "b_hh": jax.random.uniform(k4, (4 * hidden_dim,), jnp.float32, -bound, bound),
        })
        in_dim = hidden_dim
    key, k5, k6 = jax.random.split(key, 3)
    w_fc = jax.random.uniform(k5, (output_dim, hidden_dim), jnp.float32, -bound, bound)
    b_fc = jax.random.uniform(k6, (output_dim,), jnp.float32, -bound, bound)
    return {"lstm": layers, "fc": {"w": w_fc, "b": b_fc}}


def _pad_gate_cols(w, hidden, hidden_p):
    """w: (in_dim, 4H) cols [i|f|g|o] -> (in_dim, 4Hp), each gate zero-padded to Hp lanes."""
    if hidden_p == hidden:
        return w
    in_dim = w.shape[0]
    w4 = w.reshape(in_dim, 4, hidden)
    w4 = jnp.pad(w4, ((0, 0), (0, 0), (0, hidden_p - hidden)))
    return w4.reshape(in_dim, 4 * hidden_p)


def _pad_gate_bias(b, hidden, hidden_p):
    if hidden_p == hidden:
        return b
    b4 = b.reshape(4, hidden)
    b4 = jnp.pad(b4, ((0, 0), (0, hidden_p - hidden)))
    return b4.reshape(4 * hidden_p)


def _pad_rows(w, rows_p):
    r = w.shape[0]
    return w if r == rows_p else jnp.pad(w, ((0, rows_p - r), (0, 0)))


def prepare_kernel_params(params, mxu_dtype, hidden_p):
    """PyTorch weights -> lane-aligned, gate-padded kernel layouts.

    Zero padding is exact: padded gate pre-activations are 0, so padded lanes of
    h/c stay exactly 0 for every timestep and contribute nothing downstream.
    """
    lstm = params["lstm"]
    hidden = lstm[0]["w_hh"].shape[1]
    l0 = lstm[0]
    w_ih0 = _pad_gate_cols(l0["w_ih"].T, hidden, hidden_p).astype(mxu_dtype)      # (D, 4Hp)
    w_hh0 = _pad_rows(_pad_gate_cols(l0["w_hh"].T, hidden, hidden_p),
                      hidden_p).astype(mxu_dtype)                                 # (Hp, 4Hp)
    b0 = _pad_gate_bias(l0["b_ih"] + l0["b_hh"], hidden, hidden_p)[None, :]        # (1, 4Hp) f32
    deep = []
    for layer in lstm[1:]:
        w_ih = _pad_rows(_pad_gate_cols(layer["w_ih"].T, hidden, hidden_p),
                         hidden_p).astype(mxu_dtype)                               # (Hp, 4Hp)
        w_hh = _pad_rows(_pad_gate_cols(layer["w_hh"].T, hidden, hidden_p),
                         hidden_p).astype(mxu_dtype)                               # (Hp, 4Hp)
        b = _pad_gate_bias(layer["b_ih"] + layer["b_hh"], hidden, hidden_p)[None, :]
        deep.append((w_ih, w_hh, b))
    out_dim = params["fc"]["w"].shape[0]
    w_fc = _pad_rows(params["fc"]["w"].T, hidden_p)                                # (Hp, O) f32
    b_fc = params["fc"]["b"][None, :]                                              # (1, O) f32
    if out_dim == 1:
        w_fc_k = jnp.transpose(w_fc).astype(jnp.float32)   # (1, Hp) used on the VPU
    else:
        w_fc_k = w_fc.astype(mxu_dtype)                    # (Hp, O) used on the MXU
    return {"w_ih0": w_ih0, "w_hh0": w_hh0, "b0": b0, "deep": deep,
            "w_fc": w_fc_k, "b_fc": b_fc}


# ----------------------------------------------------------------------------
# Full network forward (reproduces LSTMNetwork.forward).
# ----------------------------------------------------------------------------
def lstm_network_forward(x, params, *, mxu_dtype=jnp.float32,
                         chunk=None, batch_tile=None):
    """x: (B, T, input_dim) -> torch-equivalent of fc(lstm(x)[0]).squeeze().

    mxu_dtype=jnp.bfloat16 : bf16 MXU operands + f32 accumulation / gate math.
                             Recommended on v5e, v6e AND v7x (validate error
                             growth at production sequence lengths first).
    batch_tile             : v7x -> padded_B // 2 (multiple of 8) so both
                             TensorCores each run an independent batch shard;
                             v5e/v6e (single TC) -> leave as default (= B).
    """
    B, T, D = x.shape
    H = params["lstm"][0]["w_hh"].shape[1]
    O = params["fc"]["w"].shape[0]
    Hp = _round_up(H, 128)                     # lane-aligned gates / hidden state

    kp = prepare_kernel_params(params, mxu_dtype, Hp)

    # Pad batch to a multiple of 8 sublane rows (MXU row occupancy).
    Bp = _round_up(B, 8)
    if Bp != B:
        x = jnp.pad(x, ((0, Bp - B), (0, 0), (0, 0)))

    if batch_tile is None:
        batch_tile = Bp
    assert Bp % batch_tile == 0 and batch_tile % 8 == 0

    if chunk is None:
        # Largest chunk that keeps the (B, T) output block lane-dense: a
        # multiple of 128, else the full sequence (block == full dim is legal).
        chunk = T
        for cand in (256, 128):
            if T % cand == 0:
                chunk = cand
                break
    assert T % chunk == 0

    y = _stacked_lstm_fc(x, kp, hidden_p=Hp, out_dim=O, chunk=chunk,
                         batch_tile=batch_tile, mxu_dtype=mxu_dtype)
    y = y[:B]
    return jnp.squeeze(y)      # mimics torch .squeeze(): drops ALL size-1 dims


# ----------------------------------------------------------------------------
# Pure-JAX reference (lax.scan) for correctness checking.
# ----------------------------------------------------------------------------
def reference_forward(x, params):
    B, T, _ = x.shape
    h_seq = jnp.transpose(x, (1, 0, 2))                        # (T, B, D)
    for layer in params["lstm"]:
        w_ih_t = layer["w_ih"].T
        w_hh_t = layer["w_hh"].T
        bias = (layer["b_ih"] + layer["b_hh"])[None, :]
        H = layer["w_hh"].shape[1]

        def step(carry, x_t, w_ih_t=w_ih_t, w_hh_t=w_hh_t, bias=bias, H=H):
            h, c = carry
            gates = x_t @ w_ih_t + h @ w_hh_t + bias
            i = jax.nn.sigmoid(gates[:, 0 * H:1 * H])
            f = jax.nn.sigmoid(gates[:, 1 * H:2 * H])
            g = jnp.tanh(gates[:, 2 * H:3 * H])
            o = jax.nn.sigmoid(gates[:, 3 * H:4 * H])
            c = f * c + i * g
            h = o * jnp.tanh(c)
            return (h, c), h

        init = (jnp.zeros((B, H), jnp.float32), jnp.zeros((B, H), jnp.float32))
        _, h_seq = jax.lax.scan(step, init, h_seq)
    w_fc_t = params["fc"]["w"].T
    b_fc = params["fc"]["b"]
    y = h_seq @ w_fc_t + b_fc[None, None, :]                   # (T, B, O)
    return jnp.squeeze(jnp.transpose(y, (1, 0, 2)))


if __name__ == "__main__":
    # Small shapes consistent with the module.
    B, T = 2, 8
    input_dim, hidden_dim, num_layers, output_dim = 8, 32, 2, 1

    key = jax.random.PRNGKey(0)
    key, kx = jax.random.split(key)
    x = jax.random.normal(kx, (B, T, input_dim), jnp.float32)
    params = init_params(key, input_dim, hidden_dim, num_layers, output_dim)

    ref = jax.block_until_ready(reference_forward(x, params))

    # f32 MXU path: tight tolerance vs the f32 reference.
    out_f32 = jax.block_until_ready(
        lstm_network_forward(x, params, mxu_dtype=jnp.float32))
    np.testing.assert_allclose(np.asarray(out_f32), np.asarray(ref),
                               rtol=1e-5, atol=1e-5)

    # bf16 MXU operands with f32 accumulation / f32 gate math (all generations).
    out_bf16 = jax.block_until_ready(
        lstm_network_forward(x, params, mxu_dtype=jnp.bfloat16))
    np.testing.assert_allclose(np.asarray(out_bf16), np.asarray(ref),
                               rtol=5e-2, atol=5e-2)

    print("KERNEL_OK")
</pallas_src>

<mosaic_0001>
module attributes {stable_mosaic.version = 11 : i64} {
  func.func @kernel(%arg0: i32, %arg1: i32, %arg2: memref<8x8x8xf32, #tpu.memory_space<vmem>>, %arg3: memref<8x512xf32, #tpu.memory_space<vmem>>, %arg4: memref<1x512xf32, #tpu.memory_space<vmem>>, %arg5: memref<128x512xf32, #tpu.memory_space<vmem>>, %arg6: memref<128x512xf32, #tpu.memory_space<vmem>>, %arg7: memref<128x512xf32, #tpu.memory_space<vmem>>, %arg8: memref<1x512xf32, #tpu.memory_space<vmem>>, %arg9: memref<1x128xf32, #tpu.memory_space<vmem>>, %arg10: memref<1x1xf32, #tpu.memory_space<vmem>>, %arg11: memref<8x8xf32, #tpu.memory_space<vmem>>, %arg12: memref<2x8x128xf32, #tpu.memory_space<vmem>>, %arg13: memref<2x8x128xf32, #tpu.memory_space<vmem>>, %arg14: memref<8x8x512xf32, #tpu.memory_space<vmem>>, %arg15: memref<8x8x128xf32, #tpu.memory_space<vmem>>) attributes {dimension_semantics = [#tpu.dimension_semantics<parallel>, #tpu.dimension_semantics<arbitrary>], iteration_bounds = array<i64: 1, 1>, scalar_prefetch = 0 : i64, scratch_operands = 4 : i64, tpu.core_type = #tpu.core_type<tc>, window_params = [{transform_indices = @transform_0, window_bounds = array<i64: 8, 8, 8>}, {pipeline_mode = #tpu.pipeline_mode<synchronous>, transform_indices = @transform_1, window_bounds = array<i64: 8, 512>}, {pipeline_mode = #tpu.pipeline_mode<synchronous>, transform_indices = @transform_2, window_bounds = array<i64: 1, 512>}, {pipeline_mode = #tpu.pipeline_mode<synchronous>, transform_indices = @transform_3, window_bounds = array<i64: 128, 512>}, {pipeline_mode = #tpu.pipeline_mode<synchronous>, transform_indices = @transform_4, window_bounds = array<i64: 128, 512>}, {pipeline_mode = #tpu.pipeline_mode<synchronous>, transform_indices = @transform_5, window_bounds = array<i64: 128, 512>}, {pipeline_mode = #tpu.pipeline_mode<synchronous>, transform_indices = @transform_6, window_bounds = array<i64: 1, 512>}, {pipeline_mode = #tpu.pipeline_mode<synchronous>, transform_indices = @transform_7, window_bounds = array<i64: 1, 128>}, {pipeline_mode = #tpu.pipeline_mode<synchronous>, transform_indices = @transform_8, window_bounds = array<i64: 1, 1>}, {transform_indices = @transform_9, window_bounds = array<i64: 8, 8>}]} {
    %c0_i32 = arith.constant 0 : i32
    %0 = arith.cmpi eq, %arg1, %c0_i32 : i32
    %1 = arith.extui %0 : i1 to i32
    %c0_i32_0 = arith.constant 0 : i32
    %2 = arith.cmpi ne, %1, %c0_i32_0 : i32
    scf.if %2 {
      %cst_317 = arith.constant 0.000000e+00 : f32
      %666 = vector.broadcast %cst_317 : f32 to vector<2x8x128xf32>
      %c0_318 = arith.constant 0 : index
      %c0_319 = arith.constant 0 : index
      %c0_320 = arith.constant 0 : index
      %667 = vector.load %arg12[%c0_318, %c0_319, %c0_320] : memref<2x8x128xf32, #tpu.memory_space<vmem>>, vector<2x8x128xf32>
      tpu.vector_store %arg12[%c0_318, %c0_319, %c0_320], %666 {strides = array<i32>} : memref<2x8x128xf32, #tpu.memory_space<vmem>>, vector<2x8x128xf32>,
      %cst_321 = arith.constant 0.000000e+00 : f32
      %668 = vector.broadcast %cst_321 : f32 to vector<2x8x128xf32>
      %c0_322 = arith.constant 0 : index
      %c0_323 = arith.constant 0 : index
      %c0_324 = arith.constant 0 : index
      %669 = vector.load %arg13[%c0_322, %c0_323, %c0_324] : memref<2x8x128xf32, #tpu.memory_space<vmem>>, vector<2x8x128xf32>
      tpu.vector_store %arg13[%c0_322, %c0_323, %c0_324], %668 {strides = array<i32>} : memref<2x8x128xf32, #tpu.memory_space<vmem>>, vector<2x8x128xf32>,
    } else {
    }
    %c0 = arith.constant 0 : index
    %c0_1 = arith.constant 0 : index
    %c0_2 = arith.constant 0 : index
    %3 = vector.load %arg2[%c0, %c0_1, %c0_2] : memref<8x8x8xf32, #tpu.memory_space<vmem>>, vector<8x8x8xf32>
    %4 = vector.shape_cast %3 : vector<8x8x8xf32> to vector<64x8xf32>
    %c0_3 = arith.constant 0 : index
    %c0_4 = arith.constant 0 : index
    %5 = vector.load %arg3[%c0_3, %c0_4] : memref<8x512xf32, #tpu.memory_space<vmem>>, vector<8x512xf32>
    %cst = arith.constant dense<0.000000e+00> : vector<64x512xf32>
    %6 = tpu.matmul %4, %5, %cst {dimension_numbers = #tpu.dot_dimension_numbers<[1], [0], [0], [1], [0, 0, 1, 1], [], []>} : vector<64x8xf32>, vector<8x512xf32>, vector<64x512xf32> -> vector<64x512xf32>
    %c0_5 = arith.constant 0 : index
    %c0_6 = arith.constant 0 : index
    %7 = vector.load %arg4[%c0_5, %c0_6] : memref<1x512xf32, #tpu.memory_space<vmem>>, vector<1x512xf32>
    %8 = vector.broadcast %7 : vector<1x512xf32> to vector<64x512xf32>
    %9 = arith.addf %6, %8 : vector<64x512xf32>
    %10 = vector.shape_cast %9 : vector<64x512xf32> to vector<8x8x512xf32>
    %c0_7 = arith.constant 0 : index
    %c0_8 = arith.constant 0 : index
    %c0_9 = arith.constant 0 : index
    %11 = vector.load %arg14[%c0_7, %c0_8, %c0_9] : memref<8x8x512xf32, #tpu.memory_space<vmem>>, vector<8x8x512xf32>
    tpu.vector_store %arg14[%c0_7, %c0_8, %c0_9], %10 {strides = array<i32>} : memref<8x8x512xf32, #tpu.memory_space<vmem>>, vector<8x8x512xf32>,
    %c0_10 = arith.constant 0 : index
    %c0_11 = arith.constant 0 : index
    %c0_12 = arith.constant 0 : index
    %12 = vector.load %arg12[%c0_10, %c0_11, %c0_12] : memref<2x8x128xf32, #tpu.memory_space<vmem>>, vector<1x8x128xf32>
    %13 = vector.shape_cast %12 : vector<1x8x128xf32> to vector<8x128xf32>
    %c1 = arith.constant 1 : index
    %c0_13 = arith.constant 0 : index
    %c0_14 = arith.constant 0 : index
    %14 = vector.load %arg12[%c1, %c0_13, %c0_14] : memref<2x8x128xf32, #tpu.memory_space<vmem>>, vector<1x8x128xf32>
    %15 = vector.shape_cast %14 : vector<1x8x128xf32> to vector<8x128xf32>
    %c0_15 = arith.constant 0 : index
    %c0_16 = arith.constant 0 : index
    %c0_17 = arith.constant 0 : index
    %16 = vector.load %arg13[%c0_15, %c0_16, %c0_17] : memref<2x8x128xf32, #tpu.memory_space<vmem>>, vector<1x8x128xf32>
    %17 = vector.shape_cast %16 : vector<1x8x128xf32> to vector<8x128xf32>
    %c1_18 = arith.constant 1 : index
    %c0_19 = arith.constant 0 : index
    %c0_20 = arith.constant 0 : index
    %18 = vector.load %arg13[%c1_18, %c0_19, %c0_20] : memref<2x8x128xf32, #tpu.memory_space<vmem>>, vector<1x8x128xf32>
    %19 = vector.shape_cast %18 : vector<1x8x128xf32> to vector<8x128xf32>
    %c0_21 = arith.constant 0 : index
    %c0_22 = arith.constant 0 : index
    %c0_23 = arith.constant 0 : index
    %20 = vector.load %arg14[%c0_21, %c0_22, %c0_23] : memref<8x8x512xf32, #tpu.memory_space<vmem>>, vector<8x1x512xf32>
    %21 = vector.shape_cast %20 : vector<8x1x512xf32> to vector<8x512xf32>
    %c0_24 = arith.constant 0 : index
    %c0_25 = arith.constant 0 : index
    %22 = vector.load %arg5[%c0_24, %c0_25] : memref<128x512xf32, #tpu.memory_space<vmem>>, vector<128x512xf32>
    %cst_26 = arith.constant dense<0.000000e+00> : vector<8x512xf32>
    %23 = tpu.matmul %13, %22, %cst_26 {dimension_numbers = #tpu.dot_dimension_numbers<[1], [0], [0], [1], [0, 0, 1, 1], [], []>} : vector<8x128xf32>, vector<128x512xf32>, vector<8x512xf32> -> vector<8x512xf32>
    %24 = arith.addf %21, %23 : vector<8x512xf32>
    %25 = vector.extract_strided_slice %24 {offsets = [0, 0], sizes = [8, 128], strides = [1, 1]} : vector<8x512xf32> to vector<8x128xf32>
    %cst_27 = arith.constant 5.000000e-01 : f32
    %26 = vector.broadcast %cst_27 : f32 to vector<8x128xf32>
    %27 = arith.mulf %26, %25 : vector<8x128xf32>
    %28 = math.tanh %27 : vector<8x128xf32>
    %cst_28 = arith.constant 5.000000e-01 : f32
    %29 = vector.broadcast %cst_28 : f32 to vector<8x128xf32>
    %30 = arith.mulf %29, %28 : vector<8x128xf32>
    %cst_29 = arith.constant 5.000000e-01 : f32
    %31 = vector.broadcast %cst_29 : f32 to vector<8x128xf32>
    %32 = arith.addf %30, %31 : vector<8x128xf32>
    %33 = vector.extract_strided_slice %24 {offsets = [0, 128], sizes = [8, 128], strides = [1, 1]} : vector<8x512xf32> to vector<8x128xf32>
    %cst_30 = arith.constant 5.000000e-01 : f32
    %34 = vector.broadcast %cst_30 : f32 to vector<8x128xf32>
    %35 = arith.mulf %34, %33 : vector<8x128xf32>
    %36 = math.tanh %35 : vector<8x128xf32>
    %cst_31 = arith.constant 5.000000e-01 : f32
    %37 = vector.broadcast %cst_31 : f32 to vector<8x128xf32>
    %38 = arith.mulf %37, %36 : vector<8x128xf32>
    %cst_32 = arith.constant 5.000000e-01 : f32
    %39 = vector.broadcast %cst_32 : f32 to vector<8x128xf32>
    %40 = arith.addf %38, %39 : vector<8x128xf32>
    %41 = vector.extract_strided_slice %24 {offsets = [0, 256], sizes = [8, 128], strides = [1, 1]} : vector<8x512xf32> to vector<8x128xf32>
    %42 = math.tanh %41 : vector<8x128xf32>
    %43 = vector.extract_strided_slice %24 {offsets = [0, 384], sizes = [8, 128], strides = [1, 1]} : vector<8x512xf32> to vector<8x128xf32>
    %cst_33 = arith.constant 5.000000e-01 : f32
    %44 = vector.broadcast %cst_33 : f32 to vector<8x128xf32>
    %45 = arith.mulf %44, %43 : vector<8x128xf32>
    %46 = math.tanh %45 : vector<8x128xf32>
    %cst_34 = arith.constant 5.000000e-01 : f32
    %47 = vector.broadcast %cst_34 : f32 to vector<8x128xf32>
    %48 = arith.mulf %47, %46 : vector<8x128xf32>
    %cst_35 = arith.constant 5.000000e-01 : f32
    %49 = vector.broadcast %cst_35 : f32 to vector<8x128xf32>
    %50 = arith.addf %48, %49 : vector<8x128xf32>
    %51 = arith.mulf %40, %17 : vector<8x128xf32>
    %52 = arith.mulf %32, %42 : vector<8x128xf32>
    %53 = arith.addf %51, %52 : vector<8x128xf32>
    %54 = math.tanh %53 : vector<8x128xf32>
    %55 = arith.mulf %50, %54 : vector<8x128xf32>
    %c0_36 = arith.constant 0 : index
    %c0_37 = arith.constant 0 : index
    %56 = vector.load %arg6[%c0_36, %c0_37] : memref<128x512xf32, #tpu.memory_space<vmem>>, vector<128x512xf32>
    %cst_38 = arith.constant dense<0.000000e+00> : vector<8x512xf32>
    %57 = tpu.matmul %55, %56, %cst_38 {dimension_numbers = #tpu.dot_dimension_numbers<[1], [0], [0], [1], [0, 0, 1, 1], [], []>} : vector<8x128xf32>, vector<128x512xf32>, vector<8x512xf32> -> vector<8x512xf32>
    %c0_39 = arith.constant 0 : index
    %c0_40 = arith.constant 0 : index
    %58 = vector.load %arg7[%c0_39, %c0_40] : memref<128x512xf32, #tpu.memory_space<vmem>>, vector<128x512xf32>
    %cst_41 = arith.constant dense<0.000000e+00> : vector<8x512xf32>
    %59 = tpu.matmul %15, %58, %cst_41 {dimension_numbers = #tpu.dot_dimension_numbers<[1], [0], [0], [1], [0, 0, 1, 1], [], []>} : vector<8x128xf32>, vector<128x512xf32>, vector<8x512xf32> -> vector<8x512xf32>
    %60 = arith.addf %57, %59 : vector<8x512xf32>
    %c0_42 = arith.constant 0 : index
    %c0_43 = arith.constant 0 : index
    %61 = vector.load %arg8[%c0_42, %c0_43] : memref<1x512xf32, #tpu.memory_space<vmem>>, vector<1x512xf32>
    %62 = vector.broadcast %61 : vector<1x512xf32> to vector<8x512xf32>
    %63 = arith.addf %60, %62 : vector<8x512xf32>
    %64 = vector.extract_strided_slice %63 {offsets = [0, 0], sizes = [8, 128], strides = [1, 1]} : vector<8x512xf32> to vector<8x128xf32>
    %cst_44 = arith.constant 5.000000e-01 : f32
    %65 = vector.broadcast %cst_44 : f32 to vector<8x128xf32>
    %66 = arith.mulf %65, %64 : vector<8x128xf32>
    %67 = math.tanh %66 : vector<8x128xf32>
    %cst_45 = arith.constant 5.000000e-01 : f32
    %68 = vector.broadcast %cst_45 : f32 to vector<8x128xf32>
    %69 = arith.mulf %68, %67 : vector<8x128xf32>
    %cst_46 = arith.constant 5.000000e-01 : f32
    %70 = vector.broadcast %cst_46 : f32 to vector<8x128xf32>
    %71 = arith.addf %69, %70 : vector<8x128xf32>
    %72 = vector.extract_strided_slice %63 {offsets = [0, 128], sizes = [8, 128], strides = [1, 1]} : vector<8x512xf32> to vector<8x128xf32>
    %cst_47 = arith.constant 5.000000e-01 : f32
    %73 = vector.broadcast %cst_47 : f32 to vector<8x128xf32>
    %74 = arith.mulf %73, %72 : vector<8x128xf32>
    %75 = math.tanh %74 : vector<8x128xf32>
    %cst_48 = arith.constant 5.000000e-01 : f32
    %76 = vector.broadcast %cst_48 : f32 to vector<8x128xf32>
    %77 = arith.mulf %76, %75 : vector<8x128xf32>
    %cst_49 = arith.constant 5.000000e-01 : f32
    %78 = vector.broadcast %cst_49 : f32 to vector<8x128xf32>
    %79 = arith.addf %77, %78 : vector<8x128xf32>
    %80 = vector.extract_strided_slice %63 {offsets = [0, 256], sizes = [8, 128], strides = [1, 1]} : vector<8x512xf32> to vector<8x128xf32>
    %81 = math.tanh %80 : vector<8x128xf32>
    %82 = vector.extract_strided_slice %63 {offsets = [0, 384], sizes = [8, 128], strides = [1, 1]} : vector<8x512xf32> to vector<8x128xf32>
    %cst_50 = arith.constant 5.000000e-01 : f32
    %83 = vector.broadcast %cst_50 : f32 to vector<8x128xf32>
    %84 = arith.mulf %83, %82 : vector<8x128xf32>
    %85 = math.tanh %84 : vector<8x128xf32>
    %cst_51 = arith.constant 5.000000e-01 : f32
    %86 = vector.broadcast %cst_51 : f32 to vector<8x128xf32>
    %87 = arith.mulf %86, %85 : vector<8x128xf32>
    %cst_52 = arith.constant 5.000000e-01 : f32
    %88 = vector.broadcast %cst_52 : f32 to vector<8x128xf32>
    %89 = arith.addf %87, %88 : vector<8x128xf32>
    %90 = arith.mulf %79, %19 : vector<8x128xf32>
    %91 = arith.mulf %71, %81 : vector<8x128xf32>
    %92 = arith.addf %90, %91 : vector<8x128xf32>
    %93 = math.tanh %92 : vector<8x128xf32>
    %94 = arith.mulf %89, %93 : vector<8x128xf32>
    %c0_53 = arith.constant 0 : index
    %c0_54 = arith.constant 0 : index
    %c0_55 = arith.constant 0 : index
    %95 = vector.load %arg15[%c0_53, %c0_54, %c0_55] : memref<8x8x128xf32, #tpu.memory_space<vmem>>, vector<8x1x128xf32>
    %96 = vector.shape_cast %95 : vector<8x1x128xf32> to vector<8x128xf32>
    %97 = vector.shape_cast %94 : vector<8x128xf32> to vector<8x1x128xf32>
    tpu.vector_store %arg15[%c0_53, %c0_54, %c0_55], %97 {strides = array<i32>} : memref<8x8x128xf32, #tpu.memory_space<vmem>>, vector<8x1x128xf32>,
    %c0_56 = arith.constant 0 : index
    %c1_57 = arith.constant 1 : index
    %c0_58 = arith.constant 0 : index
    %98 = vector.load %arg14[%c0_56, %c1_57, %c0_58] : memref<8x8x512xf32, #tpu.memory_space<vmem>>, vector<8x1x512xf32>
    %99 = vector.shape_cast %98 : vector<8x1x512xf32> to vector<8x512xf32>
    %c0_59 = arith.constant 0 : index
    %c0_60 = arith.constant 0 : index
    %100 = vector.load %arg5[%c0_59, %c0_60] : memref<128x512xf32, #tpu.memory_space<vmem>>, vector<128x512xf32>
    %cst_61 = arith.constant dense<0.000000e+00> : vector<8x512xf32>
    %101 = tpu.matmul %55, %100, %cst_61 {dimension_numbers = #tpu.dot_dimension_numbers<[1], [0], [0], [1], [0, 0, 1, 1], [], []>} : vector<8x128xf32>, vector<128x512xf32>, vector<8x512xf32> -> vector<8x512xf32>
    %102 = arith.addf %99, %101 : vector<8x512xf32>
    %103 = vector.extract_strided_slice %102 {offsets = [0, 0], sizes = [8, 128], strides = [1, 1]} : vector<8x512xf32> to vector<8x128xf32>
    %cst_62 = arith.constant 5.000000e-01 : f32
    %104 = vector.broadcast %cst_62 : f32 to vector<8x128xf32>
    %105 = arith.mulf %104, %103 : vector<8x128xf32>
    %106 = math.tanh %105 : vector<8x128xf32>
    %cst_63 = arith.constant 5.000000e-01 : f32
    %107 = vector.broadcast %cst_63 : f32 to vector<8x128xf32>
    %108 = arith.mulf %107, %106 : vector<8x128xf32>
    %cst_64 = arith.constant 5.000000e-01 : f32
    %109 = vector.broadcast %cst_64 : f32 to vector<8x128xf32>
    %110 = arith.addf %108, %109 : vector<8x128xf32>
    %111 = vector.extract_strided_slice %102 {offsets = [0, 128], sizes = [8, 128], strides = [1, 1]} : vector<8x512xf32> to vector<8x128xf32>
    %cst_65 = arith.constant 5.000000e-01 : f32
    %112 = vector.broadcast %cst_65 : f32 to vector<8x128xf32>
    %113 = arith.mulf %112, %111 : vector<8x128xf32>
    %114 = math.tanh %113 : vector<8x128xf32>
    %cst_66 = arith.constant 5.000000e-01 : f32
    %115 = vector.broadcast %cst_66 : f32 to vector<8x128xf32>
    %116 = arith.mulf %115, %114 : vector<8x128xf32>
    %cst_67 = arith.constant 5.000000e-01 : f32
    %117 = vector.broadcast %cst_67 : f32 to vector<8x128xf32>
    %118 = arith.addf %116, %117 : vector<8x128xf32>
    %119 = vector.extract_strided_slice %102 {offsets = [0, 256], sizes = [8, 128], strides = [1, 1]} : vector<8x512xf32> to vector<8x128xf32>
    %120 = math.tanh %119 : vector<8x128xf32>
    %121 = vector.extract_strided_slice %102 {offsets = [0, 384], sizes = [8, 128], strides = [1, 1]} : vector<8x512xf32> to vector<8x128xf32>
    %cst_68 = arith.constant 5.000000e-01 : f32
    %122 = vector.broadcast %cst_68 : f32 to vector<8x128xf32>
    %123 = arith.mulf %122, %121 : vector<8x128xf32>
    %124 = math.tanh %123 : vector<8x128xf32>
    %cst_69 = arith.constant 5.000000e-01 : f32
    %125 = vector.broadcast %cst_69 : f32 to vector<8x128xf32>
    %126 = arith.mulf %125, %124 : vector<8x128xf32>
    %cst_70 = arith.constant 5.000000e-01 : f32
    %127 = vector.broadcast %cst_70 : f32 to vector<8x128xf32>
    %128 = arith.addf %126, %127 : vector<8x128xf32>
    %129 = arith.mulf %118, %53 : vector<8x128xf32>
    %130 = arith.mulf %110, %120 : vector<8x128xf32>
    %131 = arith.addf %129, %130 : vector<8x128xf32>
    %132 = math.tanh %131 : vector<8x128xf32>
    %133 = arith.mulf %128, %132 : vector<8x128xf32>
    %c0_71 = arith.constant 0 : index
    %c0_72 = arith.constant 0 : index
    %134 = vector.load %arg6[%c0_71, %c0_72] : memref<128x512xf32, #tpu.memory_space<vmem>>, vector<128x512xf32>
    %cst_73 = arith.constant dense<0.000000e+00> : vector<8x512xf32>
    %135 = tpu.matmul %133, %134, %cst_73 {dimension_numbers = #tpu.dot_dimension_numbers<[1], [0], [0], [1], [0, 0, 1, 1], [], []>} : vector<8x128xf32>, vector<128x512xf32>, vector<8x512xf32> -> vector<8x512xf32>
    %c0_74 = arith.constant 0 : index
    %c0_75 = arith.constant 0 : index
    %136 = vector.load %arg7[%c0_74, %c0_75] : memref<128x512xf32, #tpu.memory_space<vmem>>, vector<128x512xf32>
    %cst_76 = arith.constant dense<0.000000e+00> : vector<8x512xf32>
    %137 = tpu.matmul %94, %136, %cst_76 {dimension_numbers = #tpu.dot_dimension_numbers<[1], [0], [0], [1], [0, 0, 1, 1], [], []>} : vector<8x128xf32>, vector<128x512xf32>, vector<8x512xf32> -> vector<8x512xf32>
    %138 = arith.addf %135, %137 : vector<8x512xf32>
    %c0_77 = arith.constant 0 : index
    %c0_78 = arith.constant 0 : index
    %139 = vector.load %arg8[%c0_77, %c0_78] : memref<1x512xf32, #tpu.memory_space<vmem>>, vector<1x512xf32>
    %140 = vector.broadcast %139 : vector<1x512xf32> to vector<8x512xf32>
    %141 = arith.addf %138, %140 : vector<8x512xf32>
    %142 = vector.extract_strided_slice %141 {offsets = [0, 0], sizes = [8, 128], strides = [1, 1]} : vector<8x512xf32> to vector<8x128xf32>
    %cst_79 = arith.constant 5.000000e-01 : f32
    %143 = vector.broadcast %cst_79 : f32 to vector<8x128xf32>
    %144 = arith.mulf %143, %142 : vector<8x128xf32>
    %145 = math.tanh %144 : vector<8x128xf32>
    %cst_80 = arith.constant 5.000000e-01 : f32
    %146 = vector.broadcast %cst_80 : f32 to vector<8x128xf32>
    %147 = arith.mulf %146, %145 : vector<8x128xf32>
    %cst_81 = arith.constant 5.000000e-01 : f32
    %148 = vector.broadcast %cst_81 : f32 to vector<8x128xf32>
    %149 = arith.addf %147, %148 : vector<8x128xf32>
    %150 = vector.extract_strided_slice %141 {offsets = [0, 128], sizes = [8, 128], strides = [1, 1]} : vector<8x512xf32> to vector<8x128xf32>
    %cst_82 = arith.constant 5.000000e-01 : f32
    %151 = vector.broadcast %cst_82 : f32 to vector<8x128xf32>
    %152 = arith.mulf %151, %150 : vector<8x128xf32>
    %153 = math.tanh %152 : vector<8x128xf32>
    %cst_83 = arith.constant 5.000000e-01 : f32
    %154 = vector.broadcast %cst_83 : f32 to vector<8x128xf32>
    %155 = arith.mulf %154, %153 : vector<8x128xf32>
    %cst_84 = arith.constant 5.000000e-01 : f32
    %156 = vector.broadcast %cst_84 : f32 to vector<8x128xf32>
    %157 = arith.addf %155, %156 : vector<8x128xf32>
    %158 = vector.extract_strided_slice %141 {offsets = [0, 256], sizes = [8, 128], strides = [1, 1]} : vector<8x512xf32> to vector<8x128xf32>
    %159 = math.tanh %158 : vector<8x128xf32>
    %160 = vector.extract_strided_slice %141 {offsets = [0, 384], sizes = [8, 128], strides = [1, 1]} : vector<8x512xf32> to vector<8x128xf32>
    %cst_85 = arith.constant 5.000000e-01 : f32
    %161 = vector.broadcast %cst_85 : f32 to vector<8x128xf32>
    %162 = arith.mulf %161, %160 : vector<8x128xf32>
    %163 = math.tanh %162 : vector<8x128xf32>
    %cst_86 = arith.constant 5.000000e-01 : f32
    %164 = vector.broadcast %cst_86 : f32 to vector<8x128xf32>
    %165 = arith.mulf %164, %163 : vector<8x128xf32>
    %cst_87 = arith.constant 5.000000e-01 : f32
    %166 = vector.broadcast %cst_87 : f32 to vector<8x128xf32>
    %167 = arith.addf %165, %166 : vector<8x128xf32>
    %168 = arith.mulf %157, %92 : vector<8x128xf32>
    %169 = arith.mulf %149, %159 : vector<8x128xf32>
    %170 = arith.addf %168, %169 : vector<8x128xf32>
    %171 = math.tanh %170 : vector<8x128xf32>
    %172 = arith.mulf %167, %171 : vector<8x128xf32>
    %c0_88 = arith.constant 0 : index
    %c1_89 = arith.constant 1 : index
    %c0_90 = arith.constant 0 : index
    %173 = vector.load %arg15[%c0_88, %c1_89, %c0_90] : memref<8x8x128xf32, #tpu.memory_space<vmem>>, vector<8x1x128xf32>
    %174 = vector.shape_cast %173 : vector<8x1x128xf32> to vector<8x128xf32>
    %175 = vector.shape_cast %172 : vector<8x128xf32> to vector<8x1x128xf32>
    tpu.vector_store %arg15[%c0_88, %c1_89, %c0_90], %175 {strides = array<i32>} : memref<8x8x128xf32, #tpu.memory_space<vmem>>, vector<8x1x128xf32>,
    %c0_91 = arith.constant 0 : index
    %c2 = arith.constant 2 : index
    %c0_92 = arith.constant 0 : index
    %176 = vector.load %arg14[%c0_91, %c2, %c0_92] : memref<8x8x512xf32, #tpu.memory_space<vmem>>, vector<8x1x512xf32>
    %177 = vector.shape_cast %176 : vector<8x1x512xf32> to vector<8x512xf32>
    %c0_93 = arith.constant 0 : index
    %c0_94 = arith.constant 0 : index
    %178 = vector.load %arg5[%c0_93, %c0_94] : memref<128x512xf32, #tpu.memory_space<vmem>>, vector<128x512xf32>
    %cst_95 = arith.constant dense<0.000000e+00> : vector<8x512xf32>
    %179 = tpu.matmul %133, %178, %cst_95 {dimension_numbers = #tpu.dot_dimension_numbers<[1], [0], [0], [1], [0, 0, 1, 1], [], []>} : vector<8x128xf32>, vector<128x512xf32>, vector<8x512xf32> -> vector<8x512xf32>
    %180 = arith.addf %177, %179 : vector<8x512xf32>
    %181 = vector.extract_strided_slice %180 {offsets = [0, 0], sizes = [8, 128], strides = [1, 1]} : vector<8x512xf32> to vector<8x128xf32>
    %cst_96 = arith.constant 5.000000e-01 : f32
    %182 = vector.broadcast %cst_96 : f32 to vector<8x128xf32>
    %183 = arith.mulf %182, %181 : vector<8x128xf32>
    %184 = math.tanh %183 : vector<8x128xf32>
    %cst_97 = arith.constant 5.000000e-01 : f32
    %185 = vector.broadcast %cst_97 : f32 to vector<8x128xf32>
    %186 = arith.mulf %185, %184 : vector<8x128xf32>
    %cst_98 = arith.constant 5.000000e-01 : f32
    %187 = vector.broadcast %cst_98 : f32 to vector<8x128xf32>
    %188 = arith.addf %186, %187 : vector<8x128xf32>
    %189 = vector.extract_strided_slice %180 {offsets = [0, 128], sizes = [8, 128], strides = [1, 1]} : vector<8x512xf32> to vector<8x128xf32>
    %cst_99 = arith.constant 5.000000e-01 : f32
    %190 = vector.broadcast %cst_99 : f32 to vector<8x128xf32>
    %191 = arith.mulf %190, %189 : vector<8x128xf32>
    %192 = math.tanh %191 : vector<8x128xf32>
    %cst_100 = arith.constant 5.000000e-01 : f32
    %193 = vector.broadcast %cst_100 : f32 to vector<8x128xf32>
    %194 = arith.mulf %193, %192 : vector<8x128xf32>
    %cst_101 = arith.constant 5.000000e-01 : f32
    %195 = vector.broadcast %cst_101 : f32 to vector<8x128xf32>
    %196 = arith.addf %194, %195 : vector<8x128xf32>
    %197 = vector.extract_strided_slice %180 {offsets = [0, 256], sizes = [8, 128], strides = [1, 1]} : vector<8x512xf32> to vector<8x128xf32>
    %198 = math.tanh %197 : vector<8x128xf32>
    %199 = vector.extract_strided_slice %180 {offsets = [0, 384], sizes = [8, 128], strides = [1, 1]} : vector<8x512xf32> to vector<8x128xf32>
    %cst_102 = arith.constant 5.000000e-01 : f32
    %200 = vector.broadcast %cst_102 : f32 to vector<8x128xf32>
    %201 = arith.mulf %200, %199 : vector<8x128xf32>
    %202 = math.tanh %201 : vector<8x128xf32>
    %cst_103 = arith.constant 5.000000e-01 : f32
    %203 = vector.broadcast %cst_103 : f32 to vector<8x128xf32>
    %204 = arith.mulf %203, %202 : vector<8x128xf32>
    %cst_104 = arith.constant 5.000000e-01 : f32
    %205 = vector.broadcast %cst_104 : f32 to vector<8x128xf32>
    %206 = arith.addf %204, %205 : vector<8x128xf32>
    %207 = arith.mulf %196, %131 : vector<8x128xf32>
    %208 = arith.mulf %188, %198 : vector<8x128xf32>
    %209 = arith.addf %207, %208 : vector<8x128xf32>
    %210 = math.tanh %209 : vector<8x128xf32>
    %211 = arith.mulf %206, %210 : vector<8x128xf32>
    %c0_105 = arith.constant 0 : index
    %c0_106 = arith.constant 0 : index
    %212 = vector.load %arg6[%c0_105, %c0_106] : memref<128x512xf32, #tpu.memory_space<vmem>>, vector<128x512xf32>
    %cst_107 = arith.constant dense<0.000000e+00> : vector<8x512xf32>
    %213 = tpu.matmul %211, %212, %cst_107 {dimension_numbers = #tpu.dot_dimension_numbers<[1], [0], [0], [1], [0, 0, 1, 1], [], []>} : vector<8x128xf32>, vector<128x512xf32>, vector<8x512xf32> -> vector<8x512xf32>
    %c0_108 = arith.constant 0 : index
    %c0_109 = arith.constant 0 : index
    %214 = vector.load %arg7[%c0_108, %c0_109] : memref<128x512xf32, #tpu.memory_space<vmem>>, vector<128x512xf32>
    %cst_110 = arith.constant dense<0.000000e+00> : vector<8x512xf32>
    %215 = tpu.matmul %172, %214, %cst_110 {dimension_numbers = #tpu.dot_dimension_numbers<[1], [0], [0], [1], [0, 0, 1, 1], [], []>} : vector<8x128xf32>, vector<128x512xf32>, vector<8x512xf32> -> vector<8x512xf32>
    %216 = arith.addf %213, %215 : vector<8x512xf32>
    %c0_111 = arith.constant 0 : index
    %c0_112 = arith.constant 0 : index
    %217 = vector.load %arg8[%c0_111, %c0_112] : memref<1x512xf32, #tpu.memory_space<vmem>>, vector<1x512xf32>
    %218 = vector.broadcast %217 : vector<1x512xf32> to vector<8x512xf32>
    %219 = arith.addf %216, %218 : vector<8x512xf32>
    %220 = vector.extract_strided_slice %219 {offsets = [0, 0], sizes = [8, 128], strides = [1, 1]} : vector<8x512xf32> to vector<8x128xf32>
    %cst_113 = arith.constant 5.000000e-01 : f32
    %221 = vector.broadcast %cst_113 : f32 to vector<8x128xf32>
    %222 = arith.mulf %221, %220 : vector<8x128xf32>
    %223 = math.tanh %222 : vector<8x128xf32>
    %cst_114 = arith.constant 5.000000e-01 : f32
    %224 = vector.broadcast %cst_114 : f32 to vector<8x128xf32>
    %225 = arith.mulf %224, %223 : vector<8x128xf32>
    %cst_115 = arith.constant 5.000000e-01 : f32
    %226 = vector.broadcast %cst_115 : f32 to vector<8x128xf32>
    %227 = arith.addf %225, %226 : vector<8x128xf32>
    %228 = vector.extract_strided_slice %219 {offsets = [0, 128], sizes = [8, 128], strides = [1, 1]} : vector<8x512xf32> to vector<8x128xf32>
    %cst_116 = arith.constant 5.000000e-01 : f32
    %229 = vector.broadcast %cst_116 : f32 to vector<8x128xf32>
    %230 = arith.mulf %229, %228 : vector<8x128xf32>
    %231 = math.tanh %230 : vector<8x128xf32>
    %cst_117 = arith.constant 5.000000e-01 : f32
    %232 = vector.broadcast %cst_117 : f32 to vector<8x128xf32>
    %233 = arith.mulf %232, %231 : vector<8x128xf32>
    %cst_118 = arith.constant 5.000000e-01 : f32
    %234 = vector.broadcast %cst_118 : f32 to vector<8x128xf32>
    %235 = arith.addf %233, %234 : vector<8x128xf32>
    %236 = vector.extract_strided_slice %219 {offsets = [0, 256], sizes = [8, 128], strides = [1, 1]} : vector<8x512xf32> to vector<8x128xf32>
    %237 = math.tanh %236 : vector<8x128xf32>
    %238 = vector.extract_strided_slice %219 {offsets = [0, 384], sizes = [8, 128], strides = [1, 1]} : vector<8x512xf32> to vector<8x128xf32>
    %cst_119 = arith.constant 5.000000e-01 : f32
    %239 = vector.broadcast %cst_119 : f32 to vector<8x128xf32>
    %240 = arith.mulf %239, %238 : vector<8x128xf32>
    %241 = math.tanh %240 : vector<8x128xf32>
    %cst_120 = arith.constant 5.000000e-01 : f32
    %242 = vector.broadcast %cst_120 : f32 to vector<8x128xf32>
    %243 = arith.mulf %242, %241 : vector<8x128xf32>
    %cst_121 = arith.constant 5.000000e-01 : f32
    %244 = vector.broadcast %cst_121 : f32 to vector<8x128xf32>
    %245 = arith.addf %243, %244 : vector<8x128xf32>
    %246 = arith.mulf %235, %170 : vector<8x128xf32>
    %247 = arith.mulf %227, %237 : vector<8x128xf32>
    %248 = arith.addf %246, %247 : vector<8x128xf32>
    %249 = math.tanh %248 : vector<8x128xf32>
    %250 = arith.mulf %245, %249 : vector<8x128xf32>
    %c0_122 = arith.constant 0 : index
    %c2_123 = arith.constant 2 : index
    %c0_124 = arith.constant 0 : index
    %251 = vector.load %arg15[%c0_122, %c2_123, %c0_124] : memref<8x8x128xf32, #tpu.memory_space<vmem>>, vector<8x1x128xf32>
    %252 = vector.shape_cast %251 : vector<8x1x128xf32> to vector<8x128xf32>
    %253 = vector.shape_cast %250 : vector<8x128xf32> to vector<8x1x128xf32>
    tpu.vector_store %arg15[%c0_122, %c2_123, %c0_124], %253 {strides = array<i32>} : memref<8x8x128xf32, #tpu.memory_space<vmem>>, vector<8x1x128xf32>,
    %c0_125 = arith.constant 0 : index
    %c3 = arith.constant 3 : index
    %c0_126 = arith.constant 0 : index
    %254 = vector.load %arg14[%c0_125, %c3, %c0_126] : memref<8x8x512xf32, #tpu.memory_space<vmem>>, vector<8x1x512xf32>
    %255 = vector.shape_cast %254 : vector<8x1x512xf32> to vector<8x512xf32>
    %c0_127 = arith.constant 0 : index
    %c0_128 = arith.constant 0 : index
    %256 = vector.load %arg5[%c0_127, %c0_128] : memref<128x512xf32, #tpu.memory_space<vmem>>, vector<128x512xf32>
    %cst_129 = arith.constant dense<0.000000e+00> : vector<8x512xf32>
    %257 = tpu.matmul %211, %256, %cst_129 {dimension_numbers = #tpu.dot_dimension_numbers<[1], [0], [0], [1], [0, 0, 1, 1], [], []>} : vector<8x128xf32>, vector<128x512xf32>, vector<8x512xf32> -> vector<8x512xf32>
    %258 = arith.addf %255, %257 : vector<8x512xf32>
    %259 = vector.extract_strided_slice %258 {offsets = [0, 0], sizes = [8, 128], strides = [1, 1]} : vector<8x512xf32> to vector<8x128xf32>
    %cst_130 = arith.constant 5.000000e-01 : f32
    %260 = vector.broadcast %cst_130 : f32 to vector<8x128xf32>
    %261 = arith.mulf %260, %259 : vector<8x128xf32>
    %262 = math.tanh %261 : vector<8x128xf32>
    %cst_131 = arith.constant 5.000000e-01 : f32
    %263 = vector.broadcast %cst_131 : f32 to vector<8x128xf32>
    %264 = arith.mulf %263, %262 : vector<8x128xf32>
    %cst_132 = arith.constant 5.000000e-01 : f32
    %265 = vector.broadcast %cst_132 : f32 to vector<8x128xf32>
    %266 = arith.addf %264, %265 : vector<8x128xf32>
    %267 = vector.extract_strided_slice %258 {offsets = [0, 128], sizes = [8, 128], strides = [1, 1]} : vector<8x512xf32> to vector<8x128xf32>
    %cst_133 = arith.constant 5.000000e-01 : f32
    %268 = vector.broadcast %cst_133 : f32 to vector<8x128xf32>
    %269 = arith.mulf %268, %267 : vector<8x128xf32>
    %270 = math.tanh %269 : vector<8x128xf32>
    %cst_134 = arith.constant 5.000000e-01 : f32
    %271 = vector.broadcast %cst_134 : f32 to vector<8x128xf32>
    %272 = arith.mulf %271, %270 : vector<8x128xf32>
    %cst_135 = arith.constant 5.000000e-01 : f32
    %273 = vector.broadcast %cst_135 : f32 to vector<8x128xf32>
    %274 = arith.addf %272, %273 : vector<8x128xf32>
    %275 = vector.extract_strided_slice %258 {offsets = [0, 256], sizes = [8, 128], strides = [1, 1]} : vector<8x512xf32> to vector<8x128xf32>
    %276 = math.tanh %275 : vector<8x128xf32>
    %277 = vector.extract_strided_slice %258 {offsets = [0, 384], sizes = [8, 128], strides = [1, 1]} : vector<8x512xf32> to vector<8x128xf32>
    %cst_136 = arith.constant 5.000000e-01 : f32
    %278 = vector.broadcast %cst_136 : f32 to vector<8x128xf32>
    %279 = arith.mulf %278, %277 : vector<8x128xf32>
    %280 = math.tanh %279 : vector<8x128xf32>
    %cst_137 = arith.constant 5.000000e-01 : f32
    %281 = vector.broadcast %cst_137 : f32 to vector<8x128xf32>
    %282 = arith.mulf %281, %280 : vector<8x128xf32>
    %cst_138 = arith.constant 5.000000e-01 : f32
    %283 = vector.broadcast %cst_138 : f32 to vector<8x128xf32>
    %284 = arith.addf %282, %283 : vector<8x128xf32>
    %285 = arith.mulf %274, %209 : vector<8x128xf32>
    %286 = arith.mulf %266, %276 : vector<8x128xf32>
    %287 = arith.addf %285, %286 : vector<8x128xf32>
    %288 = math.tanh %287 : vector<8x128xf32>
    %289 = arith.mulf %284, %288 : vector<8x128xf32>
    %c0_139 = arith.constant 0 : index
    %c0_140 = arith.constant 0 : index
    %290 = vector.load %arg6[%c0_139, %c0_140] : memref<128x512xf32, #tpu.memory_space<vmem>>, vector<128x512xf32>
    %cst_141 = arith.constant dense<0.000000e+00> : vector<8x512xf32>
    %291 = tpu.matmul %289, %290, %cst_141 {dimension_numbers = #tpu.dot_dimension_numbers<[1], [0], [0], [1], [0, 0, 1, 1], [], []>} : vector<8x128xf32>, vector<128x512xf32>, vector<8x512xf32> -> vector<8x512xf32>
    %c0_142 = arith.constant 0 : index
    %c0_143 = arith.constant 0 : index
    %292 = vector.load %arg7[%c0_142, %c0_143] : memref<128x512xf32, #tpu.memory_space<vmem>>, vector<128x512xf32>
    %cst_144 = arith.constant dense<0.000000e+00> : vector<8x512xf32>
    %293 = tpu.matmul %250, %292, %cst_144 {dimension_numbers = #tpu.dot_dimension_numbers<[1], [0], [0], [1], [0, 0, 1, 1], [], []>} : vector<8x128xf32>, vector<128x512xf32>, vector<8x512xf32> -> vector<8x512xf32>
    %294 = arith.addf %291, %293 : vector<8x512xf32>
    %c0_145 = arith.constant 0 : index
    %c0_146 = arith.constant 0 : index
    %295 = vector.load %arg8[%c0_145, %c0_146] : memref<1x512xf32, #tpu.memory_space<vmem>>, vector<1x512xf32>
    %296 = vector.broadcast %295 : vector<1x512xf32> to vector<8x512xf32>
    %297 = arith.addf %294, %296 : vector<8x512xf32>
    %298 = vector.extract_strided_slice %297 {offsets = [0, 0], sizes = [8, 128], strides = [1, 1]} : vector<8x512xf32> to vector<8x128xf32>
    %cst_147 = arith.constant 5.000000e-01 : f32
    %299 = vector.broadcast %cst_147 : f32 to vector<8x128xf32>
    %300 = arith.mulf %299, %298 : vector<8x128xf32>
    %301 = math.tanh %300 : vector<8x128xf32>
    %cst_148 = arith.constant 5.000000e-01 : f32
    %302 = vector.broadcast %cst_148 : f32 to vector<8x128xf32>
    %303 = arith.mulf %302, %301 : vector<8x128xf32>
    %cst_149 = arith.constant 5.000000e-01 : f32
    %304 = vector.broadcast %cst_149 : f32 to vector<8x128xf32>
    %305 = arith.addf %303, %304 : vector<8x128xf32>
    %306 = vector.extract_strided_slice %297 {offsets = [0, 128], sizes = [8, 128], strides = [1, 1]} : vector<8x512xf32> to vector<8x128xf32>
    %cst_150 = arith.constant 5.000000e-01 : f32
    %307 = vector.broadcast %cst_150 : f32 to vector<8x128xf32>
    %308 = arith.mulf %307, %306 : vector<8x128xf32>
    %309 = math.tanh %308 : vector<8x128xf32>
    %cst_151 = arith.constant 5.000000e-01 : f32
    %310 = vector.broadcast %cst_151 : f32 to vector<8x128xf32>
    %311 = arith.mulf %310, %309 : vector<8x128xf32>
    %cst_152 = arith.constant 5.000000e-01 : f32
    %312 = vector.broadcast %cst_152 : f32 to vector<8x128xf32>
    %313 = arith.addf %311, %312 : vector<8x128xf32>
    %314 = vector.extract_strided_slice %297 {offsets = [0, 256], sizes = [8, 128], strides = [1, 1]} : vector<8x512xf32> to vector<8x128xf32>
    %315 = math.tanh %314 : vector<8x128xf32>
    %316 = vector.extract_strided_slice %297 {offsets = [0, 384], sizes = [8, 128], strides = [1, 1]} : vector<8x512xf32> to vector<8x128xf32>
    %cst_153 = arith.constant 5.000000e-01 : f32
    %317 = vector.broadcast %cst_153 : f32 to vector<8x128xf32>
    %318 = arith.mulf %317, %316 : vector<8x128xf32>
    %319 = math.tanh %318 : vector<8x128xf32>
    %cst_154 = arith.constant 5.000000e-01 : f32
    %320 = vector.broadcast %cst_154 : f32 to vector<8x128xf32>
    %321 = arith.mulf %320, %319 : vector<8x128xf32>
    %cst_155 = arith.constant 5.000000e-01 : f32
    %322 = vector.broadcast %cst_155 : f32 to vector<8x128xf32>
    %323 = arith.addf %321, %322 : vector<8x128xf32>
    %324 = arith.mulf %313, %248 : vector<8x128xf32>
    %325 = arith.mulf %305, %315 : vector<8x128xf32>
    %326 = arith.addf %324, %325 : vector<8x128xf32>
    %327 = math.tanh %326 : vector<8x128xf32>
    %328 = arith.mulf %323, %327 : vector<8x128xf32>
    %c0_156 = arith.constant 0 : index
    %c3_157 = arith.constant 3 : index
    %c0_158 = arith.constant 0 : index
    %329 = vector.load %arg15[%c0_156, %c3_157, %c0_158] : memref<8x8x128xf32, #tpu.memory_space<vmem>>, vector<8x1x128xf32>
    %330 = vector.shape_cast %329 : vector<8x1x128xf32> to vector<8x128xf32>
    %331 = vector.shape_cast %328 : vector<8x128xf32> to vector<8x1x128xf32>
    tpu.vector_store %arg15[%c0_156, %c3_157, %c0_158], %331 {strides = array<i32>} : memref<8x8x128xf32, #tpu.memory_space<vmem>>, vector<8x1x128xf32>,
    %c0_159 = arith.constant 0 : index
    %c4 = arith.constant 4 : index
    %c0_160 = arith.constant 0 : index
    %332 = vector.load %arg14[%c0_159, %c4, %c0_160] : memref<8x8x512xf32, #tpu.memory_space<vmem>>, vector<8x1x512xf32>
    %333 = vector.shape_cast %332 : vector<8x1x512xf32> to vector<8x512xf32>
    %c0_161 = arith.constant 0 : index
    %c0_162 = arith.constant 0 : index
    %334 = vector.load %arg5[%c0_161, %c0_162] : memref<128x512xf32, #tpu.memory_space<vmem>>, vector<128x512xf32>
    %cst_163 = arith.constant dense<0.000000e+00> : vector<8x512xf32>
    %335 = tpu.matmul %289, %334, %cst_163 {dimension_numbers = #tpu.dot_dimension_numbers<[1], [0], [0], [1], [0, 0, 1, 1], [], []>} : vector<8x128xf32>, vector<128x512xf32>, vector<8x512xf32> -> vector<8x512xf32>
    %336 = arith.addf %333, %335 : vector<8x512xf32>
    %337 = vector.extract_strided_slice %336 {offsets = [0, 0], sizes = [8, 128], strides = [1, 1]} : vector<8x512xf32> to vector<8x128xf32>
    %cst_164 = arith.constant 5.000000e-01 : f32
    %338 = vector.broadcast %cst_164 : f32 to vector<8x128xf32>
    %339 = arith.mulf %338, %337 : vector<8x128xf32>
    %340 = math.tanh %339 : vector<8x128xf32>
    %cst_165 = arith.constant 5.000000e-01 : f32
    %341 = vector.broadcast %cst_165 : f32 to vector<8x128xf32>
    %342 = arith.mulf %341, %340 : vector<8x128xf32>
    %cst_166 = arith.constant 5.000000e-01 : f32
    %343 = vector.broadcast %cst_166 : f32 to vector<8x128xf32>
    %344 = arith.addf %342, %343 : vector<8x128xf32>
    %345 = vector.extract_strided_slice %336 {offsets = [0, 128], sizes = [8, 128], strides = [1, 1]} : vector<8x512xf32> to vector<8x128xf32>
    %cst_167 = arith.constant 5.000000e-01 : f32
    %346 = vector.broadcast %cst_167 : f32 to vector<8x128xf32>
    %347 = arith.mulf %346, %345 : vector<8x128xf32>
    %348 = math.tanh %347 : vector<8x128xf32>
    %cst_168 = arith.constant 5.000000e-01 : f32
    %349 = vector.broadcast %cst_168 : f32 to vector<8x128xf32>
    %350 = arith.mulf %349, %348 : vector<8x128xf32>
    %cst_169 = arith.constant 5.000000e-01 : f32
    %351 = vector.broadcast %cst_169 : f32 to vector<8x128xf32>
    %352 = arith.addf %350, %351 : vector<8x128xf32>
    %353 = vector.extract_strided_slice %336 {offsets = [0, 256], sizes = [8, 128], strides = [1, 1]} : vector<8x512xf32> to vector<8x128xf32>
    %354 = math.tanh %353 : vector<8x128xf32>
    %355 = vector.extract_strided_slice %336 {offsets = [0, 384], sizes = [8, 128], strides = [1, 1]} : vector<8x512xf32> to vector<8x128xf32>
    %cst_170 = arith.constant 5.000000e-01 : f32
    %356 = vector.broadcast %cst_170 : f32 to vector<8x128xf32>
    %357 = arith.mulf %356, %355 : vector<8x128xf32>
    %358 = math.tanh %357 : vector<8x128xf32>
    %cst_171 = arith.constant 5.000000e-01 : f32
    %359 = vector.broadcast %cst_171 : f32 to vector<8x128xf32>
    %360 = arith.mulf %359, %358 : vector<8x128xf32>
    %cst_172 = arith.constant 5.000000e-01 : f32
    %361 = vector.broadcast %cst_172 : f32 to vector<8x128xf32>
    %362 = arith.addf %360, %361 : vector<8x128xf32>
    %363 = arith.mulf %352, %287 : vector<8x128xf32>
    %364 = arith.mulf %344, %354 : vector<8x128xf32>
    %365 = arith.addf %363, %364 : vector<8x128xf32>
    %366 = math.tanh %365 : vector<8x128xf32>
    %367 = arith.mulf %362, %366 : vector<8x128xf32>
    %c0_173 = arith.constant 0 : index
    %c0_174 = arith.constant 0 : index
    %368 = vector.load %arg6[%c0_173, %c0_174] : memref<128x512xf32, #tpu.memory_space<vmem>>, vector<128x512xf32>
    %cst_175 = arith.constant dense<0.000000e+00> : vector<8x512xf32>
    %369 = tpu.matmul %367, %368, %cst_175 {dimension_numbers = #tpu.dot_dimension_numbers<[1], [0], [0], [1], [0, 0, 1, 1], [], []>} : vector<8x128xf32>, vector<128x512xf32>, vector<8x512xf32> -> vector<8x512xf32>
    %c0_176 = arith.constant 0 : index
    %c0_177 = arith.constant 0 : index
    %370 = vector.load %arg7[%c0_176, %c0_177] : memref<128x512xf32, #tpu.memory_space<vmem>>, vector<128x512xf32>
    %cst_178 = arith.constant dense<0.000000e+00> : vector<8x512xf32>
    %371 = tpu.matmul %328, %370, %cst_178 {dimension_numbers = #tpu.dot_dimension_numbers<[1], [0], [0], [1], [0, 0, 1, 1], [], []>} : vector<8x128xf32>, vector<128x512xf32>, vector<8x512xf32> -> vector<8x512xf32>
    %372 = arith.addf %369, %371 : vector<8x512xf32>
    %c0_179 = arith.constant 0 : index
    %c0_180 = arith.constant 0 : index
    %373 = vector.load %arg8[%c0_179, %c0_180] : memref<1x512xf32, #tpu.memory_space<vmem>>, vector<1x512xf32>
    %374 = vector.broadcast %373 : vector<1x512xf32> to vector<8x512xf32>
    %375 = arith.addf %372, %374 : vector<8x512xf32>
    %376 = vector.extract_strided_slice %375 {offsets = [0, 0], sizes = [8, 128], strides = [1, 1]} : vector<8x512xf32> to vector<8x128xf32>
    %cst_181 = arith.constant 5.000000e-01 : f32
    %377 = vector.broadcast %cst_181 : f32 to vector<8x128xf32>
    %378 = arith.mulf %377, %376 : vector<8x128xf32>
    %379 = math.tanh %378 : vector<8x128xf32>
    %cst_182 = arith.constant 5.000000e-01 : f32
    %380 = vector.broadcast %cst_182 : f32 to vector<8x128xf32>
    %381 = arith.mulf %380, %379 : vector<8x128xf32>
    %cst_183 = arith.constant 5.000000e-01 : f32
    %382 = vector.broadcast %cst_183 : f32 to vector<8x128xf32>
    %383 = arith.addf %381, %382 : vector<8x128xf32>
    %384 = vector.extract_strided_slice %375 {offsets = [0, 128], sizes = [8, 128], strides = [1, 1]} : vector<8x512xf32> to vector<8x128xf32>
    %cst_184 = arith.constant 5.000000e-01 : f32
    %385 = vector.broadcast %cst_184 : f32 to vector<8x128xf32>
    %386 = arith.mulf %385, %384 : vector<8x128xf32>
    %387 = math.tanh %386 : vector<8x128xf32>
    %cst_185 = arith.constant 5.000000e-01 : f32
    %388 = vector.broadcast %cst_185 : f32 to vector<8x128xf32>
    %389 = arith.mulf %388, %387 : vector<8x128xf32>
    %cst_186 = arith.constant 5.000000e-01 : f32
    %390 = vector.broadcast %cst_186 : f32 to vector<8x128xf32>
    %391 = arith.addf %389, %390 : vector<8x128xf32>
    %392 = vector.extract_strided_slice %375 {offsets = [0, 256], sizes = [8, 128], strides = [1, 1]} : vector<8x512xf32> to vector<8x128xf32>
    %393 = math.tanh %392 : vector<8x128xf32>
    %394 = vector.extract_strided_slice %375 {offsets = [0, 384], sizes = [8, 128], strides = [1, 1]} : vector<8x512xf32> to vector<8x128xf32>
    %cst_187 = arith.constant 5.000000e-01 : f32
    %395 = vector.broadcast %cst_187 : f32 to vector<8x128xf32>
    %396 = arith.mulf %395, %394 : vector<8x128xf32>
    %397 = math.tanh %396 : vector<8x128xf32>
    %cst_188 = arith.constant 5.000000e-01 : f32
    %398 = vector.broadcast %cst_188 : f32 to vector<8x128xf32>
    %399 = arith.mulf %398, %397 : vector<8x128xf32>
    %cst_189 = arith.constant 5.000000e-01 : f32
    %400 = vector.broadcast %cst_189 : f32 to vector<8x128xf32>
    %401 = arith.addf %399, %400 : vector<8x128xf32>
    %402 = arith.mulf %391, %326 : vector<8x128xf32>
    %403 = arith.mulf %383, %393 : vector<8x128xf32>
    %404 = arith.addf %402, %403 : vector<8x128xf32>
    %405 = math.tanh %404 : vector<8x128xf32>
    %406 = arith.mulf %401, %405 : vector<8x128xf32>
    %c0_190 = arith.constant 0 : index
    %c4_191 = arith.constant 4 : index
    %c0_192 = arith.constant 0 : index
    %407 = vector.load %arg15[%c0_190, %c4_191, %c0_192] : memref<8x8x128xf32, #tpu.memory_space<vmem>>, vector<8x1x128xf32>
    %408 = vector.shape_cast %407 : vector<8x1x128xf32> to vector<8x128xf32>
    %409 = vector.shape_cast %406 : vector<8x128xf32> to vector<8x1x128xf32>
    tpu.vector_store %arg15[%c0_190, %c4_191, %c0_192], %409 {strides = array<i32>} : memref<8x8x128xf32, #tpu.memory_space<vmem>>, vector<8x1x128xf32>,
    %c0_193 = arith.constant 0 : index
    %c5 = arith.constant 5 : index
    %c0_194 = arith.constant 0 : index
    %410 = vector.load %arg14[%c0_193, %c5, %c0_194] : memref<8x8x512xf32, #tpu.memory_space<vmem>>, vector<8x1x512xf32>
    %411 = vector.shape_cast %410 : vector<8x1x512xf32> to vector<8x512xf32>
    %c0_195 = arith.constant 0 : index
    %c0_196 = arith.constant 0 : index
    %412 = vector.load %arg5[%c0_195, %c0_196] : memref<128x512xf32, #tpu.memory_space<vmem>>, vector<128x512xf32>
    %cst_197 = arith.constant dense<0.000000e+00> : vector<8x512xf32>
    %413 = tpu.matmul %367, %412, %cst_197 {dimension_numbers = #tpu.dot_dimension_numbers<[1], [0], [0], [1], [0, 0, 1, 1], [], []>} : vector<8x128xf32>, vector<128x512xf32>, vector<8x512xf32> -> vector<8x512xf32>
    %414 = arith.addf %411, %413 : vector<8x512xf32>
    %415 = vector.extract_strided_slice %414 {offsets = [0, 0], sizes = [8, 128], strides = [1, 1]} : vector<8x512xf32> to vector<8x128xf32>
    %cst_198 = arith.constant 5.000000e-01 : f32
    %416 = vector.broadcast %cst_198 : f32 to vector<8x128xf32>
    %417 = arith.mulf %416, %415 : vector<8x128xf32>
    %418 = math.tanh %417 : vector<8x128xf32>
    %cst_199 = arith.constant 5.000000e-01 : f32
    %419 = vector.broadcast %cst_199 : f32 to vector<8x128xf32>
    %420 = arith.mulf %419, %418 : vector<8x128xf32>
    %cst_200 = arith.constant 5.000000e-01 : f32
    %421 = vector.broadcast %cst_200 : f32 to vector<8x128xf32>
    %422 = arith.addf %420, %421 : vector<8x128xf32>
    %423 = vector.extract_strided_slice %414 {offsets = [0, 128], sizes = [8, 128], strides = [1, 1]} : vector<8x512xf32> to vector<8x128xf32>
    %cst_201 = arith.constant 5.000000e-01 : f32
    %424 = vector.broadcast %cst_201 : f32 to vector<8x128xf32>
    %425 = arith.mulf %424, %423 : vector<8x128xf32>
    %426 = math.tanh %425 : vector<8x128xf32>
    %cst_202 = arith.constant 5.000000e-01 : f32
    %427 = vector.broadcast %cst_202 : f32 to vector<8x128xf32>
    %428 = arith.mulf %427, %426 : vector<8x128xf32>
    %cst_203 = arith.constant 5.000000e-01 : f32
    %429 = vector.broadcast %cst_203 : f32 to vector<8x128xf32>
    %430 = arith.addf %428, %429 : vector<8x128xf32>
    %431 = vector.extract_strided_slice %414 {offsets = [0, 256], sizes = [8, 128], strides = [1, 1]} : vector<8x512xf32> to vector<8x128xf32>
    %432 = math.tanh %431 : vector<8x128xf32>
    %433 = vector.extract_strided_slice %414 {offsets = [0, 384], sizes = [8, 128], strides = [1, 1]} : vector<8x512xf32> to vector<8x128xf32>
    %cst_204 = arith.constant 5.000000e-01 : f32
    %434 = vector.broadcast %cst_204 : f32 to vector<8x128xf32>
    %435 = arith.mulf %434, %433 : vector<8x128xf32>
    %436 = math.tanh %435 : vector<8x128xf32>
    %cst_205 = arith.constant 5.000000e-01 : f32
    %437 = vector.broadcast %cst_205 : f32 to vector<8x128xf32>
    %438 = arith.mulf %437, %436 : vector<8x128xf32>
    %cst_206 = arith.constant 5.000000e-01 : f32
    %439 = vector.broadcast %cst_206 : f32 to vector<8x128xf32>
    %440 = arith.addf %438, %439 : vector<8x128xf32>
    %441 = arith.mulf %430, %365 : vector<8x128xf32>
    %442 = arith.mulf %422, %432 : vector<8x128xf32>
    %443 = arith.addf %441, %442 : vector<8x128xf32>
    %444 = math.tanh %443 : vector<8x128xf32>
    %445 = arith.mulf %440, %444 : vector<8x128xf32>
    %c0_207 = arith.constant 0 : index
    %c0_208 = arith.constant 0 : index
    %446 = vector.load %arg6[%c0_207, %c0_208] : memref<128x512xf32, #tpu.memory_space<vmem>>, vector<128x512xf32>
    %cst_209 = arith.constant dense<0.000000e+00> : vector<8x512xf32>
    %447 = tpu.matmul %445, %446, %cst_209 {dimension_numbers = #tpu.dot_dimension_numbers<[1], [0], [0], [1], [0, 0, 1, 1], [], []>} : vector<8x128xf32>, vector<128x512xf32>, vector<8x512xf32> -> vector<8x512xf32>
    %c0_210 = arith.constant 0 : index
    %c0_211 = arith.constant 0 : index
    %448 = vector.load %arg7[%c0_210, %c0_211] : memref<128x512xf32, #tpu.memory_space<vmem>>, vector<128x512xf32>
    %cst_212 = arith.constant dense<0.000000e+00> : vector<8x512xf32>
    %449 = tpu.matmul %406, %448, %cst_212 {dimension_numbers = #tpu.dot_dimension_numbers<[1], [0], [0], [1], [0, 0, 1, 1], [], []>} : vector<8x128xf32>, vector<128x512xf32>, vector<8x512xf32> -> vector<8x512xf32>
    %450 = arith.addf %447, %449 : vector<8x512xf32>
    %c0_213 = arith.constant 0 : index
    %c0_214 = arith.constant 0 : index
    %451 = vector.load %arg8[%c0_213, %c0_214] : memref<1x512xf32, #tpu.memory_space<vmem>>, vector<1x512xf32>
    %452 = vector.broadcast %451 : vector<1x512xf32> to vector<8x512xf32>
    %453 = arith.addf %450, %452 : vector<8x512xf32>
    %454 = vector.extract_strided_slice %453 {offsets = [0, 0], sizes = [8, 128], strides = [1, 1]} : vector<8x512xf32> to vector<8x128xf32>
    %cst_215 = arith.constant 5.000000e-01 : f32
    %455 = vector.broadcast %cst_215 : f32 to vector<8x128xf32>
    %456 = arith.mulf %455, %454 : vector<8x128xf32>
    %457 = math.tanh %456 : vector<8x128xf32>
    %cst_216 = arith.constant 5.000000e-01 : f32
    %458 = vector.broadcast %cst_216 : f32 to vector<8x128xf32>
    %459 = arith.mulf %458, %457 : vector<8x128xf32>
    %cst_217 = arith.constant 5.000000e-01 : f32
    %460 = vector.broadcast %cst_217 : f32 to vector<8x128xf32>
    %461 = arith.addf %459, %460 : vector<8x128xf32>
    %462 = vector.extract_strided_slice %453 {offsets = [0, 128], sizes = [8, 128], strides = [1, 1]} : vector<8x512xf32> to vector<8x128xf32>
    %cst_218 = arith.constant 5.000000e-01 : f32
    %463 = vector.broadcast %cst_218 : f32 to vector<8x128xf32>
    %464 = arith.mulf %463, %462 : vector<8x128xf32>
    %465 = math.tanh %464 : vector<8x128xf32>
    %cst_219 = arith.constant 5.000000e-01 : f32
    %466 = vector.broadcast %cst_219 : f32 to vector<8x128xf32>
    %467 = arith.mulf %466, %465 : vector<8x128xf32>
    %cst_220 = arith.constant 5.000000e-01 : f32
    %468 = vector.broadcast %cst_220 : f32 to vector<8x128xf32>
    %469 = arith.addf %467, %468 : vector<8x128xf32>
    %470 = vector.extract_strided_slice %453 {offsets = [0, 256], sizes = [8, 128], strides = [1, 1]} : vector<8x512xf32> to vector<8x128xf32>
    %471 = math.tanh %470 : vector<8x128xf32>
    %472 = vector.extract_strided_slice %453 {offsets = [0, 384], sizes = [8, 128], strides = [1, 1]} : vector<8x512xf32> to vector<8x128xf32>
    %cst_221 = arith.constant 5.000000e-01 : f32
    %473 = vector.broadcast %cst_221 : f32 to vector<8x128xf32>
    %474 = arith.mulf %473, %472 : vector<8x128xf32>
    %475 = math.tanh %474 : vector<8x128xf32>
    %cst_222 = arith.constant 5.000000e-01 : f32
    %476 = vector.broadcast %cst_222 : f32 to vector<8x128xf32>
    %477 = arith.mulf %476, %475 : vector<8x128xf32>
    %cst_223 = arith.constant 5.000000e-01 : f32
    %478 = vector.broadcast %cst_223 : f32 to vector<8x128xf32>
    %479 = arith.addf %477, %478 : vector<8x128xf32>
    %480 = arith.mulf %469, %404 : vector<8x128xf32>
    %481 = arith.mulf %461, %471 : vector<8x128xf32>
    %482 = arith.addf %480, %481 : vector<8x128xf32>
    %483 = math.tanh %482 : vector<8x128xf32>
    %484 = arith.mulf %479, %483 : vector<8x128xf32>
    %c0_224 = arith.constant 0 : index
    %c5_225 = arith.constant 5 : index
    %c0_226 = arith.constant 0 : index
    %485 = vector.load %arg15[%c0_224, %c5_225, %c0_226] : memref<8x8x128xf32, #tpu.memory_space<vmem>>, vector<8x1x128xf32>
    %486 = vector.shape_cast %485 : vector<8x1x128xf32> to vector<8x128xf32>
    %487 = vector.shape_cast %484 : vector<8x128xf32> to vector<8x1x128xf32>
    tpu.vector_store %arg15[%c0_224, %c5_225, %c0_226], %487 {strides = array<i32>} : memref<8x8x128xf32, #tpu.memory_space<vmem>>, vector<8x1x128xf32>,
    %c0_227 = arith.constant 0 : index
    %c6 = arith.constant 6 : index
    %c0_228 = arith.constant 0 : index
    %488 = vector.load %arg14[%c0_227, %c6, %c0_228] : memref<8x8x512xf32, #tpu.memory_space<vmem>>, vector<8x1x512xf32>
    %489 = vector.shape_cast %488 : vector<8x1x512xf32> to vector<8x512xf32>
    %c0_229 = arith.constant 0 : index
    %c0_230 = arith.constant 0 : index
    %490 = vector.load %arg5[%c0_229, %c0_230] : memref<128x512xf32, #tpu.memory_space<vmem>>, vector<128x512xf32>
    %cst_231 = arith.constant dense<0.000000e+00> : vector<8x512xf32>
    %491 = tpu.matmul %445, %490, %cst_231 {dimension_numbers = #tpu.dot_dimension_numbers<[1], [0], [0], [1], [0, 0, 1, 1], [], []>} : vector<8x128xf32>, vector<128x512xf32>, vector<8x512xf32> -> vector<8x512xf32>
    %492 = arith.addf %489, %491 : vector<8x512xf32>
    %493 = vector.extract_strided_slice %492 {offsets = [0, 0], sizes = [8, 128], strides = [1, 1]} : vector<8x512xf32> to vector<8x128xf32>
    %cst_232 = arith.constant 5.000000e-01 : f32
    %494 = vector.broadcast %cst_232 : f32 to vector<8x128xf32>
    %495 = arith.mulf %494, %493 : vector<8x128xf32>
    %496 = math.tanh %495 : vector<8x128xf32>
    %cst_233 = arith.constant 5.000000e-01 : f32
    %497 = vector.broadcast %cst_233 : f32 to vector<8x128xf32>
    %498 = arith.mulf %497, %496 : vector<8x128xf32>
    %cst_234 = arith.constant 5.000000e-01 : f32
    %499 = vector.broadcast %cst_234 : f32 to vector<8x128xf32>
    %500 = arith.addf %498, %499 : vector<8x128xf32>
    %501 = vector.extract_strided_slice %492 {offsets = [0, 128], sizes = [8, 128], strides = [1, 1]} : vector<8x512xf32> to vector<8x128xf32>
    %cst_235 = arith.constant 5.000000e-01 : f32
    %502 = vector.broadcast %cst_235 : f32 to vector<8x128xf32>
    %503 = arith.mulf %502, %501 : vector<8x128xf32>
    %504 = math.tanh %503 : vector<8x128xf32>
    %cst_236 = arith.constant 5.000000e-01 : f32
    %505 = vector.broadcast %cst_236 : f32 to vector<8x128xf32>
    %506 = arith.mulf %505, %504 : vector<8x128xf32>
    %cst_237 = arith.constant 5.000000e-01 : f32
    %507 = vector.broadcast %cst_237 : f32 to vector<8x128xf32>
    %508 = arith.addf %506, %507 : vector<8x128xf32>
    %509 = vector.extract_strided_slice %492 {offsets = [0, 256], sizes = [8, 128], strides = [1, 1]} : vector<8x512xf32> to vector<8x128xf32>
    %510 = math.tanh %509 : vector<8x128xf32>
    %511 = vector.extract_strided_slice %492 {offsets = [0, 384], sizes = [8, 128], strides = [1, 1]} : vector<8x512xf32> to vector<8x128xf32>
    %cst_238 = arith.constant 5.000000e-01 : f32
    %512 = vector.broadcast %cst_238 : f32 to vector<8x128xf32>
    %513 = arith.mulf %512, %511 : vector<8x128xf32>
    %514 = math.tanh %513 : vector<8x128xf32>
    %cst_239 = arith.constant 5.000000e-01 : f32
    %515 = vector.broadcast %cst_239 : f32 to vector<8x128xf32>
    %516 = arith.mulf %515, %514 : vector<8x128xf32>
    %cst_240 = arith.constant 5.000000e-01 : f32
    %517 = vector.broadcast %cst_240 : f32 to vector<8x128xf32>
    %518 = arith.addf %516, %517 : vector<8x128xf32>
    %519 = arith.mulf %508, %443 : vector<8x128xf32>
    %520 = arith.mulf %500, %510 : vector<8x128xf32>
    %521 = arith.addf %519, %520 : vector<8x128xf32>
    %522 = math.tanh %521 : vector<8x128xf32>
    %523 = arith.mulf %518, %522 : vector<8x128xf32>
    %c0_241 = arith.constant 0 : index
    %c0_242 = arith.constant 0 : index
    %524 = vector.load %arg6[%c0_241, %c0_242] : memref<128x512xf32, #tpu.memory_space<vmem>>, vector<128x512xf32>
    %cst_243 = arith.constant dense<0.000000e+00> : vector<8x512xf32>
    %525 = tpu.matmul %523, %524, %cst_243 {dimension_numbers = #tpu.dot_dimension_numbers<[1], [0], [0], [1], [0, 0, 1, 1], [], []>} : vector<8x128xf32>, vector<128x512xf32>, vector<8x512xf32> -> vector<8x512xf32>
    %c0_244 = arith.constant 0 : index
    %c0_245 = arith.constant 0 : index
    %526 = vector.load %arg7[%c0_244, %c0_245] : memref<128x512xf32, #tpu.memory_space<vmem>>, vector<128x512xf32>
    %cst_246 = arith.constant dense<0.000000e+00> : vector<8x512xf32>
    %527 = tpu.matmul %484, %526, %cst_246 {dimension_numbers = #tpu.dot_dimension_numbers<[1], [0], [0], [1], [0, 0, 1, 1], [], []>} : vector<8x128xf32>, vector<128x512xf32>, vector<8x512xf32> -> vector<8x512xf32>
    %528 = arith.addf %525, %527 : vector<8x512xf32>
    %c0_247 = arith.constant 0 : index
    %c0_248 = arith.constant 0 : index
    %529 = vector.load %arg8[%c0_247, %c0_248] : memref<1x512xf32, #tpu.memory_space<vmem>>, vector<1x512xf32>
    %530 = vector.broadcast %529 : vector<1x512xf32> to vector<8x512xf32>
    %531 = arith.addf %528, %530 : vector<8x512xf32>
    %532 = vector.extract_strided_slice %531 {offsets = [0, 0], sizes = [8, 128], strides = [1, 1]} : vector<8x512xf32> to vector<8x128xf32>
    %cst_249 = arith.constant 5.000000e-01 : f32
    %533 = vector.broadcast %cst_249 : f32 to vector<8x128xf32>
    %534 = arith.mulf %533, %532 : vector<8x128xf32>
    %535 = math.tanh %534 : vector<8x128xf32>
    %cst_250 = arith.constant 5.000000e-01 : f32
    %536 = vector.broadcast %cst_250 : f32 to vector<8x128xf32>
    %537 = arith.mulf %536, %535 : vector<8x128xf32>
    %cst_251 = arith.constant 5.000000e-01 : f32
    %538 = vector.broadcast %cst_251 : f32 to vector<8x128xf32>
    %539 = arith.addf %537, %538 : vector<8x128xf32>
    %540 = vector.extract_strided_slice %531 {offsets = [0, 128], sizes = [8, 128], strides = [1, 1]} : vector<8x512xf32> to vector<8x128xf32>
    %cst_252 = arith.constant 5.000000e-01 : f32
    %541 = vector.broadcast %cst_252 : f32 to vector<8x128xf32>
    %542 = arith.mulf %541, %540 : vector<8x128xf32>
    %543 = math.tanh %542 : vector<8x128xf32>
    %cst_253 = arith.constant 5.000000e-01 : f32
    %544 = vector.broadcast %cst_253 : f32 to vector<8x128xf32>
    %545 = arith.mulf %544, %543 : vector<8x128xf32>
    %cst_254 = arith.constant 5.000000e-01 : f32
    %546 = vector.broadcast %cst_254 : f32 to vector<8x128xf32>
    %547 = arith.addf %545, %546 : vector<8x128xf32>
    %548 = vector.extract_strided_slice %531 {offsets = [0, 256], sizes = [8, 128], strides = [1, 1]} : vector<8x512xf32> to vector<8x128xf32>
    %549 = math.tanh %548 : vector<8x128xf32>
    %550 = vector.extract_strided_slice %531 {offsets = [0, 384], sizes = [8, 128], strides = [1, 1]} : vector<8x512xf32> to vector<8x128xf32>
    %cst_255 = arith.constant 5.000000e-01 : f32
    %551 = vector.broadcast %cst_255 : f32 to vector<8x128xf32>
    %552 = arith.mulf %551, %550 : vector<8x128xf32>
    %553 = math.tanh %552 : vector<8x128xf32>
    %cst_256 = arith.constant 5.000000e-01 : f32
    %554 = vector.broadcast %cst_256 : f32 to vector<8x128xf32>
    %555 = arith.mulf %554, %553 : vector<8x128xf32>
    %cst_257 = arith.constant 5.000000e-01 : f32
    %556 = vector.broadcast %cst_257 : f32 to vector<8x128xf32>
    %557 = arith.addf %555, %556 : vector<8x128xf32>
    %558 = arith.mulf %547, %482 : vector<8x128xf32>
    %559 = arith.mulf %539, %549 : vector<8x128xf32>
    %560 = arith.addf %558, %559 : vector<8x128xf32>
    %561 = math.tanh %560 : vector<8x128xf32>
    %562 = arith.mulf %557, %561 : vector<8x128xf32>
    %c0_258 = arith.constant 0 : index
    %c6_259 = arith.constant 6 : index
    %c0_260 = arith.constant 0 : index
    %563 = vector.load %arg15[%c0_258, %c6_259, %c0_260] : memref<8x8x128xf32, #tpu.memory_space<vmem>>, vector<8x1x128xf32>
    %564 = vector.shape_cast %563 : vector<8x1x128xf32> to vector<8x128xf32>
    %565 = vector.shape_cast %562 : vector<8x128xf32> to vector<8x1x128xf32>
    tpu.vector_store %arg15[%c0_258, %c6_259, %c0_260], %565 {strides = array<i32>} : memref<8x8x128xf32, #tpu.memory_space<vmem>>, vector<8x1x128xf32>,
    %c0_261 = arith.constant 0 : index
    %c7 = arith.constant 7 : index
    %c0_262 = arith.constant 0 : index
    %566 = vector.load %arg14[%c0_261, %c7, %c0_262] : memref<8x8x512xf32, #tpu.memory_space<vmem>>, vector<8x1x512xf32>
    %567 = vector.shape_cast %566 : vector<8x1x512xf32> to vector<8x512xf32>
    %c0_263 = arith.constant 0 : index
    %c0_264 = arith.constant 0 : index
    %568 = vector.load %arg5[%c0_263, %c0_264] : memref<128x512xf32, #tpu.memory_space<vmem>>, vector<128x512xf32>
    %cst_265 = arith.constant dense<0.000000e+00> : vector<8x512xf32>
    %569 = tpu.matmul %523, %568, %cst_265 {dimension_numbers = #tpu.dot_dimension_numbers<[1], [0], [0], [1], [0, 0, 1, 1], [], []>} : vector<8x128xf32>, vector<128x512xf32>, vector<8x512xf32> -> vector<8x512xf32>
    %570 = arith.addf %567, %569 : vector<8x512xf32>
    %571 = vector.extract_strided_slice %570 {offsets = [0, 0], sizes = [8, 128], strides = [1, 1]} : vector<8x512xf32> to vector<8x128xf32>
    %cst_266 = arith.constant 5.000000e-01 : f32
    %572 = vector.broadcast %cst_266 : f32 to vector<8x128xf32>
    %573 = arith.mulf %572, %571 : vector<8x128xf32>
    %574 = math.tanh %573 : vector<8x128xf32>
    %cst_267 = arith.constant 5.000000e-01 : f32
    %575 = vector.broadcast %cst_267 : f32 to vector<8x128xf32>
    %576 = arith.mulf %575, %574 : vector<8x128xf32>
    %cst_268 = arith.constant 5.000000e-01 : f32
    %577 = vector.broadcast %cst_268 : f32 to vector<8x128xf32>
    %578 = arith.addf %576, %577 : vector<8x128xf32>
    %579 = vector.extract_strided_slice %570 {offsets = [0, 128], sizes = [8, 128], strides = [1, 1]} : vector<8x512xf32> to vector<8x128xf32>
    %cst_269 = arith.constant 5.000000e-01 : f32
    %580 = vector.broadcast %cst_269 : f32 to vector<8x128xf32>
    %581 = arith.mulf %580, %579 : vector<8x128xf32>
    %582 = math.tanh %581 : vector<8x128xf32>
    %cst_270 = arith.constant 5.000000e-01 : f32
    %583 = vector.broadcast %cst_270 : f32 to vector<8x128xf32>
    %584 = arith.mulf %583, %582 : vector<8x128xf32>
    %cst_271 = arith.constant 5.000000e-01 : f32
    %585 = vector.broadcast %cst_271 : f32 to vector<8x128xf32>
    %586 = arith.addf %584, %585 : vector<8x128xf32>
    %587 = vector.extract_strided_slice %570 {offsets = [0, 256], sizes = [8, 128], strides = [1, 1]} : vector<8x512xf32> to vector<8x128xf32>
    %588 = math.tanh %587 : vector<8x128xf32>
    %589 = vector.extract_strided_slice %570 {offsets = [0, 384], sizes = [8, 128], strides = [1, 1]} : vector<8x512xf32> to vector<8x128xf32>
    %cst_272 = arith.constant 5.000000e-01 : f32
    %590 = vector.broadcast %cst_272 : f32 to vector<8x128xf32>
    %591 = arith.mulf %590, %589 : vector<8x128xf32>
    %592 = math.tanh %591 : vector<8x128xf32>
    %cst_273 = arith.constant 5.000000e-01 : f32
    %593 = vector.broadcast %cst_273 : f32 to vector<8x128xf32>
    %594 = arith.mulf %593, %592 : vector<8x128xf32>
    %cst_274 = arith.constant 5.000000e-01 : f32
    %595 = vector.broadcast %cst_274 : f32 to vector<8x128xf32>
    %596 = arith.addf %594, %595 : vector<8x128xf32>
    %597 = arith.mulf %586, %521 : vector<8x128xf32>
    %598 = arith.mulf %578, %588 : vector<8x128xf32>
    %599 = arith.addf %597, %598 : vector<8x128xf32>
    %600 = math.tanh %599 : vector<8x128xf32>
    %601 = arith.mulf %596, %600 : vector<8x128xf32>
    %c0_275 = arith.constant 0 : index
    %c0_276 = arith.constant 0 : index
    %602 = vector.load %arg6[%c0_275, %c0_276] : memref<128x512xf32, #tpu.memory_space<vmem>>, vector<128x512xf32>
    %cst_277 = arith.constant dense<0.000000e+00> : vector<8x512xf32>
    %603 = tpu.matmul %601, %602, %cst_277 {dimension_numbers = #tpu.dot_dimension_numbers<[1], [0], [0], [1], [0, 0, 1, 1], [], []>} : vector<8x128xf32>, vector<128x512xf32>, vector<8x512xf32> -> vector<8x512xf32>
    %c0_278 = arith.constant 0 : index
    %c0_279 = arith.constant 0 : index
    %604 = vector.load %arg7[%c0_278, %c0_279] : memref<128x512xf32, #tpu.memory_space<vmem>>, vector<128x512xf32>
    %cst_280 = arith.constant dense<0.000000e+00> : vector<8x512xf32>
    %605 = tpu.matmul %562, %604, %cst_280 {dimension_numbers = #tpu.dot_dimension_numbers<[1], [0], [0], [1], [0, 0, 1, 1], [], []>} : vector<8x128xf32>, vector<128x512xf32>, vector<8x512xf32> -> vector<8x512xf32>
    %606 = arith.addf %603, %605 : vector<8x512xf32>
    %c0_281 = arith.constant 0 : index
    %c0_282 = arith.constant 0 : index
    %607 = vector.load %arg8[%c0_281, %c0_282] : memref<1x512xf32, #tpu.memory_space<vmem>>, vector<1x512xf32>
    %608 = vector.broadcast %607 : vector<1x512xf32> to vector<8x512xf32>
    %609 = arith.addf %606, %608 : vector<8x512xf32>
    %610 = vector.extract_strided_slice %609 {offsets = [0, 0], sizes = [8, 128], strides = [1, 1]} : vector<8x512xf32> to vector<8x128xf32>
    %cst_283 = arith.constant 5.000000e-01 : f32
    %611 = vector.broadcast %cst_283 : f32 to vector<8x128xf32>
    %612 = arith.mulf %611, %610 : vector<8x128xf32>
    %613 = math.tanh %612 : vector<8x128xf32>
    %cst_284 = arith.constant 5.000000e-01 : f32
    %614 = vector.broadcast %cst_284 : f32 to vector<8x128xf32>
    %615 = arith.mulf %614, %613 : vector<8x128xf32>
    %cst_285 = arith.constant 5.000000e-01 : f32
    %616 = vector.broadcast %cst_285 : f32 to vector<8x128xf32>
    %617 = arith.addf %615, %616 : vector<8x128xf32>
    %618 = vector.extract_strided_slice %609 {offsets = [0, 128], sizes = [8, 128], strides = [1, 1]} : vector<8x512xf32> to vector<8x128xf32>
    %cst_286 = arith.constant 5.000000e-01 : f32
    %619 = vector.broadcast %cst_286 : f32 to vector<8x128xf32>
    %620 = arith.mulf %619, %618 : vector<8x128xf32>
    %621 = math.tanh %620 : vector<8x128xf32>
    %cst_287 = arith.constant 5.000000e-01 : f32
    %622 = vector.broadcast %cst_287 : f32 to vector<8x128xf32>
    %623 = arith.mulf %622, %621 : vector<8x128xf32>
    %cst_288 = arith.constant 5.000000e-01 : f32
    %624 = vector.broadcast %cst_288 : f32 to vector<8x128xf32>
    %625 = arith.addf %623, %624 : vector<8x128xf32>
    %626 = vector.extract_strided_slice %609 {offsets = [0, 256], sizes = [8, 128], strides = [1, 1]} : vector<8x512xf32> to vector<8x128xf32>
    %627 = math.tanh %626 : vector<8x128xf32>
    %628 = vector.extract_strided_slice %609 {offsets = [0, 384], sizes = [8, 128], strides = [1, 1]} : vector<8x512xf32> to vector<8x128xf32>
    %cst_289 = arith.constant 5.000000e-01 : f32
    %629 = vector.broadcast %cst_289 : f32 to vector<8x128xf32>
    %630 = arith.mulf %629, %628 : vector<8x128xf32>
    %631 = math.tanh %630 : vector<8x128xf32>
    %cst_290 = arith.constant 5.000000e-01 : f32
    %632 = vector.broadcast %cst_290 : f32 to vector<8x128xf32>
    %633 = arith.mulf %632, %631 : vector<8x128xf32>
    %cst_291 = arith.constant 5.000000e-01 : f32
    %634 = vector.broadcast %cst_291 : f32 to vector<8x128xf32>
    %635 = arith.addf %633, %634 : vector<8x128xf32>
    %636 = arith.mulf %625, %560 : vector<8x128xf32>
    %637 = arith.mulf %617, %627 : vector<8x128xf32>
    %638 = arith.addf %636, %637 : vector<8x128xf32>
    %639 = math.tanh %638 : vector<8x128xf32>
    %640 = arith.mulf %635, %639 : vector<8x128xf32>
    %c0_292 = arith.constant 0 : index
    %c7_293 = arith.constant 7 : index
    %c0_294 = arith.constant 0 : index
    %641 = vector.load %arg15[%c0_292, %c7_293, %c0_294] : memref<8x8x128xf32, #tpu.memory_space<vmem>>, vector<8x1x128xf32>
    %642 = vector.shape_cast %641 : vector<8x1x128xf32> to vector<8x128xf32>
    %643 = vector.shape_cast %640 : vector<8x128xf32> to vector<8x1x128xf32>
    tpu.vector_store %arg15[%c0_292, %c7_293, %c0_294], %643 {strides = array<i32>} : memref<8x8x128xf32, #tpu.memory_space<vmem>>, vector<8x1x128xf32>,
    %c0_295 = arith.constant 0 : index
    %c0_296 = arith.constant 0 : index
    %c0_297 = arith.constant 0 : index
    %644 = vector.load %arg12[%c0_295, %c0_296, %c0_297] : memref<2x8x128xf32, #tpu.memory_space<vmem>>, vector<1x8x128xf32>
    %645 = vector.shape_cast %644 : vector<1x8x128xf32> to vector<8x128xf32>
    %646 = vector.shape_cast %601 : vector<8x128xf32> to vector<1x8x128xf32>
    tpu.vector_store %arg12[%c0_295, %c0_296, %c0_297], %646 {strides = array<i32>} : memref<2x8x128xf32, #tpu.memory_space<vmem>>, vector<1x8x128xf32>,
    %c0_298 = arith.constant 0 : index
    %c0_299 = arith.constant 0 : index
    %c0_300 = arith.constant 0 : index
    %647 = vector.load %arg13[%c0_298, %c0_299, %c0_300] : memref<2x8x128xf32, #tpu.memory_space<vmem>>, vector<1x8x128xf32>
    %648 = vector.shape_cast %647 : vector<1x8x128xf32> to vector<8x128xf32>
    %649 = vector.shape_cast %599 : vector<8x128xf32> to vector<1x8x128xf32>
    tpu.vector_store %arg13[%c0_298, %c0_299, %c0_300], %649 {strides = array<i32>} : memref<2x8x128xf32, #tpu.memory_space<vmem>>, vector<1x8x128xf32>,
    %c1_301 = arith.constant 1 : index
    %c0_302 = arith.constant 0 : index
    %c0_303 = arith.constant 0 : index
    %650 = vector.load %arg12[%c1_301, %c0_302, %c0_303] : memref<2x8x128xf32, #tpu.memory_space<vmem>>, vector<1x8x128xf32>
    %651 = vector.shape_cast %650 : vector<1x8x128xf32> to vector<8x128xf32>
    %652 = vector.shape_cast %640 : vector<8x128xf32> to vector<1x8x128xf32>
    tpu.vector_store %arg12[%c1_301, %c0_302, %c0_303], %652 {strides = array<i32>} : memref<2x8x128xf32, #tpu.memory_space<vmem>>, vector<1x8x128xf32>,
    %c1_304 = arith.constant 1 : index
    %c0_305 = arith.constant 0 : index
    %c0_306 = arith.constant 0 : index
    %653 = vector.load %arg13[%c1_304, %c0_305, %c0_306] : memref<2x8x128xf32, #tpu.memory_space<vmem>>, vector<1x8x128xf32>
    %654 = vector.shape_cast %653 : vector<1x8x128xf32> to vector<8x128xf32>
    %655 = vector.shape_cast %638 : vector<8x128xf32> to vector<1x8x128xf32>
    tpu.vector_store %arg13[%c1_304, %c0_305, %c0_306], %655 {strides = array<i32>} : memref<2x8x128xf32, #tpu.memory_space<vmem>>, vector<1x8x128xf32>,
    %c0_307 = arith.constant 0 : index
    %c0_308 = arith.constant 0 : index
    %c0_309 = arith.constant 0 : index
    %656 = vector.load %arg15[%c0_307, %c0_308, %c0_309] : memref<8x8x128xf32, #tpu.memory_space<vmem>>, vector<8x8x128xf32>
    %c0_310 = arith.constant 0 : index
    %c0_311 = arith.constant 0 : index
    %657 = vector.load %arg9[%c0_310, %c0_311] : memref<1x128xf32, #tpu.memory_space<vmem>>, vector<1x128xf32>
    %658 = vector.shape_cast %657 : vector<1x128xf32> to vector<1x1x128xf32>
    %659 = vector.broadcast %658 : vector<1x1x128xf32> to vector<8x8x128xf32>
    %660 = arith.mulf %656, %659 : vector<8x8x128xf32>
    %cst_312 = arith.constant dense<0.000000e+00> : vector<8x8xf32>
    %661 = vector.multi_reduction <add>, %660, %cst_312 [2] : vector<8x8x128xf32> to vector<8x8xf32>
    %c0_313 = arith.constant 0 : index
    %c0_314 = arith.constant 0 : index
    %662 = vector.load %arg10[%c0_313, %c0_314] : memref<1x1xf32, #tpu.memory_space<vmem>>, vector<1x1xf32>
    %663 = vector.broadcast %662 : vector<1x1xf32> to vector<8x8xf32>
    %664 = arith.addf %661, %663 : vector<8x8xf32>
    %c0_315 = arith.constant 0 : index
    %c0_316 = arith.constant 0 : index
    %665 = vector.load %arg11[%c0_315, %c0_316] : memref<8x8xf32, #tpu.memory_space<vmem>>, vector<8x8xf32>
    tpu.vector_store %arg11[%c0_315, %c0_316], %664 {strides = array<i32>} : memref<8x8xf32, #tpu.memory_space<vmem>>, vector<8x8xf32>,
    return
  }
  func.func @transform_0(%arg0: i32, %arg1: i32) -> (i32, i32, i32) {
    %c0_i32 = arith.constant 0 : i32
    %c0_i32_0 = arith.constant 0 : i32
    return %arg0, %arg1, %c0_i32 : i32, i32, i32
  }
  func.func @transform_1(%arg0: i32, %arg1: i32) -> (i32, i32) {
    %c0_i32 = arith.constant 0 : i32
    %c0_i32_0 = arith.constant 0 : i32
    %c0_i32_1 = arith.constant 0 : i32
    return %c0_i32, %c0_i32_0 : i32, i32
  }
  func.func @transform_2(%arg0: i32, %arg1: i32) -> (i32, i32) {
    %c0_i32 = arith.constant 0 : i32
    %c0_i32_0 = arith.constant 0 : i32
    %c0_i32_1 = arith.constant 0 : i32
    return %c0_i32, %c0_i32_0 : i32, i32
  }
  func.func @transform_3(%arg0: i32, %arg1: i32) -> (i32, i32) {
    %c0_i32 = arith.constant 0 : i32
    %c0_i32_0 = arith.constant 0 : i32
    %c0_i32_1 = arith.constant 0 : i32
    return %c0_i32, %c0_i32_0 : i32, i32
  }
  func.func @transform_4(%arg0: i32, %arg1: i32) -> (i32, i32) {
    %c0_i32 = arith.constant 0 : i32
    %c0_i32_0 = arith.constant 0 : i32
    %c0_i32_1 = arith.constant 0 : i32
    return %c0_i32, %c0_i32_0 : i32, i32
  }
  func.func @transform_5(%arg0: i32, %arg1: i32) -> (i32, i32) {
    %c0_i32 = arith.constant 0 : i32
    %c0_i32_0 = arith.constant 0 : i32
    %c0_i32_1 = arith.constant 0 : i32
    return %c0_i32, %c0_i32_0 : i32, i32
  }
  func.func @transform_6(%arg0: i32, %arg1: i32) -> (i32, i32) {
    %c0_i32 = arith.constant 0 : i32
    %c0_i32_0 = arith.constant 0 : i32
    %c0_i32_1 = arith.constant 0 : i32
    return %c0_i32, %c0_i32_0 : i32, i32
  }
  func.func @transform_7(%arg0: i32, %arg1: i32) -> (i32, i32) {
    %c0_i32 = arith.constant 0 : i32
    %c0_i32_0 = arith.constant 0 : i32
    %c0_i32_1 = arith.constant 0 : i32
    return %c0_i32, %c0_i32_0 : i32, i32
  }
  func.func @transform_8(%arg0: i32, %arg1: i32) -> (i32, i32) {
    %c0_i32 = arith.constant 0 : i32
    %c0_i32_0 = arith.constant 0 : i32
    %c0_i32_1 = arith.constant 0 : i32
    return %c0_i32, %c0_i32_0 : i32, i32
  }
  func.func @transform_9(%arg0: i32, %arg1: i32) -> (i32, i32) {
    %c0_i32 = arith.constant 0 : i32
    return %arg0, %arg1 : i32, i32
  }
}

</mosaic_0001>

<llo_original>
// kernel: tpu_custom_call.1
$region0: #{tpu_custom_call.1}
  #allocation0 [shape = 'u32[]', space=smem, size = 0x4, offset = 0x4, fixed_abs, tag = 'smem constant byte address 0x4 - core index']
  #allocation1 [shape = 'u32[144,128]{1,0:T(1,128)}', space=vmem, size = 0x12000, scoped, tag = 'internal scratch']
  #allocation2 [shape = 'f32[2,8,128]{2,1,0:T(8,128)}', space=vmem, size = 0x2000, scoped, tag = 'scratch operand']
  #allocation3 [shape = 'f32[2,8,128]{2,1,0:T(8,128)}', space=vmem, size = 0x2000, scoped, tag = 'scratch operand']
  #allocation4 [shape = 'f32[8,8,512]{2,1,0:T(8,128)}', space=vmem, size = 0x20000, scoped, tag = 'scratch operand']
  #allocation5 [shape = 'f32[8,8,128]{2,1,0:T(8,128)}', space=vmem, size = 0x8000, scoped, tag = 'scratch operand']
  #allocation6 [shape = 'f32[1,1]{1,0:T(1,128)S(1)}', space=vmem, size = 0x200, scoped, tag = 'scoped memory for tpu_custom_call.1']
  %s0 = inlined_call_operand.hbm [shape: f32[8,8,8], index: 0, kind: input, shape index: {}]
  %s1 = inlined_call_operand.hbm [shape: f32[8,512], index: 1, kind: input, shape index: {}]
  %s2 = inlined_call_operand.vmem [shape: f32[1,512], index: 2, kind: input, shape index: {}]
  %s3 = inlined_call_operand.hbm [shape: f32[128,512], index: 3, kind: input, shape index: {}]
  %s4 = inlined_call_operand.hbm [shape: f32[128,512], index: 4, kind: input, shape index: {}]
  %s5 = inlined_call_operand.hbm [shape: f32[128,512], index: 5, kind: input, shape index: {}]
  %s6 = inlined_call_operand.vmem [shape: f32[1,512], index: 6, kind: input, shape index: {}]
  %s7 = inlined_call_operand.vmem [shape: f32[1,128], index: 7, kind: input, shape index: {}]
  %s8 = inlined_call_operand.<no memory space> [shape: f32[1,1], index: 8, kind: input, shape index: {}]
  %s9 = inlined_call_operand.hbm [shape: f32[8,8], index: 9, kind: output, shape index: {}]
  %s10 = sld [smem:[#allocation0]]
  $region70: #{tpu_custom_call.1} parent=0
    _
  %s12 = ssub.s32 1, %s10
  %s13 = scalar_select 0, %s12, %s10
  %v14 = vstv %s8
  %15 = vst [vmem:[#allocation6] sm:$0x1] %v14
  $region1: #{tpu_custom_call.1} parent=0
    #allocation7 [shape = 'u8[32768]{0}', space=vmem, size = 0x8000, scoped, tag = 'input window, operand 0, single buffered']
    #allocation8 [shape = 's32[1]{0}', space=sflag, size = 0x4, scoped, tag = 'scoped memory for tpu_custom_call.1']
    #allocation9 [shape = 's32[1]{0}', space=sflag, size = 0x4, scoped, tag = 'scoped memory for tpu_custom_call.1']
    #allocation10 [shape = 'u8[16384]{0}', space=vmem, size = 0x4000, scoped, tag = 'input window, operand 1, single buffered']
    #allocation11 [shape = 's32[1]{0}', space=sflag, size = 0x4, scoped, tag = 'scoped memory for tpu_custom_call.1']
    #allocation12 [shape = 'u8[262144]{0}', space=vmem, size = 0x40000, scoped, tag = 'input window, operand 3, single buffered']
    #allocation13 [shape = 'u8[262144]{0}', space=vmem, size = 0x40000, scoped, tag = 'input window, operand 4, single buffered']
    #allocation14 [shape = 's32[1]{0}', space=sflag, size = 0x4, scoped, tag = 'scoped memory for tpu_custom_call.1']
    #allocation15 [shape = 'u8[262144]{0}', space=vmem, size = 0x40000, scoped, tag = 'input window, operand 5, single buffered']
    #allocation16 [shape = 'u8[4096]{0}', space=vmem, size = 0x1000, scoped, tag = 'output window, operand 0, single buffered']
    %16 = vsyncpa [#allocation8], 0
    %17 = vsyncpa [#allocation11], 0
    %18 = vsyncpa [#allocation14], 0
    %19 = vsyncpa [#allocation9], 0
    // Predicated region
    $region2: #{tpu_custom_call.1} parent=1 // pred_check
      _
    $region3: #{tpu_custom_call.1} parent=1 // pred_check_branch
      %21 = sbr.rel (0) target = $region5
    $region4: #{tpu_custom_call.1} parent=1 // pred_region
      %s23 = ssub.s32 1024, 1024
      %24 = vsyncadd [#allocation8], %s23
      %s25 = sshll.u32 [#allocation7], 4
      %s26 = int_to_ptr.vmem [resolvable:$true] %s25
      %31 = dma.hbm_to_vmem [thread:$0]  %s0, 1024, %s26, [#allocation8], 128, 128, 8
    $region5: #{tpu_custom_call.1} parent=1 // pred_fallthru
      _
    // Predicated region
    $region6: #{tpu_custom_call.1} parent=1 // pred_check
      _
    $region7: #{tpu_custom_call.1} parent=1 // pred_check_branch
      %33 = sbr.rel (0) target = $region9
    $region8: #{tpu_custom_call.1} parent=1 // pred_region
      %s35 = ssub.s32 512, 512
      %36 = vsyncadd [#allocation11], %s35
      %s38 = sshll.u32 [#allocation10], 4
      %s39 = int_to_ptr.vmem [resolvable:$true] %s38
      %41 = dma.hbm_to_vmem [thread:$0]  %s1, 512, %s39, [#allocation11]
    $region9: #{tpu_custom_call.1} parent=1 // pred_fallthru
      _
    // Predicated region
    $region10: #{tpu_custom_call.1} parent=1 // pred_check
      _
    $region11: #{tpu_custom_call.1} parent=1 // pred_check_branch
      %43 = sbr.rel (0) target = $region13
    $region12: #{tpu_custom_call.1} parent=1 // pred_region
      _
    $region13: #{tpu_custom_call.1} parent=1 // pred_fallthru
      _
    // Predicated region
    $region14: #{tpu_custom_call.1} parent=1 // pred_check
      _
    $region15: #{tpu_custom_call.1} parent=1 // pred_check_branch
      %45 = sbr.rel (0) target = $region17
    $region16: #{tpu_custom_call.1} parent=1 // pred_region
      %s47 = ssub.s32 8192, 8192
      %48 = vsyncadd [#allocation11], %s47
      %s49 = sshll.u32 [#allocation12], 4
      %s50 = int_to_ptr.vmem [resolvable:$true] %s49
      %55 = dma.hbm_to_vmem [thread:$0]  %s3, 8192, %s50, [#allocation11], 512, 512, 32
    $region17: #{tpu_custom_call.1} parent=1 // pred_fallthru
      _
    // Predicated region
    $region18: #{tpu_custom_call.1} parent=1 // pred_check
      _
    $region19: #{tpu_custom_call.1} parent=1 // pred_check_branch
      %57 = sbr.rel (0) target = $region21
    $region20: #{tpu_custom_call.1} parent=1 // pred_region
      %s59 = ssub.s32 8192, 8192
      %60 = vsyncadd [#allocation14], %s59
      %s61 = sshll.u32 [#allocation13], 4
      %s62 = int_to_ptr.vmem [resolvable:$true] %s61
      %67 = dma.hbm_to_vmem [thread:$0]  %s4, 8192, %s62, [#allocation14], 512, 512, 32
    $region21: #{tpu_custom_call.1} parent=1 // pred_fallthru
      _
    // Predicated region
    $region22: #{tpu_custom_call.1} parent=1 // pred_check
      _
    $region23: #{tpu_custom_call.1} parent=1 // pred_check_branch
      %69 = sbr.rel (0) target = $region25
    $region24: #{tpu_custom_call.1} parent=1 // pred_region
      %s71 = ssub.s32 8192, 8192
      %72 = vsyncadd [#allocation14], %s71
      %s73 = sshll.u32 [#allocation15], 4
      %s74 = int_to_ptr.vmem [resolvable:$true] %s73
      %79 = dma.hbm_to_vmem [thread:$0]  %s5, 8192, %s74, [#allocation14], 512, 512, 32
    $region25: #{tpu_custom_call.1} parent=1 // pred_fallthru
      _
    // Predicated region
    $region26: #{tpu_custom_call.1} parent=1 // pred_check
      _
    $region27: #{tpu_custom_call.1} parent=1 // pred_check_branch
      %81 = sbr.rel (0) target = $region29
    $region28: #{tpu_custom_call.1} parent=1 // pred_region
      _
    $region29: #{tpu_custom_call.1} parent=1 // pred_fallthru
      _
    // Predicated region
    $region30: #{tpu_custom_call.1} parent=1 // pred_check
      _
    $region31: #{tpu_custom_call.1} parent=1 // pred_check_branch
      %83 = sbr.rel (0) target = $region33
    $region32: #{tpu_custom_call.1} parent=1 // pred_region
      _
    $region33: #{tpu_custom_call.1} parent=1 // pred_fallthru
      _
    // Predicated region
    $region34: #{tpu_custom_call.1} parent=1 // pred_check
      _
    $region35: #{tpu_custom_call.1} parent=1 // pred_check_branch
      %85 = sbr.rel (0) target = $region37
    $region36: #{tpu_custom_call.1} parent=1 // pred_region
      _
    $region37: #{tpu_custom_call.1} parent=1 // pred_fallthru
      _
    // Predicated region
    $region38: #{tpu_custom_call.1} parent=1 // pred_check
      _
    $region39: #{tpu_custom_call.1} parent=1 // pred_check_branch
      %87 = sbr.rel (0) target = $region41
    $region40: #{tpu_custom_call.1} parent=1 // pred_region
      %88 = dma.done [#allocation8], 1024
    $region41: #{tpu_custom_call.1} parent=1 // pred_fallthru
      _
    // Predicated region
    $region42: #{tpu_custom_call.1} parent=1 // pred_check
      _
    $region43: #{tpu_custom_call.1} parent=1 // pred_check_branch
      %90 = sbr.rel (0) target = $region45
    $region44: #{tpu_custom_call.1} parent=1 // pred_region
      %91 = dma.done [#allocation11], 512
    $region45: #{tpu_custom_call.1} parent=1 // pred_fallthru
      _
    // Predicated region
    $region46: #{tpu_custom_call.1} parent=1 // pred_check
      _
    $region47: #{tpu_custom_call.1} parent=1 // pred_check_branch
      %93 = sbr.rel (0) target = $region49
    $region48: #{tpu_custom_call.1} parent=1 // pred_region
      %94 = dma.done [#allocation11], 8192
    $region49: #{tpu_custom_call.1} parent=1 // pred_fallthru
      _
    // Predicated region
    $region50: #{tpu_custom_call.1} parent=1 // pred_check
      _
    $region51: #{tpu_custom_call.1} parent=1 // pred_check_branch
      %96 = sbr.rel (0) target = $region53
    $region52: #{tpu_custom_call.1} parent=1 // pred_region
      %97 = dma.done [#allocation14], 8192
    $region53: #{tpu_custom_call.1} parent=1 // pred_fallthru
      _
    // Predicated region
    $region54: #{tpu_custom_call.1} parent=1 // pred_check
      _
    $region55: #{tpu_custom_call.1} parent=1 // pred_check_branch
      %99 = sbr.rel (0) target = $region57
    $region56: #{tpu_custom_call.1} parent=1 // pred_region
      %100 = dma.done [#allocation14], 8192
    $region57: #{tpu_custom_call.1} parent=1 // pred_fallthru
      _
    %p101 = scmp.eq.s32.totalorder 0, 0
    // Predicated region
    $region58: #{tpu_custom_call.1} parent=1 // pred_check
      %p102 = pneg %p101
    $region59: #{tpu_custom_call.1} parent=1 // pred_check_branch
      %104 = sbr.rel (%p102) target = $region61
    $region60: #{tpu_custom_call.1} parent=1 // pred_region
      %105 = vst [vmem:[#allocation2] sm:$0xff] 0.0
      %106 = vst [vmem:[#allocation2 + $0x8] sm:$0xff] 0.0
      %107 = vst [vmem:[#allocation3] sm:$0xff] 0.0
      %108 = vst [vmem:[#allocation3 + $0x8] sm:$0xff] 0.0
    $region61: #{tpu_custom_call.1} parent=1 // pred_fallthru
      _
    %v109 = vld [vmem:[#allocation7] sm:$0xff]
    %v110 = vld [vmem:[#allocation7 + $0x8] sm:$0xff]
    %v111 = vld [vmem:[#allocation7 + $0x10] sm:$0xff]
    %v112 = vld [vmem:[#allocation7 + $0x18] sm:$0xff]
    %v113 = vld [vmem:[#allocation7 + $0x20] sm:$0xff]
    %v114 = vld [vmem:[#allocation7 + $0x28] sm:$0xff]
    %v115 = vld [vmem:[#allocation7 + $0x30] sm:$0xff]
    %v116 = vld [vmem:[#allocation7 + $0x38] sm:$0xff]
    %v117 = vld [vmem:[#allocation10] sm:$0xff]
    %v118 = vld [vmem:[#allocation10 + $0x8] sm:$0xff]
    %v119 = vld [vmem:[#allocation10 + $0x10] sm:$0xff]
    %v120 = vld [vmem:[#allocation10 + $0x18] sm:$0xff]
    %v121 = vld [vmem:[%s2] sm:$0xf]
    %v123 = vlaneseq
    %v124 = vshrl.u32 %v123, 7
    %v125 = vsub.s32 0, %v124
    %v126 = vrot.slane %v121, %v125
    %v127 = vlaneseq
    %v128 = vshrl.u32 %v127, 7
    %v129 = vsub.s32 1, %v128
    %v130 = vrot.slane %v121, %v129
    %v131 = vlaneseq
    %v132 = vshrl.u32 %v131, 7
    %v133 = vsub.s32 2, %v132
    %v134 = vrot.slane %v121, %v133
    %v135 = vlaneseq
    %v136 = vshrl.u32 %v135, 7
    %v137 = vsub.s32 3, %v136
    %v138 = vrot.slane %v121, %v137
    %vm143 = vcmask 64512
    %v145 = vsel %vm143, %v109, 0
    %v148 = vsel %vm143, %v110, 0
    %v151 = vsel %vm143, %v111, 0
    %v154 = vsel %vm143, %v112, 0
    %v157 = vsel %vm143, %v113, 0
    %v160 = vsel %vm143, %v114, 0
    %v163 = vsel %vm143, %v115, 0
    %v166 = vsel %vm143, %v116, 0
    %168 = vmatprep.subr.mxu0 %v118
    %169 = vmatpush1.msra.mxu0 %v117
    %170 = vmatprep.subr.mxu0 0.0
    %171 = vmatpush1.msra.mxu0 0.0
    %172 = vmatprep.subr.mxu0 0.0
    %173 = vmatpush1.msra.mxu0 0.0
    %174 = vmatprep.subr.mxu0 0.0
    %175 = vmatpush1.msra.mxu0 0.0
    %176 = vmatprep.subr.mxu0 0.0
    %177 = vmatpush1.msra.mxu0 0.0
    %178 = vmatprep.subr.mxu0 0.0
    %179 = vmatpush1.msra.mxu0 0.0
    %180 = vmatprep.subr.mxu0 0.0
    %181 = vmatpush1.msra.mxu0 0.0
    %182 = vmatprep.subr.mxu0 0.0
    %183 = vmatpush1.msra.mxu0 0.0
    %184 = vmatprep.subr.mxu0 0.0
    %185 = vmatpush1.msra.mxu0 0.0
    %186 = vmatprep.subr.mxu0 0.0
    %187 = vmatpush1.msra.mxu0 0.0
    %188 = vmatprep.subr.mxu0 0.0
    %189 = vmatpush1.msra.mxu0 0.0
    %190 = vmatprep.subr.mxu0 0.0
    %191 = vmatpush1.msra.mxu0 0.0
    %192 = vmatprep.subr.mxu0 0.0
    %193 = vmatpush1.msra.mxu0 0.0
    %194 = vmatprep.subr.mxu0 0.0
    %195 = vmatpush1.msra.mxu0 0.0
    %196 = vmatprep.subr.mxu0 0.0
    %197 = vmatpush1.msra.mxu0 0.0
    %198 = vmatprep.subr.mxu0 0.0
    %199 = vmatpush1.msra.mxu0 0.0
    %200 = vmatprep.subr.mxu0 0.0
    %201 = vmatpush1.msra.mxu0 0.0
    %202 = vmatprep.subr.mxu0 0.0
    %203 = vmatpush1.msra.mxu0 0.0
    %204 = vmatprep.subr.mxu0 0.0
    %205 = vmatpush1.msra.mxu0 0.0
    %206 = vmatprep.subr.mxu0 0.0
    %207 = vmatpush1.msra.mxu0 0.0
    %208 = vmatprep.subr.mxu0 0.0
    %209 = vmatpush1.msra.mxu0 0.0
    %210 = vmatprep.subr.mxu0 0.0
    %211 = vmatpush1.msra.mxu0 0.0
    %212 = vmatprep.subr.mxu0 0.0
    %213 = vmatpush1.msra.mxu0 0.0
    %214 = vmatprep.subr.mxu0 0.0
    %215 = vmatpush1.msra.mxu0 0.0
    %216 = vmatprep.subr.mxu0 0.0
    %217 = vmatpush1.msra.mxu0 0.0
    %218 = vmatprep.subr.mxu0 0.0
    %219 = vmatpush1.msra.mxu0 0.0
    %220 = vmatprep.subr.mxu0 0.0
    %221 = vmatpush1.msra.mxu0 0.0
    %222 = vmatprep.subr.mxu0 0.0
    %223 = vmatpush1.msra.mxu0 0.0
    %224 = vmatprep.subr.mxu0 0.0
    %225 = vmatpush1.msra.mxu0 0.0
    %226 = vmatprep.subr.mxu0 0.0
    %227 = vmatpush1.msra.mxu0 0.0
    %228 = vmatprep.subr.mxu0 0.0
    %229 = vmatpush1.msra.mxu0 0.0
    %230 = vmatprep.subr.mxu0 0.0
    %231 = vmatpush1.msra.mxu0 0.0
    %232 = vmatprep.mubr.f32.mxu0 0.0
    %233 = vmatmul.mubr.f32.gmra.mrb[0].mxu0 %v145
    %v234 = vpop.f32.mrb[0].mxu0
    %v235 = vadd.f32 %v126, %v234
    %v236 = vpop.f32.mrb[0].mxu0
    %v237 = vadd.f32 %v130, %v236
    %238 = vmatprep.mubr.f32.mxu0 0.0
    %239 = vmatmul.mubr.f32.gmra.mrb[0].mxu0 %v148
    %v240 = vpop.f32.mrb[0].mxu0
    %v241 = vadd.f32 %v126, %v240
    %v242 = vpop.f32.mrb[0].mxu0
    %v243 = vadd.f32 %v130, %v242
    %244 = vmatprep.mubr.f32.mxu0 0.0
    %245 = vmatmul.mubr.f32.gmra.mrb[0].mxu0 %v151
    %v246 = vpop.f32.mrb[0].mxu0
    %v247 = vadd.f32 %v126, %v246
    %v248 = vpop.f32.mrb[0].mxu0
    %v249 = vadd.f32 %v130, %v248
    %250 = vmatprep.mubr.f32.mxu0 0.0
    %251 = vmatmul.mubr.f32.gmra.mrb[0].mxu0 %v154
    %v252 = vpop.f32.mrb[0].mxu0
    %v253 = vadd.f32 %v126, %v252
    %v254 = vpop.f32.mrb[0].mxu0
    %v255 = vadd.f32 %v130, %v254
    %256 = vmatprep.mubr.f32.mxu0 0.0
    %257 = vmatmul.mubr.f32.gmra.mrb[0].mxu0 %v157
    %v258 = vpop.f32.mrb[0].mxu0
    %v259 = vadd.f32 %v126, %v258
    %v260 = vpop.f32.mrb[0].mxu0
    %v261 = vadd.f32 %v130, %v260
    %262 = vmatprep.mubr.f32.mxu0 0.0
    %263 = vmatmul.mubr.f32.gmra.mrb[0].mxu0 %v160
    %v264 = vpop.f32.mrb[0].mxu0
    %v265 = vadd.f32 %v126, %v264
    %v266 = vpop.f32.mrb[0].mxu0
    %v267 = vadd.f32 %v130, %v266
    %268 = vmatprep.mubr.f32.mxu0 0.0
    %269 = vmatmul.mubr.f32.gmra.mrb[0].mxu0 %v163
    %v270 = vpop.f32.mrb[0].mxu0
    %v271 = vadd.f32 %v126, %v270
    %v272 = vpop.f32.mrb[0].mxu0
    %v273 = vadd.f32 %v130, %v272
    %274 = vmatprep.mubr.f32.mxu0 0.0
    %275 = vmatmul.mubr.f32.gmra.mrb[0].mxu0 %v166
    %v276 = vpop.f32.mrb[0].mxu0
    %v277 = vadd.f32 %v126, %v276
    %v278 = vpop.f32.mrb[0].mxu0
    %v279 = vadd.f32 %v130, %v278
    %280 = vdwg.mxu0
    %281 = vmatprep.subr.mxu0 %v120
    %282 = vmatpush1.msra.mxu0 %v119
    %283 = vmatprep.subr.mxu0 0.0
    %284 = vmatpush1.msra.mxu0 0.0
    %285 = vmatprep.subr.mxu0 0.0
    %286 = vmatpush1.msra.mxu0 0.0
    %287 = vmatprep.subr.mxu0 0.0
    %288 = vmatpush1.msra.mxu0 0.0
    %289 = vmatprep.subr.mxu0 0.0
    %290 = vmatpush1.msra.mxu0 0.0
    %291 = vmatprep.subr.mxu0 0.0
    %292 = vmatpush1.msra.mxu0 0.0
    %293 = vmatprep.subr.mxu0 0.0
    %294 = vmatpush1.msra.mxu0 0.0
    %295 = vmatprep.subr.mxu0 0.0
    %296 = vmatpush1.msra.mxu0 0.0
    %297 = vmatprep.subr.mxu0 0.0
    %298 = vmatpush1.msra.mxu0 0.0
    %299 = vmatprep.subr.mxu0 0.0
    %300 = vmatpush1.msra.mxu0 0.0
    %301 = vmatprep.subr.mxu0 0.0
    %302 = vmatpush1.msra.mxu0 0.0
    %303 = vmatprep.subr.mxu0 0.0
    %304 = vmatpush1.msra.mxu0 0.0
    %305 = vmatprep.subr.mxu0 0.0
    %306 = vmatpush1.msra.mxu0 0.0
    %307 = vmatprep.subr.mxu0 0.0
    %308 = vmatpush1.msra.mxu0 0.0
    %309 = vmatprep.subr.mxu0 0.0
    %310 = vmatpush1.msra.mxu0 0.0
    %311 = vmatprep.subr.mxu0 0.0
    %312 = vmatpush1.msra.mxu0 0.0
    %313 = vmatprep.subr.mxu0 0.0
    %314 = vmatpush1.msra.mxu0 0.0
    %315 = vmatprep.subr.mxu0 0.0
    %316 = vmatpush1.msra.mxu0 0.0
    %317 = vmatprep.subr.mxu0 0.0
    %318 = vmatpush1.msra.mxu0 0.0
    %319 = vmatprep.subr.mxu0 0.0
    %320 = vmatpush1.msra.mxu0 0.0
    %321 = vmatprep.subr.mxu0 0.0
    %322 = vmatpush1.msra.mxu0 0.0
    %323 = vmatprep.subr.mxu0 0.0
    %324 = vmatpush1.msra.mxu0 0.0
    %325 = vmatprep.subr.mxu0 0.0
    %326 = vmatpush1.msra.mxu0 0.0
    %327 = vmatprep.subr.mxu0 0.0
    %328 = vmatpush1.msra.mxu0 0.0
    %329 = vmatprep.subr.mxu0 0.0
    %330 = vmatpush1.msra.mxu0 0.0
    %331 = vmatprep.subr.mxu0 0.0
    %332 = vmatpush1.msra.mxu0 0.0
    %333 = vmatprep.subr.mxu0 0.0
    %334 = vmatpush1.msra.mxu0 0.0
    %335 = vmatprep.subr.mxu0 0.0
    %336 = vmatpush1.msra.mxu0 0.0
    %337 = vmatprep.subr.mxu0 0.0
    %338 = vmatpush1.msra.mxu0 0.0
    %339 = vmatprep.subr.mxu0 0.0
    %340 = vmatpush1.msra.mxu0 0.0
    %341 = vmatprep.subr.mxu0 0.0
    %342 = vmatpush1.msra.mxu0 0.0
    %343 = vmatprep.subr.mxu0 0.0
    %344 = vmatpush1.msra.mxu0 0.0
    %345 = vmatprep.mubr.f32.mxu0 0.0
    %346 = vmatmul.mubr.f32.gmra.mrb[0].mxu0 %v145
    %v347 = vpop.f32.mrb[0].mxu0
    %v348 = vadd.f32 %v134, %v347
    %v349 = vpop.f32.mrb[0].mxu0
    %v350 = vadd.f32 %v138, %v349
    %351 = vmatprep.mubr.f32.mxu0 0.0
    %352 = vmatmul.mubr.f32.gmra.mrb[0].mxu0 %v148
    %v353 = vpop.f32.mrb[0].mxu0
    %v354 = vadd.f32 %v134, %v353
    %v355 = vpop.f32.mrb[0].mxu0
    %v356 = vadd.f32 %v138, %v355
    %357 = vmatprep.mubr.f32.mxu0 0.0
    %358 = vmatmul.mubr.f32.gmra.mrb[0].mxu0 %v151
    %v359 = vpop.f32.mrb[0].mxu0
    %v360 = vadd.f32 %v134, %v359
    %v361 = vpop.f32.mrb[0].mxu0
    %v362 = vadd.f32 %v138, %v361
    %363 = vmatprep.mubr.f32.mxu0 0.0
    %364 = vmatmul.mubr.f32.gmra.mrb[0].mxu0 %v154
    %v365 = vpop.f32.mrb[0].mxu0
    %v366 = vadd.f32 %v134, %v365
    %v367 = vpop.f32.mrb[0].mxu0
    %v368 = vadd.f32 %v138, %v367
    %369 = vmatprep.mubr.f32.mxu0 0.0
    %370 = vmatmul.mubr.f32.gmra.mrb[0].mxu0 %v157
    %v371 = vpop.f32.mrb[0].mxu0
    %v372 = vadd.f32 %v134, %v371
    %v373 = vpop.f32.mrb[0].mxu0
    %v374 = vadd.f32 %v138, %v373
    %375 = vmatprep.mubr.f32.mxu0 0.0
    %376 = vmatmul.mubr.f32.gmra.mrb[0].mxu0 %v160
    %v377 = vpop.f32.mrb[0].mxu0
    %v378 = vadd.f32 %v134, %v377
    %v379 = vpop.f32.mrb[0].mxu0
    %v380 = vadd.f32 %v138, %v379
    %381 = vmatprep.mubr.f32.mxu0 0.0
    %382 = vmatmul.mubr.f32.gmra.mrb[0].mxu0 %v163
    %v383 = vpop.f32.mrb[0].mxu0
    %v384 = vadd.f32 %v134, %v383
    %v385 = vpop.f32.mrb[0].mxu0
    %v386 = vadd.f32 %v138, %v385
    %387 = vmatprep.mubr.f32.mxu0 0.0
    %388 = vmatmul.mubr.f32.gmra.mrb[0].mxu0 %v166
    %v389 = vpop.f32.mrb[0].mxu0
    %v390 = vadd.f32 %v134, %v389
    %v391 = vpop.f32.mrb[0].mxu0
    %v392 = vadd.f32 %v138, %v391
    %393 = vdwg.mxu0
    %394 = vst [vmem:[#allocation4] sm:$0xff] %v235
    %395 = vst [vmem:[#allocation4 + $0x8] sm:$0xff] %v237
    %396 = vst [vmem:[#allocation4 + $0x10] sm:$0xff] %v348
    %397 = vst [vmem:[#allocation4 + $0x18] sm:$0xff] %v350
    %398 = vst [vmem:[#allocation4 + $0x20] sm:$0xff] %v241
    %399 = vst [vmem:[#allocation4 + $0x28] sm:$0xff] %v243
    %400 = vst [vmem:[#allocation4 + $0x30] sm:$0xff] %v354
    %401 = vst [vmem:[#allocation4 + $0x38] sm:$0xff] %v356
    %402 = vst [vmem:[#allocation4 + $0x40] sm:$0xff] %v247
    %403 = vst [vmem:[#allocation4 + $0x48] sm:$0xff] %v249
    %404 = vst [vmem:[#allocation4 + $0x50] sm:$0xff] %v360
    %405 = vst [vmem:[#allocation4 + $0x58] sm:$0xff] %v362
    %406 = vst [vmem:[#allocation4 + $0x60] sm:$0xff] %v253
    %407 = vst [vmem:[#allocation4 + $0x68] sm:$0xff] %v255
    %408 = vst [vmem:[#allocation4 + $0x70] sm:$0xff] %v366
    %409 = vst [vmem:[#allocation4 + $0x78] sm:$0xff] %v368
    %410 = vst [vmem:[#allocation4 + $0x80] sm:$0xff] %v259
    %411 = vst [vmem:[#allocation4 + $0x88] sm:$0xff] %v261
    %412 = vst [vmem:[#allocation4 + $0x90] sm:$0xff] %v372
    %413 = vst [vmem:[#allocation4 + $0x98] sm:$0xff] %v374
    %414 = vst [vmem:[#allocation4 + $0xa0] sm:$0xff] %v265
    %415 = vst [vmem:[#allocation4 + $0xa8] sm:$0xff] %v267
    %416 = vst [vmem:[#allocation4 + $0xb0] sm:$0xff] %v378
    %417 = vst [vmem:[#allocation4 + $0xb8] sm:$0xff] %v380
    %418 = vst [vmem:[#allocation4 + $0xc0] sm:$0xff] %v271
    %419 = vst [vmem:[#allocation4 + $0xc8] sm:$0xff] %v273
    %420 = vst [vmem:[#allocation4 + $0xd0] sm:$0xff] %v384
    %421 = vst [vmem:[#allocation4 + $0xd8] sm:$0xff] %v386
    %422 = vst [vmem:[#allocation4 + $0xe0] sm:$0xff] %v277
    %423 = vst [vmem:[#allocation4 + $0xe8] sm:$0xff] %v279
    %424 = vst [vmem:[#allocation4 + $0xf0] sm:$0xff] %v390
    %425 = vst [vmem:[#allocation4 + $0xf8] sm:$0xff] %v392
    %v426 = vld [vmem:[#allocation2] sm:$0xff]
    %s427 = scalar_lea.vmem [#allocation2], 8
    %v428 = vld [vmem:[%s427] sm:$0xff]
    %v429 = vld [vmem:[#allocation3] sm:$0xff]
    %s430 = scalar_lea.vmem [#allocation3], 8
    %v431 = vld [vmem:[%s430] sm:$0xff]
    %v432 = vld [vmem:[#allocation4] ss:$8 sm:$0xf]
    %s433 = scalar_lea.vmem [#allocation4], 32
    %v434 = vld [vmem:[%s433] ss:$8 sm:$0xf]
    %s435 = scalar_lea.vmem [#allocation4], 64
    %v436 = vld [vmem:[%s435] ss:$8 sm:$0xf]
    %s437 = scalar_lea.vmem [#allocation4], 96
    %v438 = vld [vmem:[%s437] ss:$8 sm:$0xf]
    %s439 = scalar_lea.vmem [#allocation4], 128
    %v440 = vld [vmem:[%s439] ss:$8 sm:$0xf]
    %s441 = scalar_lea.vmem [#allocation4], 160
    %v442 = vld [vmem:[%s441] ss:$8 sm:$0xf]
    %s443 = scalar_lea.vmem [#allocation4], 192
    %v444 = vld [vmem:[%s443] ss:$8 sm:$0xf]
    %s445 = scalar_lea.vmem [#allocation4], 224
    %v446 = vld [vmem:[%s445] ss:$8 sm:$0xf]
    %v447 = vld [vmem:[#allocation12] sm:$0xff]
    %v448 = vld [vmem:[#allocation12 + $0x8] sm:$0xff]
    %v449 = vld [vmem:[#allocation12 + $0x10] sm:$0xff]
    %v450 = vld [vmem:[#allocation12 + $0x18] sm:$0xff]
    %v451 = vld [vmem:[#allocation12 + $0x20] sm:$0xff]
    %v452 = vld [vmem:[#allocation12 + $0x28] sm:$0xff]
    %v453 = vld [vmem:[#allocation12 + $0x30] sm:$0xff]
    %v454 = vld [vmem:[#allocation12 + $0x38] sm:$0xff]
    %v455 = vld [vmem:[#allocation12 + $0x40] sm:$0xff]
    %v456 = vld [vmem:[#allocation12 + $0x48] sm:$0xff]
    %v457 = vld [vmem:[#allocation12 + $0x50] sm:$0xff]
    %v458 = vld [vmem:[#allocation12 + $0x58] sm:$0xff]
    %v459 = vld [vmem:[#allocation12 + $0x60] sm:$0xff]
    %v460 = vld [vmem:[#allocation12 + $0x68] sm:$0xff]
    %v461 = vld [vmem:[#allocation12 + $0x70] sm:$0xff]
    %v462 = vld [vmem:[#allocation12 + $0x78] sm:$0xff]
    %v463 = vld [vmem:[#allocation12 + $0x80] sm:$0xff]
    %v464 = vld [vmem:[#allocation12 + $0x88] sm:$0xff]
    %v465 = vld [vmem:[#allocation12 + $0x90] sm:$0xff]
    %v466 = vld [vmem:[#allocation12 + $0x98] sm:$0xff]
    %v467 = vld [vmem:[#allocation12 + $0xa0] sm:$0xff]
    %v468 = vld [vmem:[#allocation12 + $0xa8] sm:$0xff]
    %v469 = vld [vmem:[#allocation12 + $0xb0] sm:$0xff]
    %v470 = vld [vmem:[#allocation12 + $0xb8] sm:$0xff]
    %v471 = vld [vmem:[#allocation12 + $0xc0] sm:$0xff]
    %v472 = vld [vmem:[#allocation12 + $0xc8] sm:$0xff]
    %v473 = vld [vmem:[#allocation12 + $0xd0] sm:$0xff]
    %v474 = vld [vmem:[#allocation12 + $0xd8] sm:$0xff]
    %v475 = vld [vmem:[#allocation12 + $0xe0] sm:$0xff]
    %v476 = vld [vmem:[#allocation12 + $0xe8] sm:$0xff]
    %v477 = vld [vmem:[#allocation12 + $0xf0] sm:$0xff]
    %v478 = vld [vmem:[#allocation12 + $0xf8] sm:$0xff]
    %v479 = vld [vmem:[#allocation12 + $0x100] sm:$0xff]
    %v480 = vld [vmem:[#allocation12 + $0x108] sm:$0xff]
    %v481 = vld [vmem:[#allocation12 + $0x110] sm:$0xff]
    %v482 = vld [vmem:[#allocation12 + $0x118] sm:$0xff]
    %v483 = vld [vmem:[#allocation12 + $0x120] sm:$0xff]
    %v484 = vld [vmem:[#allocation12 + $0x128] sm:$0xff]
    %v485 = vld [vmem:[#allocation12 + $0x130] sm:$0xff]
    %v486 = vld [vmem:[#allocation12 + $0x138] sm:$0xff]
    %v487 = vld [vmem:[#allocation12 + $0x140] sm:$0xff]
    %v488 = vld [vmem:[#allocation12 + $0x148] sm:$0xff]
    %v489 = vld [vmem:[#allocation12 + $0x150] sm:$0xff]
    %v490 = vld [vmem:[#allocation12 + $0x158] sm:$0xff]
    %v491 = vld [vmem:[#allocation12 + $0x160] sm:$0xff]
    %v492 = vld [vmem:[#allocation12 + $0x168] sm:$0xff]
    %v493 = vld [vmem:[#allocation12 + $0x170] sm:$0xff]
    %v494 = vld [vmem:[#allocation12 + $0x178] sm:$0xff]
    %v495 = vld [vmem:[#allocation12 + $0x180] sm:$0xff]
    %v496 = vld [vmem:[#allocation12 + $0x188] sm:$0xff]
    %v497 = vld [vmem:[#allocation12 + $0x190] sm:$0xff]
    %v498 = vld [vmem:[#allocation12 + $0x198] sm:$0xff]
    %v499 = vld [vmem:[#allocation12 + $0x1a0] sm:$0xff]
    %v500 = vld [vmem:[#allocation12 + $0x1a8] sm:$0xff]
    %v501 = vld [vmem:[#allocation12 + $0x1b0] sm:$0xff]
    %v502 = vld [vmem:[#allocation12 + $0x1b8] sm:$0xff]
    %v503 = vld [vmem:[#allocation12 + $0x1c0] sm:$0xff]
    %v504 = vld [vmem:[#allocation12 + $0x1c8] sm:$0xff]
    %v505 = vld [vmem:[#allocation12 + $0x1d0] sm:$0xff]
    %v506 = vld [vmem:[#allocation12 + $0x1d8] sm:$0xff]
    %v507 = vld [vmem:[#allocation12 + $0x1e0] sm:$0xff]
    %v508 = vld [vmem:[#allocation12 + $0x1e8] sm:$0xff]
    %v509 = vld [vmem:[#allocation12 + $0x1f0] sm:$0xff]
    %v510 = vld [vmem:[#allocation12 + $0x1f8] sm:$0xff]
    %511 = vmatprep.subr.mxu0 %v448
    %512 = vmatpush1.msra.mxu0 %v447
    %513 = vmatprep.subr.mxu0 %v452
    %514 = vmatpush1.msra.mxu0 %v451
    %515 = vmatprep.subr.mxu0 %v456
    %516 = vmatpush1.msra.mxu0 %v455
    %517 = vmatprep.subr.mxu0 %v460
    %518 = vmatpush1.msra.mxu0 %v459
    %519 = vmatprep.subr.mxu0 %v464
    %520 = vmatpush1.msra.mxu0 %v463
    %521 = vmatprep.subr.mxu0 %v468
    %522 = vmatpush1.msra.mxu0 %v467
    %523 = vmatprep.subr.mxu0 %v472
    %524 = vmatpush1.msra.mxu0 %v471
    %525 = vmatprep.subr.mxu0 %v476
    %526 = vmatpush1.msra.mxu0 %v475
    %527 = vmatprep.subr.mxu0 %v480
    %528 = vmatpush1.msra.mxu0 %v479
    %529 = vmatprep.subr.mxu0 %v484
    %530 = vmatpush1.msra.mxu0 %v483
    %531 = vmatprep.subr.mxu0 %v488
    %532 = vmatpush1.msra.mxu0 %v487
    %533 = vmatprep.subr.mxu0 %v492
    %534 = vmatpush1.msra.mxu0 %v491
    %535 = vmatprep.subr.mxu0 %v496
    %536 = vmatpush1.msra.mxu0 %v495
    %537 = vmatprep.subr.mxu0 %v500
    %538 = vmatpush1.msra.mxu0 %v499
    %539 = vmatprep.subr.mxu0 %v504
    %540 = vmatpush1.msra.mxu0 %v503
    %541 = vmatprep.subr.mxu0 %v508
    %542 = vmatpush1.msra.mxu0 %v507
    %543 = vmatprep.subr.mxu0 0.0
    %544 = vmatpush1.msra.mxu0 0.0
    %545 = vmatprep.subr.mxu0 0.0
    %546 = vmatpush1.msra.mxu0 0.0
    %547 = vmatprep.subr.mxu0 0.0
    %548 = vmatpush1.msra.mxu0 0.0
    %549 = vmatprep.subr.mxu0 0.0
    %550 = vmatpush1.msra.mxu0 0.0
    %551 = vmatprep.subr.mxu0 0.0
    %552 = vmatpush1.msra.mxu0 0.0
    %553 = vmatprep.subr.mxu0 0.0
    %554 = vmatpush1.msra.mxu0 0.0
    %555 = vmatprep.subr.mxu0 0.0
    %556 = vmatpush1.msra.mxu0 0.0
    %557 = vmatprep.subr.mxu0 0.0
    %558 = vmatpush1.msra.mxu0 0.0
    %559 = vmatprep.subr.mxu0 0.0
    %560 = vmatpush1.msra.mxu0 0.0
    %561 = vmatprep.subr.mxu0 0.0
    %562 = vmatpush1.msra.mxu0 0.0
    %563 = vmatprep.subr.mxu0 0.0
    %564 = vmatpush1.msra.mxu0 0.0
    %565 = vmatprep.subr.mxu0 0.0
    %566 = vmatpush1.msra.mxu0 0.0
    %567 = vmatprep.subr.mxu0 0.0
    %568 = vmatpush1.msra.mxu0 0.0
    %569 = vmatprep.subr.mxu0 0.0
    %570 = vmatpush1.msra.mxu0 0.0
    %571 = vmatprep.subr.mxu0 0.0
    %572 = vmatpush1.msra.mxu0 0.0
    %573 = vmatprep.subr.mxu0 0.0
    %574 = vmatpush1.msra.mxu0 0.0
    %575 = vmatprep.mubr.f32.mxu0 0.0
    %576 = vmatmul.mubr.f32.gmra.mrb[0].mxu0 %v426
    %v577 = vpop.f32.mrb[0].mxu0
    %v578 = vadd.f32 0.0, %v577
    %v579 = vpop.f32.mrb[0].mxu0
    %v580 = vadd.f32 0.0, %v579
    %581 = vdwg.mxu0
    %582 = vmatprep.subr.mxu0 %v450
    %583 = vmatpush1.msra.mxu0 %v449
    %584 = vmatprep.subr.mxu0 %v454
    %585 = vmatpush1.msra.mxu0 %v453
    %586 = vmatprep.subr.mxu0 %v458
    %587 = vmatpush1.msra.mxu0 %v457
    %588 = vmatprep.subr.mxu0 %v462
    %589 = vmatpush1.msra.mxu0 %v461
    %590 = vmatprep.subr.mxu0 %v466
    %591 = vmatpush1.msra.mxu0 %v465
    %592 = vmatprep.subr.mxu0 %v470
    %593 = vmatpush1.msra.mxu0 %v469
    %594 = vmatprep.subr.mxu0 %v474
    %595 = vmatpush1.msra.mxu0 %v473
    %596 = vmatprep.subr.mxu0 %v478
    %597 = vmatpush1.msra.mxu0 %v477
    %598 = vmatprep.subr.mxu0 %v482
    %599 = vmatpush1.msra.mxu0 %v481
    %600 = vmatprep.subr.mxu0 %v486
    %601 = vmatpush1.msra.mxu0 %v485
    %602 = vmatprep.subr.mxu0 %v490
    %603 = vmatpush1.msra.mxu0 %v489
    %604 = vmatprep.subr.mxu0 %v494
    %605 = vmatpush1.msra.mxu0 %v493
    %606 = vmatprep.subr.mxu0 %v498
    %607 = vmatpush1.msra.mxu0 %v497
    %608 = vmatprep.subr.mxu0 %v502
    %609 = vmatpush1.msra.mxu0 %v501
    %610 = vmatprep.subr.mxu0 %v506
    %611 = vmatpush1.msra.mxu0 %v505
    %612 = vmatprep.subr.mxu0 %v510
    %613 = vmatpush1.msra.mxu0 %v509
    %614 = vmatprep.subr.mxu0 0.0
    %615 = vmatpush1.msra.mxu0 0.0
    %616 = vmatprep.subr.mxu0 0.0
    %617 = vmatpush1.msra.mxu0 0.0
    %618 = vmatprep.subr.mxu0 0.0
    %619 = vmatpush1.msra.mxu0 0.0
    %620 = vmatprep.subr.mxu0 0.0
    %621 = vmatpush1.msra.mxu0 0.0
    %622 = vmatprep.subr.mxu0 0.0
    %623 = vmatpush1.msra.mxu0 0.0
    %624 = vmatprep.subr.mxu0 0.0
    %625 = vmatpush1.msra.mxu0 0.0
    %626 = vmatprep.subr.mxu0 0.0
    %627 = vmatpush1.msra.mxu0 0.0
    %628 = vmatprep.subr.mxu0 0.0
    %629 = vmatpush1.msra.mxu0 0.0
    %630 = vmatprep.subr.mxu0 0.0
    %631 = vmatpush1.msra.mxu0 0.0
    %632 = vmatprep.subr.mxu0 0.0
    %633 = vmatpush1.msra.mxu0 0.0
    %634 = vmatprep.subr.mxu0 0.0
    %635 = vmatpush1.msra.mxu0 0.0
    %636 = vmatprep.subr.mxu0 0.0
    %637 = vmatpush1.msra.mxu0 0.0
    %638 = vmatprep.subr.mxu0 0.0
    %639 = vmatpush1.msra.mxu0 0.0
    %640 = vmatprep.subr.mxu0 0.0
    %641 = vmatpush1.msra.mxu0 0.0
    %642 = vmatprep.subr.mxu0 0.0
    %643 = vmatpush1.msra.mxu0 0.0
    %644 = vmatprep.subr.mxu0 0.0
    %645 = vmatpush1.msra.mxu0 0.0
    %646 = vmatprep.mubr.f32.mxu0 0.0
    %647 = vmatmul.mubr.f32.gmra.mrb[0].mxu0 %v426
    %v648 = vpop.f32.mrb[0].mxu0
    %v649 = vadd.f32 0.0, %v648
    %v650 = vpop.f32.mrb[0].mxu0
    %v651 = vadd.f32 0.0, %v650
    %652 = vdwg.mxu0
    %v657 = vcombine.low %v578, %v580
    %v658 = vcombine.high %v578, %v580
    %v659 = vcombine.low %v649, %v651
    %v660 = vcombine.high %v649, %v651
    %v662 = vunpack.c.l.s4 1966171168
    %v663 = vunpack.c.0.s8 %v662
    %v664 = vlaneseq
    %v665 = vshrl.u32 %v664, 7
    %v666 = vsub.s32 %v663, %v665
    %v667 = vrot.slane %v657, %v666
    %v669 = vunpack.c.l.s4 1966171168
    %v670 = vunpack.c.0.s8 %v669
    %v671 = vlaneseq
    %v672 = vshrl.u32 %v671, 7
    %v673 = vsub.s32 %v670, %v672
    %v674 = vrot.slane %v658, %v673
    %v676 = vunpack.c.l.s4 1966171168
    %v677 = vunpack.c.0.s8 %v676
    %v678 = vlaneseq
    %v679 = vshrl.u32 %v678, 7
    %v680 = vsub.s32 %v677, %v679
    %v681 = vrot.slane %v659, %v680
    %v683 = vunpack.c.l.s4 1966171168
    %v684 = vunpack.c.0.s8 %v683
    %v685 = vlaneseq
    %v686 = vshrl.u32 %v685, 7
    %v687 = vsub.s32 %v684, %v686
    %v688 = vrot.slane %v660, %v687
    %v689 = vcombine.low %v667, %v681
    %v690 = vcombine.high %v667, %v681
    %v691 = vcombine.low %v674, %v688
    %v692 = vcombine.high %v674, %v688
    %v694 = vunpack.c.l.s4 1966171168
    %v695 = vunpack.c.0.s8 %v694
    %v696 = vlaneseq
    %v697 = vshrl.u32 %v696, 7
    %v698 = vsub.s32 %v695, %v697
    %v699 = vrot.slane %v689, %v698
    %v701 = vunpack.c.l.s4 1966171168
    %v702 = vunpack.c.0.s8 %v701
    %v703 = vlaneseq
    %v704 = vshrl.u32 %v703, 7
    %v705 = vsub.s32 %v702, %v704
    %v706 = vrot.slane %v691, %v705
    %v708 = vunpack.c.l.s4 1966171168
    %v709 = vunpack.c.0.s8 %v708
    %v710 = vlaneseq
    %v711 = vshrl.u32 %v710, 7
    %v712 = vsub.s32 %v709, %v711
    %v713 = vrot.slane %v690, %v712
    %v715 = vunpack.c.l.s4 1966171168
    %v716 = vunpack.c.0.s8 %v715
    %v717 = vlaneseq
    %v718 = vshrl.u32 %v717, 7
    %v719 = vsub.s32 %v716, %v718
    %v720 = vrot.slane %v692, %v719
    %v721 = vcombine.high %v699, %v699
    %v722 = vcombine.high %v706, %v706
    %v723 = vcombine.high %v713, %v713
    %v724 = vcombine.high %v720, %v720
    %v733 = vadd.f32 %v432, %v699
    %v734 = vadd.f32 %v434, %v713
    %v735 = vadd.f32 %v436, %v721
    %v736 = vadd.f32 %v438, %v723
    %v737 = vadd.f32 %v440, %v706
    %v738 = vadd.f32 %v442, %v720
    %v739 = vadd.f32 %v444, %v722
    %v740 = vadd.f32 %v446, %v724
    %v741 = vmul.f32 %v733, 0.5
    %v742 = vmul.f32 %v734, 0.5
    %v743 = vmul.f32 %v735, 0.5
    %v744 = vmul.f32 %v736, 0.5
    %v745 = vmul.f32 %v737, 0.5
    %v746 = vmul.f32 %v738, 0.5
    %v747 = vmul.f32 %v739, 0.5
    %v748 = vmul.f32 %v740, 0.5
    %v749 = vtanh.pop %v741
    %v750 = vtanh.pop %v742
    %v751 = vtanh.pop %v743
    %v752 = vtanh.pop %v744
    %v753 = vtanh.pop %v745
    %v754 = vtanh.pop %v746
    %v755 = vtanh.pop %v747
    %v756 = vtanh.pop %v748
    %v757 = vmul.f32 %v749, 0.5
    %v758 = vmul.f32 %v750, 0.5
    %v759 = vmul.f32 %v751, 0.5
    %v760 = vmul.f32 %v752, 0.5
    %v761 = vmul.f32 %v753, 0.5
    %v762 = vmul.f32 %v754, 0.5
    %v763 = vmul.f32 %v755, 0.5
    %v764 = vmul.f32 %v756, 0.5
    %v765 = vadd.f32 %v757, 0.5
    %v766 = vadd.f32 %v758, 0.5
    %v767 = vadd.f32 %v759, 0.5
    %v768 = vadd.f32 %v760, 0.5
    %v769 = vadd.f32 %v761, 0.5
    %v770 = vadd.f32 %v762, 0.5
    %v771 = vadd.f32 %v763, 0.5
    %v772 = vadd.f32 %v764, 0.5
    %v781 = vrot.slane %v733, 1
    %v782 = vrot.slane %v734, 1
    %v783 = vrot.slane %v735, 1
    %v784 = vrot.slane %v736, 1
    %v785 = vrot.slane %v737, 1
    %v786 = vrot.slane %v738, 1
    %v787 = vrot.slane %v739, 1
    %v788 = vrot.slane %v740, 1
    %v797 = vmul.f32 %v781, 0.5
    %v798 = vmul.f32 %v782, 0.5
    %v799 = vmul.f32 %v783, 0.5
    %v800 = vmul.f32 %v784, 0.5
    %v801 = vmul.f32 %v785, 0.5
    %v802 = vmul.f32 %v786, 0.5
    %v803 = vmul.f32 %v787, 0.5
    %v804 = vmul.f32 %v788, 0.5
    %v805 = vtanh.pop %v797
    %v806 = vtanh.pop %v798
    %v807 = vtanh.pop %v799
    %v808 = vtanh.pop %v800
    %v809 = vtanh.pop %v801
    %v810 = vtanh.pop %v802
    %v811 = vtanh.pop %v803
    %v812 = vtanh.pop %v804
    %v813 = vmul.f32 %v805, 0.5
    %v814 = vmul.f32 %v806, 0.5
    %v815 = vmul.f32 %v807, 0.5
    %v816 = vmul.f32 %v808, 0.5
    %v817 = vmul.f32 %v809, 0.5
    %v818 = vmul.f32 %v810, 0.5
    %v819 = vmul.f32 %v811, 0.5
    %v820 = vmul.f32 %v812, 0.5
    %v821 = vadd.f32 %v813, 0.5
    %v822 = vadd.f32 %v814, 0.5
    %v823 = vadd.f32 %v815, 0.5
    %v824 = vadd.f32 %v816, 0.5
    %v825 = vadd.f32 %v817, 0.5
    %v826 = vadd.f32 %v818, 0.5
    %v827 = vadd.f32 %v819, 0.5
    %v828 = vadd.f32 %v820, 0.5
    %v829 = vrot.slane %v733, 2
    %v830 = vrot.slane %v734, 2
    %v831 = vrot.slane %v735, 2
    %v832 = vrot.slane %v736, 2
    %v833 = vrot.slane %v737, 2
    %v834 = vrot.slane %v738, 2
    %v835 = vrot.slane %v739, 2
    %v836 = vrot.slane %v740, 2
    %v845 = vtanh.pop %v829
    %v846 = vtanh.pop %v830
    %v847 = vtanh.pop %v831
    %v848 = vtanh.pop %v832
    %v849 = vtanh.pop %v833
    %v850 = vtanh.pop %v834
    %v851 = vtanh.pop %v835
    %v852 = vtanh.pop %v836
    %v853 = vrot.slane %v733, 3
    %v854 = vrot.slane %v734, 3
    %v855 = vrot.slane %v735, 3
    %v856 = vrot.slane %v736, 3
    %v857 = vrot.slane %v737, 3
    %v858 = vrot.slane %v738, 3
    %v859 = vrot.slane %v739, 3
    %v860 = vrot.slane %v740, 3
    %v869 = vmul.f32 %v853, 0.5
    %v870 = vmul.f32 %v854, 0.5
    %v871 = vmul.f32 %v855, 0.5
    %v872 = vmul.f32 %v856, 0.5
    %v873 = vmul.f32 %v857, 0.5
    %v874 = vmul.f32 %v858, 0.5
    %v875 = vmul.f32 %v859, 0.5
    %v876 = vmul.f32 %v860, 0.5
    %v877 = vtanh.pop %v869
    %v878 = vtanh.pop %v870
    %v879 = vtanh.pop %v871
    %v880 = vtanh.pop %v872
    %v881 = vtanh.pop %v873
    %v882 = vtanh.pop %v874
    %v883 = vtanh.pop %v875
    %v884 = vtanh.pop %v876
    %v885 = vmul.f32 %v877, 0.5
    %v886 = vmul.f32 %v878, 0.5
    %v887 = vmul.f32 %v879, 0.5
    %v888 = vmul.f32 %v880, 0.5
    %v889 = vmul.f32 %v881, 0.5
    %v890 = vmul.f32 %v882, 0.5
    %v891 = vmul.f32 %v883, 0.5
    %v892 = vmul.f32 %v884, 0.5
    %v893 = vadd.f32 %v885, 0.5
    %v894 = vadd.f32 %v886, 0.5
    %v895 = vadd.f32 %v887, 0.5
    %v896 = vadd.f32 %v888, 0.5
    %v897 = vadd.f32 %v889, 0.5
    %v898 = vadd.f32 %v890, 0.5
    %v899 = vadd.f32 %v891, 0.5
    %v900 = vadd.f32 %v892, 0.5
    %v902 = vcombine.high %v429, %v429
    %v904 = vunpack.c.l.s4 1966171168
    %v905 = vunpack.c.0.s8 %v904
    %v906 = vlaneseq
    %v907 = vshrl.u32 %v906, 7
    %v908 = vsub.s32 %v905, %v907
    %v909 = vrot.slane %v429, %v908
    %v911 = vunpack.c.l.s4 1966171168
    %v912 = vunpack.c.0.s8 %v911
    %v913 = vlaneseq
    %v914 = vshrl.u32 %v913, 7
    %v915 = vsub.s32 %v912, %v914
    %v916 = vrot.slane %v902, %v915
    %v917 = vcombine.high %v909, %v909
    %v918 = vcombine.high %v916, %v916
    %v920 = vunpack.c.l.s4 1966171168
    %v921 = vunpack.c.0.s8 %v920
    %v922 = vlaneseq
    %v923 = vshrl.u32 %v922, 7
    %v924 = vsub.s32 %v921, %v923
    %v925 = vrot.slane %v909, %v924
    %v927 = vunpack.c.l.s4 1966171168
    %v928 = vunpack.c.0.s8 %v927
    %v929 = vlaneseq
    %v930 = vshrl.u32 %v929, 7
    %v931 = vsub.s32 %v928, %v930
    %v932 = vrot.slane %v916, %v931
    %v934 = vunpack.c.l.s4 1966171168
    %v935 = vunpack.c.0.s8 %v934
    %v936 = vlaneseq
    %v937 = vshrl.u32 %v936, 7
    %v938 = vsub.s32 %v935, %v937
    %v939 = vrot.slane %v917, %v938
    %v941 = vunpack.c.l.s4 1966171168
    %v942 = vunpack.c.0.s8 %v941
    %v943 = vlaneseq
    %v944 = vshrl.u32 %v943, 7
    %v945 = vsub.s32 %v942, %v944
    %v946 = vrot.slane %v918, %v945
    %v947 = vcombine.high %v925, %v925
    %v948 = vcombine.high %v932, %v932
    %v949 = vcombine.high %v939, %v939
    %v950 = vcombine.high %v946, %v946
    %v959 = vmul.f32 %v821, %v925
    %v960 = vmul.f32 %v822, %v939
    %v961 = vmul.f32 %v823, %v947
    %v962 = vmul.f32 %v824, %v949
    %v963 = vmul.f32 %v825, %v932
    %v964 = vmul.f32 %v826, %v946
    %v965 = vmul.f32 %v827, %v948
    %v966 = vmul.f32 %v828, %v950
    %v967 = vmul.f32 %v765, %v845
    %v968 = vmul.f32 %v766, %v846
    %v969 = vmul.f32 %v767, %v847
    %v970 = vmul.f32 %v768, %v848
    %v971 = vmul.f32 %v769, %v849
    %v972 = vmul.f32 %v770, %v850
    %v973 = vmul.f32 %v771, %v851
    %v974 = vmul.f32 %v772, %v852
    %v975 = vadd.f32 %v959, %v967
    %v976 = vadd.f32 %v960, %v968
    %v977 = vadd.f32 %v961, %v969
    %v978 = vadd.f32 %v962, %v970
    %v979 = vadd.f32 %v963, %v971
    %v980 = vadd.f32 %v964, %v972
    %v981 = vadd.f32 %v965, %v973
    %v982 = vadd.f32 %v966, %v974
    %v983 = vtanh.pop %v975
    %v984 = vtanh.pop %v976
    %v985 = vtanh.pop %v977
    %v986 = vtanh.pop %v978
    %v987 = vtanh.pop %v979
    %v988 = vtanh.pop %v980
    %v989 = vtanh.pop %v981
    %v990 = vtanh.pop %v982
    %v991 = vmul.f32 %v893, %v983
    %v992 = vmul.f32 %v894, %v984
    %v993 = vmul.f32 %v895, %v985
    %v994 = vmul.f32 %v896, %v986
    %v995 = vmul.f32 %v897, %v987
    %v996 = vmul.f32 %v898, %v988
    %v997 = vmul.f32 %v899, %v989
    %v998 = vmul.f32 %v900, %v990
    %v999 = vld [vmem:[#allocation13] sm:$0xff]
    %v1000 = vld [vmem:[#allocation13 + $0x8] sm:$0xff]
    %v1001 = vld [vmem:[#allocation13 + $0x10] sm:$0xff]
    %v1002 = vld [vmem:[#allocation13 + $0x18] sm:$0xff]
    %v1003 = vld [vmem:[#allocation13 + $0x20] sm:$0xff]
    %v1004 = vld [vmem:[#allocation13 + $0x28] sm:$0xff]
    %v1005 = vld [vmem:[#allocation13 + $0x30] sm:$0xff]
    %v1006 = vld [vmem:[#allocation13 + $0x38] sm:$0xff]
    %v1007 = vld [vmem:[#allocation13 + $0x40] sm:$0xff]
    %v1008 = vld [vmem:[#allocation13 + $0x48] sm:$0xff]
    %v1009 = vld [vmem:[#allocation13 + $0x50] sm:$0xff]
    %v1010 = vld [vmem:[#allocation13 + $0x58] sm:$0xff]
    %v1011 = vld [vmem:[#allocation13 + $0x60] sm:$0xff]
    %v1012 = vld [vmem:[#allocation13 + $0x68] sm:$0xff]
    %v1013 = vld [vmem:[#allocation13 + $0x70] sm:$0xff]
    %v1014 = vld [vmem:[#allocation13 + $0x78] sm:$0xff]
    %v1015 = vld [vmem:[#allocation13 + $0x80] sm:$0xff]
    %v1016 = vld [vmem:[#allocation13 + $0x88] sm:$0xff]
    %v1017 = vld [vmem:[#allocation13 + $0x90] sm:$0xff]
    %v1018 = vld [vmem:[#allocation13 + $0x98] sm:$0xff]
    %v1019 = vld [vmem:[#allocation13 + $0xa0] sm:$0xff]
    %v1020 = vld [vmem:[#allocation13 + $0xa8] sm:$0xff]
    %v1021 = vld [vmem:[#allocation13 + $0xb0] sm:$0xff]
    %v1022 = vld [vmem:[#allocation13 + $0xb8] sm:$0xff]
    %v1023 = vld [vmem:[#allocation13 + $0xc0] sm:$0xff]
    %v1024 = vld [vmem:[#allocation13 + $0xc8] sm:$0xff]
    %v1025 = vld [vmem:[#allocation13 + $0xd0] sm:$0xff]
    %v1026 = vld [vmem:[#allocation13 + $0xd8] sm:$0xff]
    %v1027 = vld [vmem:[#allocation13 + $0xe0] sm:$0xff]
    %v1028 = vld [vmem:[#allocation13 + $0xe8] sm:$0xff]
    %v1029 = vld [vmem:[#allocation13 + $0xf0] sm:$0xff]
    %v1030 = vld [vmem:[#allocation13 + $0xf8] sm:$0xff]
    %v1031 = vld [vmem:[#allocation13 + $0x100] sm:$0xff]
    %v1032 = vld [vmem:[#allocation13 + $0x108] sm:$0xff]
    %v1033 = vld [vmem:[#allocation13 + $0x110] sm:$0xff]
    %v1034 = vld [vmem:[#allocation13 + $0x118] sm:$0xff]
    %v1035 = vld [vmem:[#allocation13 + $0x120] sm:$0xff]
    %v1036 = vld [vmem:[#allocation13 + $0x128] sm:$0xff]
    %v1037 = vld [vmem:[#allocation13 + $0x130] sm:$0xff]
    %v1038 = vld [vmem:[#allocation13 + $0x138] sm:$0xff]
    %v1039 = vld [vmem:[#allocation13 + $0x140] sm:$0xff]
    %v1040 = vld [vmem:[#allocation13 + $0x148] sm:$0xff]
    %v1041 = vld [vmem:[#allocation13 + $0x150] sm:$0xff]
    %v1042 = vld [vmem:[#allocation13 + $0x158] sm:$0xff]
    %v1043 = vld [vmem:[#allocation13 + $0x160] sm:$0xff]
    %v1044 = vld [vmem:[#allocation13 + $0x168] sm:$0xff]
    %v1045 = vld [vmem:[#allocation13 + $0x170] sm:$0xff]
    %v1046 = vld [vmem:[#allocation13 + $0x178] sm:$0xff]
    %v1047 = vld [vmem:[#allocation13 + $0x180] sm:$0xff]
    %v1048 = vld [vmem:[#allocation13 + $0x188] sm:$0xff]
    %v1049 = vld [vmem:[#allocation13 + $0x190] sm:$0xff]
    %v1050 = vld [vmem:[#allocation13 + $0x198] sm:$0xff]
    %v1051 = vld [vmem:[#allocation13 + $0x1a0] sm:$0xff]
    %v1052 = vld [vmem:[#allocation13 + $0x1a8] sm:$0xff]
    %v1053 = vld [vmem:[#allocation13 + $0x1b0] sm:$0xff]
    %v1054 = vld [vmem:[#allocation13 + $0x1b8] sm:$0xff]
    %v1055 = vld [vmem:[#allocation13 + $0x1c0] sm:$0xff]
    %v1056 = vld [vmem:[#allocation13 + $0x1c8] sm:$0xff]
    %v1057 = vld [vmem:[#allocation13 + $0x1d0] sm:$0xff]
    %v1058 = vld [vmem:[#allocation13 + $0x1d8] sm:$0xff]
    %v1059 = vld [vmem:[#allocation13 + $0x1e0] sm:$0xff]
    %v1060 = vld [vmem:[#allocation13 + $0x1e8] sm:$0xff]
    %v1061 = vld [vmem:[#allocation13 + $0x1f0] sm:$0xff]
    %v1062 = vld [vmem:[#allocation13 + $0x1f8] sm:$0xff]
    %v1063 = vld [vmem:[#allocation15] sm:$0xff]
    %v1064 = vld [vmem:[#allocation15 + $0x8] sm:$0xff]
    %v1065 = vld [vmem:[#allocation15 + $0x10] sm:$0xff]
    %v1066 = vld [vmem:[#allocation15 + $0x18] sm:$0xff]
    %v1067 = vld [vmem:[#allocation15 + $0x20] sm:$0xff]
    %v1068 = vld [vmem:[#allocation15 + $0x28] sm:$0xff]
    %v1069 = vld [vmem:[#allocation15 + $0x30] sm:$0xff]
    %v1070 = vld [vmem:[#allocation15 + $0x38] sm:$0xff]
    %v1071 = vld [vmem:[#allocation15 + $0x40] sm:$0xff]
    %v1072 = vld [vmem:[#allocation15 + $0x48] sm:$0xff]
    %v1073 = vld [vmem:[#allocation15 + $0x50] sm:$0xff]
    %v1074 = vld [vmem:[#allocation15 + $0x58] sm:$0xff]
    %v1075 = vld [vmem:[#allocation15 + $0x60] sm:$0xff]
    %v1076 = vld [vmem:[#allocation15 + $0x68] sm:$0xff]
    %v1077 = vld [vmem:[#allocation15 + $0x70] sm:$0xff]
    %v1078 = vld [vmem:[#allocation15 + $0x78] sm:$0xff]
    %v1079 = vld [vmem:[#allocation15 + $0x80] sm:$0xff]
    %v1080 = vld [vmem:[#allocation15 + $0x88] sm:$0xff]
    %v1081 = vld [vmem:[#allocation15 + $0x90] sm:$0xff]
    %v1082 = vld [vmem:[#allocation15 + $0x98] sm:$0xff]
    %v1083 = vld [vmem:[#allocation15 + $0xa0] sm:$0xff]
    %v1084 = vld [vmem:[#allocation15 + $0xa8] sm:$0xff]
    %v1085 = vld [vmem:[#allocation15 + $0xb0] sm:$0xff]
    %v1086 = vld [vmem:[#allocation15 + $0xb8] sm:$0xff]
    %v1087 = vld [vmem:[#allocation15 + $0xc0] sm:$0xff]
    %v1088 = vld [vmem:[#allocation15 + $0xc8] sm:$0xff]
    %v1089 = vld [vmem:[#allocation15 + $0xd0] sm:$0xff]
    %v1090 = vld [vmem:[#allocation15 + $0xd8] sm:$0xff]
    %v1091 = vld [vmem:[#allocation15 + $0xe0] sm:$0xff]
    %v1092 = vld [vmem:[#allocation15 + $0xe8] sm:$0xff]
    %v1093 = vld [vmem:[#allocation15 + $0xf0] sm:$0xff]
    %v1094 = vld [vmem:[#allocation15 + $0xf8] sm:$0xff]
    %v1095 = vld [vmem:[#allocation15 + $0x100] sm:$0xff]
    %v1096 = vld [vmem:[#allocation15 + $0x108] sm:$0xff]
    %v1097 = vld [vmem:[#allocation15 + $0x110] sm:$0xff]
    %v1098 = vld [vmem:[#allocation15 + $0x118] sm:$0xff]
    %v1099 = vld [vmem:[#allocation15 + $0x120] sm:$0xff]
    %v1100 = vld [vmem:[#allocation15 + $0x128] sm:$0xff]
    %v1101 = vld [vmem:[#allocation15 + $0x130] sm:$0xff]
    %v1102 = vld [vmem:[#allocation15 + $0x138] sm:$0xff]
    %v1103 = vld [vmem:[#allocation15 + $0x140] sm:$0xff]
    %v1104 = vld [vmem:[#allocation15 + $0x148] sm:$0xff]
    %v1105 = vld [vmem:[#allocation15 + $0x150] sm:$0xff]
    %v1106 = vld [vmem:[#allocation15 + $0x158] sm:$0xff]
    %v1107 = vld [vmem:[#allocation15 + $0x160] sm:$0xff]
    %v1108 = vld [vmem:[#allocation15 + $0x168] sm:$0xff]
    %v1109 = vld [vmem:[#allocation15 + $0x170] sm:$0xff]
    %v1110 = vld [vmem:[#allocation15 + $0x178] sm:$0xff]
    %v1111 = vld [vmem:[#allocation15 + $0x180] sm:$0xff]
    %v1112 = vld [vmem:[#allocation15 + $0x188] sm:$0xff]
    %v1113 = vld [vmem:[#allocation15 + $0x190] sm:$0xff]
    %v1114 = vld [vmem:[#allocation15 + $0x198] sm:$0xff]
    %v1115 = vld [vmem:[#allocation15 + $0x1a0] sm:$0xff]
    %v1116 = vld [vmem:[#allocation15 + $0x1a8] sm:$0xff]
    %v1117 = vld [vmem:[#allocation15 + $0x1b0] sm:$0xff]
    %v1118 = vld [vmem:[#allocation15 + $0x1b8] sm:$0xff]
    %v1119 = vld [vmem:[#allocation15 + $0x1c0] sm:$0xff]
    %v1120 = vld [vmem:[#allocation15 + $0x1c8] sm:$0xff]
    %v1121 = vld [vmem:[#allocation15 + $0x1d0] sm:$0xff]
    %v1122 = vld [vmem:[#allocation15 + $0x1d8] sm:$0xff]
    %v1123 = vld [vmem:[#allocation15 + $0x1e0] sm:$0xff]
    %v1124 = vld [vmem:[#allocation15 + $0x1e8] sm:$0xff]
    %v1125 = vld [vmem:[#allocation15 + $0x1f0] sm:$0xff]
    %v1126 = vld [vmem:[#allocation15 + $0x1f8] sm:$0xff]
    %1127 = vmatprep.subr.mxu0 %v1064
    %1128 = vmatpush1.msra.mxu0 %v1063
    %1129 = vmatprep.subr.mxu0 %v1068
    %1130 = vmatpush1.msra.mxu0 %v1067
    %1131 = vmatprep.subr.mxu0 %v1072
    %1132 = vmatpush1.msra.mxu0 %v1071
    %1133 = vmatprep.subr.mxu0 %v1076
    %1134 = vmatpush1.msra.mxu0 %v1075
    %1135 = vmatprep.subr.mxu0 %v1080
    %1136 = vmatpush1.msra.mxu0 %v1079
    %1137 = vmatprep.subr.mxu0 %v1084
    %1138 = vmatpush1.msra.mxu0 %v1083
    %1139 = vmatprep.subr.mxu0 %v1088
    %1140 = vmatpush1.msra.mxu0 %v1087
    %1141 = vmatprep.subr.mxu0 %v1092
    %1142 = vmatpush1.msra.mxu0 %v1091
    %1143 = vmatprep.subr.mxu0 %v1096
    %1144 = vmatpush1.msra.mxu0 %v1095
    %1145 = vmatprep.subr.mxu0 %v1100
    %1146 = vmatpush1.msra.mxu0 %v1099
    %1147 = vmatprep.subr.mxu0 %v1104
    %1148 = vmatpush1.msra.mxu0 %v1103
    %1149 = vmatprep.subr.mxu0 %v1108
    %1150 = vmatpush1.msra.mxu0 %v1107
    %1151 = vmatprep.subr.mxu0 %v1112
    %1152 = vmatpush1.msra.mxu0 %v1111
    %1153 = vmatprep.subr.mxu0 %v1116
    %1154 = vmatpush1.msra.mxu0 %v1115
    %1155 = vmatprep.subr.mxu0 %v1120
    %1156 = vmatpush1.msra.mxu0 %v1119
    %1157 = vmatprep.subr.mxu0 %v1124
    %1158 = vmatpush1.msra.mxu0 %v1123
    %1159 = vmatprep.subr.mxu0 0.0
    %1160 = vmatpush1.msra.mxu0 0.0
    %1161 = vmatprep.subr.mxu0 0.0
    %1162 = vmatpush1.msra.mxu0 0.0
    %1163 = vmatprep.subr.mxu0 0.0
    %1164 = vmatpush1.msra.mxu0 0.0
    %1165 = vmatprep.subr.mxu0 0.0
    %1166 = vmatpush1.msra.mxu0 0.0
    %1167 = vmatprep.subr.mxu0 0.0
    %1168 = vmatpush1.msra.mxu0 0.0
    %1169 = vmatprep.subr.mxu0 0.0
    %1170 = vmatpush1.msra.mxu0 0.0
    %1171 = vmatprep.subr.mxu0 0.0
    %1172 = vmatpush1.msra.mxu0 0.0
    %1173 = vmatprep.subr.mxu0 0.0
    %1174 = vmatpush1.msra.mxu0 0.0
    %1175 = vmatprep.subr.mxu0 0.0
    %1176 = vmatpush1.msra.mxu0 0.0
    %1177 = vmatprep.subr.mxu0 0.0
    %1178 = vmatpush1.msra.mxu0 0.0
    %1179 = vmatprep.subr.mxu0 0.0
    %1180 = vmatpush1.msra.mxu0 0.0
    %1181 = vmatprep.subr.mxu0 0.0
    %1182 = vmatpush1.msra.mxu0 0.0
    %1183 = vmatprep.subr.mxu0 0.0
    %1184 = vmatpush1.msra.mxu0 0.0
    %1185 = vmatprep.subr.mxu0 0.0
    %1186 = vmatpush1.msra.mxu0 0.0
    %1187 = vmatprep.subr.mxu0 0.0
    %1188 = vmatpush1.msra.mxu0 0.0
    %1189 = vmatprep.subr.mxu0 0.0
    %1190 = vmatpush1.msra.mxu0 0.0
    %1191 = vmatprep.mubr.f32.mxu0 0.0
    %1192 = vmatmul.mubr.f32.gmra.mrb[0].mxu0 %v428
    %v1193 = vpop.f32.mrb[0].mxu0
    %v1194 = vadd.f32 0.0, %v1193
    %v1195 = vpop.f32.mrb[0].mxu0
    %v1196 = vadd.f32 0.0, %v1195
    %1197 = vdwg.mxu0
    %1198 = vmatprep.subr.mxu0 %v1066
    %1199 = vmatpush1.msra.mxu0 %v1065
    %1200 = vmatprep.subr.mxu0 %v1070
    %1201 = vmatpush1.msra.mxu0 %v1069
    %1202 = vmatprep.subr.mxu0 %v1074
    %1203 = vmatpush1.msra.mxu0 %v1073
    %1204 = vmatprep.subr.mxu0 %v1078
    %1205 = vmatpush1.msra.mxu0 %v1077
    %1206 = vmatprep.subr.mxu0 %v1082
    %1207 = vmatpush1.msra.mxu0 %v1081
    %1208 = vmatprep.subr.mxu0 %v1086
    %1209 = vmatpush1.msra.mxu0 %v1085
    %1210 = vmatprep.subr.mxu0 %v1090
    %1211 = vmatpush1.msra.mxu0 %v1089
    %1212 = vmatprep.subr.mxu0 %v1094
    %1213 = vmatpush1.msra.mxu0 %v1093
    %1214 = vmatprep.subr.mxu0 %v1098
    %1215 = vmatpush1.msra.mxu0 %v1097
    %1216 = vmatprep.subr.mxu0 %v1102
    %1217 = vmatpush1.msra.mxu0 %v1101
    %1218 = vmatprep.subr.mxu0 %v1106
    %1219 = vmatpush1.msra.mxu0 %v1105
    %1220 = vmatprep.subr.mxu0 %v1110
    %1221 = vmatpush1.msra.mxu0 %v1109
    %1222 = vmatprep.subr.mxu0 %v1114
    %1223 = vmatpush1.msra.mxu0 %v1113
    %1224 = vmatprep.subr.mxu0 %v1118
    %1225 = vmatpush1.msra.mxu0 %v1117
    %1226 = vmatprep.subr.mxu0 %v1122
    %1227 = vmatpush1.msra.mxu0 %v1121
    %1228 = vmatprep.subr.mxu0 %v1126
    %1229 = vmatpush1.msra.mxu0 %v1125
    %1230 = vmatprep.subr.mxu0 0.0
    %1231 = vmatpush1.msra.mxu0 0.0
    %1232 = vmatprep.subr.mxu0 0.0
    %1233 = vmatpush1.msra.mxu0 0.0
    %1234 = vmatprep.subr.mxu0 0.0
    %1235 = vmatpush1.msra.mxu0 0.0
    %1236 = vmatprep.subr.mxu0 0.0
    %1237 = vmatpush1.msra.mxu0 0.0
    %1238 = vmatprep.subr.mxu0 0.0
    %1239 = vmatpush1.msra.mxu0 0.0
    %1240 = vmatprep.subr.mxu0 0.0
    %1241 = vmatpush1.msra.mxu0 0.0
    %1242 = vmatprep.subr.mxu0 0.0
    %1243 = vmatpush1.msra.mxu0 0.0
    %1244 = vmatprep.subr.mxu0 0.0
    %1245 = vmatpush1.msra.mxu0 0.0
    %1246 = vmatprep.subr.mxu0 0.0
    %1247 = vmatpush1.msra.mxu0 0.0
    %1248 = vmatprep.subr.mxu0 0.0
    %1249 = vmatpush1.msra.mxu0 0.0
    %1250 = vmatprep.subr.mxu0 0.0
    %1251 = vmatpush1.msra.mxu0 0.0
    %1252 = vmatprep.subr.mxu0 0.0
    %1253 = vmatpush1.msra.mxu0 0.0
    %1254 = vmatprep.subr.mxu0 0.0
    %1255 = vmatpush1.msra.mxu0 0.0
    %1256 = vmatprep.subr.mxu0 0.0
    %1257 = vmatpush1.msra.mxu0 0.0
    %1258 = vmatprep.subr.mxu0 0.0
    %1259 = vmatpush1.msra.mxu0 0.0
    %1260 = vmatprep.subr.mxu0 0.0
    %1261 = vmatpush1.msra.mxu0 0.0
    %1262 = vmatprep.mubr.f32.mxu0 0.0
    %1263 = vmatmul.mubr.f32.gmra.mrb[0].mxu0 %v428
    %v1264 = vpop.f32.mrb[0].mxu0
    %v1265 = vadd.f32 0.0, %v1264
    %v1266 = vpop.f32.mrb[0].mxu0
    %v1267 = vadd.f32 0.0, %v1266
    %1268 = vdwg.mxu0
    %v1277 = vcombine.low %v991, %v992
    %v1278 = vcombine.low %v993, %v994
    %v1279 = vcombine.low %v995, %v996
    %v1280 = vcombine.low %v997, %v998
    %v1282 = vunpack.c.l.s4 1966171168
    %v1283 = vunpack.c.0.s8 %v1282
    %v1284 = vlaneseq
    %v1285 = vshrl.u32 %v1284, 7
    %v1286 = vsub.s32 %v1283, %v1285
    %v1287 = vrot.slane %v1277, %v1286
    %v1289 = vunpack.c.l.s4 1966171168
    %v1290 = vunpack.c.0.s8 %v1289
    %v1291 = vlaneseq
    %v1292 = vshrl.u32 %v1291, 7
    %v1293 = vsub.s32 %v1290, %v1292
    %v1294 = vrot.slane %v1278, %v1293
    %v1296 = vunpack.c.l.s4 1966171168
    %v1297 = vunpack.c.0.s8 %v1296
    %v1298 = vlaneseq
    %v1299 = vshrl.u32 %v1298, 7
    %v1300 = vsub.s32 %v1297, %v1299
    %v1301 = vrot.slane %v1279, %v1300
    %v1303 = vunpack.c.l.s4 1966171168
    %v1304 = vunpack.c.0.s8 %v1303
    %v1305 = vlaneseq
    %v1306 = vshrl.u32 %v1305, 7
    %v1307 = vsub.s32 %v1304, %v1306
    %v1308 = vrot.slane %v1280, %v1307
    %v1309 = vcombine.low %v1287, %v1294
    %v1310 = vcombine.low %v1301, %v1308
    %v1312 = vunpack.c.l.s4 1966171168
    %v1313 = vunpack.c.0.s8 %v1312
    %v1314 = vlaneseq
    %v1315 = vshrl.u32 %v1314, 7
    %v1316 = vsub.s32 %v1313, %v1315
    %v1317 = vrot.slane %v1309, %v1316
    %v1319 = vunpack.c.l.s4 1966171168
    %v1320 = vunpack.c.0.s8 %v1319
    %v1321 = vlaneseq
    %v1322 = vshrl.u32 %v1321, 7
    %v1323 = vsub.s32 %v1320, %v1322
    %v1324 = vrot.slane %v1310, %v1323
    %v1325 = vcombine.low %v1317, %v1324
    %1327 = vmatprep.subr.mxu0 %v1000
    %1328 = vmatpush1.msra.mxu0 %v999
    %1329 = vmatprep.subr.mxu0 %v1004
    %1330 = vmatpush1.msra.mxu0 %v1003
    %1331 = vmatprep.subr.mxu0 %v1008
    %1332 = vmatpush1.msra.mxu0 %v1007
    %1333 = vmatprep.subr.mxu0 %v1012
    %1334 = vmatpush1.msra.mxu0 %v1011
    %1335 = vmatprep.subr.mxu0 %v1016
    %1336 = vmatpush1.msra.mxu0 %v1015
    %1337 = vmatprep.subr.mxu0 %v1020
    %1338 = vmatpush1.msra.mxu0 %v1019
    %1339 = vmatprep.subr.mxu0 %v1024
    %1340 = vmatpush1.msra.mxu0 %v1023
    %1341 = vmatprep.subr.mxu0 %v1028
    %1342 = vmatpush1.msra.mxu0 %v1027
    %1343 = vmatprep.subr.mxu0 %v1032
    %1344 = vmatpush1.msra.mxu0 %v1031
    %1345 = vmatprep.subr.mxu0 %v1036
    %1346 = vmatpush1.msra.mxu0 %v1035
    %1347 = vmatprep.subr.mxu0 %v1040
    %1348 = vmatpush1.msra.mxu0 %v1039
    %1349 = vmatprep.subr.mxu0 %v1044
    %1350 = vmatpush1.msra.mxu0 %v1043
    %1351 = vmatprep.subr.mxu0 %v1048
    %1352 = vmatpush1.msra.mxu0 %v1047
    %1353 = vmatprep.subr.mxu0 %v1052
    %1354 = vmatpush1.msra.mxu0 %v1051
    %1355 = vmatprep.subr.mxu0 %v1056
    %1356 = vmatpush1.msra.mxu0 %v1055
    %1357 = vmatprep.subr.mxu0 %v1060
    %1358 = vmatpush1.msra.mxu0 %v1059
    %1359 = vmatprep.subr.mxu0 0.0
    %1360 = vmatpush1.msra.mxu0 0.0
    %1361 = vmatprep.subr.mxu0 0.0
    %1362 = vmatpush1.msra.mxu0 0.0
    %1363 = vmatprep.subr.mxu0 0.0
    %1364 = vmatpush1.msra.mxu0 0.0
    %1365 = vmatprep.subr.mxu0 0.0
    %1366 = vmatpush1.msra.mxu0 0.0
    %1367 = vmatprep.subr.mxu0 0.0
    %1368 = vmatpush1.msra.mxu0 0.0
    %1369 = vmatprep.subr.mxu0 0.0
    %1370 = vmatpush1.msra.mxu0 0.0
    %1371 = vmatprep.subr.mxu0 0.0
    %1372 = vmatpush1.msra.mxu0 0.0
    %1373 = vmatprep.subr.mxu0 0.0
    %1374 = vmatpush1.msra.mxu0 0.0
    %1375 = vmatprep.subr.mxu0 0.0
    %1376 = vmatpush1.msra.mxu0 0.0
    %1377 = vmatprep.subr.mxu0 0.0
    %1378 = vmatpush1.msra.mxu0 0.0
    %1379 = vmatprep.subr.mxu0 0.0
    %1380 = vmatpush1.msra.mxu0 0.0
    %1381 = vmatprep.subr.mxu0 0.0
    %1382 = vmatpush1.msra.mxu0 0.0
    %1383 = vmatprep.subr.mxu0 0.0
    %1384 = vmatpush1.msra.mxu0 0.0
    %1385 = vmatprep.subr.mxu0 0.0
    %1386 = vmatpush1.msra.mxu0 0.0
    %1387 = vmatprep.subr.mxu0 0.0
    %1388 = vmatpush1.msra.mxu0 0.0
    %1389 = vmatprep.subr.mxu0 0.0
    %1390 = vmatpush1.msra.mxu0 0.0
    %1391 = vmatprep.mubr.f32.mxu0 0.0
    %1392 = vmatmul.mubr.f32.gmra.mrb[0].mxu0 %v1325
    %v1393 = vpop.f32.mrb[0].mxu0
    %v1394 = vadd.f32 %v1194, %v1393
    %v1395 = vpop.f32.mrb[0].mxu0
    %v1396 = vadd.f32 %v1196, %v1395
    %1397 = vdwg.mxu0
    %1398 = vmatprep.subr.mxu0 %v1002
    %1399 = vmatpush1.msra.mxu0 %v1001
    %1400 = vmatprep.subr.mxu0 %v1006
    %1401 = vmatpush1.msra.mxu0 %v1005
    %1402 = vmatprep.subr.mxu0 %v1010
    %1403 = vmatpush1.msra.mxu0 %v1009
    %1404 = vmatprep.subr.mxu0 %v1014
    %1405 = vmatpush1.msra.mxu0 %v1013
    %1406 = vmatprep.subr.mxu0 %v1018
    %1407 = vmatpush1.msra.mxu0 %v1017
    %1408 = vmatprep.subr.mxu0 %v1022
    %1409 = vmatpush1.msra.mxu0 %v1021
    %1410 = vmatprep.subr.mxu0 %v1026
    %1411 = vmatpush1.msra.mxu0 %v1025
    %1412 = vmatprep.subr.mxu0 %v1030
    %1413 = vmatpush1.msra.mxu0 %v1029
    %1414 = vmatprep.subr.mxu0 %v1034
    %1415 = vmatpush1.msra.mxu0 %v1033
    %1416 = vmatprep.subr.mxu0 %v1038
    %1417 = vmatpush1.msra.mxu0 %v1037
    %1418 = vmatprep.subr.mxu0 %v1042
    %1419 = vmatpush1.msra.mxu0 %v1041
    %1420 = vmatprep.subr.mxu0 %v1046
    %1421 = vmatpush1.msra.mxu0 %v1045
    %1422 = vmatprep.subr.mxu0 %v1050
    %1423 = vmatpush1.msra.mxu0 %v1049
    %1424 = vmatprep.subr.mxu0 %v1054
    %1425 = vmatpush1.msra.mxu0 %v1053
    %1426 = vmatprep.subr.mxu0 %v1058
    %1427 = vmatpush1.msra.mxu0 %v1057
    %1428 = vmatprep.subr.mxu0 %v1062
    %1429 = vmatpush1.msra.mxu0 %v1061
    %1430 = vmatprep.subr.mxu0 0.0
    %1431 = vmatpush1.msra.mxu0 0.0
    %1432 = vmatprep.subr.mxu0 0.0
    %1433 = vmatpush1.msra.mxu0 0.0
    %1434 = vmatprep.subr.mxu0 0.0
    %1435 = vmatpush1.msra.mxu0 0.0
    %1436 = vmatprep.subr.mxu0 0.0
    %1437 = vmatpush1.msra.mxu0 0.0
    %1438 = vmatprep.subr.mxu0 0.0
    %1439 = vmatpush1.msra.mxu0 0.0
    %1440 = vmatprep.subr.mxu0 0.0
    %1441 = vmatpush1.msra.mxu0 0.0
    %1442 = vmatprep.subr.mxu0 0.0
    %1443 = vmatpush1.msra.mxu0 0.0
    %1444 = vmatprep.subr.mxu0 0.0
    %1445 = vmatpush1.msra.mxu0 0.0
    %1446 = vmatprep.subr.mxu0 0.0
    %1447 = vmatpush1.msra.mxu0 0.0
    %1448 = vmatprep.subr.mxu0 0.0
    %1449 = vmatpush1.msra.mxu0 0.0
    %1450 = vmatprep.subr.mxu0 0.0
    %1451 = vmatpush1.msra.mxu0 0.0
    %1452 = vmatprep.subr.mxu0 0.0
    %1453 = vmatpush1.msra.mxu0 0.0
    %1454 = vmatprep.subr.mxu0 0.0
    %1455 = vmatpush1.msra.mxu0 0.0
    %1456 = vmatprep.subr.mxu0 0.0
    %1457 = vmatpush1.msra.mxu0 0.0
    %1458 = vmatprep.subr.mxu0 0.0
    %1459 = vmatpush1.msra.mxu0 0.0
    %1460 = vmatprep.subr.mxu0 0.0
    %1461 = vmatpush1.msra.mxu0 0.0
    %1462 = vmatprep.mubr.f32.mxu0 0.0
    %1463 = vmatmul.mubr.f32.gmra.mrb[0].mxu0 %v1325
    %v1464 = vpop.f32.mrb[0].mxu0
    %v1465 = vadd.f32 %v1265, %v1464
    %v1466 = vpop.f32.mrb[0].mxu0
    %v1467 = vadd.f32 %v1267, %v1466
    %1468 = vdwg.mxu0
    %v1469 = vld [vmem:[%s6] sm:$0xf]
    %v1471 = vlaneseq
    %v1472 = vshrl.u32 %v1471, 7
    %v1473 = vsub.s32 0, %v1472
    %v1474 = vrot.slane %v1469, %v1473
    %v1475 = vlaneseq
    %v1476 = vshrl.u32 %v1475, 7
    %v1477 = vsub.s32 1, %v1476
    %v1478 = vrot.slane %v1469, %v1477
    %v1479 = vlaneseq
    %v1480 = vshrl.u32 %v1479, 7
    %v1481 = vsub.s32 2, %v1480
    %v1482 = vrot.slane %v1469, %v1481
    %v1483 = vlaneseq
    %v1484 = vshrl.u32 %v1483, 7
    %v1485 = vsub.s32 3, %v1484
    %v1486 = vrot.slane %v1469, %v1485
    %v1491 = vadd.f32 %v1394, %v1474
    %v1492 = vadd.f32 %v1396, %v1478
    %v1493 = vadd.f32 %v1465, %v1482
    %v1494 = vadd.f32 %v1467, %v1486
    %v1495 = vmul.f32 %v1491, 0.5
    %v1496 = vtanh.pop %v1495
    %v1497 = vmul.f32 %v1496, 0.5
    %v1498 = vadd.f32 %v1497, 0.5
    %v1499 = vmul.f32 %v1492, 0.5
    %v1500 = vtanh.pop %v1499
    %v1501 = vmul.f32 %v1500, 0.5
    %v1502 = vadd.f32 %v1501, 0.5
    %v1503 = vtanh.pop %v1493
    %v1504 = vmul.f32 %v1494, 0.5
    %v1505 = vtanh.pop %v1504
    %v1506 = vmul.f32 %v1505, 0.5
    %v1507 = vadd.f32 %v1506, 0.5
    %v1508 = vmul.f32 %v1502, %v431
    %v1509 = vmul.f32 %v1498, %v1503
    %v1510 = vadd.f32 %v1508, %v1509
    %v1511 = vtanh.pop %v1510
    %v1512 = vmul.f32 %v1507, %v1511
    %v1514 = vcombine.high %v1512, %v1512
    %v1516 = vunpack.c.l.s4 1966171168
    %v1517 = vunpack.c.0.s8 %v1516
    %v1518 = vlaneseq
    %v1519 = vshrl.u32 %v1518, 7
    %v1520 = vsub.s32 %v1517, %v1519
    %v1521 = vrot.slane %v1512, %v1520
    %v1523 = vunpack.c.l.s4 1966171168
    %v1524 = vunpack.c.0.s8 %v1523
    %v1525 = vlaneseq
    %v1526 = vshrl.u32 %v1525, 7
    %v1527 = vsub.s32 %v1524, %v1526
    %v1528 = vrot.slane %v1514, %v1527
    %v1529 = vcombine.high %v1521, %v1521
    %v1530 = vcombine.high %v1528, %v1528
    %v1532 = vunpack.c.l.s4 1966171168
    %v1533 = vunpack.c.0.s8 %v1532
    %v1534 = vlaneseq
    %v1535 = vshrl.u32 %v1534, 7
    %v1536 = vsub.s32 %v1533, %v1535
    %v1537 = vrot.slane %v1521, %v1536
    %v1539 = vunpack.c.l.s4 1966171168
    %v1540 = vunpack.c.0.s8 %v1539
    %v1541 = vlaneseq
    %v1542 = vshrl.u32 %v1541, 7
    %v1543 = vsub.s32 %v1540, %v1542
    %v1544 = vrot.slane %v1528, %v1543
    %v1546 = vunpack.c.l.s4 1966171168
    %v1547 = vunpack.c.0.s8 %v1546
    %v1548 = vlaneseq
    %v1549 = vshrl.u32 %v1548, 7
    %v1550 = vsub.s32 %v1547, %v1549
    %v1551 = vrot.slane %v1529, %v1550
    %v1553 = vunpack.c.l.s4 1966171168
    %v1554 = vunpack.c.0.s8 %v1553
    %v1555 = vlaneseq
    %v1556 = vshrl.u32 %v1555, 7
    %v1557 = vsub.s32 %v1554, %v1556
    %v1558 = vrot.slane %v1530, %v1557
    %v1559 = vcombine.high %v1537, %v1537
    %v1560 = vcombine.high %v1544, %v1544
    %v1561 = vcombine.high %v1551, %v1551
    %v1562 = vcombine.high %v1558, %v1558
    %1571 = vst [vmem:[#allocation5] sm:$0x1] %v1537
    %1572 = vst [vmem:[#allocation5 + $0x8] sm:$0x1] %v1551
    %1573 = vst [vmem:[#allocation5 + $0x10] sm:$0x1] %v1559
    %1574 = vst [vmem:[#allocation5 + $0x18] sm:$0x1] %v1561
    %1575 = vst [vmem:[#allocation5 + $0x20] sm:$0x1] %v1544
    %1576 = vst [vmem:[#allocation5 + $0x28] sm:$0x1] %v1558
    %1577 = vst [vmem:[#allocation5 + $0x30] sm:$0x1] %v1560
    %1578 = vst [vmem:[#allocation5 + $0x38] sm:$0x1] %v1562
    %s1579 = scalar_lea.vmem [#allocation4], 1
    %v1580 = vld [vmem:[%s1579] ss:$8 sm:$0xf]
    %s1581 = scalar_lea.vmem [#allocation4], 33
    %v1582 = vld [vmem:[%s1581] ss:$8 sm:$0xf]
    %s1583 = scalar_lea.vmem [#allocation4], 65
    %v1584 = vld [vmem:[%s1583] ss:$8 sm:$0xf]
    %s1585 = scalar_lea.vmem [#allocation4], 97
    %v1586 = vld [vmem:[%s1585] ss:$8 sm:$0xf]
    %s1587 = scalar_lea.vmem [#allocation4], 129
    %v1588 = vld [vmem:[%s1587] ss:$8 sm:$0xf]
    %s1589 = scalar_lea.vmem [#allocation4], 161
    %v1590 = vld [vmem:[%s1589] ss:$8 sm:$0xf]
    %s1591 = scalar_lea.vmem [#allocation4], 193
    %v1592 = vld [vmem:[%s1591] ss:$8 sm:$0xf]
    %s1593 = scalar_lea.vmem [#allocation4], 225
    %v1594 = vld [vmem:[%s1593] ss:$8 sm:$0xf]
    %v1595 = vld [vmem:[#allocation12] sm:$0xff]
    %v1596 = vld [vmem:[#allocation12 + $0x8] sm:$0xff]
    %v1597 = vld [vmem:[#allocation12 + $0x10] sm:$0xff]
    %v1598 = vld [vmem:[#allocation12 + $0x18] sm:$0xff]
    %v1599 = vld [vmem:[#allocation12 + $0x20] sm:$0xff]
    %v1600 = vld [vmem:[#allocation12 + $0x28] sm:$0xff]
    %v1601 = vld [vmem:[#allocation12 + $0x30] sm:$0xff]
    %v1602 = vld [vmem:[#allocation12 + $0x38] sm:$0xff]
    %v1603 = vld [vmem:[#allocation12 + $0x40] sm:$0xff]
    %v1604 = vld [vmem:[#allocation12 + $0x48] sm:$0xff]
    %v1605 = vld [vmem:[#allocation12 + $0x50] sm:$0xff]
    %v1606 = vld [vmem:[#allocation12 + $0x58] sm:$0xff]
    %v1607 = vld [vmem:[#allocation12 + $0x60] sm:$0xff]
    %v1608 = vld [vmem:[#allocation12 + $0x68] sm:$0xff]
    %v1609 = vld [vmem:[#allocation12 + $0x70] sm:$0xff]
    %v1610 = vld [vmem:[#allocation12 + $0x78] sm:$0xff]
    %v1611 = vld [vmem:[#allocation12 + $0x80] sm:$0xff]
    %v1612 = vld [vmem:[#allocation12 + $0x88] sm:$0xff]
    %v1613 = vld [vmem:[#allocation12 + $0x90] sm:$0xff]
    %v1614 = vld [vmem:[#allocation12 + $0x98] sm:$0xff]
    %v1615 = vld [vmem:[#allocation12 + $0xa0] sm:$0xff]
    %v1616 = vld [vmem:[#allocation12 + $0xa8] sm:$0xff]
    %v1617 = vld [vmem:[#allocation12 + $0xb0] sm:$0xff]
    %v1618 = vld [vmem:[#allocation12 + $0xb8] sm:$0xff]
    %v1619 = vld [vmem:[#allocation12 + $0xc0] sm:$0xff]
    %v1620 = vld [vmem:[#allocation12 + $0xc8] sm:$0xff]
    %v1621 = vld [vmem:[#allocation12 + $0xd0] sm:$0xff]
    %v1622 = vld [vmem:[#allocation12 + $0xd8] sm:$0xff]
    %v1623 = vld [vmem:[#allocation12 + $0xe0] sm:$0xff]
    %v1624 = vld [vmem:[#allocation12 + $0xe8] sm:$0xff]
    %v1625 = vld [vmem:[#allocation12 + $0xf0] sm:$0xff]
    %v1626 = vld [vmem:[#allocation12 + $0xf8] sm:$0xff]
    %v1627 = vld [vmem:[#allocation12 + $0x100] sm:$0xff]
    %v1628 = vld [vmem:[#allocation12 + $0x108] sm:$0xff]
    %v1629 = vld [vmem:[#allocation12 + $0x110] sm:$0xff]
    %v1630 = vld [vmem:[#allocation12 + $0x118] sm:$0xff]
    %v1631 = vld [vmem:[#allocation12 + $0x120] sm:$0xff]
    %v1632 = vld [vmem:[#allocation12 + $0x128] sm:$0xff]
    %v1633 = vld [vmem:[#allocation12 + $0x130] sm:$0xff]
    %v1634 = vld [vmem:[#allocation12 + $0x138] sm:$0xff]
    %v1635 = vld [vmem:[#allocation12 + $0x140] sm:$0xff]
    %v1636 = vld [vmem:[#allocation12 + $0x148] sm:$0xff]
    %v1637 = vld [vmem:[#allocation12 + $0x150] sm:$0xff]
    %v1638 = vld [vmem:[#allocation12 + $0x158] sm:$0xff]
    %v1639 = vld [vmem:[#allocation12 + $0x160] sm:$0xff]
    %v1640 = vld [vmem:[#allocation12 + $0x168] sm:$0xff]
    %v1641 = vld [vmem:[#allocation12 + $0x170] sm:$0xff]
    %v1642 = vld [vmem:[#allocation12 + $0x178] sm:$0xff]
    %v1643 = vld [vmem:[#allocation12 + $0x180] sm:$0xff]
    %v1644 = vld [vmem:[#allocation12 + $0x188] sm:$0xff]
    %v1645 = vld [vmem:[#allocation12 + $0x190] sm:$0xff]
    %v1646 = vld [vmem:[#allocation12 + $0x198] sm:$0xff]
    %v1647 = vld [vmem:[#allocation12 + $0x1a0] sm:$0xff]
    %v1648 = vld [vmem:[#allocation12 + $0x1a8] sm:$0xff]
    %v1649 = vld [vmem:[#allocation12 + $0x1b0] sm:$0xff]
    %v1650 = vld [vmem:[#allocation12 + $0x1b8] sm:$0xff]
    %v1651 = vld [vmem:[#allocation12 + $0x1c0] sm:$0xff]
    %v1652 = vld [vmem:[#allocation12 + $0x1c8] sm:$0xff]
    %v1653 = vld [vmem:[#allocation12 + $0x1d0] sm:$0xff]
    %v1654 = vld [vmem:[#allocation12 + $0x1d8] sm:$0xff]
    %v1655 = vld [vmem:[#allocation12 + $0x1e0] sm:$0xff]
    %v1656 = vld [vmem:[#allocation12 + $0x1e8] sm:$0xff]
    %v1657 = vld [vmem:[#allocation12 + $0x1f0] sm:$0xff]
    %v1658 = vld [vmem:[#allocation12 + $0x1f8] sm:$0xff]
    %1659 = vmatprep.subr.mxu0 %v1596
    %1660 = vmatpush1.msra.mxu0 %v1595
    %1661 = vmatprep.subr.mxu0 %v1600
    %1662 = vmatpush1.msra.mxu0 %v1599
    %1663 = vmatprep.subr.mxu0 %v1604
    %1664 = vmatpush1.msra.mxu0 %v1603
    %1665 = vmatprep.subr.mxu0 %v1608
    %1666 = vmatpush1.msra.mxu0 %v1607
    %1667 = vmatprep.subr.mxu0 %v1612
    %1668 = vmatpush1.msra.mxu0 %v1611
    %1669 = vmatprep.subr.mxu0 %v1616
    %1670 = vmatpush1.msra.mxu0 %v1615
    %1671 = vmatprep.subr.mxu0 %v1620
    %1672 = vmatpush1.msra.mxu0 %v1619
    %1673 = vmatprep.subr.mxu0 %v1624
    %1674 = vmatpush1.msra.mxu0 %v1623
    %1675 = vmatprep.subr.mxu0 %v1628
    %1676 = vmatpush1.msra.mxu0 %v1627
    %1677 = vmatprep.subr.mxu0 %v1632
    %1678 = vmatpush1.msra.mxu0 %v1631
    %1679 = vmatprep.subr.mxu0 %v1636
    %1680 = vmatpush1.msra.mxu0 %v1635
    %1681 = vmatprep.subr.mxu0 %v1640
    %1682 = vmatpush1.msra.mxu0 %v1639
    %1683 = vmatprep.subr.mxu0 %v1644
    %1684 = vmatpush1.msra.mxu0 %v1643
    %1685 = vmatprep.subr.mxu0 %v1648
    %1686 = vmatpush1.msra.mxu0 %v1647
    %1687 = vmatprep.subr.mxu0 %v1652
    %1688 = vmatpush1.msra.mxu0 %v1651
    %1689 = vmatprep.subr.mxu0 %v1656
    %1690 = vmatpush1.msra.mxu0 %v1655
    %1691 = vmatprep.subr.mxu0 0.0
    %1692 = vmatpush1.msra.mxu0 0.0
    %1693 = vmatprep.subr.mxu0 0.0
    %1694 = vmatpush1.msra.mxu0 0.0
    %1695 = vmatprep.subr.mxu0 0.0
    %1696 = vmatpush1.msra.mxu0 0.0
    %1697 = vmatprep.subr.mxu0 0.0
    %1698 = vmatpush1.msra.mxu0 0.0
    %1699 = vmatprep.subr.mxu0 0.0
    %1700 = vmatpush1.msra.mxu0 0.0
    %1701 = vmatprep.subr.mxu0 0.0
    %1702 = vmatpush1.msra.mxu0 0.0
    %1703 = vmatprep.subr.mxu0 0.0
    %1704 = vmatpush1.msra.mxu0 0.0
    %1705 = vmatprep.subr.mxu0 0.0
    %1706 = vmatpush1.msra.mxu0 0.0
    %1707 = vmatprep.subr.mxu0 0.0
    %1708 = vmatpush1.msra.mxu0 0.0
    %1709 = vmatprep.subr.mxu0 0.0
    %1710 = vmatpush1.msra.mxu0 0.0
    %1711 = vmatprep.subr.mxu0 0.0
    %1712 = vmatpush1.msra.mxu0 0.0
    %1713 = vmatprep.subr.mxu0 0.0
    %1714 = vmatpush1.msra.mxu0 0.0
    %1715 = vmatprep.subr.mxu0 0.0
    %1716 = vmatpush1.msra.mxu0 0.0
    %1717 = vmatprep.subr.mxu0 0.0
    %1718 = vmatpush1.msra.mxu0 0.0
    %1719 = vmatprep.subr.mxu0 0.0
    %1720 = vmatpush1.msra.mxu0 0.0
    %1721 = vmatprep.subr.mxu0 0.0
    %1722 = vmatpush1.msra.mxu0 0.0
    %1723 = vmatprep.mubr.f32.mxu0 0.0
    %1724 = vmatmul.mubr.f32.gmra.mrb[0].mxu0 %v1325
    %v1725 = vpop.f32.mrb[0].mxu0
    %v1726 = vadd.f32 0.0, %v1725
    %v1727 = vpop.f32.mrb[0].mxu0
    %v1728 = vadd.f32 0.0, %v1727
    %1729 = vdwg.mxu0
    %1730 = vmatprep.subr.mxu0 %v1598
    %1731 = vmatpush1.msra.mxu0 %v1597
    %1732 = vmatprep.subr.mxu0 %v1602
    %1733 = vmatpush1.msra.mxu0 %v1601
    %1734 = vmatprep.subr.mxu0 %v1606
    %1735 = vmatpush1.msra.mxu0 %v1605
    %1736 = vmatprep.subr.mxu0 %v1610
    %1737 = vmatpush1.msra.mxu0 %v1609
    %1738 = vmatprep.subr.mxu0 %v1614
    %1739 = vmatpush1.msra.mxu0 %v1613
    %1740 = vmatprep.subr.mxu0 %v1618
    %1741 = vmatpush1.msra.mxu0 %v1617
    %1742 = vmatprep.subr.mxu0 %v1622
    %1743 = vmatpush1.msra.mxu0 %v1621
    %1744 = vmatprep.subr.mxu0 %v1626
    %1745 = vmatpush1.msra.mxu0 %v1625
    %1746 = vmatprep.subr.mxu0 %v1630
    %1747 = vmatpush1.msra.mxu0 %v1629
    %1748 = vmatprep.subr.mxu0 %v1634
    %1749 = vmatpush1.msra.mxu0 %v1633
    %1750 = vmatprep.subr.mxu0 %v1638
    %1751 = vmatpush1.msra.mxu0 %v1637
    %1752 = vmatprep.subr.mxu0 %v1642
    %1753 = vmatpush1.msra.mxu0 %v1641
    %1754 = vmatprep.subr.mxu0 %v1646
    %1755 = vmatpush1.msra.mxu0 %v1645
    %1756 = vmatprep.subr.mxu0 %v1650
    %1757 = vmatpush1.msra.mxu0 %v1649
    %1758 = vmatprep.subr.mxu0 %v1654
    %1759 = vmatpush1.msra.mxu0 %v1653
    %1760 = vmatprep.subr.mxu0 %v1658
    %1761 = vmatpush1.msra.mxu0 %v1657
    %1762 = vmatprep.subr.mxu0 0.0
    %1763 = vmatpush1.msra.mxu0 0.0
    %1764 = vmatprep.subr.mxu0 0.0
    %1765 = vmatpush1.msra.mxu0 0.0
    %1766 = vmatprep.subr.mxu0 0.0
    %1767 = vmatpush1.msra.mxu0 0.0
    %1768 = vmatprep.subr.mxu0 0.0
    %1769 = vmatpush1.msra.mxu0 0.0
    %1770 = vmatprep.subr.mxu0 0.0
    %1771 = vmatpush1.msra.mxu0 0.0
    %1772 = vmatprep.subr.mxu0 0.0
    %1773 = vmatpush1.msra.mxu0 0.0
    %1774 = vmatprep.subr.mxu0 0.0
    %1775 = vmatpush1.msra.mxu0 0.0
    %1776 = vmatprep.subr.mxu0 0.0
    %1777 = vmatpush1.msra.mxu0 0.0
    %1778 = vmatprep.subr.mxu0 0.0
    %1779 = vmatpush1.msra.mxu0 0.0
    %1780 = vmatprep.subr.mxu0 0.0
    %1781 = vmatpush1.msra.mxu0 0.0
    %1782 = vmatprep.subr.mxu0 0.0
    %1783 = vmatpush1.msra.mxu0 0.0
    %1784 = vmatprep.subr.mxu0 0.0
    %1785 = vmatpush1.msra.mxu0 0.0
    %1786 = vmatprep.subr.mxu0 0.0
    %1787 = vmatpush1.msra.mxu0 0.0
    %1788 = vmatprep.subr.mxu0 0.0
    %1789 = vmatpush1.msra.mxu0 0.0
    %1790 = vmatprep.subr.mxu0 0.0
    %1791 = vmatpush1.msra.mxu0 0.0
    %1792 = vmatprep.subr.mxu0 0.0
    %1793 = vmatpush1.msra.mxu0 0.0
    %1794 = vmatprep.mubr.f32.mxu0 0.0
    %1795 = vmatmul.mubr.f32.gmra.mrb[0].mxu0 %v1325
    %v1796 = vpop.f32.mrb[0].mxu0
    %v1797 = vadd.f32 0.0, %v1796
    %v1798 = vpop.f32.mrb[0].mxu0
    %v1799 = vadd.f32 0.0, %v1798
    %1800 = vdwg.mxu0
    %v1805 = vcombine.low %v1726, %v1728
    %v1806 = vcombine.high %v1726, %v1728
    %v1807 = vcombine.low %v1797, %v1799
    %v1808 = vcombine.high %v1797, %v1799
    %v1810 = vunpack.c.l.s4 1966171168
    %v1811 = vunpack.c.0.s8 %v1810
    %v1812 = vlaneseq
    %v1813 = vshrl.u32 %v1812, 7
    %v1814 = vsub.s32 %v1811, %v1813
    %v1815 = vrot.slane %v1805, %v1814
    %v1817 = vunpack.c.l.s4 1966171168
    %v1818 = vunpack.c.0.s8 %v1817
    %v1819 = vlaneseq
    %v1820 = vshrl.u32 %v1819, 7
    %v1821 = vsub.s32 %v1818, %v1820
    %v1822 = vrot.slane %v1806, %v1821
    %v1824 = vunpack.c.l.s4 1966171168
    %v1825 = vunpack.c.0.s8 %v1824
    %v1826 = vlaneseq
    %v1827 = vshrl.u32 %v1826, 7
    %v1828 = vsub.s32 %v1825, %v1827
    %v1829 = vrot.slane %v1807, %v1828
    %v1831 = vunpack.c.l.s4 1966171168
    %v1832 = vunpack.c.0.s8 %v1831
    %v1833 = vlaneseq
    %v1834 = vshrl.u32 %v1833, 7
    %v1835 = vsub.s32 %v1832, %v1834
    %v1836 = vrot.slane %v1808, %v1835
    %v1837 = vcombine.low %v1815, %v1829
    %v1838 = vcombine.high %v1815, %v1829
    %v1839 = vcombine.low %v1822, %v1836
    %v1840 = vcombine.high %v1822, %v1836
    %v1842 = vunpack.c.l.s4 1966171168
    %v1843 = vunpack.c.0.s8 %v1842
    %v1844 = vlaneseq
    %v1845 = vshrl.u32 %v1844, 7
    %v1846 = vsub.s32 %v1843, %v1845
    %v1847 = vrot.slane %v1837, %v1846
    %v1849 = vunpack.c.l.s4 1966171168
    %v1850 = vunpack.c.0.s8 %v1849
    %v1851 = vlaneseq
    %v1852 = vshrl.u32 %v1851, 7
    %v1853 = vsub.s32 %v1850, %v1852
    %v1854 = vrot.slane %v1839, %v1853
    %v1856 = vunpack.c.l.s4 1966171168
    %v1857 = vunpack.c.0.s8 %v1856
    %v1858 = vlaneseq
    %v1859 = vshrl.u32 %v1858, 7
    %v1860 = vsub.s32 %v1857, %v1859
    %v1861 = vrot.slane %v1838, %v1860
    %v1863 = vunpack.c.l.s4 1966171168
    %v1864 = vunpack.c.0.s8 %v1863
    %v1865 = vlaneseq
    %v1866 = vshrl.u32 %v1865, 7
    %v1867 = vsub.s32 %v1864, %v1866
    %v1868 = vrot.slane %v1840, %v1867
    %v1869 = vcombine.high %v1847, %v1847
    %v1870 = vcombine.high %v1854, %v1854
    %v1871 = vcombine.high %v1861, %v1861
    %v1872 = vcombine.high %v1868, %v1868
    %v1881 = vadd.f32 %v1580, %v1847
    %v1882 = vadd.f32 %v1582, %v1861
    %v1883 = vadd.f32 %v1584, %v1869
    %v1884 = vadd.f32 %v1586, %v1871
    %v1885 = vadd.f32 %v1588, %v1854
    %v1886 = vadd.f32 %v1590, %v1868
    %v1887 = vadd.f32 %v1592, %v1870
    %v1888 = vadd.f32 %v1594, %v1872
    %v1889 = vmul.f32 %v1881, 0.5
    %v1890 = vmul.f32 %v1882, 0.5
    %v1891 = vmul.f32 %v1883, 0.5
    %v1892 = vmul.f32 %v1884, 0.5
    %v1893 = vmul.f32 %v1885, 0.5
    %v1894 = vmul.f32 %v1886, 0.5
    %v1895 = vmul.f32 %v1887, 0.5
    %v1896 = vmul.f32 %v1888, 0.5
    %v1897 = vtanh.pop %v1889
    %v1898 = vtanh.pop %v1890
    %v1899 = vtanh.pop %v1891
    %v1900 = vtanh.pop %v1892
    %v1901 = vtanh.pop %v1893
    %v1902 = vtanh.pop %v1894
    %v1903 = vtanh.pop %v1895
    %v1904 = vtanh.pop %v1896
    %v1905 = vmul.f32 %v1897, 0.5
    %v1906 = vmul.f32 %v1898, 0.5
    %v1907 = vmul.f32 %v1899, 0.5
    %v1908 = vmul.f32 %v1900, 0.5
    %v1909 = vmul.f32 %v1901, 0.5
    %v1910 = vmul.f32 %v1902, 0.5
    %v1911 = vmul.f32 %v1903, 0.5
    %v1912 = vmul.f32 %v1904, 0.5
    %v1913 = vadd.f32 %v1905, 0.5
    %v1914 = vadd.f32 %v1906, 0.5
    %v1915 = vadd.f32 %v1907, 0.5
    %v1916 = vadd.f32 %v1908, 0.5
    %v1917 = vadd.f32 %v1909, 0.5
    %v1918 = vadd.f32 %v1910, 0.5
    %v1919 = vadd.f32 %v1911, 0.5
    %v1920 = vadd.f32 %v1912, 0.5
    %v1929 = vrot.slane %v1881, 1
    %v1930 = vrot.slane %v1882, 1
    %v1931 = vrot.slane %v1883, 1
    %v1932 = vrot.slane %v1884, 1
    %v1933 = vrot.slane %v1885, 1
    %v1934 = vrot.slane %v1886, 1
    %v1935 = vrot.slane %v1887, 1
    %v1936 = vrot.slane %v1888, 1
    %v1945 = vmul.f32 %v1929, 0.5
    %v1946 = vmul.f32 %v1930, 0.5
    %v1947 = vmul.f32 %v1931, 0.5
    %v1948 = vmul.f32 %v1932, 0.5
    %v1949 = vmul.f32 %v1933, 0.5
    %v1950 = vmul.f32 %v1934, 0.5
    %v1951 = vmul.f32 %v1935, 0.5
    %v1952 = vmul.f32 %v1936, 0.5
    %v1953 = vtanh.pop %v1945
    %v1954 = vtanh.pop %v1946
    %v1955 = vtanh.pop %v1947
    %v1956 = vtanh.pop %v1948
    %v1957 = vtanh.pop %v1949
    %v1958 = vtanh.pop %v1950
    %v1959 = vtanh.pop %v1951
    %v1960 = vtanh.pop %v1952
    %v1961 = vmul.f32 %v1953, 0.5
    %v1962 = vmul.f32 %v1954, 0.5
    %v1963 = vmul.f32 %v1955, 0.5
    %v1964 = vmul.f32 %v1956, 0.5
    %v1965 = vmul.f32 %v1957, 0.5
    %v1966 = vmul.f32 %v1958, 0.5
    %v1967 = vmul.f32 %v1959, 0.5
    %v1968 = vmul.f32 %v1960, 0.5
    %v1969 = vadd.f32 %v1961, 0.5
    %v1970 = vadd.f32 %v1962, 0.5
    %v1971 = vadd.f32 %v1963, 0.5
    %v1972 = vadd.f32 %v1964, 0.5
    %v1973 = vadd.f32 %v1965, 0.5
    %v1974 = vadd.f32 %v1966, 0.5
    %v1975 = vadd.f32 %v1967, 0.5
    %v1976 = vadd.f32 %v1968, 0.5
    %v1977 = vrot.slane %v1881, 2
    %v1978 = vrot.slane %v1882, 2
    %v1979 = vrot.slane %v1883, 2
    %v1980 = vrot.slane %v1884, 2
    %v1981 = vrot.slane %v1885, 2
    %v1982 = vrot.slane %v1886, 2
    %v1983 = vrot.slane %v1887, 2
    %v1984 = vrot.slane %v1888, 2
    %v1993 = vtanh.pop %v1977
    %v1994 = vtanh.pop %v1978
    %v1995 = vtanh.pop %v1979
    %v1996 = vtanh.pop %v1980
    %v1997 = vtanh.pop %v1981
    %v1998 = vtanh.pop %v1982
    %v1999 = vtanh.pop %v1983
    %v2000 = vtanh.pop %v1984
    %v2001 = vrot.slane %v1881, 3
    %v2002 = vrot.slane %v1882, 3
    %v2003 = vrot.slane %v1883, 3
    %v2004 = vrot.slane %v1884, 3
    %v2005 = vrot.slane %v1885, 3
    %v2006 = vrot.slane %v1886, 3
    %v2007 = vrot.slane %v1887, 3
    %v2008 = vrot.slane %v1888, 3
    %v2017 = vmul.f32 %v2001, 0.5
    %v2018 = vmul.f32 %v2002, 0.5
    %v2019 = vmul.f32 %v2003, 0.5
    %v2020 = vmul.f32 %v2004, 0.5
    %v2021 = vmul.f32 %v2005, 0.5
    %v2022 = vmul.f32 %v2006, 0.5
    %v2023 = vmul.f32 %v2007, 0.5
    %v2024 = vmul.f32 %v2008, 0.5
    %v2025 = vtanh.pop %v2017
    %v2026 = vtanh.pop %v2018
    %v2027 = vtanh.pop %v2019
    %v2028 = vtanh.pop %v2020
    %v2029 = vtanh.pop %v2021
    %v2030 = vtanh.pop %v2022
    %v2031 = vtanh.pop %v2023
    %v2032 = vtanh.pop %v2024
    %v2033 = vmul.f32 %v2025, 0.5
    %v2034 = vmul.f32 %v2026, 0.5
    %v2035 = vmul.f32 %v2027, 0.5
    %v2036 = vmul.f32 %v2028, 0.5
    %v2037 = vmul.f32 %v2029, 0.5
    %v2038 = vmul.f32 %v2030, 0.5
    %v2039 = vmul.f32 %v2031, 0.5
    %v2040 = vmul.f32 %v2032, 0.5
    %v2041 = vadd.f32 %v2033, 0.5
    %v2042 = vadd.f32 %v2034, 0.5
    %v2043 = vadd.f32 %v2035, 0.5
    %v2044 = vadd.f32 %v2036, 0.5
    %v2045 = vadd.f32 %v2037, 0.5
    %v2046 = vadd.f32 %v2038, 0.5
    %v2047 = vadd.f32 %v2039, 0.5
    %v2048 = vadd.f32 %v2040, 0.5
    %v2049 = vmul.f32 %v1969, %v975
    %v2050 = vmul.f32 %v1970, %v976
    %v2051 = vmul.f32 %v1971, %v977
    %v2052 = vmul.f32 %v1972, %v978
    %v2053 = vmul.f32 %v1973, %v979
    %v2054 = vmul.f32 %v1974, %v980
    %v2055 = vmul.f32 %v1975, %v981
    %v2056 = vmul.f32 %v1976, %v982
    %v2057 = vmul.f32 %v1913, %v1993
    %v2058 = vmul.f32 %v1914, %v1994
    %v2059 = vmul.f32 %v1915, %v1995
    %v2060 = vmul.f32 %v1916, %v1996
    %v2061 = vmul.f32 %v1917, %v1997
    %v2062 = vmul.f32 %v1918, %v1998
    %v2063 = vmul.f32 %v1919, %v1999
    %v2064 = vmul.f32 %v1920, %v2000
    %v2065 = vadd.f32 %v2049, %v2057
    %v2066 = vadd.f32 %v2050, %v2058
    %v2067 = vadd.f32 %v2051, %v2059
    %v2068 = vadd.f32 %v2052, %v2060
    %v2069 = vadd.f32 %v2053, %v2061
    %v2070 = vadd.f32 %v2054, %v2062
    %v2071 = vadd.f32 %v2055, %v2063
    %v2072 = vadd.f32 %v2056, %v2064
    %v2073 = vtanh.pop %v2065
    %v2074 = vtanh.pop %v2066
    %v2075 = vtanh.pop %v2067
    %v2076 = vtanh.pop %v2068
    %v2077 = vtanh.pop %v2069
    %v2078 = vtanh.pop %v2070
    %v2079 = vtanh.pop %v2071
    %v2080 = vtanh.pop %v2072
    %v2081 = vmul.f32 %v2041, %v2073
    %v2082 = vmul.f32 %v2042, %v2074
    %v2083 = vmul.f32 %v2043, %v2075
    %v2084 = vmul.f32 %v2044, %v2076
    %v2085 = vmul.f32 %v2045, %v2077
    %v2086 = vmul.f32 %v2046, %v2078
    %v2087 = vmul.f32 %v2047, %v2079
    %v2088 = vmul.f32 %v2048, %v2080
    %v2089 = vld [vmem:[#allocation13] sm:$0xff]
    %v2090 = vld [vmem:[#allocation13 + $0x8] sm:$0xff]
    %v2091 = vld [vmem:[#allocation13 + $0x10] sm:$0xff]
    %v2092 = vld [vmem:[#allocation13 + $0x18] sm:$0xff]
    %v2093 = vld [vmem:[#allocation13 + $0x20] sm:$0xff]
    %v2094 = vld [vmem:[#allocation13 + $0x28] sm:$0xff]
    %v2095 = vld [vmem:[#allocation13 + $0x30] sm:$0xff]
    %v2096 = vld [vmem:[#allocation13 + $0x38] sm:$0xff]
    %v2097 = vld [vmem:[#allocation13 + $0x40] sm:$0xff]
    %v2098 = vld [vmem:[#allocation13 + $0x48] sm:$0xff]
    %v2099 = vld [vmem:[#allocation13 + $0x50] sm:$0xff]
    %v2100 = vld [vmem:[#allocation13 + $0x58] sm:$0xff]
    %v2101 = vld [vmem:[#allocation13 + $0x60] sm:$0xff]
    %v2102 = vld [vmem:[#allocation13 + $0x68] sm:$0xff]
    %v2103 = vld [vmem:[#allocation13 + $0x70] sm:$0xff]
    %v2104 = vld [vmem:[#allocation13 + $0x78] sm:$0xff]
    %v2105 = vld [vmem:[#allocation13 + $0x80] sm:$0xff]
    %v2106 = vld [vmem:[#allocation13 + $0x88] sm:$0xff]
    %v2107 = vld [vmem:[#allocation13 + $0x90] sm:$0xff]
    %v2108 = vld [vmem:[#allocation13 + $0x98] sm:$0xff]
    %v2109 = vld [vmem:[#allocation13 + $0xa0] sm:$0xff]
    %v2110 = vld [vmem:[#allocation13 + $0xa8] sm:$0xff]
    %v2111 = vld [vmem:[#allocation13 + $0xb0] sm:$0xff]
    %v2112 = vld [vmem:[#allocation13 + $0xb8] sm:$0xff]
    %v2113 = vld [vmem:[#allocation13 + $0xc0] sm:$0xff]
    %v2114 = vld [vmem:[#allocation13 + $0xc8] sm:$0xff]
    %v2115 = vld [vmem:[#allocation13 + $0xd0] sm:$0xff]
    %v2116 = vld [vmem:[#allocation13 + $0xd8] sm:$0xff]
    %v2117 = vld [vmem:[#allocation13 + $0xe0] sm:$0xff]
    %v2118 = vld [vmem:[#allocation13 + $0xe8] sm:$0xff]
    %v2119 = vld [vmem:[#allocation13 + $0xf0] sm:$0xff]
    %v2120 = vld [vmem:[#allocation13 + $0xf8] sm:$0xff]
    %v2121 = vld [vmem:[#allocation13 + $0x100] sm:$0xff]
    %v2122 = vld [vmem:[#allocation13 + $0x108] sm:$0xff]
    %v2123 = vld [vmem:[#allocation13 + $0x110] sm:$0xff]
    %v2124 = vld [vmem:[#allocation13 + $0x118] sm:$0xff]
    %v2125 = vld [vmem:[#allocation13 + $0x120] sm:$0xff]
    %v2126 = vld [vmem:[#allocation13 + $0x128] sm:$0xff]
    %v2127 = vld [vmem:[#allocation13 + $0x130] sm:$0xff]
    %v2128 = vld [vmem:[#allocation13 + $0x138] sm:$0xff]
    %v2129 = vld [vmem:[#allocation13 + $0x140] sm:$0xff]
    %v2130 = vld [vmem:[#allocation13 + $0x148] sm:$0xff]
    %v2131 = vld [vmem:[#allocation13 + $0x150] sm:$0xff]
    %v2132 = vld [vmem:[#allocation13 + $0x158] sm:$0xff]
    %v2133 = vld [vmem:[#allocation13 + $0x160] sm:$0xff]
    %v2134 = vld [vmem:[#allocation13 + $0x168] sm:$0xff]
    %v2135 = vld [vmem:[#allocation13 + $0x170] sm:$0xff]
    %v2136 = vld [vmem:[#allocation13 + $0x178] sm:$0xff]
    %v2137 = vld [vmem:[#allocation13 + $0x180] sm:$0xff]
    %v2138 = vld [vmem:[#allocation13 + $0x188] sm:$0xff]
    %v2139 = vld [vmem:[#allocation13 + $0x190] sm:$0xff]
    %v2140 = vld [vmem:[#allocation13 + $0x198] sm:$0xff]
    %v2141 = vld [vmem:[#allocation13 + $0x1a0] sm:$0xff]
    %v2142 = vld [vmem:[#allocation13 + $0x1a8] sm:$0xff]
    %v2143 = vld [vmem:[#allocation13 + $0x1b0] sm:$0xff]
    %v2144 = vld [vmem:[#allocation13 + $0x1b8] sm:$0xff]
    %v2145 = vld [vmem:[#allocation13 + $0x1c0] sm:$0xff]
    %v2146 = vld [vmem:[#allocation13 + $0x1c8] sm:$0xff]
    %v2147 = vld [vmem:[#allocation13 + $0x1d0] sm:$0xff]
    %v2148 = vld [vmem:[#allocation13 + $0x1d8] sm:$0xff]
    %v2149 = vld [vmem:[#allocation13 + $0x1e0] sm:$0xff]
    %v2150 = vld [vmem:[#allocation13 + $0x1e8] sm:$0xff]
    %v2151 = vld [vmem:[#allocation13 + $0x1f0] sm:$0xff]
    %v2152 = vld [vmem:[#allocation13 + $0x1f8] sm:$0xff]
    %v2153 = vld [vmem:[#allocation15] sm:$0xff]
    %v2154 = vld [vmem:[#allocation15 + $0x8] sm:$0xff]
    %v2155 = vld [vmem:[#allocation15 + $0x10] sm:$0xff]
    %v2156 = vld [vmem:[#allocation15 + $0x18] sm:$0xff]
    %v2157 = vld [vmem:[#allocation15 + $0x20] sm:$0xff]
    %v2158 = vld [vmem:[#allocation15 + $0x28] sm:$0xff]
    %v2159 = vld [vmem:[#allocation15 + $0x30] sm:$0xff]
    %v2160 = vld [vmem:[#allocation15 + $0x38] sm:$0xff]
    %v2161 = vld [vmem:[#allocation15 + $0x40] sm:$0xff]
    %v2162 = vld [vmem:[#allocation15 + $0x48] sm:$0xff]
    %v2163 = vld [vmem:[#allocation15 + $0x50] sm:$0xff]
    %v2164 = vld [vmem:[#allocation15 + $0x58] sm:$0xff]
    %v2165 = vld [vmem:[#allocation15 + $0x60] sm:$0xff]
    %v2166 = vld [vmem:[#allocation15 + $0x68] sm:$0xff]
    %v2167 = vld [vmem:[#allocation15 + $0x70] sm:$0xff]
    %v2168 = vld [vmem:[#allocation15 + $0x78] sm:$0xff]
    %v2169 = vld [vmem:[#allocation15 + $0x80] sm:$0xff]
    %v2170 = vld [vmem:[#allocation15 + $0x88] sm:$0xff]
    %v2171 = vld [vmem:[#allocation15 + $0x90] sm:$0xff]
    %v2172 = vld [vmem:[#allocation15 + $0x98] sm:$0xff]
    %v2173 = vld [vmem:[#allocation15 + $0xa0] sm:$0xff]
    %v2174 = vld [vmem:[#allocation15 + $0xa8] sm:$0xff]
    %v2175 = vld [vmem:[#allocation15 + $0xb0] sm:$0xff]
    %v2176 = vld [vmem:[#allocation15 + $0xb8] sm:$0xff]
    %v2177 = vld [vmem:[#allocation15 + $0xc0] sm:$0xff]
    %v2178 = vld [vmem:[#allocation15 + $0xc8] sm:$0xff]
    %v2179 = vld [vmem:[#allocation15 + $0xd0] sm:$0xff]
    %v2180 = vld [vmem:[#allocation15 + $0xd8] sm:$0xff]
    %v2181 = vld [vmem:[#allocation15 + $0xe0] sm:$0xff]
    %v2182 = vld [vmem:[#allocation15 + $0xe8] sm:$0xff]
    %v2183 = vld [vmem:[#allocation15 + $0xf0] sm:$0xff]
    %v2184 = vld [vmem:[#allocation15 + $0xf8] sm:$0xff]
    %v2185 = vld [vmem:[#allocation15 + $0x100] sm:$0xff]
    %v2186 = vld [vmem:[#allocation15 + $0x108] sm:$0xff]
    %v2187 = vld [vmem:[#allocation15 + $0x110] sm:$0xff]
    %v2188 = vld [vmem:[#allocation15 + $0x118] sm:$0xff]
    %v2189 = vld [vmem:[#allocation15 + $0x120] sm:$0xff]
    %v2190 = vld [vmem:[#allocation15 + $0x128] sm:$0xff]
    %v2191 = vld [vmem:[#allocation15 + $0x130] sm:$0xff]
    %v2192 = vld [vmem:[#allocation15 + $0x138] sm:$0xff]
    %v2193 = vld [vmem:[#allocation15 + $0x140] sm:$0xff]
    %v2194 = vld [vmem:[#allocation15 + $0x148] sm:$0xff]
    %v2195 = vld [vmem:[#allocation15 + $0x150] sm:$0xff]
    %v2196 = vld [vmem:[#allocation15 + $0x158] sm:$0xff]
    %v2197 = vld [vmem:[#allocation15 + $0x160] sm:$0xff]
    %v2198 = vld [vmem:[#allocation15 + $0x168] sm:$0xff]
    %v2199 = vld [vmem:[#allocation15 + $0x170] sm:$0xff]
    %v2200 = vld [vmem:[#allocation15 + $0x178] sm:$0xff]
    %v2201 = vld [vmem:[#allocation15 + $0x180] sm:$0xff]
    %v2202 = vld [vmem:[#allocation15 + $0x188] sm:$0xff]
    %v2203 = vld [vmem:[#allocation15 + $0x190] sm:$0xff]
    %v2204 = vld [vmem:[#allocation15 + $0x198] sm:$0xff]
    %v2205 = vld [vmem:[#allocation15 + $0x1a0] sm:$0xff]
    %v2206 = vld [vmem:[#allocation15 + $0x1a8] sm:$0xff]
    %v2207 = vld [vmem:[#allocation15 + $0x1b0] sm:$0xff]
    %v2208 = vld [vmem:[#allocation15 + $0x1b8] sm:$0xff]
    %v2209 = vld [vmem:[#allocation15 + $0x1c0] sm:$0xff]
    %v2210 = vld [vmem:[#allocation15 + $0x1c8] sm:$0xff]
    %v2211 = vld [vmem:[#allocation15 + $0x1d0] sm:$0xff]
    %v2212 = vld [vmem:[#allocation15 + $0x1d8] sm:$0xff]
    %v2213 = vld [vmem:[#allocation15 + $0x1e0] sm:$0xff]
    %v2214 = vld [vmem:[#allocation15 + $0x1e8] sm:$0xff]
    %v2215 = vld [vmem:[#allocation15 + $0x1f0] sm:$0xff]
    %v2216 = vld [vmem:[#allocation15 + $0x1f8] sm:$0xff]
    %2217 = vmatprep.subr.mxu0 %v2154
    %2218 = vmatpush1.msra.mxu0 %v2153
    %2219 = vmatprep.subr.mxu0 %v2158
    %2220 = vmatpush1.msra.mxu0 %v2157
    %2221 = vmatprep.subr.mxu0 %v2162
    %2222 = vmatpush1.msra.mxu0 %v2161
    %2223 = vmatprep.subr.mxu0 %v2166
    %2224 = vmatpush1.msra.mxu0 %v2165
    %2225 = vmatprep.subr.mxu0 %v2170
    %2226 = vmatpush1.msra.mxu0 %v2169
    %2227 = vmatprep.subr.mxu0 %v2174
    %2228 = vmatpush1.msra.mxu0 %v2173
    %2229 = vmatprep.subr.mxu0 %v2178
    %2230 = vmatpush1.msra.mxu0 %v2177
    %2231 = vmatprep.subr.mxu0 %v2182
    %2232 = vmatpush1.msra.mxu0 %v2181
    %2233 = vmatprep.subr.mxu0 %v2186
    %2234 = vmatpush1.msra.mxu0 %v2185
    %2235 = vmatprep.subr.mxu0 %v2190
    %2236 = vmatpush1.msra.mxu0 %v2189
    %2237 = vmatprep.subr.mxu0 %v2194
    %2238 = vmatpush1.msra.mxu0 %v2193
    %2239 = vmatprep.subr.mxu0 %v2198
    %2240 = vmatpush1.msra.mxu0 %v2197
    %2241 = vmatprep.subr.mxu0 %v2202
    %2242 = vmatpush1.msra.mxu0 %v2201
    %2243 = vmatprep.subr.mxu0 %v2206
    %2244 = vmatpush1.msra.mxu0 %v2205
    %2245 = vmatprep.subr.mxu0 %v2210
    %2246 = vmatpush1.msra.mxu0 %v2209
    %2247 = vmatprep.subr.mxu0 %v2214
    %2248 = vmatpush1.msra.mxu0 %v2213
    %2249 = vmatprep.subr.mxu0 0.0
    %2250 = vmatpush1.msra.mxu0 0.0
    %2251 = vmatprep.subr.mxu0 0.0
    %2252 = vmatpush1.msra.mxu0 0.0
    %2253 = vmatprep.subr.mxu0 0.0
    %2254 = vmatpush1.msra.mxu0 0.0
    %2255 = vmatprep.subr.mxu0 0.0
    %2256 = vmatpush1.msra.mxu0 0.0
    %2257 = vmatprep.subr.mxu0 0.0
    %2258 = vmatpush1.msra.mxu0 0.0
    %2259 = vmatprep.subr.mxu0 0.0
    %2260 = vmatpush1.msra.mxu0 0.0
    %2261 = vmatprep.subr.mxu0 0.0
    %2262 = vmatpush1.msra.mxu0 0.0
    %2263 = vmatprep.subr.mxu0 0.0
    %2264 = vmatpush1.msra.mxu0 0.0
    %2265 = vmatprep.subr.mxu0 0.0
    %2266 = vmatpush1.msra.mxu0 0.0
    %2267 = vmatprep.subr.mxu0 0.0
    %2268 = vmatpush1.msra.mxu0 0.0
    %2269 = vmatprep.subr.mxu0 0.0
    %2270 = vmatpush1.msra.mxu0 0.0
    %2271 = vmatprep.subr.mxu0 0.0
    %2272 = vmatpush1.msra.mxu0 0.0
    %2273 = vmatprep.subr.mxu0 0.0
    %2274 = vmatpush1.msra.mxu0 0.0
    %2275 = vmatprep.subr.mxu0 0.0
    %2276 = vmatpush1.msra.mxu0 0.0
    %2277 = vmatprep.subr.mxu0 0.0
    %2278 = vmatpush1.msra.mxu0 0.0
    %2279 = vmatprep.subr.mxu0 0.0
    %2280 = vmatpush1.msra.mxu0 0.0
    %2281 = vmatprep.mubr.f32.mxu0 0.0
    %2282 = vmatmul.mubr.f32.gmra.mrb[0].mxu0 %v1512
    %v2283 = vpop.f32.mrb[0].mxu0
    %v2284 = vadd.f32 0.0, %v2283
    %v2285 = vpop.f32.mrb[0].mxu0
    %v2286 = vadd.f32 0.0, %v2285
    %2287 = vdwg.mxu0
    %2288 = vmatprep.subr.mxu0 %v2156
    %2289 = vmatpush1.msra.mxu0 %v2155
    %2290 = vmatprep.subr.mxu0 %v2160
    %2291 = vmatpush1.msra.mxu0 %v2159
    %2292 = vmatprep.subr.mxu0 %v2164
    %2293 = vmatpush1.msra.mxu0 %v2163
    %2294 = vmatprep.subr.mxu0 %v2168
    %2295 = vmatpush1.msra.mxu0 %v2167
    %2296 = vmatprep.subr.mxu0 %v2172
    %2297 = vmatpush1.msra.mxu0 %v2171
    %2298 = vmatprep.subr.mxu0 %v2176
    %2299 = vmatpush1.msra.mxu0 %v2175
    %2300 = vmatprep.subr.mxu0 %v2180
    %2301 = vmatpush1.msra.mxu0 %v2179
    %2302 = vmatprep.subr.mxu0 %v2184
    %2303 = vmatpush1.msra.mxu0 %v2183
    %2304 = vmatprep.subr.mxu0 %v2188
    %2305 = vmatpush1.msra.mxu0 %v2187
    %2306 = vmatprep.subr.mxu0 %v2192
    %2307 = vmatpush1.msra.mxu0 %v2191
    %2308 = vmatprep.subr.mxu0 %v2196
    %2309 = vmatpush1.msra.mxu0 %v2195
    %2310 = vmatprep.subr.mxu0 %v2200
    %2311 = vmatpush1.msra.mxu0 %v2199
    %2312 = vmatprep.subr.mxu0 %v2204
    %2313 = vmatpush1.msra.mxu0 %v2203
    %2314 = vmatprep.subr.mxu0 %v2208
    %2315 = vmatpush1.msra.mxu0 %v2207
    %2316 = vmatprep.subr.mxu0 %v2212
    %2317 = vmatpush1.msra.mxu0 %v2211
    %2318 = vmatprep.subr.mxu0 %v2216
    %2319 = vmatpush1.msra.mxu0 %v2215
    %2320 = vmatprep.subr.mxu0 0.0
    %2321 = vmatpush1.msra.mxu0 0.0
    %2322 = vmatprep.subr.mxu0 0.0
    %2323 = vmatpush1.msra.mxu0 0.0
    %2324 = vmatprep.subr.mxu0 0.0
    %2325 = vmatpush1.msra.mxu0 0.0
    %2326 = vmatprep.subr.mxu0 0.0
    %2327 = vmatpush1.msra.mxu0 0.0
    %2328 = vmatprep.subr.mxu0 0.0
    %2329 = vmatpush1.msra.mxu0 0.0
    %2330 = vmatprep.subr.mxu0 0.0
    %2331 = vmatpush1.msra.mxu0 0.0
    %2332 = vmatprep.subr.mxu0 0.0
    %2333 = vmatpush1.msra.mxu0 0.0
    %2334 = vmatprep.subr.mxu0 0.0
    %2335 = vmatpush1.msra.mxu0 0.0
    %2336 = vmatprep.subr.mxu0 0.0
    %2337 = vmatpush1.msra.mxu0 0.0
    %2338 = vmatprep.subr.mxu0 0.0
    %2339 = vmatpush1.msra.mxu0 0.0
    %2340 = vmatprep.subr.mxu0 0.0
    %2341 = vmatpush1.msra.mxu0 0.0
    %2342 = vmatprep.subr.mxu0 0.0
    %2343 = vmatpush1.msra.mxu0 0.0
    %2344 = vmatprep.subr.mxu0 0.0
    %2345 = vmatpush1.msra.mxu0 0.0
    %2346 = vmatprep.subr.mxu0 0.0
    %2347 = vmatpush1.msra.mxu0 0.0
    %2348 = vmatprep.subr.mxu0 0.0
    %2349 = vmatpush1.msra.mxu0 0.0
    %2350 = vmatprep.subr.mxu0 0.0
    %2351 = vmatpush1.msra.mxu0 0.0
    %2352 = vmatprep.mubr.f32.mxu0 0.0
    %2353 = vmatmul.mubr.f32.gmra.mrb[0].mxu0 %v1512
    %v2354 = vpop.f32.mrb[0].mxu0
    %v2355 = vadd.f32 0.0, %v2354
    %v2356 = vpop.f32.mrb[0].mxu0
    %v2357 = vadd.f32 0.0, %v2356
    %2358 = vdwg.mxu0
    %v2367 = vcombine.low %v2081, %v2082
    %v2368 = vcombine.low %v2083, %v2084
    %v2369 = vcombine.low %v2085, %v2086
    %v2370 = vcombine.low %v2087, %v2088
    %v2372 = vunpack.c.l.s4 1966171168
    %v2373 = vunpack.c.0.s8 %v2372
    %v2374 = vlaneseq
    %v2375 = vshrl.u32 %v2374, 7
    %v2376 = vsub.s32 %v2373, %v2375
    %v2377 = vrot.slane %v2367, %v2376
    %v2379 = vunpack.c.l.s4 1966171168
    %v2380 = vunpack.c.0.s8 %v2379
    %v2381 = vlaneseq
    %v2382 = vshrl.u32 %v2381, 7
    %v2383 = vsub.s32 %v2380, %v2382
    %v2384 = vrot.slane %v2368, %v2383
    %v2386 = vunpack.c.l.s4 1966171168
    %v2387 = vunpack.c.0.s8 %v2386
    %v2388 = vlaneseq
    %v2389 = vshrl.u32 %v2388, 7
    %v2390 = vsub.s32 %v2387, %v2389
    %v2391 = vrot.slane %v2369, %v2390
    %v2393 = vunpack.c.l.s4 1966171168
    %v2394 = vunpack.c.0.s8 %v2393
    %v2395 = vlaneseq
    %v2396 = vshrl.u32 %v2395, 7
    %v2397 = vsub.s32 %v2394, %v2396
    %v2398 = vrot.slane %v2370, %v2397
    %v2399 = vcombine.low %v2377, %v2384
    %v2400 = vcombine.low %v2391, %v2398
    %v2402 = vunpack.c.l.s4 1966171168
    %v2403 = vunpack.c.0.s8 %v2402
    %v2404 = vlaneseq
    %v2405 = vshrl.u32 %v2404, 7
    %v2406 = vsub.s32 %v2403, %v2405
    %v2407 = vrot.slane %v2399, %v2406
    %v2409 = vunpack.c.l.s4 1966171168
    %v2410 = vunpack.c.0.s8 %v2409
    %v2411 = vlaneseq
    %v2412 = vshrl.u32 %v2411, 7
    %v2413 = vsub.s32 %v2410, %v2412
    %v2414 = vrot.slane %v2400, %v2413
    %v2415 = vcombine.low %v2407, %v2414
    %2417 = vmatprep.subr.mxu0 %v2090
    %2418 = vmatpush1.msra.mxu0 %v2089
    %2419 = vmatprep.subr.mxu0 %v2094
    %2420 = vmatpush1.msra.mxu0 %v2093
    %2421 = vmatprep.subr.mxu0 %v2098
    %2422 = vmatpush1.msra.mxu0 %v2097
    %2423 = vmatprep.subr.mxu0 %v2102
    %2424 = vmatpush1.msra.mxu0 %v2101
    %2425 = vmatprep.subr.mxu0 %v2106
    %2426 = vmatpush1.msra.mxu0 %v2105
    %2427 = vmatprep.subr.mxu0 %v2110
    %2428 = vmatpush1.msra.mxu0 %v2109
    %2429 = vmatprep.subr.mxu0 %v2114
    %2430 = vmatpush1.msra.mxu0 %v2113
    %2431 = vmatprep.subr.mxu0 %v2118
    %2432 = vmatpush1.msra.mxu0 %v2117
    %2433 = vmatprep.subr.mxu0 %v2122
    %2434 = vmatpush1.msra.mxu0 %v2121
    %2435 = vmatprep.subr.mxu0 %v2126
    %2436 = vmatpush1.msra.mxu0 %v2125
    %2437 = vmatprep.subr.mxu0 %v2130
    %2438 = vmatpush1.msra.mxu0 %v2129
    %2439 = vmatprep.subr.mxu0 %v2134
    %2440 = vmatpush1.msra.mxu0 %v2133
    %2441 = vmatprep.subr.mxu0 %v2138
    %2442 = vmatpush1.msra.mxu0 %v2137
    %2443 = vmatprep.subr.mxu0 %v2142
    %2444 = vmatpush1.msra.mxu0 %v2141
    %2445 = vmatprep.subr.mxu0 %v2146
    %2446 = vmatpush1.msra.mxu0 %v2145
    %2447 = vmatprep.subr.mxu0 %v2150
    %2448 = vmatpush1.msra.mxu0 %v2149
    %2449 = vmatprep.subr.mxu0 0.0
    %2450 = vmatpush1.msra.mxu0 0.0
    %2451 = vmatprep.subr.mxu0 0.0
    %2452 = vmatpush1.msra.mxu0 0.0
    %2453 = vmatprep.subr.mxu0 0.0
    %2454 = vmatpush1.msra.mxu0 0.0
    %2455 = vmatprep.subr.mxu0 0.0
    %2456 = vmatpush1.msra.mxu0 0.0
    %2457 = vmatprep.subr.mxu0 0.0
    %2458 = vmatpush1.msra.mxu0 0.0
    %2459 = vmatprep.subr.mxu0 0.0
    %2460 = vmatpush1.msra.mxu0 0.0
    %2461 = vmatprep.subr.mxu0 0.0
    %2462 = vmatpush1.msra.mxu0 0.0
    %2463 = vmatprep.subr.mxu0 0.0
    %2464 = vmatpush1.msra.mxu0 0.0
    %2465 = vmatprep.subr.mxu0 0.0
    %2466 = vmatpush1.msra.mxu0 0.0
    %2467 = vmatprep.subr.mxu0 0.0
    %2468 = vmatpush1.msra.mxu0 0.0
    %2469 = vmatprep.subr.mxu0 0.0
    %2470 = vmatpush1.msra.mxu0 0.0
    %2471 = vmatprep.subr.mxu0 0.0
    %2472 = vmatpush1.msra.mxu0 0.0
    %2473 = vmatprep.subr.mxu0 0.0
    %2474 = vmatpush1.msra.mxu0 0.0
    %2475 = vmatprep.subr.mxu0 0.0
    %2476 = vmatpush1.msra.mxu0 0.0
    %2477 = vmatprep.subr.mxu0 0.0
    %2478 = vmatpush1.msra.mxu0 0.0
    %2479 = vmatprep.subr.mxu0 0.0
    %2480 = vmatpush1.msra.mxu0 0.0
    %2481 = vmatprep.mubr.f32.mxu0 0.0
    %2482 = vmatmul.mubr.f32.gmra.mrb[0].mxu0 %v2415
    %v2483 = vpop.f32.mrb[0].mxu0
    %v2484 = vadd.f32 %v2284, %v2483
    %v2485 = vpop.f32.mrb[0].mxu0
    %v2486 = vadd.f32 %v2286, %v2485
    %2487 = vdwg.mxu0
    %2488 = vmatprep.subr.mxu0 %v2092
    %2489 = vmatpush1.msra.mxu0 %v2091
    %2490 = vmatprep.subr.mxu0 %v2096
    %2491 = vmatpush1.msra.mxu0 %v2095
    %2492 = vmatprep.subr.mxu0 %v2100
    %2493 = vmatpush1.msra.mxu0 %v2099
    %2494 = vmatprep.subr.mxu0 %v2104
    %2495 = vmatpush1.msra.mxu0 %v2103
    %2496 = vmatprep.subr.mxu0 %v2108
    %2497 = vmatpush1.msra.mxu0 %v2107
    %2498 = vmatprep.subr.mxu0 %v2112
    %2499 = vmatpush1.msra.mxu0 %v2111
    %2500 = vmatprep.subr.mxu0 %v2116
    %2501 = vmatpush1.msra.mxu0 %v2115
    %2502 = vmatprep.subr.mxu0 %v2120
    %2503 = vmatpush1.msra.mxu0 %v2119
    %2504 = vmatprep.subr.mxu0 %v2124
    %2505 = vmatpush1.msra.mxu0 %v2123
    %2506 = vmatprep.subr.mxu0 %v2128
    %2507 = vmatpush1.msra.mxu0 %v2127
    %2508 = vmatprep.subr.mxu0 %v2132
    %2509 = vmatpush1.msra.mxu0 %v2131
    %2510 = vmatprep.subr.mxu0 %v2136
    %2511 = vmatpush1.msra.mxu0 %v2135
    %2512 = vmatprep.subr.mxu0 %v2140
    %2513 = vmatpush1.msra.mxu0 %v2139
    %2514 = vmatprep.subr.mxu0 %v2144
    %2515 = vmatpush1.msra.mxu0 %v2143
    %2516 = vmatprep.subr.mxu0 %v2148
    %2517 = vmatpush1.msra.mxu0 %v2147
    %2518 = vmatprep.subr.mxu0 %v2152
    %2519 = vmatpush1.msra.mxu0 %v2151
    %2520 = vmatprep.subr.mxu0 0.0
    %2521 = vmatpush1.msra.mxu0 0.0
    %2522 = vmatprep.subr.mxu0 0.0
    %2523 = vmatpush1.msra.mxu0 0.0
    %2524 = vmatprep.subr.mxu0 0.0
    %2525 = vmatpush1.msra.mxu0 0.0
    %2526 = vmatprep.subr.mxu0 0.0
    %2527 = vmatpush1.msra.mxu0 0.0
    %2528 = vmatprep.subr.mxu0 0.0
    %2529 = vmatpush1.msra.mxu0 0.0
    %2530 = vmatprep.subr.mxu0 0.0
    %2531 = vmatpush1.msra.mxu0 0.0
    %2532 = vmatprep.subr.mxu0 0.0
    %2533 = vmatpush1.msra.mxu0 0.0
    %2534 = vmatprep.subr.mxu0 0.0
    %2535 = vmatpush1.msra.mxu0 0.0
    %2536 = vmatprep.subr.mxu0 0.0
    %2537 = vmatpush1.msra.mxu0 0.0
    %2538 = vmatprep.subr.mxu0 0.0
    %2539 = vmatpush1.msra.mxu0 0.0
    %2540 = vmatprep.subr.mxu0 0.0
    %2541 = vmatpush1.msra.mxu0 0.0
    %2542 = vmatprep.subr.mxu0 0.0
    %2543 = vmatpush1.msra.mxu0 0.0
    %2544 = vmatprep.subr.mxu0 0.0
    %2545 = vmatpush1.msra.mxu0 0.0
    %2546 = vmatprep.subr.mxu0 0.0
    %2547 = vmatpush1.msra.mxu0 0.0
    %2548 = vmatprep.subr.mxu0 0.0
    %2549 = vmatpush1.msra.mxu0 0.0
    %2550 = vmatprep.subr.mxu0 0.0
    %2551 = vmatpush1.msra.mxu0 0.0
    %2552 = vmatprep.mubr.f32.mxu0 0.0
    %2553 = vmatmul.mubr.f32.gmra.mrb[0].mxu0 %v2415
    %v2554 = vpop.f32.mrb[0].mxu0
    %v2555 = vadd.f32 %v2355, %v2554
    %v2556 = vpop.f32.mrb[0].mxu0
    %v2557 = vadd.f32 %v2357, %v2556
    %2558 = vdwg.mxu0
    %v2559 = vld [vmem:[%s6] sm:$0xf]
    %v2561 = vlaneseq
    %v2562 = vshrl.u32 %v2561, 7
    %v2563 = vsub.s32 0, %v2562
    %v2564 = vrot.slane %v2559, %v2563
    %v2565 = vlaneseq
    %v2566 = vshrl.u32 %v2565, 7
    %v2567 = vsub.s32 1, %v2566
    %v2568 = vrot.slane %v2559, %v2567
    %v2569 = vlaneseq
    %v2570 = vshrl.u32 %v2569, 7
    %v2571 = vsub.s32 2, %v2570
    %v2572 = vrot.slane %v2559, %v2571
    %v2573 = vlaneseq
    %v2574 = vshrl.u32 %v2573, 7
    %v2575 = vsub.s32 3, %v2574
    %v2576 = vrot.slane %v2559, %v2575
    %v2581 = vadd.f32 %v2484, %v2564
    %v2582 = vadd.f32 %v2486, %v2568
    %v2583 = vadd.f32 %v2555, %v2572
    %v2584 = vadd.f32 %v2557, %v2576
    %v2585 = vmul.f32 %v2581, 0.5
    %v2586 = vtanh.pop %v2585
    %v2587 = vmul.f32 %v2586, 0.5
    %v2588 = vadd.f32 %v2587, 0.5
    %v2589 = vmul.f32 %v2582, 0.5
    %v2590 = vtanh.pop %v2589
    %v2591 = vmul.f32 %v2590, 0.5
    %v2592 = vadd.f32 %v2591, 0.5
    %v2593 = vtanh.pop %v2583
    %v2594 = vmul.f32 %v2584, 0.5
    %v2595 = vtanh.pop %v2594
    %v2596 = vmul.f32 %v2595, 0.5
    %v2597 = vadd.f32 %v2596, 0.5
    %v2598 = vmul.f32 %v2592, %v1510
    %v2599 = vmul.f32 %v2588, %v2593
    %v2600 = vadd.f32 %v2598, %v2599
    %v2601 = vtanh.pop %v2600
    %v2602 = vmul.f32 %v2597, %v2601
    %v2604 = vcombine.high %v2602, %v2602
    %v2606 = vunpack.c.l.s4 1966171168
    %v2607 = vunpack.c.0.s8 %v2606
    %v2608 = vlaneseq
    %v2609 = vshrl.u32 %v2608, 7
    %v2610 = vsub.s32 %v2607, %v2609
    %v2611 = vrot.slane %v2602, %v2610
    %v2613 = vunpack.c.l.s4 1966171168
    %v2614 = vunpack.c.0.s8 %v2613
    %v2615 = vlaneseq
    %v2616 = vshrl.u32 %v2615, 7
    %v2617 = vsub.s32 %v2614, %v2616
    %v2618 = vrot.slane %v2604, %v2617
    %v2619 = vcombine.high %v2611, %v2611
    %v2620 = vcombine.high %v2618, %v2618
    %v2622 = vunpack.c.l.s4 1966171168
    %v2623 = vunpack.c.0.s8 %v2622
    %v2624 = vlaneseq
    %v2625 = vshrl.u32 %v2624, 7
    %v2626 = vsub.s32 %v2623, %v2625
    %v2627 = vrot.slane %v2611, %v2626
    %v2629 = vunpack.c.l.s4 1966171168
    %v2630 = vunpack.c.0.s8 %v2629
    %v2631 = vlaneseq
    %v2632 = vshrl.u32 %v2631, 7
    %v2633 = vsub.s32 %v2630, %v2632
    %v2634 = vrot.slane %v2618, %v2633
    %v2636 = vunpack.c.l.s4 1966171168
    %v2637 = vunpack.c.0.s8 %v2636
    %v2638 = vlaneseq
    %v2639 = vshrl.u32 %v2638, 7
    %v2640 = vsub.s32 %v2637, %v2639
    %v2641 = vrot.slane %v2619, %v2640
    %v2643 = vunpack.c.l.s4 1966171168
    %v2644 = vunpack.c.0.s8 %v2643
    %v2645 = vlaneseq
    %v2646 = vshrl.u32 %v2645, 7
    %v2647 = vsub.s32 %v2644, %v2646
    %v2648 = vrot.slane %v2620, %v2647
    %v2649 = vcombine.high %v2627, %v2627
    %v2650 = vcombine.high %v2634, %v2634
    %v2651 = vcombine.high %v2641, %v2641
    %v2652 = vcombine.high %v2648, %v2648
    %2661 = vst [vmem:[#allocation5 + $0x1] sm:$0x1] %v2627
    %2662 = vst [vmem:[#allocation5 + $0x9] sm:$0x1] %v2641
    %2663 = vst [vmem:[#allocation5 + $0x11] sm:$0x1] %v2649
    %2664 = vst [vmem:[#allocation5 + $0x19] sm:$0x1] %v2651
    %2665 = vst [vmem:[#allocation5 + $0x21] sm:$0x1] %v2634
    %2666 = vst [vmem:[#allocation5 + $0x29] sm:$0x1] %v2648
    %2667 = vst [vmem:[#allocation5 + $0x31] sm:$0x1] %v2650
    %2668 = vst [vmem:[#allocation5 + $0x39] sm:$0x1] %v2652
    %s2669 = scalar_lea.vmem [#allocation4], 2
    %v2670 = vld [vmem:[%s2669] ss:$8 sm:$0xf]
    %s2671 = scalar_lea.vmem [#allocation4], 34
    %v2672 = vld [vmem:[%s2671] ss:$8 sm:$0xf]
    %s2673 = scalar_lea.vmem [#allocation4], 66
    %v2674 = vld [vmem:[%s2673] ss:$8 sm:$0xf]
    %s2675 = scalar_lea.vmem [#allocation4], 98
    %v2676 = vld [vmem:[%s2675] ss:$8 sm:$0xf]
    %s2677 = scalar_lea.vmem [#allocation4], 130
    %v2678 = vld [vmem:[%s2677] ss:$8 sm:$0xf]
    %s2679 = scalar_lea.vmem [#allocation4], 162
    %v2680 = vld [vmem:[%s2679] ss:$8 sm:$0xf]
    %s2681 = scalar_lea.vmem [#allocation4], 194
    %v2682 = vld [vmem:[%s2681] ss:$8 sm:$0xf]
    %s2683 = scalar_lea.vmem [#allocation4], 226
    %v2684 = vld [vmem:[%s2683] ss:$8 sm:$0xf]
    %v2685 = vld [vmem:[#allocation12] sm:$0xff]
    %v2686 = vld [vmem:[#allocation12 + $0x8] sm:$0xff]
    %v2687 = vld [vmem:[#allocation12 + $0x10] sm:$0xff]
    %v2688 = vld [vmem:[#allocation12 + $0x18] sm:$0xff]
    %v2689 = vld [vmem:[#allocation12 + $0x20] sm:$0xff]
    %v2690 = vld [vmem:[#allocation12 + $0x28] sm:$0xff]
    %v2691 = vld [vmem:[#allocation12 + $0x30] sm:$0xff]
    %v2692 = vld [vmem:[#allocation12 + $0x38] sm:$0xff]
    %v2693 = vld [vmem:[#allocation12 + $0x40] sm:$0xff]
    %v2694 = vld [vmem:[#allocation12 + $0x48] sm:$0xff]
    %v2695 = vld [vmem:[#allocation12 + $0x50] sm:$0xff]
    %v2696 = vld [vmem:[#allocation12 + $0x58] sm:$0xff]
    %v2697 = vld [vmem:[#allocation12 + $0x60] sm:$0xff]
    %v2698 = vld [vmem:[#allocation12 + $0x68] sm:$0xff]
    %v2699 = vld [vmem:[#allocation12 + $0x70] sm:$0xff]
    %v2700 = vld [vmem:[#allocation12 + $0x78] sm:$0xff]
    %v2701 = vld [vmem:[#allocation12 + $0x80] sm:$0xff]
    %v2702 = vld [vmem:[#allocation12 + $0x88] sm:$0xff]
    %v2703 = vld [vmem:[#allocation12 + $0x90] sm:$0xff]
    %v2704 = vld [vmem:[#allocation12 + $0x98] sm:$0xff]
    %v2705 = vld [vmem:[#allocation12 + $0xa0] sm:$0xff]
    %v2706 = vld [vmem:[#allocation12 + $0xa8] sm:$0xff]
    %v2707 = vld [vmem:[#allocation12 + $0xb0] sm:$0xff]
    %v2708 = vld [vmem:[#allocation12 + $0xb8] sm:$0xff]
    %v2709 = vld [vmem:[#allocation12 + $0xc0] sm:$0xff]
    %v2710 = vld [vmem:[#allocation12 + $0xc8] sm:$0xff]
    %v2711 = vld [vmem:[#allocation12 + $0xd0] sm:$0xff]
    %v2712 = vld [vmem:[#allocation12 + $0xd8] sm:$0xff]
    %v2713 = vld [vmem:[#allocation12 + $0xe0] sm:$0xff]
    %v2714 = vld [vmem:[#allocation12 + $0xe8] sm:$0xff]
    %v2715 = vld [vmem:[#allocation12 + $0xf0] sm:$0xff]
    %v2716 = vld [vmem:[#allocation12 + $0xf8] sm:$0xff]
    %v2717 = vld [vmem:[#allocation12 + $0x100] sm:$0xff]
    %v2718 = vld [vmem:[#allocation12 + $0x108] sm:$0xff]
    %v2719 = vld [vmem:[#allocation12 + $0x110] sm:$0xff]
    %v2720 = vld [vmem:[#allocation12 + $0x118] sm:$0xff]
    %v2721 = vld [vmem:[#allocation12 + $0x120] sm:$0xff]
    %v2722 = vld [vmem:[#allocation12 + $0x128] sm:$0xff]
    %v2723 = vld [vmem:[#allocation12 + $0x130] sm:$0xff]
    %v2724 = vld [vmem:[#allocation12 + $0x138] sm:$0xff]
    %v2725 = vld [vmem:[#allocation12 + $0x140] sm:$0xff]
    %v2726 = vld [vmem:[#allocation12 + $0x148] sm:$0xff]
    %v2727 = vld [vmem:[#allocation12 + $0x150] sm:$0xff]
    %v2728 = vld [vmem:[#allocation12 + $0x158] sm:$0xff]
    %v2729 = vld [vmem:[#allocation12 + $0x160] sm:$0xff]
    %v2730 = vld [vmem:[#allocation12 + $0x168] sm:$0xff]
    %v2731 = vld [vmem:[#allocation12 + $0x170] sm:$0xff]
    %v2732 = vld [vmem:[#allocation12 + $0x178] sm:$0xff]
    %v2733 = vld [vmem:[#allocation12 + $0x180] sm:$0xff]
    %v2734 = vld [vmem:[#allocation12 + $0x188] sm:$0xff]
    %v2735 = vld [vmem:[#allocation12 + $0x190] sm:$0xff]
    %v2736 = vld [vmem:[#allocation12 + $0x198] sm:$0xff]
    %v2737 = vld [vmem:[#allocation12 + $0x1a0] sm:$0xff]
    %v2738 = vld [vmem:[#allocation12 + $0x1a8] sm:$0xff]
    %v2739 = vld [vmem:[#allocation12 + $0x1b0] sm:$0xff]
    %v2740 = vld [vmem:[#allocation12 + $0x1b8] sm:$0xff]
    %v2741 = vld [vmem:[#allocation12 + $0x1c0] sm:$0xff]
    %v2742 = vld [vmem:[#allocation12 + $0x1c8] sm:$0xff]
    %v2743 = vld [vmem:[#allocation12 + $0x1d0] sm:$0xff]
    %v2744 = vld [vmem:[#allocation12 + $0x1d8] sm:$0xff]
    %v2745 = vld [vmem:[#allocation12 + $0x1e0] sm:$0xff]
    %v2746 = vld [vmem:[#allocation12 + $0x1e8] sm:$0xff]
    %v2747 = vld [vmem:[#allocation12 + $0x1f0] sm:$0xff]
    %v2748 = vld [vmem:[#allocation12 + $0x1f8] sm:$0xff]
    %2749 = vmatprep.subr.mxu0 %v2686
    %2750 = vmatpush1.msra.mxu0 %v2685
    %2751 = vmatprep.subr.mxu0 %v2690
    %2752 = vmatpush1.msra.mxu0 %v2689
    %2753 = vmatprep.subr.mxu0 %v2694
    %2754 = vmatpush1.msra.mxu0 %v2693
    %2755 = vmatprep.subr.mxu0 %v2698
    %2756 = vmatpush1.msra.mxu0 %v2697
    %2757 = vmatprep.subr.mxu0 %v2702
    %2758 = vmatpush1.msra.mxu0 %v2701
    %2759 = vmatprep.subr.mxu0 %v2706
    %2760 = vmatpush1.msra.mxu0 %v2705
    %2761 = vmatprep.subr.mxu0 %v2710
    %2762 = vmatpush1.msra.mxu0 %v2709
    %2763 = vmatprep.subr.mxu0 %v2714
    %2764 = vmatpush1.msra.mxu0 %v2713
    %2765 = vmatprep.subr.mxu0 %v2718
    %2766 = vmatpush1.msra.mxu0 %v2717
    %2767 = vmatprep.subr.mxu0 %v2722
    %2768 = vmatpush1.msra.mxu0 %v2721
    %2769 = vmatprep.subr.mxu0 %v2726
    %2770 = vmatpush1.msra.mxu0 %v2725
    %2771 = vmatprep.subr.mxu0 %v2730
    %2772 = vmatpush1.msra.mxu0 %v2729
    %2773 = vmatprep.subr.mxu0 %v2734
    %2774 = vmatpush1.msra.mxu0 %v2733
    %2775 = vmatprep.subr.mxu0 %v2738
    %2776 = vmatpush1.msra.mxu0 %v2737
    %2777 = vmatprep.subr.mxu0 %v2742
    %2778 = vmatpush1.msra.mxu0 %v2741
    %2779 = vmatprep.subr.mxu0 %v2746
    %2780 = vmatpush1.msra.mxu0 %v2745
    %2781 = vmatprep.subr.mxu0 0.0
    %2782 = vmatpush1.msra.mxu0 0.0
    %2783 = vmatprep.subr.mxu0 0.0
    %2784 = vmatpush1.msra.mxu0 0.0
    %2785 = vmatprep.subr.mxu0 0.0
    %2786 = vmatpush1.msra.mxu0 0.0
    %2787 = vmatprep.subr.mxu0 0.0
    %2788 = vmatpush1.msra.mxu0 0.0
    %2789 = vmatprep.subr.mxu0 0.0
    %2790 = vmatpush1.msra.mxu0 0.0
    %2791 = vmatprep.subr.mxu0 0.0
    %2792 = vmatpush1.msra.mxu0 0.0
    %2793 = vmatprep.subr.mxu0 0.0
    %2794 = vmatpush1.msra.mxu0 0.0
    %2795 = vmatprep.subr.mxu0 0.0
    %2796 = vmatpush1.msra.mxu0 0.0
    %2797 = vmatprep.subr.mxu0 0.0
    %2798 = vmatpush1.msra.mxu0 0.0
    %2799 = vmatprep.subr.mxu0 0.0
    %2800 = vmatpush1.msra.mxu0 0.0
    %2801 = vmatprep.subr.mxu0 0.0
    %2802 = vmatpush1.msra.mxu0 0.0
    %2803 = vmatprep.subr.mxu0 0.0
    %2804 = vmatpush1.msra.mxu0 0.0
    %2805 = vmatprep.subr.mxu0 0.0
    %2806 = vmatpush1.msra.mxu0 0.0
    %2807 = vmatprep.subr.mxu0 0.0
    %2808 = vmatpush1.msra.mxu0 0.0
    %2809 = vmatprep.subr.mxu0 0.0
    %2810 = vmatpush1.msra.mxu0 0.0
    %2811 = vmatprep.subr.mxu0 0.0
    %2812 = vmatpush1.msra.mxu0 0.0
    %2813 = vmatprep.mubr.f32.mxu0 0.0
    %2814 = vmatmul.mubr.f32.gmra.mrb[0].mxu0 %v2415
    %v2815 = vpop.f32.mrb[0].mxu0
    %v2816 = vadd.f32 0.0, %v2815
    %v2817 = vpop.f32.mrb[0].mxu0
    %v2818 = vadd.f32 0.0, %v2817
    %2819 = vdwg.mxu0
    %2820 = vmatprep.subr.mxu0 %v2688
    %2821 = vmatpush1.msra.mxu0 %v2687
    %2822 = vmatprep.subr.mxu0 %v2692
    %2823 = vmatpush1.msra.mxu0 %v2691
    %2824 = vmatprep.subr.mxu0 %v2696
    %2825 = vmatpush1.msra.mxu0 %v2695
    %2826 = vmatprep.subr.mxu0 %v2700
    %2827 = vmatpush1.msra.mxu0 %v2699
    %2828 = vmatprep.subr.mxu0 %v2704
    %2829 = vmatpush1.msra.mxu0 %v2703
    %2830 = vmatprep.subr.mxu0 %v2708
    %2831 = vmatpush1.msra.mxu0 %v2707
    %2832 = vmatprep.subr.mxu0 %v2712
    %2833 = vmatpush1.msra.mxu0 %v2711
    %2834 = vmatprep.subr.mxu0 %v2716
    %2835 = vmatpush1.msra.mxu0 %v2715
    %2836 = vmatprep.subr.mxu0 %v2720
    %2837 = vmatpush1.msra.mxu0 %v2719
    %2838 = vmatprep.subr.mxu0 %v2724
    %2839 = vmatpush1.msra.mxu0 %v2723
    %2840 = vmatprep.subr.mxu0 %v2728
    %2841 = vmatpush1.msra.mxu0 %v2727
    %2842 = vmatprep.subr.mxu0 %v2732
    %2843 = vmatpush1.msra.mxu0 %v2731
    %2844 = vmatprep.subr.mxu0 %v2736
    %2845 = vmatpush1.msra.mxu0 %v2735
    %2846 = vmatprep.subr.mxu0 %v2740
    %2847 = vmatpush1.msra.mxu0 %v2739
    %2848 = vmatprep.subr.mxu0 %v2744
    %2849 = vmatpush1.msra.mxu0 %v2743
    %2850 = vmatprep.subr.mxu0 %v2748
    %2851 = vmatpush1.msra.mxu0 %v2747
    %2852 = vmatprep.subr.mxu0 0.0
    %2853 = vmatpush1.msra.mxu0 0.0
    %2854 = vmatprep.subr.mxu0 0.0
    %2855 = vmatpush1.msra.mxu0 0.0
    %2856 = vmatprep.subr.mxu0 0.0
    %2857 = vmatpush1.msra.mxu0 0.0
    %2858 = vmatprep.subr.mxu0 0.0
    %2859 = vmatpush1.msra.mxu0 0.0
    %2860 = vmatprep.subr.mxu0 0.0
    %2861 = vmatpush1.msra.mxu0 0.0
    %2862 = vmatprep.subr.mxu0 0.0
    %2863 = vmatpush1.msra.mxu0 0.0
    %2864 = vmatprep.subr.mxu0 0.0
    %2865 = vmatpush1.msra.mxu0 0.0
    %2866 = vmatprep.subr.mxu0 0.0
    %2867 = vmatpush1.msra.mxu0 0.0
    %2868 = vmatprep.subr.mxu0 0.0
    %2869 = vmatpush1.msra.mxu0 0.0
    %2870 = vmatprep.subr.mxu0 0.0
    %2871 = vmatpush1.msra.mxu0 0.0
    %2872 = vmatprep.subr.mxu0 0.0
    %2873 = vmatpush1.msra.mxu0 0.0
    %2874 = vmatprep.subr.mxu0 0.0
    %2875 = vmatpush1.msra.mxu0 0.0
    %2876 = vmatprep.subr.mxu0 0.0
    %2877 = vmatpush1.msra.mxu0 0.0
    %2878 = vmatprep.subr.mxu0 0.0
    %2879 = vmatpush1.msra.mxu0 0.0
    %2880 = vmatprep.subr.mxu0 0.0
    %2881 = vmatpush1.msra.mxu0 0.0
    %2882 = vmatprep.subr.mxu0 0.0
    %2883 = vmatpush1.msra.mxu0 0.0
    %2884 = vmatprep.mubr.f32.mxu0 0.0
    %2885 = vmatmul.mubr.f32.gmra.mrb[0].mxu0 %v2415
    %v2886 = vpop.f32.mrb[0].mxu0
    %v2887 = vadd.f32 0.0, %v2886
    %v2888 = vpop.f32.mrb[0].mxu0
    %v2889 = vadd.f32 0.0, %v2888
    %2890 = vdwg.mxu0
    %v2895 = vcombine.low %v2816, %v2818
    %v2896 = vcombine.high %v2816, %v2818
    %v2897 = vcombine.low %v2887, %v2889
    %v2898 = vcombine.high %v2887, %v2889
    %v2900 = vunpack.c.l.s4 1966171168
    %v2901 = vunpack.c.0.s8 %v2900
    %v2902 = vlaneseq
    %v2903 = vshrl.u32 %v2902, 7
    %v2904 = vsub.s32 %v2901, %v2903
    %v2905 = vrot.slane %v2895, %v2904
    %v2907 = vunpack.c.l.s4 1966171168
    %v2908 = vunpack.c.0.s8 %v2907
    %v2909 = vlaneseq
    %v2910 = vshrl.u32 %v2909, 7
    %v2911 = vsub.s32 %v2908, %v2910
    %v2912 = vrot.slane %v2896, %v2911
    %v2914 = vunpack.c.l.s4 1966171168
    %v2915 = vunpack.c.0.s8 %v2914
    %v2916 = vlaneseq
    %v2917 = vshrl.u32 %v2916, 7
    %v2918 = vsub.s32 %v2915, %v2917
    %v2919 = vrot.slane %v2897, %v2918
    %v2921 = vunpack.c.l.s4 1966171168
    %v2922 = vunpack.c.0.s8 %v2921
    %v2923 = vlaneseq
    %v2924 = vshrl.u32 %v2923, 7
    %v2925 = vsub.s32 %v2922, %v2924
    %v2926 = vrot.slane %v2898, %v2925
    %v2927 = vcombine.low %v2905, %v2919
    %v2928 = vcombine.high %v2905, %v2919
    %v2929 = vcombine.low %v2912, %v2926
    %v2930 = vcombine.high %v2912, %v2926
    %v2932 = vunpack.c.l.s4 1966171168
    %v2933 = vunpack.c.0.s8 %v2932
    %v2934 = vlaneseq
    %v2935 = vshrl.u32 %v2934, 7
    %v2936 = vsub.s32 %v2933, %v2935
    %v2937 = vrot.slane %v2927, %v2936
    %v2939 = vunpack.c.l.s4 1966171168
    %v2940 = vunpack.c.0.s8 %v2939
    %v2941 = vlaneseq
    %v2942 = vshrl.u32 %v2941, 7
    %v2943 = vsub.s32 %v2940, %v2942
    %v2944 = vrot.slane %v2929, %v2943
    %v2946 = vunpack.c.l.s4 1966171168
    %v2947 = vunpack.c.0.s8 %v2946
    %v2948 = vlaneseq
    %v2949 = vshrl.u32 %v2948, 7
    %v2950 = vsub.s32 %v2947, %v2949
    %v2951 = vrot.slane %v2928, %v2950
    %v2953 = vunpack.c.l.s4 1966171168
    %v2954 = vunpack.c.0.s8 %v2953
    %v2955 = vlaneseq
    %v2956 = vshrl.u32 %v2955, 7
    %v2957 = vsub.s32 %v2954, %v2956
    %v2958 = vrot.slane %v2930, %v2957
    %v2959 = vcombine.high %v2937, %v2937
    %v2960 = vcombine.high %v2944, %v2944
    %v2961 = vcombine.high %v2951, %v2951
    %v2962 = vcombine.high %v2958, %v2958
    %v2971 = vadd.f32 %v2670, %v2937
    %v2972 = vadd.f32 %v2672, %v2951
    %v2973 = vadd.f32 %v2674, %v2959
    %v2974 = vadd.f32 %v2676, %v2961
    %v2975 = vadd.f32 %v2678, %v2944
    %v2976 = vadd.f32 %v2680, %v2958
    %v2977 = vadd.f32 %v2682, %v2960
    %v2978 = vadd.f32 %v2684, %v2962
    %v2979 = vmul.f32 %v2971, 0.5
    %v2980 = vmul.f32 %v2972, 0.5
    %v2981 = vmul.f32 %v2973, 0.5
    %v2982 = vmul.f32 %v2974, 0.5
    %v2983 = vmul.f32 %v2975, 0.5
    %v2984 = vmul.f32 %v2976, 0.5
    %v2985 = vmul.f32 %v2977, 0.5
    %v2986 = vmul.f32 %v2978, 0.5
    %v2987 = vtanh.pop %v2979
    %v2988 = vtanh.pop %v2980
    %v2989 = vtanh.pop %v2981
    %v2990 = vtanh.pop %v2982
    %v2991 = vtanh.pop %v2983
    %v2992 = vtanh.pop %v2984
    %v2993 = vtanh.pop %v2985
    %v2994 = vtanh.pop %v2986
    %v2995 = vmul.f32 %v2987, 0.5
    %v2996 = vmul.f32 %v2988, 0.5
    %v2997 = vmul.f32 %v2989, 0.5
    %v2998 = vmul.f32 %v2990, 0.5
    %v2999 = vmul.f32 %v2991, 0.5
    %v3000 = vmul.f32 %v2992, 0.5
    %v3001 = vmul.f32 %v2993, 0.5
    %v3002 = vmul.f32 %v2994, 0.5
    %v3003 = vadd.f32 %v2995, 0.5
    %v3004 = vadd.f32 %v2996, 0.5
    %v3005 = vadd.f32 %v2997, 0.5
    %v3006 = vadd.f32 %v2998, 0.5
    %v3007 = vadd.f32 %v2999, 0.5
    %v3008 = vadd.f32 %v3000, 0.5
    %v3009 = vadd.f32 %v3001, 0.5
    %v3010 = vadd.f32 %v3002, 0.5
    %v3019 = vrot.slane %v2971, 1
    %v3020 = vrot.slane %v2972, 1
    %v3021 = vrot.slane %v2973, 1
    %v3022 = vrot.slane %v2974, 1
    %v3023 = vrot.slane %v2975, 1
    %v3024 = vrot.slane %v2976, 1
    %v3025 = vrot.slane %v2977, 1
    %v3026 = vrot.slane %v2978, 1
    %v3035 = vmul.f32 %v3019, 0.5
    %v3036 = vmul.f32 %v3020, 0.5
    %v3037 = vmul.f32 %v3021, 0.5
    %v3038 = vmul.f32 %v3022, 0.5
    %v3039 = vmul.f32 %v3023, 0.5
    %v3040 = vmul.f32 %v3024, 0.5
    %v3041 = vmul.f32 %v3025, 0.5
    %v3042 = vmul.f32 %v3026, 0.5
    %v3043 = vtanh.pop %v3035
    %v3044 = vtanh.pop %v3036
    %v3045 = vtanh.pop %v3037
    %v3046 = vtanh.pop %v3038
    %v3047 = vtanh.pop %v3039
    %v3048 = vtanh.pop %v3040
    %v3049 = vtanh.pop %v3041
    %v3050 = vtanh.pop %v3042
    %v3051 = vmul.f32 %v3043, 0.5
    %v3052 = vmul.f32 %v3044, 0.5
    %v3053 = vmul.f32 %v3045, 0.5
    %v3054 = vmul.f32 %v3046, 0.5
    %v3055 = vmul.f32 %v3047, 0.5
    %v3056 = vmul.f32 %v3048, 0.5
    %v3057 = vmul.f32 %v3049, 0.5
    %v3058 = vmul.f32 %v3050, 0.5
    %v3059 = vadd.f32 %v3051, 0.5
    %v3060 = vadd.f32 %v3052, 0.5
    %v3061 = vadd.f32 %v3053, 0.5
    %v3062 = vadd.f32 %v3054, 0.5
    %v3063 = vadd.f32 %v3055, 0.5
    %v3064 = vadd.f32 %v3056, 0.5
    %v3065 = vadd.f32 %v3057, 0.5
    %v3066 = vadd.f32 %v3058, 0.5
    %v3067 = vrot.slane %v2971, 2
    %v3068 = vrot.slane %v2972, 2
    %v3069 = vrot.slane %v2973, 2
    %v3070 = vrot.slane %v2974, 2
    %v3071 = vrot.slane %v2975, 2
    %v3072 = vrot.slane %v2976, 2
    %v3073 = vrot.slane %v2977, 2
    %v3074 = vrot.slane %v2978, 2
    %v3083 = vtanh.pop %v3067
    %v3084 = vtanh.pop %v3068
    %v3085 = vtanh.pop %v3069
    %v3086 = vtanh.pop %v3070
    %v3087 = vtanh.pop %v3071
    %v3088 = vtanh.pop %v3072
    %v3089 = vtanh.pop %v3073
    %v3090 = vtanh.pop %v3074
    %v3091 = vrot.slane %v2971, 3
    %v3092 = vrot.slane %v2972, 3
    %v3093 = vrot.slane %v2973, 3
    %v3094 = vrot.slane %v2974, 3
    %v3095 = vrot.slane %v2975, 3
    %v3096 = vrot.slane %v2976, 3
    %v3097 = vrot.slane %v2977, 3
    %v3098 = vrot.slane %v2978, 3
    %v3107 = vmul.f32 %v3091, 0.5
    %v3108 = vmul.f32 %v3092, 0.5
    %v3109 = vmul.f32 %v3093, 0.5
    %v3110 = vmul.f32 %v3094, 0.5
    %v3111 = vmul.f32 %v3095, 0.5
    %v3112 = vmul.f32 %v3096, 0.5
    %v3113 = vmul.f32 %v3097, 0.5
    %v3114 = vmul.f32 %v3098, 0.5
    %v3115 = vtanh.pop %v3107
    %v3116 = vtanh.pop %v3108
    %v3117 = vtanh.pop %v3109
    %v3118 = vtanh.pop %v3110
    %v3119 = vtanh.pop %v3111
    %v3120 = vtanh.pop %v3112
    %v3121 = vtanh.pop %v3113
    %v3122 = vtanh.pop %v3114
    %v3123 = vmul.f32 %v3115, 0.5
    %v3124 = vmul.f32 %v3116, 0.5
    %v3125 = vmul.f32 %v3117, 0.5
    %v3126 = vmul.f32 %v3118, 0.5
    %v3127 = vmul.f32 %v3119, 0.5
    %v3128 = vmul.f32 %v3120, 0.5
    %v3129 = vmul.f32 %v3121, 0.5
    %v3130 = vmul.f32 %v3122, 0.5
    %v3131 = vadd.f32 %v3123, 0.5
    %v3132 = vadd.f32 %v3124, 0.5
    %v3133 = vadd.f32 %v3125, 0.5
    %v3134 = vadd.f32 %v3126, 0.5
    %v3135 = vadd.f32 %v3127, 0.5
    %v3136 = vadd.f32 %v3128, 0.5
    %v3137 = vadd.f32 %v3129, 0.5
    %v3138 = vadd.f32 %v3130, 0.5
    %v3139 = vmul.f32 %v3059, %v2065
    %v3140 = vmul.f32 %v3060, %v2066
    %v3141 = vmul.f32 %v3061, %v2067
    %v3142 = vmul.f32 %v3062, %v2068
    %v3143 = vmul.f32 %v3063, %v2069
    %v3144 = vmul.f32 %v3064, %v2070
    %v3145 = vmul.f32 %v3065, %v2071
    %v3146 = vmul.f32 %v3066, %v2072
    %v3147 = vmul.f32 %v3003, %v3083
    %v3148 = vmul.f32 %v3004, %v3084
    %v3149 = vmul.f32 %v3005, %v3085
    %v3150 = vmul.f32 %v3006, %v3086
    %v3151 = vmul.f32 %v3007, %v3087
    %v3152 = vmul.f32 %v3008, %v3088
    %v3153 = vmul.f32 %v3009, %v3089
    %v3154 = vmul.f32 %v3010, %v3090
    %v3155 = vadd.f32 %v3139, %v3147
    %v3156 = vadd.f32 %v3140, %v3148
    %v3157 = vadd.f32 %v3141, %v3149
    %v3158 = vadd.f32 %v3142, %v3150
    %v3159 = vadd.f32 %v3143, %v3151
    %v3160 = vadd.f32 %v3144, %v3152
    %v3161 = vadd.f32 %v3145, %v3153
    %v3162 = vadd.f32 %v3146, %v3154
    %v3163 = vtanh.pop %v3155
    %v3164 = vtanh.pop %v3156
    %v3165 = vtanh.pop %v3157
    %v3166 = vtanh.pop %v3158
    %v3167 = vtanh.pop %v3159
    %v3168 = vtanh.pop %v3160
    %v3169 = vtanh.pop %v3161
    %v3170 = vtanh.pop %v3162
    %v3171 = vmul.f32 %v3131, %v3163
    %v3172 = vmul.f32 %v3132, %v3164
    %v3173 = vmul.f32 %v3133, %v3165
    %v3174 = vmul.f32 %v3134, %v3166
    %v3175 = vmul.f32 %v3135, %v3167
    %v3176 = vmul.f32 %v3136, %v3168
    %v3177 = vmul.f32 %v3137, %v3169
    %v3178 = vmul.f32 %v3138, %v3170
    %v3179 = vld [vmem:[#allocation13] sm:$0xff]
    %v3180 = vld [vmem:[#allocation13 + $0x8] sm:$0xff]
    %v3181 = vld [vmem:[#allocation13 + $0x10] sm:$0xff]
    %v3182 = vld [vmem:[#allocation13 + $0x18] sm:$0xff]
    %v3183 = vld [vmem:[#allocation13 + $0x20] sm:$0xff]
    %v3184 = vld [vmem:[#allocation13 + $0x28] sm:$0xff]
    %v3185 = vld [vmem:[#allocation13 + $0x30] sm:$0xff]
    %v3186 = vld [vmem:[#allocation13 + $0x38] sm:$0xff]
    %v3187 = vld [vmem:[#allocation13 + $0x40] sm:$0xff]
    %v3188 = vld [vmem:[#allocation13 + $0x48] sm:$0xff]
    %v3189 = vld [vmem:[#allocation13 + $0x50] sm:$0xff]
    %v3190 = vld [vmem:[#allocation13 + $0x58] sm:$0xff]
    %v3191 = vld [vmem:[#allocation13 + $0x60] sm:$0xff]
    %v3192 = vld [vmem:[#allocation13 + $0x68] sm:$0xff]
    %v3193 = vld [vmem:[#allocation13 + $0x70] sm:$0xff]
    %v3194 = vld [vmem:[#allocation13 + $0x78] sm:$0xff]
    %v3195 = vld [vmem:[#allocation13 + $0x80] sm:$0xff]
    %v3196 = vld [vmem:[#allocation13 + $0x88] sm:$0xff]
    %v3197 = vld [vmem:[#allocation13 + $0x90] sm:$0xff]
    %v3198 = vld [vmem:[#allocation13 + $0x98] sm:$0xff]
    %v3199 = vld [vmem:[#allocation13 + $0xa0] sm:$0xff]
    %v3200 = vld [vmem:[#allocation13 + $0xa8] sm:$0xff]
    %v3201 = vld [vmem:[#allocation13 + $0xb0] sm:$0xff]
    %v3202 = vld [vmem:[#allocation13 + $0xb8] sm:$0xff]
    %v3203 = vld [vmem:[#allocation13 + $0xc0] sm:$0xff]
    %v3204 = vld [vmem:[#allocation13 + $0xc8] sm:$0xff]
    %v3205 = vld [vmem:[#allocation13 + $0xd0] sm:$0xff]
    %v3206 = vld [vmem:[#allocation13 + $0xd8] sm:$0xff]
    %v3207 = vld [vmem:[#allocation13 + $0xe0] sm:$0xff]
    %v3208 = vld [vmem:[#allocation13 + $0xe8] sm:$0xff]
    %v3209 = vld [vmem:[#allocation13 + $0xf0] sm:$0xff]
    %v3210 = vld [vmem:[#allocation13 + $0xf8] sm:$0xff]
    %v3211 = vld [vmem:[#allocation13 + $0x100] sm:$0xff]
    %v3212 = vld [vmem:[#allocation13 + $0x108] sm:$0xff]
    %v3213 = vld [vmem:[#allocation13 + $0x110] sm:$0xff]
    %v3214 = vld [vmem:[#allocation13 + $0x118] sm:$0xff]
    %v3215 = vld [vmem:[#allocation13 + $0x120] sm:$0xff]
    %v3216 = vld [vmem:[#allocation13 + $0x128] sm:$0xff]
    %v3217 = vld [vmem:[#allocation13 + $0x130] sm:$0xff]
    %v3218 = vld [vmem:[#allocation13 + $0x138] sm:$0xff]
    %v3219 = vld [vmem:[#allocation13 + $0x140] sm:$0xff]
    %v3220 = vld [vmem:[#allocation13 + $0x148] sm:$0xff]
    %v3221 = vld [vmem:[#allocation13 + $0x150] sm:$0xff]
    %v3222 = vld [vmem:[#allocation13 + $0x158] sm:$0xff]
    %v3223 = vld [vmem:[#allocation13 + $0x160] sm:$0xff]
    %v3224 = vld [vmem:[#allocation13 + $0x168] sm:$0xff]
    %v3225 = vld [vmem:[#allocation13 + $0x170] sm:$0xff]
    %v3226 = vld [vmem:[#allocation13 + $0x178] sm:$0xff]
    %v3227 = vld [vmem:[#allocation13 + $0x180] sm:$0xff]
    %v3228 = vld [vmem:[#allocation13 + $0x188] sm:$0xff]
    %v3229 = vld [vmem:[#allocation13 + $0x190] sm:$0xff]
    %v3230 = vld [vmem:[#allocation13 + $0x198] sm:$0xff]
    %v3231 = vld [vmem:[#allocation13 + $0x1a0] sm:$0xff]
    %v3232 = vld [vmem:[#allocation13 + $0x1a8] sm:$0xff]
    %v3233 = vld [vmem:[#allocation13 + $0x1b0] sm:$0xff]
    %v3234 = vld [vmem:[#allocation13 + $0x1b8] sm:$0xff]
    %v3235 = vld [vmem:[#allocation13 + $0x1c0] sm:$0xff]
    %v3236 = vld [vmem:[#allocation13 + $0x1c8] sm:$0xff]
    %v3237 = vld [vmem:[#allocation13 + $0x1d0] sm:$0xff]
    %v3238 = vld [vmem:[#allocation13 + $0x1d8] sm:$0xff]
    %v3239 = vld [vmem:[#allocation13 + $0x1e0] sm:$0xff]
    %v3240 = vld [vmem:[#allocation13 + $0x1e8] sm:$0xff]
    %v3241 = vld [vmem:[#allocation13 + $0x1f0] sm:$0xff]
    %v3242 = vld [vmem:[#allocation13 + $0x1f8] sm:$0xff]
    %v3243 = vld [vmem:[#allocation15] sm:$0xff]
    %v3244 = vld [vmem:[#allocation15 + $0x8] sm:$0xff]
    %v3245 = vld [vmem:[#allocation15 + $0x10] sm:$0xff]
    %v3246 = vld [vmem:[#allocation15 + $0x18] sm:$0xff]
    %v3247 = vld [vmem:[#allocation15 + $0x20] sm:$0xff]
    %v3248 = vld [vmem:[#allocation15 + $0x28] sm:$0xff]
    %v3249 = vld [vmem:[#allocation15 + $0x30] sm:$0xff]
    %v3250 = vld [vmem:[#allocation15 + $0x38] sm:$0xff]
    %v3251 = vld [vmem:[#allocation15 + $0x40] sm:$0xff]
    %v3252 = vld [vmem:[#allocation15 + $0x48] sm:$0xff]
    %v3253 = vld [vmem:[#allocation15 + $0x50] sm:$0xff]
    %v3254 = vld [vmem:[#allocation15 + $0x58] sm:$0xff]
    %v3255 = vld [vmem:[#allocation15 + $0x60] sm:$0xff]
    %v3256 = vld [vmem:[#allocation15 + $0x68] sm:$0xff]
    %v3257 = vld [vmem:[#allocation15 + $0x70] sm:$0xff]
    %v3258 = vld [vmem:[#allocation15 + $0x78] sm:$0xff]
    %v3259 = vld [vmem:[#allocation15 + $0x80] sm:$0xff]
    %v3260 = vld [vmem:[#allocation15 + $0x88] sm:$0xff]
    %v3261 = vld [vmem:[#allocation15 + $0x90] sm:$0xff]
    %v3262 = vld [vmem:[#allocation15 + $0x98] sm:$0xff]
    %v3263 = vld [vmem:[#allocation15 + $0xa0] sm:$0xff]
    %v3264 = vld [vmem:[#allocation15 + $0xa8] sm:$0xff]
    %v3265 = vld [vmem:[#allocation15 + $0xb0] sm:$0xff]
    %v3266 = vld [vmem:[#allocation15 + $0xb8] sm:$0xff]
    %v3267 = vld [vmem:[#allocation15 + $0xc0] sm:$0xff]
    %v3268 = vld [vmem:[#allocation15 + $0xc8] sm:$0xff]
    %v3269 = vld [vmem:[#allocation15 + $0xd0] sm:$0xff]
    %v3270 = vld [vmem:[#allocation15 + $0xd8] sm:$0xff]
    %v3271 = vld [vmem:[#allocation15 + $0xe0] sm:$0xff]
    %v3272 = vld [vmem:[#allocation15 + $0xe8] sm:$0xff]
    %v3273 = vld [vmem:[#allocation15 + $0xf0] sm:$0xff]
    %v3274 = vld [vmem:[#allocation15 + $0xf8] sm:$0xff]
    %v3275 = vld [vmem:[#allocation15 + $0x100] sm:$0xff]
    %v3276 = vld [vmem:[#allocation15 + $0x108] sm:$0xff]
    %v3277 = vld [vmem:[#allocation15 + $0x110] sm:$0xff]
    %v3278 = vld [vmem:[#allocation15 + $0x118] sm:$0xff]
    %v3279 = vld [vmem:[#allocation15 + $0x120] sm:$0xff]
    %v3280 = vld [vmem:[#allocation15 + $0x128] sm:$0xff]
    %v3281 = vld [vmem:[#allocation15 + $0x130] sm:$0xff]
    %v3282 = vld [vmem:[#allocation15 + $0x138] sm:$0xff]
    %v3283 = vld [vmem:[#allocation15 + $0x140] sm:$0xff]
    %v3284 = vld [vmem:[#allocation15 + $0x148] sm:$0xff]
    %v3285 = vld [vmem:[#allocation15 + $0x150] sm:$0xff]
    %v3286 = vld [vmem:[#allocation15 + $0x158] sm:$0xff]
    %v3287 = vld [vmem:[#allocation15 + $0x160] sm:$0xff]
    %v3288 = vld [vmem:[#allocation15 + $0x168] sm:$0xff]
    %v3289 = vld [vmem:[#allocation15 + $0x170] sm:$0xff]
    %v3290 = vld [vmem:[#allocation15 + $0x178] sm:$0xff]
    %v3291 = vld [vmem:[#allocation15 + $0x180] sm:$0xff]
    %v3292 = vld [vmem:[#allocation15 + $0x188] sm:$0xff]
    %v3293 = vld [vmem:[#allocation15 + $0x190] sm:$0xff]
    %v3294 = vld [vmem:[#allocation15 + $0x198] sm:$0xff]
    %v3295 = vld [vmem:[#allocation15 + $0x1a0] sm:$0xff]
    %v3296 = vld [vmem:[#allocation15 + $0x1a8] sm:$0xff]
    %v3297 = vld [vmem:[#allocation15 + $0x1b0] sm:$0xff]
    %v3298 = vld [vmem:[#allocation15 + $0x1b8] sm:$0xff]
    %v3299 = vld [vmem:[#allocation15 + $0x1c0] sm:$0xff]
    %v3300 = vld [vmem:[#allocation15 + $0x1c8] sm:$0xff]
    %v3301 = vld [vmem:[#allocation15 + $0x1d0] sm:$0xff]
    %v3302 = vld [vmem:[#allocation15 + $0x1d8] sm:$0xff]
    %v3303 = vld [vmem:[#allocation15 + $0x1e0] sm:$0xff]
    %v3304 = vld [vmem:[#allocation15 + $0x1e8] sm:$0xff]
    %v3305 = vld [vmem:[#allocation15 + $0x1f0] sm:$0xff]
    %v3306 = vld [vmem:[#allocation15 + $0x1f8] sm:$0xff]
    %3307 = vmatprep.subr.mxu0 %v3244
    %3308 = vmatpush1.msra.mxu0 %v3243
    %3309 = vmatprep.subr.mxu0 %v3248
    %3310 = vmatpush1.msra.mxu0 %v3247
    %3311 = vmatprep.subr.mxu0 %v3252
    %3312 = vmatpush1.msra.mxu0 %v3251
    %3313 = vmatprep.subr.mxu0 %v3256
    %3314 = vmatpush1.msra.mxu0 %v3255
    %3315 = vmatprep.subr.mxu0 %v3260
    %3316 = vmatpush1.msra.mxu0 %v3259
    %3317 = vmatprep.subr.mxu0 %v3264
    %3318 = vmatpush1.msra.mxu0 %v3263
    %3319 = vmatprep.subr.mxu0 %v3268
    %3320 = vmatpush1.msra.mxu0 %v3267
    %3321 = vmatprep.subr.mxu0 %v3272
    %3322 = vmatpush1.msra.mxu0 %v3271
    %3323 = vmatprep.subr.mxu0 %v3276
    %3324 = vmatpush1.msra.mxu0 %v3275
    %3325 = vmatprep.subr.mxu0 %v3280
    %3326 = vmatpush1.msra.mxu0 %v3279
    %3327 = vmatprep.subr.mxu0 %v3284
    %3328 = vmatpush1.msra.mxu0 %v3283
    %3329 = vmatprep.subr.mxu0 %v3288
    %3330 = vmatpush1.msra.mxu0 %v3287
    %3331 = vmatprep.subr.mxu0 %v3292
    %3332 = vmatpush1.msra.mxu0 %v3291
    %3333 = vmatprep.subr.mxu0 %v3296
    %3334 = vmatpush1.msra.mxu0 %v3295
    %3335 = vmatprep.subr.mxu0 %v3300
    %3336 = vmatpush1.msra.mxu0 %v3299
    %3337 = vmatprep.subr.mxu0 %v3304
    %3338 = vmatpush1.msra.mxu0 %v3303
    %3339 = vmatprep.subr.mxu0 0.0
    %3340 = vmatpush1.msra.mxu0 0.0
    %3341 = vmatprep.subr.mxu0 0.0
    %3342 = vmatpush1.msra.mxu0 0.0
    %3343 = vmatprep.subr.mxu0 0.0
    %3344 = vmatpush1.msra.mxu0 0.0
    %3345 = vmatprep.subr.mxu0 0.0
    %3346 = vmatpush1.msra.mxu0 0.0
    %3347 = vmatprep.subr.mxu0 0.0
    %3348 = vmatpush1.msra.mxu0 0.0
    %3349 = vmatprep.subr.mxu0 0.0
    %3350 = vmatpush1.msra.mxu0 0.0
    %3351 = vmatprep.subr.mxu0 0.0
    %3352 = vmatpush1.msra.mxu0 0.0
    %3353 = vmatprep.subr.mxu0 0.0
    %3354 = vmatpush1.msra.mxu0 0.0
    %3355 = vmatprep.subr.mxu0 0.0
    %3356 = vmatpush1.msra.mxu0 0.0
    %3357 = vmatprep.subr.mxu0 0.0
    %3358 = vmatpush1.msra.mxu0 0.0
    %3359 = vmatprep.subr.mxu0 0.0
    %3360 = vmatpush1.msra.mxu0 0.0
    %3361 = vmatprep.subr.mxu0 0.0
    %3362 = vmatpush1.msra.mxu0 0.0
    %3363 = vmatprep.subr.mxu0 0.0
    %3364 = vmatpush1.msra.mxu0 0.0
    %3365 = vmatprep.subr.mxu0 0.0
    %3366 = vmatpush1.msra.mxu0 0.0
    %3367 = vmatprep.subr.mxu0 0.0
    %3368 = vmatpush1.msra.mxu0 0.0
    %3369 = vmatprep.subr.mxu0 0.0
    %3370 = vmatpush1.msra.mxu0 0.0
    %3371 = vmatprep.mubr.f32.mxu0 0.0
    %3372 = vmatmul.mubr.f32.gmra.mrb[0].mxu0 %v2602
    %v3373 = vpop.f32.mrb[0].mxu0
    %v3374 = vadd.f32 0.0, %v3373
    %v3375 = vpop.f32.mrb[0].mxu0
    %v3376 = vadd.f32 0.0, %v3375
    %3377 = vdwg.mxu0
    %3378 = vmatprep.subr.mxu0 %v3246
    %3379 = vmatpush1.msra.mxu0 %v3245
    %3380 = vmatprep.subr.mxu0 %v3250
    %3381 = vmatpush1.msra.mxu0 %v3249
    %3382 = vmatprep.subr.mxu0 %v3254
    %3383 = vmatpush1.msra.mxu0 %v3253
    %3384 = vmatprep.subr.mxu0 %v3258
    %3385 = vmatpush1.msra.mxu0 %v3257
    %3386 = vmatprep.subr.mxu0 %v3262
    %3387 = vmatpush1.msra.mxu0 %v3261
    %3388 = vmatprep.subr.mxu0 %v3266
    %3389 = vmatpush1.msra.mxu0 %v3265
    %3390 = vmatprep.subr.mxu0 %v3270
    %3391 = vmatpush1.msra.mxu0 %v3269
    %3392 = vmatprep.subr.mxu0 %v3274
    %3393 = vmatpush1.msra.mxu0 %v3273
    %3394 = vmatprep.subr.mxu0 %v3278
    %3395 = vmatpush1.msra.mxu0 %v3277
    %3396 = vmatprep.subr.mxu0 %v3282
    %3397 = vmatpush1.msra.mxu0 %v3281
    %3398 = vmatprep.subr.mxu0 %v3286
    %3399 = vmatpush1.msra.mxu0 %v3285
    %3400 = vmatprep.subr.mxu0 %v3290
    %3401 = vmatpush1.msra.mxu0 %v3289
    %3402 = vmatprep.subr.mxu0 %v3294
    %3403 = vmatpush1.msra.mxu0 %v3293
    %3404 = vmatprep.subr.mxu0 %v3298
    %3405 = vmatpush1.msra.mxu0 %v3297
    %3406 = vmatprep.subr.mxu0 %v3302
    %3407 = vmatpush1.msra.mxu0 %v3301
    %3408 = vmatprep.subr.mxu0 %v3306
    %3409 = vmatpush1.msra.mxu0 %v3305
    %3410 = vmatprep.subr.mxu0 0.0
    %3411 = vmatpush1.msra.mxu0 0.0
    %3412 = vmatprep.subr.mxu0 0.0
    %3413 = vmatpush1.msra.mxu0 0.0
    %3414 = vmatprep.subr.mxu0 0.0
    %3415 = vmatpush1.msra.mxu0 0.0
    %3416 = vmatprep.subr.mxu0 0.0
    %3417 = vmatpush1.msra.mxu0 0.0
    %3418 = vmatprep.subr.mxu0 0.0
    %3419 = vmatpush1.msra.mxu0 0.0
    %3420 = vmatprep.subr.mxu0 0.0
    %3421 = vmatpush1.msra.mxu0 0.0
    %3422 = vmatprep.subr.mxu0 0.0
    %3423 = vmatpush1.msra.mxu0 0.0
    %3424 = vmatprep.subr.mxu0 0.0
    %3425 = vmatpush1.msra.mxu0 0.0
    %3426 = vmatprep.subr.mxu0 0.0
    %3427 = vmatpush1.msra.mxu0 0.0
    %3428 = vmatprep.subr.mxu0 0.0
    %3429 = vmatpush1.msra.mxu0 0.0
    %3430 = vmatprep.subr.mxu0 0.0
    %3431 = vmatpush1.msra.mxu0 0.0
    %3432 = vmatprep.subr.mxu0 0.0
    %3433 = vmatpush1.msra.mxu0 0.0
    %3434 = vmatprep.subr.mxu0 0.0
    %3435 = vmatpush1.msra.mxu0 0.0
    %3436 = vmatprep.subr.mxu0 0.0
    %3437 = vmatpush1.msra.mxu0 0.0
    %3438 = vmatprep.subr.mxu0 0.0
    %3439 = vmatpush1.msra.mxu0 0.0
    %3440 = vmatprep.subr.mxu0 0.0
    %3441 = vmatpush1.msra.mxu0 0.0
    %3442 = vmatprep.mubr.f32.mxu0 0.0
    %3443 = vmatmul.mubr.f32.gmra.mrb[0].mxu0 %v2602
    %v3444 = vpop.f32.mrb[0].mxu0
    %v3445 = vadd.f32 0.0, %v3444
    %v3446 = vpop.f32.mrb[0].mxu0
    %v3447 = vadd.f32 0.0, %v3446
    %3448 = vdwg.mxu0
    %v3457 = vcombine.low %v3171, %v3172
    %v3458 = vcombine.low %v3173, %v3174
    %v3459 = vcombine.low %v3175, %v3176
    %v3460 = vcombine.low %v3177, %v3178
    %v3462 = vunpack.c.l.s4 1966171168
    %v3463 = vunpack.c.0.s8 %v3462
    %v3464 = vlaneseq
    %v3465 = vshrl.u32 %v3464, 7
    %v3466 = vsub.s32 %v3463, %v3465
    %v3467 = vrot.slane %v3457, %v3466
    %v3469 = vunpack.c.l.s4 1966171168
    %v3470 = vunpack.c.0.s8 %v3469
    %v3471 = vlaneseq
    %v3472 = vshrl.u32 %v3471, 7
    %v3473 = vsub.s32 %v3470, %v3472
    %v3474 = vrot.slane %v3458, %v3473
    %v3476 = vunpack.c.l.s4 1966171168
    %v3477 = vunpack.c.0.s8 %v3476
    %v3478 = vlaneseq
    %v3479 = vshrl.u32 %v3478, 7
    %v3480 = vsub.s32 %v3477, %v3479
    %v3481 = vrot.slane %v3459, %v3480
    %v3483 = vunpack.c.l.s4 1966171168
    %v3484 = vunpack.c.0.s8 %v3483
    %v3485 = vlaneseq
    %v3486 = vshrl.u32 %v3485, 7
    %v3487 = vsub.s32 %v3484, %v3486
    %v3488 = vrot.slane %v3460, %v3487
    %v3489 = vcombine.low %v3467, %v3474
    %v3490 = vcombine.low %v3481, %v3488
    %v3492 = vunpack.c.l.s4 1966171168
    %v3493 = vunpack.c.0.s8 %v3492
    %v3494 = vlaneseq
    %v3495 = vshrl.u32 %v3494, 7
    %v3496 = vsub.s32 %v3493, %v3495
    %v3497 = vrot.slane %v3489, %v3496
    %v3499 = vunpack.c.l.s4 1966171168
    %v3500 = vunpack.c.0.s8 %v3499
    %v3501 = vlaneseq
    %v3502 = vshrl.u32 %v3501, 7
    %v3503 = vsub.s32 %v3500, %v3502
    %v3504 = vrot.slane %v3490, %v3503
    %v3505 = vcombine.low %v3497, %v3504
    %3507 = vmatprep.subr.mxu0 %v3180
    %3508 = vmatpush1.msra.mxu0 %v3179
    %3509 = vmatprep.subr.mxu0 %v3184
    %3510 = vmatpush1.msra.mxu0 %v3183
    %3511 = vmatprep.subr.mxu0 %v3188
    %3512 = vmatpush1.msra.mxu0 %v3187
    %3513 = vmatprep.subr.mxu0 %v3192
    %3514 = vmatpush1.msra.mxu0 %v3191
    %3515 = vmatprep.subr.mxu0 %v3196
    %3516 = vmatpush1.msra.mxu0 %v3195
    %3517 = vmatprep.subr.mxu0 %v3200
    %3518 = vmatpush1.msra.mxu0 %v3199
    %3519 = vmatprep.subr.mxu0 %v3204
    %3520 = vmatpush1.msra.mxu0 %v3203
    %3521 = vmatprep.subr.mxu0 %v3208
    %3522 = vmatpush1.msra.mxu0 %v3207
    %3523 = vmatprep.subr.mxu0 %v3212
    %3524 = vmatpush1.msra.mxu0 %v3211
    %3525 = vmatprep.subr.mxu0 %v3216
    %3526 = vmatpush1.msra.mxu0 %v3215
    %3527 = vmatprep.subr.mxu0 %v3220
    %3528 = vmatpush1.msra.mxu0 %v3219
    %3529 = vmatprep.subr.mxu0 %v3224
    %3530 = vmatpush1.msra.mxu0 %v3223
    %3531 = vmatprep.subr.mxu0 %v3228
    %3532 = vmatpush1.msra.mxu0 %v3227
    %3533 = vmatprep.subr.mxu0 %v3232
    %3534 = vmatpush1.msra.mxu0 %v3231
    %3535 = vmatprep.subr.mxu0 %v3236
    %3536 = vmatpush1.msra.mxu0 %v3235
    %3537 = vmatprep.subr.mxu0 %v3240
    %3538 = vmatpush1.msra.mxu0 %v3239
    %3539 = vmatprep.subr.mxu0 0.0
    %3540 = vmatpush1.msra.mxu0 0.0
    %3541 = vmatprep.subr.mxu0 0.0
    %3542 = vmatpush1.msra.mxu0 0.0
    %3543 = vmatprep.subr.mxu0 0.0
    %3544 = vmatpush1.msra.mxu0 0.0
    %3545 = vmatprep.subr.mxu0 0.0
    %3546 = vmatpush1.msra.mxu0 0.0
    %3547 = vmatprep.subr.mxu0 0.0
    %3548 = vmatpush1.msra.mxu0 0.0
    %3549 = vmatprep.subr.mxu0 0.0
    %3550 = vmatpush1.msra.mxu0 0.0
    %3551 = vmatprep.subr.mxu0 0.0
    %3552 = vmatpush1.msra.mxu0 0.0
    %3553 = vmatprep.subr.mxu0 0.0
    %3554 = vmatpush1.msra.mxu0 0.0
    %3555 = vmatprep.subr.mxu0 0.0
    %3556 = vmatpush1.msra.mxu0 0.0
    %3557 = vmatprep.subr.mxu0 0.0
    %3558 = vmatpush1.msra.mxu0 0.0
    %3559 = vmatprep.subr.mxu0 0.0
    %3560 = vmatpush1.msra.mxu0 0.0
    %3561 = vmatprep.subr.mxu0 0.0
    %3562 = vmatpush1.msra.mxu0 0.0
    %3563 = vmatprep.subr.mxu0 0.0
    %3564 = vmatpush1.msra.mxu0 0.0
    %3565 = vmatprep.subr.mxu0 0.0
    %3566 = vmatpush1.msra.mxu0 0.0
    %3567 = vmatprep.subr.mxu0 0.0
    %3568 = vmatpush1.msra.mxu0 0.0
    %3569 = vmatprep.subr.mxu0 0.0
    %3570 = vmatpush1.msra.mxu0 0.0
    %3571 = vmatprep.mubr.f32.mxu0 0.0
    %3572 = vmatmul.mubr.f32.gmra.mrb[0].mxu0 %v3505
    %v3573 = vpop.f32.mrb[0].mxu0
    %v3574 = vadd.f32 %v3374, %v3573
    %v3575 = vpop.f32.mrb[0].mxu0
    %v3576 = vadd.f32 %v3376, %v3575
    %3577 = vdwg.mxu0
    %3578 = vmatprep.subr.mxu0 %v3182
    %3579 = vmatpush1.msra.mxu0 %v3181
    %3580 = vmatprep.subr.mxu0 %v3186
    %3581 = vmatpush1.msra.mxu0 %v3185
    %3582 = vmatprep.subr.mxu0 %v3190
    %3583 = vmatpush1.msra.mxu0 %v3189
    %3584 = vmatprep.subr.mxu0 %v3194
    %3585 = vmatpush1.msra.mxu0 %v3193
    %3586 = vmatprep.subr.mxu0 %v3198
    %3587 = vmatpush1.msra.mxu0 %v3197
    %3588 = vmatprep.subr.mxu0 %v3202
    %3589 = vmatpush1.msra.mxu0 %v3201
    %3590 = vmatprep.subr.mxu0 %v3206
    %3591 = vmatpush1.msra.mxu0 %v3205
    %3592 = vmatprep.subr.mxu0 %v3210
    %3593 = vmatpush1.msra.mxu0 %v3209
    %3594 = vmatprep.subr.mxu0 %v3214
    %3595 = vmatpush1.msra.mxu0 %v3213
    %3596 = vmatprep.subr.mxu0 %v3218
    %3597 = vmatpush1.msra.mxu0 %v3217
    %3598 = vmatprep.subr.mxu0 %v3222
    %3599 = vmatpush1.msra.mxu0 %v3221
    %3600 = vmatprep.subr.mxu0 %v3226
    %3601 = vmatpush1.msra.mxu0 %v3225
    %3602 = vmatprep.subr.mxu0 %v3230
    %3603 = vmatpush1.msra.mxu0 %v3229
    %3604 = vmatprep.subr.mxu0 %v3234
    %3605 = vmatpush1.msra.mxu0 %v3233
    %3606 = vmatprep.subr.mxu0 %v3238
    %3607 = vmatpush1.msra.mxu0 %v3237
    %3608 = vmatprep.subr.mxu0 %v3242
    %3609 = vmatpush1.msra.mxu0 %v3241
    %3610 = vmatprep.subr.mxu0 0.0
    %3611 = vmatpush1.msra.mxu0 0.0
    %3612 = vmatprep.subr.mxu0 0.0
    %3613 = vmatpush1.msra.mxu0 0.0
    %3614 = vmatprep.subr.mxu0 0.0
    %3615 = vmatpush1.msra.mxu0 0.0
    %3616 = vmatprep.subr.mxu0 0.0
    %3617 = vmatpush1.msra.mxu0 0.0
    %3618 = vmatprep.subr.mxu0 0.0
    %3619 = vmatpush1.msra.mxu0 0.0
    %3620 = vmatprep.subr.mxu0 0.0
    %3621 = vmatpush1.msra.mxu0 0.0
    %3622 = vmatprep.subr.mxu0 0.0
    %3623 = vmatpush1.msra.mxu0 0.0
    %3624 = vmatprep.subr.mxu0 0.0
    %3625 = vmatpush1.msra.mxu0 0.0
    %3626 = vmatprep.subr.mxu0 0.0
    %3627 = vmatpush1.msra.mxu0 0.0
    %3628 = vmatprep.subr.mxu0 0.0
    %3629 = vmatpush1.msra.mxu0 0.0
    %3630 = vmatprep.subr.mxu0 0.0
    %3631 = vmatpush1.msra.mxu0 0.0
    %3632 = vmatprep.subr.mxu0 0.0
    %3633 = vmatpush1.msra.mxu0 0.0
    %3634 = vmatprep.subr.mxu0 0.0
    %3635 = vmatpush1.msra.mxu0 0.0
    %3636 = vmatprep.subr.mxu0 0.0
    %3637 = vmatpush1.msra.mxu0 0.0
    %3638 = vmatprep.subr.mxu0 0.0
    %3639 = vmatpush1.msra.mxu0 0.0
    %3640 = vmatprep.subr.mxu0 0.0
    %3641 = vmatpush1.msra.mxu0 0.0
    %3642 = vmatprep.mubr.f32.mxu0 0.0
    %3643 = vmatmul.mubr.f32.gmra.mrb[0].mxu0 %v3505
    %v3644 = vpop.f32.mrb[0].mxu0
    %v3645 = vadd.f32 %v3445, %v3644
    %v3646 = vpop.f32.mrb[0].mxu0
    %v3647 = vadd.f32 %v3447, %v3646
    %3648 = vdwg.mxu0
    %v3649 = vld [vmem:[%s6] sm:$0xf]
    %v3651 = vlaneseq
    %v3652 = vshrl.u32 %v3651, 7
    %v3653 = vsub.s32 0, %v3652
    %v3654 = vrot.slane %v3649, %v3653
    %v3655 = vlaneseq
    %v3656 = vshrl.u32 %v3655, 7
    %v3657 = vsub.s32 1, %v3656
    %v3658 = vrot.slane %v3649, %v3657
    %v3659 = vlaneseq
    %v3660 = vshrl.u32 %v3659, 7
    %v3661 = vsub.s32 2, %v3660
    %v3662 = vrot.slane %v3649, %v3661
    %v3663 = vlaneseq
    %v3664 = vshrl.u32 %v3663, 7
    %v3665 = vsub.s32 3, %v3664
    %v3666 = vrot.slane %v3649, %v3665
    %v3671 = vadd.f32 %v3574, %v3654
    %v3672 = vadd.f32 %v3576, %v3658
    %v3673 = vadd.f32 %v3645, %v3662
    %v3674 = vadd.f32 %v3647, %v3666
    %v3675 = vmul.f32 %v3671, 0.5
    %v3676 = vtanh.pop %v3675
    %v3677 = vmul.f32 %v3676, 0.5
    %v3678 = vadd.f32 %v3677, 0.5
    %v3679 = vmul.f32 %v3672, 0.5
    %v3680 = vtanh.pop %v3679
    %v3681 = vmul.f32 %v3680, 0.5
    %v3682 = vadd.f32 %v3681, 0.5
    %v3683 = vtanh.pop %v3673
    %v3684 = vmul.f32 %v3674, 0.5
    %v3685 = vtanh.pop %v3684
    %v3686 = vmul.f32 %v3685, 0.5
    %v3687 = vadd.f32 %v3686, 0.5
    %v3688 = vmul.f32 %v3682, %v2600
    %v3689 = vmul.f32 %v3678, %v3683
    %v3690 = vadd.f32 %v3688, %v3689
    %v3691 = vtanh.pop %v3690
    %v3692 = vmul.f32 %v3687, %v3691
    %v3694 = vcombine.high %v3692, %v3692
    %v3696 = vunpack.c.l.s4 1966171168
    %v3697 = vunpack.c.0.s8 %v3696
    %v3698 = vlaneseq
    %v3699 = vshrl.u32 %v3698, 7
    %v3700 = vsub.s32 %v3697, %v3699
    %v3701 = vrot.slane %v3692, %v3700
    %v3703 = vunpack.c.l.s4 1966171168
    %v3704 = vunpack.c.0.s8 %v3703
    %v3705 = vlaneseq
    %v3706 = vshrl.u32 %v3705, 7
    %v3707 = vsub.s32 %v3704, %v3706
    %v3708 = vrot.slane %v3694, %v3707
    %v3709 = vcombine.high %v3701, %v3701
    %v3710 = vcombine.high %v3708, %v3708
    %v3712 = vunpack.c.l.s4 1966171168
    %v3713 = vunpack.c.0.s8 %v3712
    %v3714 = vlaneseq
    %v3715 = vshrl.u32 %v3714, 7
    %v3716 = vsub.s32 %v3713, %v3715
    %v3717 = vrot.slane %v3701, %v3716
    %v3719 = vunpack.c.l.s4 1966171168
    %v3720 = vunpack.c.0.s8 %v3719
    %v3721 = vlaneseq
    %v3722 = vshrl.u32 %v3721, 7
    %v3723 = vsub.s32 %v3720, %v3722
    %v3724 = vrot.slane %v3708, %v3723
    %v3726 = vunpack.c.l.s4 1966171168
    %v3727 = vunpack.c.0.s8 %v3726
    %v3728 = vlaneseq
    %v3729 = vshrl.u32 %v3728, 7
    %v3730 = vsub.s32 %v3727, %v3729
    %v3731 = vrot.slane %v3709, %v3730
    %v3733 = vunpack.c.l.s4 1966171168
    %v3734 = vunpack.c.0.s8 %v3733
    %v3735 = vlaneseq
    %v3736 = vshrl.u32 %v3735, 7
    %v3737 = vsub.s32 %v3734, %v3736
    %v3738 = vrot.slane %v3710, %v3737
    %v3739 = vcombine.high %v3717, %v3717
    %v3740 = vcombine.high %v3724, %v3724
    %v3741 = vcombine.high %v3731, %v3731
    %v3742 = vcombine.high %v3738, %v3738
    %3751 = vst [vmem:[#allocation5 + $0x2] sm:$0x1] %v3717
    %3752 = vst [vmem:[#allocation5 + $0xa] sm:$0x1] %v3731
    %3753 = vst [vmem:[#allocation5 + $0x12] sm:$0x1] %v3739
    %3754 = vst [vmem:[#allocation5 + $0x1a] sm:$0x1] %v3741
    %3755 = vst [vmem:[#allocation5 + $0x22] sm:$0x1] %v3724
    %3756 = vst [vmem:[#allocation5 + $0x2a] sm:$0x1] %v3738
    %3757 = vst [vmem:[#allocation5 + $0x32] sm:$0x1] %v3740
    %3758 = vst [vmem:[#allocation5 + $0x3a] sm:$0x1] %v3742
    %s3759 = scalar_lea.vmem [#allocation4], 3
    %v3760 = vld [vmem:[%s3759] ss:$8 sm:$0xf]
    %s3761 = scalar_lea.vmem [#allocation4], 35
    %v3762 = vld [vmem:[%s3761] ss:$8 sm:$0xf]
    %s3763 = scalar_lea.vmem [#allocation4], 67
    %v3764 = vld [vmem:[%s3763] ss:$8 sm:$0xf]
    %s3765 = scalar_lea.vmem [#allocation4], 99
    %v3766 = vld [vmem:[%s3765] ss:$8 sm:$0xf]
    %s3767 = scalar_lea.vmem [#allocation4], 131
    %v3768 = vld [vmem:[%s3767] ss:$8 sm:$0xf]
    %s3769 = scalar_lea.vmem [#allocation4], 163
    %v3770 = vld [vmem:[%s3769] ss:$8 sm:$0xf]
    %s3771 = scalar_lea.vmem [#allocation4], 195
    %v3772 = vld [vmem:[%s3771] ss:$8 sm:$0xf]
    %s3773 = scalar_lea.vmem [#allocation4], 227
    %v3774 = vld [vmem:[%s3773] ss:$8 sm:$0xf]
    %v3775 = vld [vmem:[#allocation12] sm:$0xff]
    %v3776 = vld [vmem:[#allocation12 + $0x8] sm:$0xff]
    %v3777 = vld [vmem:[#allocation12 + $0x10] sm:$0xff]
    %v3778 = vld [vmem:[#allocation12 + $0x18] sm:$0xff]
    %v3779 = vld [vmem:[#allocation12 + $0x20] sm:$0xff]
    %v3780 = vld [vmem:[#allocation12 + $0x28] sm:$0xff]
    %v3781 = vld [vmem:[#allocation12 + $0x30] sm:$0xff]
    %v3782 = vld [vmem:[#allocation12 + $0x38] sm:$0xff]
    %v3783 = vld [vmem:[#allocation12 + $0x40] sm:$0xff]
    %v3784 = vld [vmem:[#allocation12 + $0x48] sm:$0xff]
    %v3785 = vld [vmem:[#allocation12 + $0x50] sm:$0xff]
    %v3786 = vld [vmem:[#allocation12 + $0x58] sm:$0xff]
    %v3787 = vld [vmem:[#allocation12 + $0x60] sm:$0xff]
    %v3788 = vld [vmem:[#allocation12 + $0x68] sm:$0xff]
    %v3789 = vld [vmem:[#allocation12 + $0x70] sm:$0xff]
    %v3790 = vld [vmem:[#allocation12 + $0x78] sm:$0xff]
    %v3791 = vld [vmem:[#allocation12 + $0x80] sm:$0xff]
    %v3792 = vld [vmem:[#allocation12 + $0x88] sm:$0xff]
    %v3793 = vld [vmem:[#allocation12 + $0x90] sm:$0xff]
    %v3794 = vld [vmem:[#allocation12 + $0x98] sm:$0xff]
    %v3795 = vld [vmem:[#allocation12 + $0xa0] sm:$0xff]
    %v3796 = vld [vmem:[#allocation12 + $0xa8] sm:$0xff]
    %v3797 = vld [vmem:[#allocation12 + $0xb0] sm:$0xff]
    %v3798 = vld [vmem:[#allocation12 + $0xb8] sm:$0xff]
    %v3799 = vld [vmem:[#allocation12 + $0xc0] sm:$0xff]
    %v3800 = vld [vmem:[#allocation12 + $0xc8] sm:$0xff]
    %v3801 = vld [vmem:[#allocation12 + $0xd0] sm:$0xff]
    %v3802 = vld [vmem:[#allocation12 + $0xd8] sm:$0xff]
    %v3803 = vld [vmem:[#allocation12 + $0xe0] sm:$0xff]
    %v3804 = vld [vmem:[#allocation12 + $0xe8] sm:$0xff]
    %v3805 = vld [vmem:[#allocation12 + $0xf0] sm:$0xff]
    %v3806 = vld [vmem:[#allocation12 + $0xf8] sm:$0xff]
    %v3807 = vld [vmem:[#allocation12 + $0x100] sm:$0xff]
    %v3808 = vld [vmem:[#allocation12 + $0x108] sm:$0xff]
    %v3809 = vld [vmem:[#allocation12 + $0x110] sm:$0xff]
    %v3810 = vld [vmem:[#allocation12 + $0x118] sm:$0xff]
    %v3811 = vld [vmem:[#allocation12 + $0x120] sm:$0xff]
    %v3812 = vld [vmem:[#allocation12 + $0x128] sm:$0xff]
    %v3813 = vld [vmem:[#allocation12 + $0x130] sm:$0xff]
    %v3814 = vld [vmem:[#allocation12 + $0x138] sm:$0xff]
    %v3815 = vld [vmem:[#allocation12 + $0x140] sm:$0xff]
    %v3816 = vld [vmem:[#allocation12 + $0x148] sm:$0xff]
    %v3817 = vld [vmem:[#allocation12 + $0x150] sm:$0xff]
    %v3818 = vld [vmem:[#allocation12 + $0x158] sm:$0xff]
    %v3819 = vld [vmem:[#allocation12 + $0x160] sm:$0xff]
    %v3820 = vld [vmem:[#allocation12 + $0x168] sm:$0xff]
    %v3821 = vld [vmem:[#allocation12 + $0x170] sm:$0xff]
    %v3822 = vld [vmem:[#allocation12 + $0x178] sm:$0xff]
    %v3823 = vld [vmem:[#allocation12 + $0x180] sm:$0xff]
    %v3824 = vld [vmem:[#allocation12 + $0x188] sm:$0xff]
    %v3825 = vld [vmem:[#allocation12 + $0x190] sm:$0xff]
    %v3826 = vld [vmem:[#allocation12 + $0x198] sm:$0xff]
    %v3827 = vld [vmem:[#allocation12 + $0x1a0] sm:$0xff]
    %v3828 = vld [vmem:[#allocation12 + $0x1a8] sm:$0xff]
    %v3829 = vld [vmem:[#allocation12 + $0x1b0] sm:$0xff]
    %v3830 = vld [vmem:[#allocation12 + $0x1b8] sm:$0xff]
    %v3831 = vld [vmem:[#allocation12 + $0x1c0] sm:$0xff]
    %v3832 = vld [vmem:[#allocation12 + $0x1c8] sm:$0xff]
    %v3833 = vld [vmem:[#allocation12 + $0x1d0] sm:$0xff]
    %v3834 = vld [vmem:[#allocation12 + $0x1d8] sm:$0xff]
    %v3835 = vld [vmem:[#allocation12 + $0x1e0] sm:$0xff]
    %v3836 = vld [vmem:[#allocation12 + $0x1e8] sm:$0xff]
    %v3837 = vld [vmem:[#allocation12 + $0x1f0] sm:$0xff]
    %v3838 = vld [vmem:[#allocation12 + $0x1f8] sm:$0xff]
    %3839 = vmatprep.subr.mxu0 %v3776
    %3840 = vmatpush1.msra.mxu0 %v3775
    %3841 = vmatprep.subr.mxu0 %v3780
    %3842 = vmatpush1.msra.mxu0 %v3779
    %3843 = vmatprep.subr.mxu0 %v3784
    %3844 = vmatpush1.msra.mxu0 %v3783
    %3845 = vmatprep.subr.mxu0 %v3788
    %3846 = vmatpush1.msra.mxu0 %v3787
    %3847 = vmatprep.subr.mxu0 %v3792
    %3848 = vmatpush1.msra.mxu0 %v3791
    %3849 = vmatprep.subr.mxu0 %v3796
    %3850 = vmatpush1.msra.mxu0 %v3795
    %3851 = vmatprep.subr.mxu0 %v3800
    %3852 = vmatpush1.msra.mxu0 %v3799
    %3853 = vmatprep.subr.mxu0 %v3804
    %3854 = vmatpush1.msra.mxu0 %v3803
    %3855 = vmatprep.subr.mxu0 %v3808
    %3856 = vmatpush1.msra.mxu0 %v3807
    %3857 = vmatprep.subr.mxu0 %v3812
    %3858 = vmatpush1.msra.mxu0 %v3811
    %3859 = vmatprep.subr.mxu0 %v3816
    %3860 = vmatpush1.msra.mxu0 %v3815
    %3861 = vmatprep.subr.mxu0 %v3820
    %3862 = vmatpush1.msra.mxu0 %v3819
    %3863 = vmatprep.subr.mxu0 %v3824
    %3864 = vmatpush1.msra.mxu0 %v3823
    %3865 = vmatprep.subr.mxu0 %v3828
    %3866 = vmatpush1.msra.mxu0 %v3827
    %3867 = vmatprep.subr.mxu0 %v3832
    %3868 = vmatpush1.msra.mxu0 %v3831
    %3869 = vmatprep.subr.mxu0 %v3836
    %3870 = vmatpush1.msra.mxu0 %v3835
    %3871 = vmatprep.subr.mxu0 0.0
    %3872 = vmatpush1.msra.mxu0 0.0
    %3873 = vmatprep.subr.mxu0 0.0
    %3874 = vmatpush1.msra.mxu0 0.0
    %3875 = vmatprep.subr.mxu0 0.0
    %3876 = vmatpush1.msra.mxu0 0.0
    %3877 = vmatprep.subr.mxu0 0.0
    %3878 = vmatpush1.msra.mxu0 0.0
    %3879 = vmatprep.subr.mxu0 0.0
    %3880 = vmatpush1.msra.mxu0 0.0
    %3881 = vmatprep.subr.mxu0 0.0
    %3882 = vmatpush1.msra.mxu0 0.0
    %3883 = vmatprep.subr.mxu0 0.0
    %3884 = vmatpush1.msra.mxu0 0.0
    %3885 = vmatprep.subr.mxu0 0.0
    %3886 = vmatpush1.msra.mxu0 0.0
    %3887 = vmatprep.subr.mxu0 0.0
    %3888 = vmatpush1.msra.mxu0 0.0
    %3889 = vmatprep.subr.mxu0 0.0
    %3890 = vmatpush1.msra.mxu0 0.0
    %3891 = vmatprep.subr.mxu0 0.0
    %3892 = vmatpush1.msra.mxu0 0.0
    %3893 = vmatprep.subr.mxu0 0.0
    %3894 = vmatpush1.msra.mxu0 0.0
    %3895 = vmatprep.subr.mxu0 0.0
    %3896 = vmatpush1.msra.mxu0 0.0
    %3897 = vmatprep.subr.mxu0 0.0
    %3898 = vmatpush1.msra.mxu0 0.0
    %3899 = vmatprep.subr.mxu0 0.0
    %3900 = vmatpush1.msra.mxu0 0.0
    %3901 = vmatprep.subr.mxu0 0.0
    %3902 = vmatpush1.msra.mxu0 0.0
    %3903 = vmatprep.mubr.f32.mxu0 0.0
    %3904 = vmatmul.mubr.f32.gmra.mrb[0].mxu0 %v3505
    %v3905 = vpop.f32.mrb[0].mxu0
    %v3906 = vadd.f32 0.0, %v3905
    %v3907 = vpop.f32.mrb[0].mxu0
    %v3908 = vadd.f32 0.0, %v3907
    %3909 = vdwg.mxu0
    %3910 = vmatprep.subr.mxu0 %v3778
    %3911 = vmatpush1.msra.mxu0 %v3777
    %3912 = vmatprep.subr.mxu0 %v3782
    %3913 = vmatpush1.msra.mxu0 %v3781
    %3914 = vmatprep.subr.mxu0 %v3786
    %3915 = vmatpush1.msra.mxu0 %v3785
    %3916 = vmatprep.subr.mxu0 %v3790
    %3917 = vmatpush1.msra.mxu0 %v3789
    %3918 = vmatprep.subr.mxu0 %v3794
    %3919 = vmatpush1.msra.mxu0 %v3793
    %3920 = vmatprep.subr.mxu0 %v3798
    %3921 = vmatpush1.msra.mxu0 %v3797
    %3922 = vmatprep.subr.mxu0 %v3802
    %3923 = vmatpush1.msra.mxu0 %v3801
    %3924 = vmatprep.subr.mxu0 %v3806
    %3925 = vmatpush1.msra.mxu0 %v3805
    %3926 = vmatprep.subr.mxu0 %v3810
    %3927 = vmatpush1.msra.mxu0 %v3809
    %3928 = vmatprep.subr.mxu0 %v3814
    %3929 = vmatpush1.msra.mxu0 %v3813
    %3930 = vmatprep.subr.mxu0 %v3818
    %3931 = vmatpush1.msra.mxu0 %v3817
    %3932 = vmatprep.subr.mxu0 %v3822
    %3933 = vmatpush1.msra.mxu0 %v3821
    %3934 = vmatprep.subr.mxu0 %v3826
    %3935 = vmatpush1.msra.mxu0 %v3825
    %3936 = vmatprep.subr.mxu0 %v3830
    %3937 = vmatpush1.msra.mxu0 %v3829
    %3938 = vmatprep.subr.mxu0 %v3834
    %3939 = vmatpush1.msra.mxu0 %v3833
    %3940 = vmatprep.subr.mxu0 %v3838
    %3941 = vmatpush1.msra.mxu0 %v3837
    %3942 = vmatprep.subr.mxu0 0.0
    %3943 = vmatpush1.msra.mxu0 0.0
    %3944 = vmatprep.subr.mxu0 0.0
    %3945 = vmatpush1.msra.mxu0 0.0
    %3946 = vmatprep.subr.mxu0 0.0
    %3947 = vmatpush1.msra.mxu0 0.0
    %3948 = vmatprep.subr.mxu0 0.0
    %3949 = vmatpush1.msra.mxu0 0.0
    %3950 = vmatprep.subr.mxu0 0.0
    %3951 = vmatpush1.msra.mxu0 0.0
    %3952 = vmatprep.subr.mxu0 0.0
    %3953 = vmatpush1.msra.mxu0 0.0
    %3954 = vmatprep.subr.mxu0 0.0
    %3955 = vmatpush1.msra.mxu0 0.0
    %3956 = vmatprep.subr.mxu0 0.0
    %3957 = vmatpush1.msra.mxu0 0.0
    %3958 = vmatprep.subr.mxu0 0.0
    %3959 = vmatpush1.msra.mxu0 0.0
    %3960 = vmatprep.subr.mxu0 0.0
    %3961 = vmatpush1.msra.mxu0 0.0
    %3962 = vmatprep.subr.mxu0 0.0
    %3963 = vmatpush1.msra.mxu0 0.0
    %3964 = vmatprep.subr.mxu0 0.0
    %3965 = vmatpush1.msra.mxu0 0.0
    %3966 = vmatprep.subr.mxu0 0.0
    %3967 = vmatpush1.msra.mxu0 0.0
    %3968 = vmatprep.subr.mxu0 0.0
    %3969 = vmatpush1.msra.mxu0 0.0
    %3970 = vmatprep.subr.mxu0 0.0
    %3971 = vmatpush1.msra.mxu0 0.0
    %3972 = vmatprep.subr.mxu0 0.0
    %3973 = vmatpush1.msra.mxu0 0.0
    %3974 = vmatprep.mubr.f32.mxu0 0.0
    %3975 = vmatmul.mubr.f32.gmra.mrb[0].mxu0 %v3505
    %v3976 = vpop.f32.mrb[0].mxu0
    %v3977 = vadd.f32 0.0, %v3976
    %v3978 = vpop.f32.mrb[0].mxu0
    %v3979 = vadd.f32 0.0, %v3978
    %3980 = vdwg.mxu0
    %v3985 = vcombine.low %v3906, %v3908
    %v3986 = vcombine.high %v3906, %v3908
    %v3987 = vcombine.low %v3977, %v3979
    %v3988 = vcombine.high %v3977, %v3979
    %v3990 = vunpack.c.l.s4 1966171168
    %v3991 = vunpack.c.0.s8 %v3990
    %v3992 = vlaneseq
    %v3993 = vshrl.u32 %v3992, 7
    %v3994 = vsub.s32 %v3991, %v3993
    %v3995 = vrot.slane %v3985, %v3994
    %v3997 = vunpack.c.l.s4 1966171168
    %v3998 = vunpack.c.0.s8 %v3997
    %v3999 = vlaneseq
    %v4000 = vshrl.u32 %v3999, 7
    %v4001 = vsub.s32 %v3998, %v4000
    %v4002 = vrot.slane %v3986, %v4001
    %v4004 = vunpack.c.l.s4 1966171168
    %v4005 = vunpack.c.0.s8 %v4004
    %v4006 = vlaneseq
    %v4007 = vshrl.u32 %v4006, 7
    %v4008 = vsub.s32 %v4005, %v4007
    %v4009 = vrot.slane %v3987, %v4008
    %v4011 = vunpack.c.l.s4 1966171168
    %v4012 = vunpack.c.0.s8 %v4011
    %v4013 = vlaneseq
    %v4014 = vshrl.u32 %v4013, 7
    %v4015 = vsub.s32 %v4012, %v4014
    %v4016 = vrot.slane %v3988, %v4015
    %v4017 = vcombine.low %v3995, %v4009
    %v4018 = vcombine.high %v3995, %v4009
    %v4019 = vcombine.low %v4002, %v4016
    %v4020 = vcombine.high %v4002, %v4016
    %v4022 = vunpack.c.l.s4 1966171168
    %v4023 = vunpack.c.0.s8 %v4022
    %v4024 = vlaneseq
    %v4025 = vshrl.u32 %v4024, 7
    %v4026 = vsub.s32 %v4023, %v4025
    %v4027 = vrot.slane %v4017, %v4026
    %v4029 = vunpack.c.l.s4 1966171168
    %v4030 = vunpack.c.0.s8 %v4029
    %v4031 = vlaneseq
    %v4032 = vshrl.u32 %v4031, 7
    %v4033 = vsub.s32 %v4030, %v4032
    %v4034 = vrot.slane %v4019, %v4033
    %v4036 = vunpack.c.l.s4 1966171168
    %v4037 = vunpack.c.0.s8 %v4036
    %v4038 = vlaneseq
    %v4039 = vshrl.u32 %v4038, 7
    %v4040 = vsub.s32 %v4037, %v4039
    %v4041 = vrot.slane %v4018, %v4040
    %v4043 = vunpack.c.l.s4 1966171168
    %v4044 = vunpack.c.0.s8 %v4043
    %v4045 = vlaneseq
    %v4046 = vshrl.u32 %v4045, 7
    %v4047 = vsub.s32 %v4044, %v4046
    %v4048 = vrot.slane %v4020, %v4047
    %v4049 = vcombine.high %v4027, %v4027
    %v4050 = vcombine.high %v4034, %v4034
    %v4051 = vcombine.high %v4041, %v4041
    %v4052 = vcombine.high %v4048, %v4048
    %v4061 = vadd.f32 %v3760, %v4027
    %v4062 = vadd.f32 %v3762, %v4041
    %v4063 = vadd.f32 %v3764, %v4049
    %v4064 = vadd.f32 %v3766, %v4051
    %v4065 = vadd.f32 %v3768, %v4034
    %v4066 = vadd.f32 %v3770, %v4048
    %v4067 = vadd.f32 %v3772, %v4050
    %v4068 = vadd.f32 %v3774, %v4052
    %v4069 = vmul.f32 %v4061, 0.5
    %v4070 = vmul.f32 %v4062, 0.5
    %v4071 = vmul.f32 %v4063, 0.5
    %v4072 = vmul.f32 %v4064, 0.5
    %v4073 = vmul.f32 %v4065, 0.5
    %v4074 = vmul.f32 %v4066, 0.5
    %v4075 = vmul.f32 %v4067, 0.5
    %v4076 = vmul.f32 %v4068, 0.5
    %v4077 = vtanh.pop %v4069
    %v4078 = vtanh.pop %v4070
    %v4079 = vtanh.pop %v4071
    %v4080 = vtanh.pop %v4072
    %v4081 = vtanh.pop %v4073
    %v4082 = vtanh.pop %v4074
    %v4083 = vtanh.pop %v4075
    %v4084 = vtanh.pop %v4076
    %v4085 = vmul.f32 %v4077, 0.5
    %v4086 = vmul.f32 %v4078, 0.5
    %v4087 = vmul.f32 %v4079, 0.5
    %v4088 = vmul.f32 %v4080, 0.5
    %v4089 = vmul.f32 %v4081, 0.5
    %v4090 = vmul.f32 %v4082, 0.5
    %v4091 = vmul.f32 %v4083, 0.5
    %v4092 = vmul.f32 %v4084, 0.5
    %v4093 = vadd.f32 %v4085, 0.5
    %v4094 = vadd.f32 %v4086, 0.5
    %v4095 = vadd.f32 %v4087, 0.5
    %v4096 = vadd.f32 %v4088, 0.5
    %v4097 = vadd.f32 %v4089, 0.5
    %v4098 = vadd.f32 %v4090, 0.5
    %v4099 = vadd.f32 %v4091, 0.5
    %v4100 = vadd.f32 %v4092, 0.5
    %v4109 = vrot.slane %v4061, 1
    %v4110 = vrot.slane %v4062, 1
    %v4111 = vrot.slane %v4063, 1
    %v4112 = vrot.slane %v4064, 1
    %v4113 = vrot.slane %v4065, 1
    %v4114 = vrot.slane %v4066, 1
    %v4115 = vrot.slane %v4067, 1
    %v4116 = vrot.slane %v4068, 1
    %v4125 = vmul.f32 %v4109, 0.5
    %v4126 = vmul.f32 %v4110, 0.5
    %v4127 = vmul.f32 %v4111, 0.5
    %v4128 = vmul.f32 %v4112, 0.5
    %v4129 = vmul.f32 %v4113, 0.5
    %v4130 = vmul.f32 %v4114, 0.5
    %v4131 = vmul.f32 %v4115, 0.5
    %v4132 = vmul.f32 %v4116, 0.5
    %v4133 = vtanh.pop %v4125
    %v4134 = vtanh.pop %v4126
    %v4135 = vtanh.pop %v4127
    %v4136 = vtanh.pop %v4128
    %v4137 = vtanh.pop %v4129
    %v4138 = vtanh.pop %v4130
    %v4139 = vtanh.pop %v4131
    %v4140 = vtanh.pop %v4132
    %v4141 = vmul.f32 %v4133, 0.5
    %v4142 = vmul.f32 %v4134, 0.5
    %v4143 = vmul.f32 %v4135, 0.5
    %v4144 = vmul.f32 %v4136, 0.5
    %v4145 = vmul.f32 %v4137, 0.5
    %v4146 = vmul.f32 %v4138, 0.5
    %v4147 = vmul.f32 %v4139, 0.5
    %v4148 = vmul.f32 %v4140, 0.5
    %v4149 = vadd.f32 %v4141, 0.5
    %v4150 = vadd.f32 %v4142, 0.5
    %v4151 = vadd.f32 %v4143, 0.5
    %v4152 = vadd.f32 %v4144, 0.5
    %v4153 = vadd.f32 %v4145, 0.5
    %v4154 = vadd.f32 %v4146, 0.5
    %v4155 = vadd.f32 %v4147, 0.5
    %v4156 = vadd.f32 %v4148, 0.5
    %v4157 = vrot.slane %v4061, 2
    %v4158 = vrot.slane %v4062, 2
    %v4159 = vrot.slane %v4063, 2
    %v4160 = vrot.slane %v4064, 2
    %v4161 = vrot.slane %v4065, 2
    %v4162 = vrot.slane %v4066, 2
    %v4163 = vrot.slane %v4067, 2
    %v4164 = vrot.slane %v4068, 2
    %v4173 = vtanh.pop %v4157
    %v4174 = vtanh.pop %v4158
    %v4175 = vtanh.pop %v4159
    %v4176 = vtanh.pop %v4160
    %v4177 = vtanh.pop %v4161
    %v4178 = vtanh.pop %v4162
    %v4179 = vtanh.pop %v4163
    %v4180 = vtanh.pop %v4164
    %v4181 = vrot.slane %v4061, 3
    %v4182 = vrot.slane %v4062, 3
    %v4183 = vrot.slane %v4063, 3
    %v4184 = vrot.slane %v4064, 3
    %v4185 = vrot.slane %v4065, 3
    %v4186 = vrot.slane %v4066, 3
    %v4187 = vrot.slane %v4067, 3
    %v4188 = vrot.slane %v4068, 3
    %v4197 = vmul.f32 %v4181, 0.5
    %v4198 = vmul.f32 %v4182, 0.5
    %v4199 = vmul.f32 %v4183, 0.5
    %v4200 = vmul.f32 %v4184, 0.5
    %v4201 = vmul.f32 %v4185, 0.5
    %v4202 = vmul.f32 %v4186, 0.5
    %v4203 = vmul.f32 %v4187, 0.5
    %v4204 = vmul.f32 %v4188, 0.5
    %v4205 = vtanh.pop %v4197
    %v4206 = vtanh.pop %v4198
    %v4207 = vtanh.pop %v4199
    %v4208 = vtanh.pop %v4200
    %v4209 = vtanh.pop %v4201
    %v4210 = vtanh.pop %v4202
    %v4211 = vtanh.pop %v4203
    %v4212 = vtanh.pop %v4204
    %v4213 = vmul.f32 %v4205, 0.5
    %v4214 = vmul.f32 %v4206, 0.5
    %v4215 = vmul.f32 %v4207, 0.5
    %v4216 = vmul.f32 %v4208, 0.5
    %v4217 = vmul.f32 %v4209, 0.5
    %v4218 = vmul.f32 %v4210, 0.5
    %v4219 = vmul.f32 %v4211, 0.5
    %v4220 = vmul.f32 %v4212, 0.5
    %v4221 = vadd.f32 %v4213, 0.5
    %v4222 = vadd.f32 %v4214, 0.5
    %v4223 = vadd.f32 %v4215, 0.5
    %v4224 = vadd.f32 %v4216, 0.5
    %v4225 = vadd.f32 %v4217, 0.5
    %v4226 = vadd.f32 %v4218, 0.5
    %v4227 = vadd.f32 %v4219, 0.5
    %v4228 = vadd.f32 %v4220, 0.5
    %v4229 = vmul.f32 %v4149, %v3155
    %v4230 = vmul.f32 %v4150, %v3156
    %v4231 = vmul.f32 %v4151, %v3157
    %v4232 = vmul.f32 %v4152, %v3158
    %v4233 = vmul.f32 %v4153, %v3159
    %v4234 = vmul.f32 %v4154, %v3160
    %v4235 = vmul.f32 %v4155, %v3161
    %v4236 = vmul.f32 %v4156, %v3162
    %v4237 = vmul.f32 %v4093, %v4173
    %v4238 = vmul.f32 %v4094, %v4174
    %v4239 = vmul.f32 %v4095, %v4175
    %v4240 = vmul.f32 %v4096, %v4176
    %v4241 = vmul.f32 %v4097, %v4177
    %v4242 = vmul.f32 %v4098, %v4178
    %v4243 = vmul.f32 %v4099, %v4179
    %v4244 = vmul.f32 %v4100, %v4180
    %v4245 = vadd.f32 %v4229, %v4237
    %v4246 = vadd.f32 %v4230, %v4238
    %v4247 = vadd.f32 %v4231, %v4239
    %v4248 = vadd.f32 %v4232, %v4240
    %v4249 = vadd.f32 %v4233, %v4241
    %v4250 = vadd.f32 %v4234, %v4242
    %v4251 = vadd.f32 %v4235, %v4243
    %v4252 = vadd.f32 %v4236, %v4244
    %v4253 = vtanh.pop %v4245
    %v4254 = vtanh.pop %v4246
    %v4255 = vtanh.pop %v4247
    %v4256 = vtanh.pop %v4248
    %v4257 = vtanh.pop %v4249
    %v4258 = vtanh.pop %v4250
    %v4259 = vtanh.pop %v4251
    %v4260 = vtanh.pop %v4252
    %v4261 = vmul.f32 %v4221, %v4253
    %v4262 = vmul.f32 %v4222, %v4254
    %v4263 = vmul.f32 %v4223, %v4255
    %v4264 = vmul.f32 %v4224, %v4256
    %v4265 = vmul.f32 %v4225, %v4257
    %v4266 = vmul.f32 %v4226, %v4258
    %v4267 = vmul.f32 %v4227, %v4259
    %v4268 = vmul.f32 %v4228, %v4260
    %v4269 = vld [vmem:[#allocation13] sm:$0xff]
    %v4270 = vld [vmem:[#allocation13 + $0x8] sm:$0xff]
    %v4271 = vld [vmem:[#allocation13 + $0x10] sm:$0xff]
    %v4272 = vld [vmem:[#allocation13 + $0x18] sm:$0xff]
    %v4273 = vld [vmem:[#allocation13 + $0x20] sm:$0xff]
    %v4274 = vld [vmem:[#allocation13 + $0x28] sm:$0xff]
    %v4275 = vld [vmem:[#allocation13 + $0x30] sm:$0xff]
    %v4276 = vld [vmem:[#allocation13 + $0x38] sm:$0xff]
    %v4277 = vld [vmem:[#allocation13 + $0x40] sm:$0xff]
    %v4278 = vld [vmem:[#allocation13 + $0x48] sm:$0xff]
    %v4279 = vld [vmem:[#allocation13 + $0x50] sm:$0xff]
    %v4280 = vld [vmem:[#allocation13 + $0x58] sm:$0xff]
    %v4281 = vld [vmem:[#allocation13 + $0x60] sm:$0xff]
    %v4282 = vld [vmem:[#allocation13 + $0x68] sm:$0xff]
    %v4283 = vld [vmem:[#allocation13 + $0x70] sm:$0xff]
    %v4284 = vld [vmem:[#allocation13 + $0x78] sm:$0xff]
    %v4285 = vld [vmem:[#allocation13 + $0x80] sm:$0xff]
    %v4286 = vld [vmem:[#allocation13 + $0x88] sm:$0xff]
    %v4287 = vld [vmem:[#allocation13 + $0x90] sm:$0xff]
    %v4288 = vld [vmem:[#allocation13 + $0x98] sm:$0xff]
    %v4289 = vld [vmem:[#allocation13 + $0xa0] sm:$0xff]
    %v4290 = vld [vmem:[#allocation13 + $0xa8] sm:$0xff]
    %v4291 = vld [vmem:[#allocation13 + $0xb0] sm:$0xff]
    %v4292 = vld [vmem:[#allocation13 + $0xb8] sm:$0xff]
    %v4293 = vld [vmem:[#allocation13 + $0xc0] sm:$0xff]
    %v4294 = vld [vmem:[#allocation13 + $0xc8] sm:$0xff]
    %v4295 = vld [vmem:[#allocation13 + $0xd0] sm:$0xff]
    %v4296 = vld [vmem:[#allocation13 + $0xd8] sm:$0xff]
    %v4297 = vld [vmem:[#allocation13 + $0xe0] sm:$0xff]
    %v4298 = vld [vmem:[#allocation13 + $0xe8] sm:$0xff]
    %v4299 = vld [vmem:[#allocation13 + $0xf0] sm:$0xff]
    %v4300 = vld [vmem:[#allocation13 + $0xf8] sm:$0xff]
    %v4301 = vld [vmem:[#allocation13 + $0x100] sm:$0xff]
    %v4302 = vld [vmem:[#allocation13 + $0x108] sm:$0xff]
    %v4303 = vld [vmem:[#allocation13 + $0x110] sm:$0xff]
    %v4304 = vld [vmem:[#allocation13 + $0x118] sm:$0xff]
    %v4305 = vld [vmem:[#allocation13 + $0x120] sm:$0xff]
    %v4306 = vld [vmem:[#allocation13 + $0x128] sm:$0xff]
    %v4307 = vld [vmem:[#allocation13 + $0x130] sm:$0xff]
    %v4308 = vld [vmem:[#allocation13 + $0x138] sm:$0xff]
    %v4309 = vld [vmem:[#allocation13 + $0x140] sm:$0xff]
    %v4310 = vld [vmem:[#allocation13 + $0x148] sm:$0xff]
    %v4311 = vld [vmem:[#allocation13 + $0x150] sm:$0xff]
    %v4312 = vld [vmem:[#allocation13 + $0x158] sm:$0xff]
    %v4313 = vld [vmem:[#allocation13 + $0x160] sm:$0xff]
    %v4314 = vld [vmem:[#allocation13 + $0x168] sm:$0xff]
    %v4315 = vld [vmem:[#allocation13 + $0x170] sm:$0xff]
    %v4316 = vld [vmem:[#allocation13 + $0x178] sm:$0xff]
    %v4317 = vld [vmem:[#allocation13 + $0x180] sm:$0xff]
    %v4318 = vld [vmem:[#allocation13 + $0x188] sm:$0xff]
    %v4319 = vld [vmem:[#allocation13 + $0x190] sm:$0xff]
    %v4320 = vld [vmem:[#allocation13 + $0x198] sm:$0xff]
    %v4321 = vld [vmem:[#allocation13 + $0x1a0] sm:$0xff]
    %v4322 = vld [vmem:[#allocation13 + $0x1a8] sm:$0xff]
    %v4323 = vld [vmem:[#allocation13 + $0x1b0] sm:$0xff]
    %v4324 = vld [vmem:[#allocation13 + $0x1b8] sm:$0xff]
    %v4325 = vld [vmem:[#allocation13 + $0x1c0] sm:$0xff]
    %v4326 = vld [vmem:[#allocation13 + $0x1c8] sm:$0xff]
    %v4327 = vld [vmem:[#allocation13 + $0x1d0] sm:$0xff]
    %v4328 = vld [vmem:[#allocation13 + $0x1d8] sm:$0xff]
    %v4329 = vld [vmem:[#allocation13 + $0x1e0] sm:$0xff]
    %v4330 = vld [vmem:[#allocation13 + $0x1e8] sm:$0xff]
    %v4331 = vld [vmem:[#allocation13 + $0x1f0] sm:$0xff]
    %v4332 = vld [vmem:[#allocation13 + $0x1f8] sm:$0xff]
    %v4333 = vld [vmem:[#allocation15] sm:$0xff]
    %v4334 = vld [vmem:[#allocation15 + $0x8] sm:$0xff]
    %v4335 = vld [vmem:[#allocation15 + $0x10] sm:$0xff]
    %v4336 = vld [vmem:[#allocation15 + $0x18] sm:$0xff]
    %v4337 = vld [vmem:[#allocation15 + $0x20] sm:$0xff]
    %v4338 = vld [vmem:[#allocation15 + $0x28] sm:$0xff]
    %v4339 = vld [vmem:[#allocation15 + $0x30] sm:$0xff]
    %v4340 = vld [vmem:[#allocation15 + $0x38] sm:$0xff]
    %v4341 = vld [vmem:[#allocation15 + $0x40] sm:$0xff]
    %v4342 = vld [vmem:[#allocation15 + $0x48] sm:$0xff]
    %v4343 = vld [vmem:[#allocation15 + $0x50] sm:$0xff]
    %v4344 = vld [vmem:[#allocation15 + $0x58] sm:$0xff]
    %v4345 = vld [vmem:[#allocation15 + $0x60] sm:$0xff]
    %v4346 = vld [vmem:[#allocation15 + $0x68] sm:$0xff]
    %v4347 = vld [vmem:[#allocation15 + $0x70] sm:$0xff]
    %v4348 = vld [vmem:[#allocation15 + $0x78] sm:$0xff]
    %v4349 = vld [vmem:[#allocation15 + $0x80] sm:$0xff]
    %v4350 = vld [vmem:[#allocation15 + $0x88] sm:$0xff]
    %v4351 = vld [vmem:[#allocation15 + $0x90] sm:$0xff]
    %v4352 = vld [vmem:[#allocation15 + $0x98] sm:$0xff]
    %v4353 = vld [vmem:[#allocation15 + $0xa0] sm:$0xff]
    %v4354 = vld [vmem:[#allocation15 + $0xa8] sm:$0xff]
    %v4355 = vld [vmem:[#allocation15 + $0xb0] sm:$0xff]
    %v4356 = vld [vmem:[#allocation15 + $0xb8] sm:$0xff]
    %v4357 = vld [vmem:[#allocation15 + $0xc0] sm:$0xff]
    %v4358 = vld [vmem:[#allocation15 + $0xc8] sm:$0xff]
    %v4359 = vld [vmem:[#allocation15 + $0xd0] sm:$0xff]
    %v4360 = vld [vmem:[#allocation15 + $0xd8] sm:$0xff]
    %v4361 = vld [vmem:[#allocation15 + $0xe0] sm:$0xff]
    %v4362 = vld [vmem:[#allocation15 + $0xe8] sm:$0xff]
    %v4363 = vld [vmem:[#allocation15 + $0xf0] sm:$0xff]
    %v4364 = vld [vmem:[#allocation15 + $0xf8] sm:$0xff]
    %v4365 = vld [vmem:[#allocation15 + $0x100] sm:$0xff]
    %v4366 = vld [vmem:[#allocation15 + $0x108] sm:$0xff]
    %v4367 = vld [vmem:[#allocation15 + $0x110] sm:$0xff]
    %v4368 = vld [vmem:[#allocation15 + $0x118] sm:$0xff]
    %v4369 = vld [vmem:[#allocation15 + $0x120] sm:$0xff]
    %v4370 = vld [vmem:[#allocation15 + $0x128] sm:$0xff]
    %v4371 = vld [vmem:[#allocation15 + $0x130] sm:$0xff]
    %v4372 = vld [vmem:[#allocation15 + $0x138] sm:$0xff]
    %v4373 = vld [vmem:[#allocation15 + $0x140] sm:$0xff]
    %v4374 = vld [vmem:[#allocation15 + $0x148] sm:$0xff]
    %v4375 = vld [vmem:[#allocation15 + $0x150] sm:$0xff]
    %v4376 = vld [vmem:[#allocation15 + $0x158] sm:$0xff]
    %v4377 = vld [vmem:[#allocation15 + $0x160] sm:$0xff]
    %v4378 = vld [vmem:[#allocation15 + $0x168] sm:$0xff]
    %v4379 = vld [vmem:[#allocation15 + $0x170] sm:$0xff]
    %v4380 = vld [vmem:[#allocation15 + $0x178] sm:$0xff]
    %v4381 = vld [vmem:[#allocation15 + $0x180] sm:$0xff]
    %v4382 = vld [vmem:[#allocation15 + $0x188] sm:$0xff]
    %v4383 = vld [vmem:[#allocation15 + $0x190] sm:$0xff]
    %v4384 = vld [vmem:[#allocation15 + $0x198] sm:$0xff]
    %v4385 = vld [vmem:[#allocation15 + $0x1a0] sm:$0xff]
    %v4386 = vld [vmem:[#allocation15 + $0x1a8] sm:$0xff]
    %v4387 = vld [vmem:[#allocation15 + $0x1b0] sm:$0xff]
    %v4388 = vld [vmem:[#allocation15 + $0x1b8] sm:$0xff]
    %v4389 = vld [vmem:[#allocation15 + $0x1c0] sm:$0xff]
    %v4390 = vld [vmem:[#allocation15 + $0x1c8] sm:$0xff]
    %v4391 = vld [vmem:[#allocation15 + $0x1d0] sm:$0xff]
    %v4392 = vld [vmem:[#allocation15 + $0x1d8] sm:$0xff]
    %v4393 = vld [vmem:[#allocation15 + $0x1e0] sm:$0xff]
    %v4394 = vld [vmem:[#allocation15 + $0x1e8] sm:$0xff]
    %v4395 = vld [vmem:[#allocation15 + $0x1f0] sm:$0xff]
    %v4396 = vld [vmem:[#allocation15 + $0x1f8] sm:$0xff]
    %4397 = vmatprep.subr.mxu0 %v4334
    %4398 = vmatpush1.msra.mxu0 %v4333
    %4399 = vmatprep.subr.mxu0 %v4338
    %4400 = vmatpush1.msra.mxu0 %v4337
    %4401 = vmatprep.subr.mxu0 %v4342
    %4402 = vmatpush1.msra.mxu0 %v4341
    %4403 = vmatprep.subr.mxu0 %v4346
    %4404 = vmatpush1.msra.mxu0 %v4345
    %4405 = vmatprep.subr.mxu0 %v4350
    %4406 = vmatpush1.msra.mxu0 %v4349
    %4407 = vmatprep.subr.mxu0 %v4354
    %4408 = vmatpush1.msra.mxu0 %v4353
    %4409 = vmatprep.subr.mxu0 %v4358
    %4410 = vmatpush1.msra.mxu0 %v4357
    %4411 = vmatprep.subr.mxu0 %v4362
    %4412 = vmatpush1.msra.mxu0 %v4361
    %4413 = vmatprep.subr.mxu0 %v4366
    %4414 = vmatpush1.msra.mxu0 %v4365
    %4415 = vmatprep.subr.mxu0 %v4370
    %4416 = vmatpush1.msra.mxu0 %v4369
    %4417 = vmatprep.subr.mxu0 %v4374
    %4418 = vmatpush1.msra.mxu0 %v4373
    %4419 = vmatprep.subr.mxu0 %v4378
    %4420 = vmatpush1.msra.mxu0 %v4377
    %4421 = vmatprep.subr.mxu0 %v4382
    %4422 = vmatpush1.msra.mxu0 %v4381
    %4423 = vmatprep.subr.mxu0 %v4386
    %4424 = vmatpush1.msra.mxu0 %v4385
    %4425 = vmatprep.subr.mxu0 %v4390
    %4426 = vmatpush1.msra.mxu0 %v4389
    %4427 = vmatprep.subr.mxu0 %v4394
    %4428 = vmatpush1.msra.mxu0 %v4393
    %4429 = vmatprep.subr.mxu0 0.0
    %4430 = vmatpush1.msra.mxu0 0.0
    %4431 = vmatprep.subr.mxu0 0.0
    %4432 = vmatpush1.msra.mxu0 0.0
    %4433 = vmatprep.subr.mxu0 0.0
    %4434 = vmatpush1.msra.mxu0 0.0
    %4435 = vmatprep.subr.mxu0 0.0
    %4436 = vmatpush1.msra.mxu0 0.0
    %4437 = vmatprep.subr.mxu0 0.0
    %4438 = vmatpush1.msra.mxu0 0.0
    %4439 = vmatprep.subr.mxu0 0.0
    %4440 = vmatpush1.msra.mxu0 0.0
    %4441 = vmatprep.subr.mxu0 0.0
    %4442 = vmatpush1.msra.mxu0 0.0
    %4443 = vmatprep.subr.mxu0 0.0
    %4444 = vmatpush1.msra.mxu0 0.0
    %4445 = vmatprep.subr.mxu0 0.0
    %4446 = vmatpush1.msra.mxu0 0.0
    %4447 = vmatprep.subr.mxu0 0.0
    %4448 = vmatpush1.msra.mxu0 0.0
    %4449 = vmatprep.subr.mxu0 0.0
    %4450 = vmatpush1.msra.mxu0 0.0
    %4451 = vmatprep.subr.mxu0 0.0
    %4452 = vmatpush1.msra.mxu0 0.0
    %4453 = vmatprep.subr.mxu0 0.0
    %4454 = vmatpush1.msra.mxu0 0.0
    %4455 = vmatprep.subr.mxu0 0.0
    %4456 = vmatpush1.msra.mxu0 0.0
    %4457 = vmatprep.subr.mxu0 0.0
    %4458 = vmatpush1.msra.mxu0 0.0
    %4459 = vmatprep.subr.mxu0 0.0
    %4460 = vmatpush1.msra.mxu0 0.0
    %4461 = vmatprep.mubr.f32.mxu0 0.0
    %4462 = vmatmul.mubr.f32.gmra.mrb[0].mxu0 %v3692
    %v4463 = vpop.f32.mrb[0].mxu0
    %v4464 = vadd.f32 0.0, %v4463
    %v4465 = vpop.f32.mrb[0].mxu0
    %v4466 = vadd.f32 0.0, %v4465
    %4467 = vdwg.mxu0
    %4468 = vmatprep.subr.mxu0 %v4336
    %4469 = vmatpush1.msra.mxu0 %v4335
    %4470 = vmatprep.subr.mxu0 %v4340
    %4471 = vmatpush1.msra.mxu0 %v4339
    %4472 = vmatprep.subr.mxu0 %v4344
    %4473 = vmatpush1.msra.mxu0 %v4343
    %4474 = vmatprep.subr.mxu0 %v4348
    %4475 = vmatpush1.msra.mxu0 %v4347
    %4476 = vmatprep.subr.mxu0 %v4352
    %4477 = vmatpush1.msra.mxu0 %v4351
    %4478 = vmatprep.subr.mxu0 %v4356
    %4479 = vmatpush1.msra.mxu0 %v4355
    %4480 = vmatprep.subr.mxu0 %v4360
    %4481 = vmatpush1.msra.mxu0 %v4359
    %4482 = vmatprep.subr.mxu0 %v4364
    %4483 = vmatpush1.msra.mxu0 %v4363
    %4484 = vmatprep.subr.mxu0 %v4368
    %4485 = vmatpush1.msra.mxu0 %v4367
    %4486 = vmatprep.subr.mxu0 %v4372
    %4487 = vmatpush1.msra.mxu0 %v4371
    %4488 = vmatprep.subr.mxu0 %v4376
    %4489 = vmatpush1.msra.mxu0 %v4375
    %4490 = vmatprep.subr.mxu0 %v4380
    %4491 = vmatpush1.msra.mxu0 %v4379
    %4492 = vmatprep.subr.mxu0 %v4384
    %4493 = vmatpush1.msra.mxu0 %v4383
    %4494 = vmatprep.subr.mxu0 %v4388
    %4495 = vmatpush1.msra.mxu0 %v4387
    %4496 = vmatprep.subr.mxu0 %v4392
    %4497 = vmatpush1.msra.mxu0 %v4391
    %4498 = vmatprep.subr.mxu0 %v4396
    %4499 = vmatpush1.msra.mxu0 %v4395
    %4500 = vmatprep.subr.mxu0 0.0
    %4501 = vmatpush1.msra.mxu0 0.0
    %4502 = vmatprep.subr.mxu0 0.0
    %4503 = vmatpush1.msra.mxu0 0.0
    %4504 = vmatprep.subr.mxu0 0.0
    %4505 = vmatpush1.msra.mxu0 0.0
    %4506 = vmatprep.subr.mxu0 0.0
    %4507 = vmatpush1.msra.mxu0 0.0
    %4508 = vmatprep.subr.mxu0 0.0
    %4509 = vmatpush1.msra.mxu0 0.0
    %4510 = vmatprep.subr.mxu0 0.0
    %4511 = vmatpush1.msra.mxu0 0.0
    %4512 = vmatprep.subr.mxu0 0.0
    %4513 = vmatpush1.msra.mxu0 0.0
    %4514 = vmatprep.subr.mxu0 0.0
    %4515 = vmatpush1.msra.mxu0 0.0
    %4516 = vmatprep.subr.mxu0 0.0
    %4517 = vmatpush1.msra.mxu0 0.0
    %4518 = vmatprep.subr.mxu0 0.0
    %4519 = vmatpush1.msra.mxu0 0.0
    %4520 = vmatprep.subr.mxu0 0.0
    %4521 = vmatpush1.msra.mxu0 0.0
    %4522 = vmatprep.subr.mxu0 0.0
    %4523 = vmatpush1.msra.mxu0 0.0
    %4524 = vmatprep.subr.mxu0 0.0
    %4525 = vmatpush1.msra.mxu0 0.0
    %4526 = vmatprep.subr.mxu0 0.0
    %4527 = vmatpush1.msra.mxu0 0.0
    %4528 = vmatprep.subr.mxu0 0.0
    %4529 = vmatpush1.msra.mxu0 0.0
    %4530 = vmatprep.subr.mxu0 0.0
    %4531 = vmatpush1.msra.mxu0 0.0
    %4532 = vmatprep.mubr.f32.mxu0 0.0
    %4533 = vmatmul.mubr.f32.gmra.mrb[0].mxu0 %v3692
    %v4534 = vpop.f32.mrb[0].mxu0
    %v4535 = vadd.f32 0.0, %v4534
    %v4536 = vpop.f32.mrb[0].mxu0
    %v4537 = vadd.f32 0.0, %v4536
    %4538 = vdwg.mxu0
    %v4547 = vcombine.low %v4261, %v4262
    %v4548 = vcombine.low %v4263, %v4264
    %v4549 = vcombine.low %v4265, %v4266
    %v4550 = vcombine.low %v4267, %v4268
    %v4552 = vunpack.c.l.s4 1966171168
    %v4553 = vunpack.c.0.s8 %v4552
    %v4554 = vlaneseq
    %v4555 = vshrl.u32 %v4554, 7
    %v4556 = vsub.s32 %v4553, %v4555
    %v4557 = vrot.slane %v4547, %v4556
    %v4559 = vunpack.c.l.s4 1966171168
    %v4560 = vunpack.c.0.s8 %v4559
    %v4561 = vlaneseq
    %v4562 = vshrl.u32 %v4561, 7
    %v4563 = vsub.s32 %v4560, %v4562
    %v4564 = vrot.slane %v4548, %v4563
    %v4566 = vunpack.c.l.s4 1966171168
    %v4567 = vunpack.c.0.s8 %v4566
    %v4568 = vlaneseq
    %v4569 = vshrl.u32 %v4568, 7
    %v4570 = vsub.s32 %v4567, %v4569
    %v4571 = vrot.slane %v4549, %v4570
    %v4573 = vunpack.c.l.s4 1966171168
    %v4574 = vunpack.c.0.s8 %v4573
    %v4575 = vlaneseq
    %v4576 = vshrl.u32 %v4575, 7
    %v4577 = vsub.s32 %v4574, %v4576
    %v4578 = vrot.slane %v4550, %v4577
    %v4579 = vcombine.low %v4557, %v4564
    %v4580 = vcombine.low %v4571, %v4578
    %v4582 = vunpack.c.l.s4 1966171168
    %v4583 = vunpack.c.0.s8 %v4582
    %v4584 = vlaneseq
    %v4585 = vshrl.u32 %v4584, 7
    %v4586 = vsub.s32 %v4583, %v4585
    %v4587 = vrot.slane %v4579, %v4586
    %v4589 = vunpack.c.l.s4 1966171168
    %v4590 = vunpack.c.0.s8 %v4589
    %v4591 = vlaneseq
    %v4592 = vshrl.u32 %v4591, 7
    %v4593 = vsub.s32 %v4590, %v4592
    %v4594 = vrot.slane %v4580, %v4593
    %v4595 = vcombine.low %v4587, %v4594
    %4597 = vmatprep.subr.mxu0 %v4270
    %4598 = vmatpush1.msra.mxu0 %v4269
    %4599 = vmatprep.subr.mxu0 %v4274
    %4600 = vmatpush1.msra.mxu0 %v4273
    %4601 = vmatprep.subr.mxu0 %v4278
    %4602 = vmatpush1.msra.mxu0 %v4277
    %4603 = vmatprep.subr.mxu0 %v4282
    %4604 = vmatpush1.msra.mxu0 %v4281
    %4605 = vmatprep.subr.mxu0 %v4286
    %4606 = vmatpush1.msra.mxu0 %v4285
    %4607 = vmatprep.subr.mxu0 %v4290
    %4608 = vmatpush1.msra.mxu0 %v4289
    %4609 = vmatprep.subr.mxu0 %v4294
    %4610 = vmatpush1.msra.mxu0 %v4293
    %4611 = vmatprep.subr.mxu0 %v4298
    %4612 = vmatpush1.msra.mxu0 %v4297
    %4613 = vmatprep.subr.mxu0 %v4302
    %4614 = vmatpush1.msra.mxu0 %v4301
    %4615 = vmatprep.subr.mxu0 %v4306
    %4616 = vmatpush1.msra.mxu0 %v4305
    %4617 = vmatprep.subr.mxu0 %v4310
    %4618 = vmatpush1.msra.mxu0 %v4309
    %4619 = vmatprep.subr.mxu0 %v4314
    %4620 = vmatpush1.msra.mxu0 %v4313
    %4621 = vmatprep.subr.mxu0 %v4318
    %4622 = vmatpush1.msra.mxu0 %v4317
    %4623 = vmatprep.subr.mxu0 %v4322
    %4624 = vmatpush1.msra.mxu0 %v4321
    %4625 = vmatprep.subr.mxu0 %v4326
    %4626 = vmatpush1.msra.mxu0 %v4325
    %4627 = vmatprep.subr.mxu0 %v4330
    %4628 = vmatpush1.msra.mxu0 %v4329
    %4629 = vmatprep.subr.mxu0 0.0
    %4630 = vmatpush1.msra.mxu0 0.0
    %4631 = vmatprep.subr.mxu0 0.0
    %4632 = vmatpush1.msra.mxu0 0.0
    %4633 = vmatprep.subr.mxu0 0.0
    %4634 = vmatpush1.msra.mxu0 0.0
    %4635 = vmatprep.subr.mxu0 0.0
    %4636 = vmatpush1.msra.mxu0 0.0
    %4637 = vmatprep.subr.mxu0 0.0
    %4638 = vmatpush1.msra.mxu0 0.0
    %4639 = vmatprep.subr.mxu0 0.0
    %4640 = vmatpush1.msra.mxu0 0.0
    %4641 = vmatprep.subr.mxu0 0.0
    %4642 = vmatpush1.msra.mxu0 0.0
    %4643 = vmatprep.subr.mxu0 0.0
    %4644 = vmatpush1.msra.mxu0 0.0
    %4645 = vmatprep.subr.mxu0 0.0
    %4646 = vmatpush1.msra.mxu0 0.0
    %4647 = vmatprep.subr.mxu0 0.0
    %4648 = vmatpush1.msra.mxu0 0.0
    %4649 = vmatprep.subr.mxu0 0.0
    %4650 = vmatpush1.msra.mxu0 0.0
    %4651 = vmatprep.subr.mxu0 0.0
    %4652 = vmatpush1.msra.mxu0 0.0
    %4653 = vmatprep.subr.mxu0 0.0
    %4654 = vmatpush1.msra.mxu0 0.0
    %4655 = vmatprep.subr.mxu0 0.0
    %4656 = vmatpush1.msra.mxu0 0.0
    %4657 = vmatprep.subr.mxu0 0.0
    %4658 = vmatpush1.msra.mxu0 0.0
    %4659 = vmatprep.subr.mxu0 0.0
    %4660 = vmatpush1.msra.mxu0 0.0
    %4661 = vmatprep.mubr.f32.mxu0 0.0
    %4662 = vmatmul.mubr.f32.gmra.mrb[0].mxu0 %v4595
    %v4663 = vpop.f32.mrb[0].mxu0
    %v4664 = vadd.f32 %v4464, %v4663
    %v4665 = vpop.f32.mrb[0].mxu0
    %v4666 = vadd.f32 %v4466, %v4665
    %4667 = vdwg.mxu0
    %4668 = vmatprep.subr.mxu0 %v4272
    %4669 = vmatpush1.msra.mxu0 %v4271
    %4670 = vmatprep.subr.mxu0 %v4276
    %4671 = vmatpush1.msra.mxu0 %v4275
    %4672 = vmatprep.subr.mxu0 %v4280
    %4673 = vmatpush1.msra.mxu0 %v4279
    %4674 = vmatprep.subr.mxu0 %v4284
    %4675 = vmatpush1.msra.mxu0 %v4283
    %4676 = vmatprep.subr.mxu0 %v4288
    %4677 = vmatpush1.msra.mxu0 %v4287
    %4678 = vmatprep.subr.mxu0 %v4292
    %4679 = vmatpush1.msra.mxu0 %v4291
    %4680 = vmatprep.subr.mxu0 %v4296
    %4681 = vmatpush1.msra.mxu0 %v4295
    %4682 = vmatprep.subr.mxu0 %v4300
    %4683 = vmatpush1.msra.mxu0 %v4299
    %4684 = vmatprep.subr.mxu0 %v4304
    %4685 = vmatpush1.msra.mxu0 %v4303
    %4686 = vmatprep.subr.mxu0 %v4308
    %4687 = vmatpush1.msra.mxu0 %v4307
    %4688 = vmatprep.subr.mxu0 %v4312
    %4689 = vmatpush1.msra.mxu0 %v4311
    %4690 = vmatprep.subr.mxu0 %v4316
    %4691 = vmatpush1.msra.mxu0 %v4315
    %4692 = vmatprep.subr.mxu0 %v4320
    %4693 = vmatpush1.msra.mxu0 %v4319
    %4694 = vmatprep.subr.mxu0 %v4324
    %4695 = vmatpush1.msra.mxu0 %v4323
    %4696 = vmatprep.subr.mxu0 %v4328
    %4697 = vmatpush1.msra.mxu0 %v4327
    %4698 = vmatprep.subr.mxu0 %v4332
    %4699 = vmatpush1.msra.mxu0 %v4331
    %4700 = vmatprep.subr.mxu0 0.0
    %4701 = vmatpush1.msra.mxu0 0.0
    %4702 = vmatprep.subr.mxu0 0.0
    %4703 = vmatpush1.msra.mxu0 0.0
    %4704 = vmatprep.subr.mxu0 0.0
    %4705 = vmatpush1.msra.mxu0 0.0
    %4706 = vmatprep.subr.mxu0 0.0
    %4707 = vmatpush1.msra.mxu0 0.0
    %4708 = vmatprep.subr.mxu0 0.0
    %4709 = vmatpush1.msra.mxu0 0.0
    %4710 = vmatprep.subr.mxu0 0.0
    %4711 = vmatpush1.msra.mxu0 0.0
    %4712 = vmatprep.subr.mxu0 0.0
    %4713 = vmatpush1.msra.mxu0 0.0
    %4714 = vmatprep.subr.mxu0 0.0
    %4715 = vmatpush1.msra.mxu0 0.0
    %4716 = vmatprep.subr.mxu0 0.0
    %4717 = vmatpush1.msra.mxu0 0.0
    %4718 = vmatprep.subr.mxu0 0.0
    %4719 = vmatpush1.msra.mxu0 0.0
    %4720 = vmatprep.subr.mxu0 0.0
    %4721 = vmatpush1.msra.mxu0 0.0
    %4722 = vmatprep.subr.mxu0 0.0
    %4723 = vmatpush1.msra.mxu0 0.0
    %4724 = vmatprep.subr.mxu0 0.0
    %4725 = vmatpush1.msra.mxu0 0.0
    %4726 = vmatprep.subr.mxu0 0.0
    %4727 = vmatpush1.msra.mxu0 0.0
    %4728 = vmatprep.subr.mxu0 0.0
    %4729 = vmatpush1.msra.mxu0 0.0
    %4730 = vmatprep.subr.mxu0 0.0
    %4731 = vmatpush1.msra.mxu0 0.0
    %4732 = vmatprep.mubr.f32.mxu0 0.0
    %4733 = vmatmul.mubr.f32.gmra.mrb[0].mxu0 %v4595
    %v4734 = vpop.f32.mrb[0].mxu0
    %v4735 = vadd.f32 %v4535, %v4734
    %v4736 = vpop.f32.mrb[0].mxu0
    %v4737 = vadd.f32 %v4537, %v4736
    %4738 = vdwg.mxu0
    %v4739 = vld [vmem:[%s6] sm:$0xf]
    %v4741 = vlaneseq
    %v4742 = vshrl.u32 %v4741, 7
    %v4743 = vsub.s32 0, %v4742
    %v4744 = vrot.slane %v4739, %v4743
    %v4745 = vlaneseq
    %v4746 = vshrl.u32 %v4745, 7
    %v4747 = vsub.s32 1, %v4746
    %v4748 = vrot.slane %v4739, %v4747
    %v4749 = vlaneseq
    %v4750 = vshrl.u32 %v4749, 7
    %v4751 = vsub.s32 2, %v4750
    %v4752 = vrot.slane %v4739, %v4751
    %v4753 = vlaneseq
    %v4754 = vshrl.u32 %v4753, 7
    %v4755 = vsub.s32 3, %v4754
    %v4756 = vrot.slane %v4739, %v4755
    %v4761 = vadd.f32 %v4664, %v4744
    %v4762 = vadd.f32 %v4666, %v4748
    %v4763 = vadd.f32 %v4735, %v4752
    %v4764 = vadd.f32 %v4737, %v4756
    %v4765 = vmul.f32 %v4761, 0.5
    %v4766 = vtanh.pop %v4765
    %v4767 = vmul.f32 %v4766, 0.5
    %v4768 = vadd.f32 %v4767, 0.5
    %v4769 = vmul.f32 %v4762, 0.5
    %v4770 = vtanh.pop %v4769
    %v4771 = vmul.f32 %v4770, 0.5
    %v4772 = vadd.f32 %v4771, 0.5
    %v4773 = vtanh.pop %v4763
    %v4774 = vmul.f32 %v4764, 0.5
    %v4775 = vtanh.pop %v4774
    %v4776 = vmul.f32 %v4775, 0.5
    %v4777 = vadd.f32 %v4776, 0.5
    %v4778 = vmul.f32 %v4772, %v3690
    %v4779 = vmul.f32 %v4768, %v4773
    %v4780 = vadd.f32 %v4778, %v4779
    %v4781 = vtanh.pop %v4780
    %v4782 = vmul.f32 %v4777, %v4781
    %v4784 = vcombine.high %v4782, %v4782
    %v4786 = vunpack.c.l.s4 1966171168
    %v4787 = vunpack.c.0.s8 %v4786
    %v4788 = vlaneseq
    %v4789 = vshrl.u32 %v4788, 7
    %v4790 = vsub.s32 %v4787, %v4789
    %v4791 = vrot.slane %v4782, %v4790
    %v4793 = vunpack.c.l.s4 1966171168
    %v4794 = vunpack.c.0.s8 %v4793
    %v4795 = vlaneseq
    %v4796 = vshrl.u32 %v4795, 7
    %v4797 = vsub.s32 %v4794, %v4796
    %v4798 = vrot.slane %v4784, %v4797
    %v4799 = vcombine.high %v4791, %v4791
    %v4800 = vcombine.high %v4798, %v4798
    %v4802 = vunpack.c.l.s4 1966171168
    %v4803 = vunpack.c.0.s8 %v4802
    %v4804 = vlaneseq
    %v4805 = vshrl.u32 %v4804, 7
    %v4806 = vsub.s32 %v4803, %v4805
    %v4807 = vrot.slane %v4791, %v4806
    %v4809 = vunpack.c.l.s4 1966171168
    %v4810 = vunpack.c.0.s8 %v4809
    %v4811 = vlaneseq
    %v4812 = vshrl.u32 %v4811, 7
    %v4813 = vsub.s32 %v4810, %v4812
    %v4814 = vrot.slane %v4798, %v4813
    %v4816 = vunpack.c.l.s4 1966171168
    %v4817 = vunpack.c.0.s8 %v4816
    %v4818 = vlaneseq
    %v4819 = vshrl.u32 %v4818, 7
    %v4820 = vsub.s32 %v4817, %v4819
    %v4821 = vrot.slane %v4799, %v4820
    %v4823 = vunpack.c.l.s4 1966171168
    %v4824 = vunpack.c.0.s8 %v4823
    %v4825 = vlaneseq
    %v4826 = vshrl.u32 %v4825, 7
    %v4827 = vsub.s32 %v4824, %v4826
    %v4828 = vrot.slane %v4800, %v4827
    %v4829 = vcombine.high %v4807, %v4807
    %v4830 = vcombine.high %v4814, %v4814
    %v4831 = vcombine.high %v4821, %v4821
    %v4832 = vcombine.high %v4828, %v4828
    %4841 = vst [vmem:[#allocation5 + $0x3] sm:$0x1] %v4807
    %4842 = vst [vmem:[#allocation5 + $0xb] sm:$0x1] %v4821
    %4843 = vst [vmem:[#allocation5 + $0x13] sm:$0x1] %v4829
    %4844 = vst [vmem:[#allocation5 + $0x1b] sm:$0x1] %v4831
    %4845 = vst [vmem:[#allocation5 + $0x23] sm:$0x1] %v4814
    %4846 = vst [vmem:[#allocation5 + $0x2b] sm:$0x1] %v4828
    %4847 = vst [vmem:[#allocation5 + $0x33] sm:$0x1] %v4830
    %4848 = vst [vmem:[#allocation5 + $0x3b] sm:$0x1] %v4832
    %s4849 = scalar_lea.vmem [#allocation4], 4
    %v4850 = vld [vmem:[%s4849] ss:$8 sm:$0xf]
    %s4851 = scalar_lea.vmem [#allocation4], 36
    %v4852 = vld [vmem:[%s4851] ss:$8 sm:$0xf]
    %s4853 = scalar_lea.vmem [#allocation4], 68
    %v4854 = vld [vmem:[%s4853] ss:$8 sm:$0xf]
    %s4855 = scalar_lea.vmem [#allocation4], 100
    %v4856 = vld [vmem:[%s4855] ss:$8 sm:$0xf]
    %s4857 = scalar_lea.vmem [#allocation4], 132
    %v4858 = vld [vmem:[%s4857] ss:$8 sm:$0xf]
    %s4859 = scalar_lea.vmem [#allocation4], 164
    %v4860 = vld [vmem:[%s4859] ss:$8 sm:$0xf]
    %s4861 = scalar_lea.vmem [#allocation4], 196
    %v4862 = vld [vmem:[%s4861] ss:$8 sm:$0xf]
    %s4863 = scalar_lea.vmem [#allocation4], 228
    %v4864 = vld [vmem:[%s4863] ss:$8 sm:$0xf]
    %v4865 = vld [vmem:[#allocation12] sm:$0xff]
    %v4866 = vld [vmem:[#allocation12 + $0x8] sm:$0xff]
    %v4867 = vld [vmem:[#allocation12 + $0x10] sm:$0xff]
    %v4868 = vld [vmem:[#allocation12 + $0x18] sm:$0xff]
    %v4869 = vld [vmem:[#allocation12 + $0x20] sm:$0xff]
    %v4870 = vld [vmem:[#allocation12 + $0x28] sm:$0xff]
    %v4871 = vld [vmem:[#allocation12 + $0x30] sm:$0xff]
    %v4872 = vld [vmem:[#allocation12 + $0x38] sm:$0xff]
    %v4873 = vld [vmem:[#allocation12 + $0x40] sm:$0xff]
    %v4874 = vld [vmem:[#allocation12 + $0x48] sm:$0xff]
    %v4875 = vld [vmem:[#allocation12 + $0x50] sm:$0xff]
    %v4876 = vld [vmem:[#allocation12 + $0x58] sm:$0xff]
    %v4877 = vld [vmem:[#allocation12 + $0x60] sm:$0xff]
    %v4878 = vld [vmem:[#allocation12 + $0x68] sm:$0xff]
    %v4879 = vld [vmem:[#allocation12 + $0x70] sm:$0xff]
    %v4880 = vld [vmem:[#allocation12 + $0x78] sm:$0xff]
    %v4881 = vld [vmem:[#allocation12 + $0x80] sm:$0xff]
    %v4882 = vld [vmem:[#allocation12 + $0x88] sm:$0xff]
    %v4883 = vld [vmem:[#allocation12 + $0x90] sm:$0xff]
    %v4884 = vld [vmem:[#allocation12 + $0x98] sm:$0xff]
    %v4885 = vld [vmem:[#allocation12 + $0xa0] sm:$0xff]
    %v4886 = vld [vmem:[#allocation12 + $0xa8] sm:$0xff]
    %v4887 = vld [vmem:[#allocation12 + $0xb0] sm:$0xff]
    %v4888 = vld [vmem:[#allocation12 + $0xb8] sm:$0xff]
    %v4889 = vld [vmem:[#allocation12 + $0xc0] sm:$0xff]
    %v4890 = vld [vmem:[#allocation12 + $0xc8] sm:$0xff]
    %v4891 = vld [vmem:[#allocation12 + $0xd0] sm:$0xff]
    %v4892 = vld [vmem:[#allocation12 + $0xd8] sm:$0xff]
    %v4893 = vld [vmem:[#allocation12 + $0xe0] sm:$0xff]
    %v4894 = vld [vmem:[#allocation12 + $0xe8] sm:$0xff]
    %v4895 = vld [vmem:[#allocation12 + $0xf0] sm:$0xff]
    %v4896 = vld [vmem:[#allocation12 + $0xf8] sm:$0xff]
    %v4897 = vld [vmem:[#allocation12 + $0x100] sm:$0xff]
    %v4898 = vld [vmem:[#allocation12 + $0x108] sm:$0xff]
    %v4899 = vld [vmem:[#allocation12 + $0x110] sm:$0xff]
    %v4900 = vld [vmem:[#allocation12 + $0x118] sm:$0xff]
    %v4901 = vld [vmem:[#allocation12 + $0x120] sm:$0xff]
    %v4902 = vld [vmem:[#allocation12 + $0x128] sm:$0xff]
    %v4903 = vld [vmem:[#allocation12 + $0x130] sm:$0xff]
    %v4904 = vld [vmem:[#allocation12 + $0x138] sm:$0xff]
    %v4905 = vld [vmem:[#allocation12 + $0x140] sm:$0xff]
    %v4906 = vld [vmem:[#allocation12 + $0x148] sm:$0xff]
    %v4907 = vld [vmem:[#allocation12 + $0x150] sm:$0xff]
    %v4908 = vld [vmem:[#allocation12 + $0x158] sm:$0xff]
    %v4909 = vld [vmem:[#allocation12 + $0x160] sm:$0xff]
    %v4910 = vld [vmem:[#allocation12 + $0x168] sm:$0xff]
    %v4911 = vld [vmem:[#allocation12 + $0x170] sm:$0xff]
    %v4912 = vld [vmem:[#allocation12 + $0x178] sm:$0xff]
    %v4913 = vld [vmem:[#allocation12 + $0x180] sm:$0xff]
    %v4914 = vld [vmem:[#allocation12 + $0x188] sm:$0xff]
    %v4915 = vld [vmem:[#allocation12 + $0x190] sm:$0xff]
    %v4916 = vld [vmem:[#allocation12 + $0x198] sm:$0xff]
    %v4917 = vld [vmem:[#allocation12 + $0x1a0] sm:$0xff]
    %v4918 = vld [vmem:[#allocation12 + $0x1a8] sm:$0xff]
    %v4919 = vld [vmem:[#allocation12 + $0x1b0] sm:$0xff]
    %v4920 = vld [vmem:[#allocation12 + $0x1b8] sm:$0xff]
    %v4921 = vld [vmem:[#allocation12 + $0x1c0] sm:$0xff]
    %v4922 = vld [vmem:[#allocation12 + $0x1c8] sm:$0xff]
    %v4923 = vld [vmem:[#allocation12 + $0x1d0] sm:$0xff]
    %v4924 = vld [vmem:[#allocation12 + $0x1d8] sm:$0xff]
    %v4925 = vld [vmem:[#allocation12 + $0x1e0] sm:$0xff]
    %v4926 = vld [vmem:[#allocation12 + $0x1e8] sm:$0xff]
    %v4927 = vld [vmem:[#allocation12 + $0x1f0] sm:$0xff]
    %v4928 = vld [vmem:[#allocation12 + $0x1f8] sm:$0xff]
    %4929 = vmatprep.subr.mxu0 %v4866
    %4930 = vmatpush1.msra.mxu0 %v4865
    %4931 = vmatprep.subr.mxu0 %v4870
    %4932 = vmatpush1.msra.mxu0 %v4869
    %4933 = vmatprep.subr.mxu0 %v4874
    %4934 = vmatpush1.msra.mxu0 %v4873
    %4935 = vmatprep.subr.mxu0 %v4878
    %4936 = vmatpush1.msra.mxu0 %v4877
    %4937 = vmatprep.subr.mxu0 %v4882
    %4938 = vmatpush1.msra.mxu0 %v4881
    %4939 = vmatprep.subr.mxu0 %v4886
    %4940 = vmatpush1.msra.mxu0 %v4885
    %4941 = vmatprep.subr.mxu0 %v4890
    %4942 = vmatpush1.msra.mxu0 %v4889
    %4943 = vmatprep.subr.mxu0 %v4894
    %4944 = vmatpush1.msra.mxu0 %v4893
    %4945 = vmatprep.subr.mxu0 %v4898
    %4946 = vmatpush1.msra.mxu0 %v4897
    %4947 = vmatprep.subr.mxu0 %v4902
    %4948 = vmatpush1.msra.mxu0 %v4901
    %4949 = vmatprep.subr.mxu0 %v4906
    %4950 = vmatpush1.msra.mxu0 %v4905
    %4951 = vmatprep.subr.mxu0 %v4910
    %4952 = vmatpush1.msra.mxu0 %v4909
    %4953 = vmatprep.subr.mxu0 %v4914
    %4954 = vmatpush1.msra.mxu0 %v4913
    %4955 = vmatprep.subr.mxu0 %v4918
    %4956 = vmatpush1.msra.mxu0 %v4917
    %4957 = vmatprep.subr.mxu0 %v4922
    %4958 = vmatpush1.msra.mxu0 %v4921
    %4959 = vmatprep.subr.mxu0 %v4926
    %4960 = vmatpush1.msra.mxu0 %v4925
    %4961 = vmatprep.subr.mxu0 0.0
    %4962 = vmatpush1.msra.mxu0 0.0
    %4963 = vmatprep.subr.mxu0 0.0
    %4964 = vmatpush1.msra.mxu0 0.0
    %4965 = vmatprep.subr.mxu0 0.0
    %4966 = vmatpush1.msra.mxu0 0.0
    %4967 = vmatprep.subr.mxu0 0.0
    %4968 = vmatpush1.msra.mxu0 0.0
    %4969 = vmatprep.subr.mxu0 0.0
    %4970 = vmatpush1.msra.mxu0 0.0
    %4971 = vmatprep.subr.mxu0 0.0
    %4972 = vmatpush1.msra.mxu0 0.0
    %4973 = vmatprep.subr.mxu0 0.0
    %4974 = vmatpush1.msra.mxu0 0.0
    %4975 = vmatprep.subr.mxu0 0.0
    %4976 = vmatpush1.msra.mxu0 0.0
    %4977 = vmatprep.subr.mxu0 0.0
    %4978 = vmatpush1.msra.mxu0 0.0
    %4979 = vmatprep.subr.mxu0 0.0
    %4980 = vmatpush1.msra.mxu0 0.0
    %4981 = vmatprep.subr.mxu0 0.0
    %4982 = vmatpush1.msra.mxu0 0.0
    %4983 = vmatprep.subr.mxu0 0.0
    %4984 = vmatpush1.msra.mxu0 0.0
    %4985 = vmatprep.subr.mxu0 0.0
    %4986 = vmatpush1.msra.mxu0 0.0
    %4987 = vmatprep.subr.mxu0 0.0
    %4988 = vmatpush1.msra.mxu0 0.0
    %4989 = vmatprep.subr.mxu0 0.0
    %4990 = vmatpush1.msra.mxu0 0.0
    %4991 = vmatprep.subr.mxu0 0.0
    %4992 = vmatpush1.msra.mxu0 0.0
    %4993 = vmatprep.mubr.f32.mxu0 0.0
    %4994 = vmatmul.mubr.f32.gmra.mrb[0].mxu0 %v4595
    %v4995 = vpop.f32.mrb[0].mxu0
    %v4996 = vadd.f32 0.0, %v4995
    %v4997 = vpop.f32.mrb[0].mxu0
    %v4998 = vadd.f32 0.0, %v4997
    %4999 = vdwg.mxu0
    %5000 = vmatprep.subr.mxu0 %v4868
    %5001 = vmatpush1.msra.mxu0 %v4867
    %5002 = vmatprep.subr.mxu0 %v4872
    %5003 = vmatpush1.msra.mxu0 %v4871
    %5004 = vmatprep.subr.mxu0 %v4876
    %5005 = vmatpush1.msra.mxu0 %v4875
    %5006 = vmatprep.subr.mxu0 %v4880
    %5007 = vmatpush1.msra.mxu0 %v4879
    %5008 = vmatprep.subr.mxu0 %v4884
    %5009 = vmatpush1.msra.mxu0 %v4883
    %5010 = vmatprep.subr.mxu0 %v4888
    %5011 = vmatpush1.msra.mxu0 %v4887
    %5012 = vmatprep.subr.mxu0 %v4892
    %5013 = vmatpush1.msra.mxu0 %v4891
    %5014 = vmatprep.subr.mxu0 %v4896
    %5015 = vmatpush1.msra.mxu0 %v4895
    %5016 = vmatprep.subr.mxu0 %v4900
    %5017 = vmatpush1.msra.mxu0 %v4899
    %5018 = vmatprep.subr.mxu0 %v4904
    %5019 = vmatpush1.msra.mxu0 %v4903
    %5020 = vmatprep.subr.mxu0 %v4908
    %5021 = vmatpush1.msra.mxu0 %v4907
    %5022 = vmatprep.subr.mxu0 %v4912
    %5023 = vmatpush1.msra.mxu0 %v4911
    %5024 = vmatprep.subr.mxu0 %v4916
    %5025 = vmatpush1.msra.mxu0 %v4915
    %5026 = vmatprep.subr.mxu0 %v4920
    %5027 = vmatpush1.msra.mxu0 %v4919
    %5028 = vmatprep.subr.mxu0 %v4924
    %5029 = vmatpush1.msra.mxu0 %v4923
    %5030 = vmatprep.subr.mxu0 %v4928
    %5031 = vmatpush1.msra.mxu0 %v4927
    %5032 = vmatprep.subr.mxu0 0.0
    %5033 = vmatpush1.msra.mxu0 0.0
    %5034 = vmatprep.subr.mxu0 0.0
    %5035 = vmatpush1.msra.mxu0 0.0
    %5036 = vmatprep.subr.mxu0 0.0
    %5037 = vmatpush1.msra.mxu0 0.0
    %5038 = vmatprep.subr.mxu0 0.0
    %5039 = vmatpush1.msra.mxu0 0.0
    %5040 = vmatprep.subr.mxu0 0.0
    %5041 = vmatpush1.msra.mxu0 0.0
    %5042 = vmatprep.subr.mxu0 0.0
    %5043 = vmatpush1.msra.mxu0 0.0
    %5044 = vmatprep.subr.mxu0 0.0
    %5045 = vmatpush1.msra.mxu0 0.0
    %5046 = vmatprep.subr.mxu0 0.0
    %5047 = vmatpush1.msra.mxu0 0.0
    %5048 = vmatprep.subr.mxu0 0.0
    %5049 = vmatpush1.msra.mxu0 0.0
    %5050 = vmatprep.subr.mxu0 0.0
    %5051 = vmatpush1.msra.mxu0 0.0
    %5052 = vmatprep.subr.mxu0 0.0
    %5053 = vmatpush1.msra.mxu0 0.0
    %5054 = vmatprep.subr.mxu0 0.0
    %5055 = vmatpush1.msra.mxu0 0.0
    %5056 = vmatprep.subr.mxu0 0.0
    %5057 = vmatpush1.msra.mxu0 0.0
    %5058 = vmatprep.subr.mxu0 0.0
    %5059 = vmatpush1.msra.mxu0 0.0
    %5060 = vmatprep.subr.mxu0 0.0
    %5061 = vmatpush1.msra.mxu0 0.0
    %5062 = vmatprep.subr.mxu0 0.0
    %5063 = vmatpush1.msra.mxu0 0.0
    %5064 = vmatprep.mubr.f32.mxu0 0.0
    %5065 = vmatmul.mubr.f32.gmra.mrb[0].mxu0 %v4595
    %v5066 = vpop.f32.mrb[0].mxu0
    %v5067 = vadd.f32 0.0, %v5066
    %v5068 = vpop.f32.mrb[0].mxu0
    %v5069 = vadd.f32 0.0, %v5068
    %5070 = vdwg.mxu0
    %v5075 = vcombine.low %v4996, %v4998
    %v5076 = vcombine.high %v4996, %v4998
    %v5077 = vcombine.low %v5067, %v5069
    %v5078 = vcombine.high %v5067, %v5069
    %v5080 = vunpack.c.l.s4 1966171168
    %v5081 = vunpack.c.0.s8 %v5080
    %v5082 = vlaneseq
    %v5083 = vshrl.u32 %v5082, 7
    %v5084 = vsub.s32 %v5081, %v5083
    %v5085 = vrot.slane %v5075, %v5084
    %v5087 = vunpack.c.l.s4 1966171168
    %v5088 = vunpack.c.0.s8 %v5087
    %v5089 = vlaneseq
    %v5090 = vshrl.u32 %v5089, 7
    %v5091 = vsub.s32 %v5088, %v5090
    %v5092 = vrot.slane %v5076, %v5091
    %v5094 = vunpack.c.l.s4 1966171168
    %v5095 = vunpack.c.0.s8 %v5094
    %v5096 = vlaneseq
    %v5097 = vshrl.u32 %v5096, 7
    %v5098 = vsub.s32 %v5095, %v5097
    %v5099 = vrot.slane %v5077, %v5098
    %v5101 = vunpack.c.l.s4 1966171168
    %v5102 = vunpack.c.0.s8 %v5101
    %v5103 = vlaneseq
    %v5104 = vshrl.u32 %v5103, 7
    %v5105 = vsub.s32 %v5102, %v5104
    %v5106 = vrot.slane %v5078, %v5105
    %v5107 = vcombine.low %v5085, %v5099
    %v5108 = vcombine.high %v5085, %v5099
    %v5109 = vcombine.low %v5092, %v5106
    %v5110 = vcombine.high %v5092, %v5106
    %v5112 = vunpack.c.l.s4 1966171168
    %v5113 = vunpack.c.0.s8 %v5112
    %v5114 = vlaneseq
    %v5115 = vshrl.u32 %v5114, 7
    %v5116 = vsub.s32 %v5113, %v5115
    %v5117 = vrot.slane %v5107, %v5116
    %v5119 = vunpack.c.l.s4 1966171168
    %v5120 = vunpack.c.0.s8 %v5119
    %v5121 = vlaneseq
    %v5122 = vshrl.u32 %v5121, 7
    %v5123 = vsub.s32 %v5120, %v5122
    %v5124 = vrot.slane %v5109, %v5123
    %v5126 = vunpack.c.l.s4 1966171168
    %v5127 = vunpack.c.0.s8 %v5126
    %v5128 = vlaneseq
    %v5129 = vshrl.u32 %v5128, 7
    %v5130 = vsub.s32 %v5127, %v5129
    %v5131 = vrot.slane %v5108, %v5130
    %v5133 = vunpack.c.l.s4 1966171168
    %v5134 = vunpack.c.0.s8 %v5133
    %v5135 = vlaneseq
    %v5136 = vshrl.u32 %v5135, 7
    %v5137 = vsub.s32 %v5134, %v5136
    %v5138 = vrot.slane %v5110, %v5137
    %v5139 = vcombine.high %v5117, %v5117
    %v5140 = vcombine.high %v5124, %v5124
    %v5141 = vcombine.high %v5131, %v5131
    %v5142 = vcombine.high %v5138, %v5138
    %v5151 = vadd.f32 %v4850, %v5117
    %v5152 = vadd.f32 %v4852, %v5131
    %v5153 = vadd.f32 %v4854, %v5139
    %v5154 = vadd.f32 %v4856, %v5141
    %v5155 = vadd.f32 %v4858, %v5124
    %v5156 = vadd.f32 %v4860, %v5138
    %v5157 = vadd.f32 %v4862, %v5140
    %v5158 = vadd.f32 %v4864, %v5142
    %v5159 = vmul.f32 %v5151, 0.5
    %v5160 = vmul.f32 %v5152, 0.5
    %v5161 = vmul.f32 %v5153, 0.5
    %v5162 = vmul.f32 %v5154, 0.5
    %v5163 = vmul.f32 %v5155, 0.5
    %v5164 = vmul.f32 %v5156, 0.5
    %v5165 = vmul.f32 %v5157, 0.5
    %v5166 = vmul.f32 %v5158, 0.5
    %v5167 = vtanh.pop %v5159
    %v5168 = vtanh.pop %v5160
    %v5169 = vtanh.pop %v5161
    %v5170 = vtanh.pop %v5162
    %v5171 = vtanh.pop %v5163
    %v5172 = vtanh.pop %v5164
    %v5173 = vtanh.pop %v5165
    %v5174 = vtanh.pop %v5166
    %v5175 = vmul.f32 %v5167, 0.5
    %v5176 = vmul.f32 %v5168, 0.5
    %v5177 = vmul.f32 %v5169, 0.5
    %v5178 = vmul.f32 %v5170, 0.5
    %v5179 = vmul.f32 %v5171, 0.5
    %v5180 = vmul.f32 %v5172, 0.5
    %v5181 = vmul.f32 %v5173, 0.5
    %v5182 = vmul.f32 %v5174, 0.5
    %v5183 = vadd.f32 %v5175, 0.5
    %v5184 = vadd.f32 %v5176, 0.5
    %v5185 = vadd.f32 %v5177, 0.5
    %v5186 = vadd.f32 %v5178, 0.5
    %v5187 = vadd.f32 %v5179, 0.5
    %v5188 = vadd.f32 %v5180, 0.5
    %v5189 = vadd.f32 %v5181, 0.5
    %v5190 = vadd.f32 %v5182, 0.5
    %v5199 = vrot.slane %v5151, 1
    %v5200 = vrot.slane %v5152, 1
    %v5201 = vrot.slane %v5153, 1
    %v5202 = vrot.slane %v5154, 1
    %v5203 = vrot.slane %v5155, 1
    %v5204 = vrot.slane %v5156, 1
    %v5205 = vrot.slane %v5157, 1
    %v5206 = vrot.slane %v5158, 1
    %v5215 = vmul.f32 %v5199, 0.5
    %v5216 = vmul.f32 %v5200, 0.5
    %v5217 = vmul.f32 %v5201, 0.5
    %v5218 = vmul.f32 %v5202, 0.5
    %v5219 = vmul.f32 %v5203, 0.5
    %v5220 = vmul.f32 %v5204, 0.5
    %v5221 = vmul.f32 %v5205, 0.5
    %v5222 = vmul.f32 %v5206, 0.5
    %v5223 = vtanh.pop %v5215
    %v5224 = vtanh.pop %v5216
    %v5225 = vtanh.pop %v5217
    %v5226 = vtanh.pop %v5218
    %v5227 = vtanh.pop %v5219
    %v5228 = vtanh.pop %v5220
    %v5229 = vtanh.pop %v5221
    %v5230 = vtanh.pop %v5222
    %v5231 = vmul.f32 %v5223, 0.5
    %v5232 = vmul.f32 %v5224, 0.5
    %v5233 = vmul.f32 %v5225, 0.5
    %v5234 = vmul.f32 %v5226, 0.5
    %v5235 = vmul.f32 %v5227, 0.5
    %v5236 = vmul.f32 %v5228, 0.5
    %v5237 = vmul.f32 %v5229, 0.5
    %v5238 = vmul.f32 %v5230, 0.5
    %v5239 = vadd.f32 %v5231, 0.5
    %v5240 = vadd.f32 %v5232, 0.5
    %v5241 = vadd.f32 %v5233, 0.5
    %v5242 = vadd.f32 %v5234, 0.5
    %v5243 = vadd.f32 %v5235, 0.5
    %v5244 = vadd.f32 %v5236, 0.5
    %v5245 = vadd.f32 %v5237, 0.5
    %v5246 = vadd.f32 %v5238, 0.5
    %v5247 = vrot.slane %v5151, 2
    %v5248 = vrot.slane %v5152, 2
    %v5249 = vrot.slane %v5153, 2
    %v5250 = vrot.slane %v5154, 2
    %v5251 = vrot.slane %v5155, 2
    %v5252 = vrot.slane %v5156, 2
    %v5253 = vrot.slane %v5157, 2
    %v5254 = vrot.slane %v5158, 2
    %v5263 = vtanh.pop %v5247
    %v5264 = vtanh.pop %v5248
    %v5265 = vtanh.pop %v5249
    %v5266 = vtanh.pop %v5250
    %v5267 = vtanh.pop %v5251
    %v5268 = vtanh.pop %v5252
    %v5269 = vtanh.pop %v5253
    %v5270 = vtanh.pop %v5254
    %v5271 = vrot.slane %v5151, 3
    %v5272 = vrot.slane %v5152, 3
    %v5273 = vrot.slane %v5153, 3
    %v5274 = vrot.slane %v5154, 3
    %v5275 = vrot.slane %v5155, 3
    %v5276 = vrot.slane %v5156, 3
    %v5277 = vrot.slane %v5157, 3
    %v5278 = vrot.slane %v5158, 3
    %v5287 = vmul.f32 %v5271, 0.5
    %v5288 = vmul.f32 %v5272, 0.5
    %v5289 = vmul.f32 %v5273, 0.5
    %v5290 = vmul.f32 %v5274, 0.5
    %v5291 = vmul.f32 %v5275, 0.5
    %v5292 = vmul.f32 %v5276, 0.5
    %v5293 = vmul.f32 %v5277, 0.5
    %v5294 = vmul.f32 %v5278, 0.5
    %v5295 = vtanh.pop %v5287
    %v5296 = vtanh.pop %v5288
    %v5297 = vtanh.pop %v5289
    %v5298 = vtanh.pop %v5290
    %v5299 = vtanh.pop %v5291
    %v5300 = vtanh.pop %v5292
    %v5301 = vtanh.pop %v5293
    %v5302 = vtanh.pop %v5294
    %v5303 = vmul.f32 %v5295, 0.5
    %v5304 = vmul.f32 %v5296, 0.5
    %v5305 = vmul.f32 %v5297, 0.5
    %v5306 = vmul.f32 %v5298, 0.5
    %v5307 = vmul.f32 %v5299, 0.5
    %v5308 = vmul.f32 %v5300, 0.5
    %v5309 = vmul.f32 %v5301, 0.5
    %v5310 = vmul.f32 %v5302, 0.5
    %v5311 = vadd.f32 %v5303, 0.5
    %v5312 = vadd.f32 %v5304, 0.5
    %v5313 = vadd.f32 %v5305, 0.5
    %v5314 = vadd.f32 %v5306, 0.5
    %v5315 = vadd.f32 %v5307, 0.5
    %v5316 = vadd.f32 %v5308, 0.5
    %v5317 = vadd.f32 %v5309, 0.5
    %v5318 = vadd.f32 %v5310, 0.5
    %v5319 = vmul.f32 %v5239, %v4245
    %v5320 = vmul.f32 %v5240, %v4246
    %v5321 = vmul.f32 %v5241, %v4247
    %v5322 = vmul.f32 %v5242, %v4248
    %v5323 = vmul.f32 %v5243, %v4249
    %v5324 = vmul.f32 %v5244, %v4250
    %v5325 = vmul.f32 %v5245, %v4251
    %v5326 = vmul.f32 %v5246, %v4252
    %v5327 = vmul.f32 %v5183, %v5263
    %v5328 = vmul.f32 %v5184, %v5264
    %v5329 = vmul.f32 %v5185, %v5265
    %v5330 = vmul.f32 %v5186, %v5266
    %v5331 = vmul.f32 %v5187, %v5267
    %v5332 = vmul.f32 %v5188, %v5268
    %v5333 = vmul.f32 %v5189, %v5269
    %v5334 = vmul.f32 %v5190, %v5270
    %v5335 = vadd.f32 %v5319, %v5327
    %v5336 = vadd.f32 %v5320, %v5328
    %v5337 = vadd.f32 %v5321, %v5329
    %v5338 = vadd.f32 %v5322, %v5330
    %v5339 = vadd.f32 %v5323, %v5331
    %v5340 = vadd.f32 %v5324, %v5332
    %v5341 = vadd.f32 %v5325, %v5333
    %v5342 = vadd.f32 %v5326, %v5334
    %v5343 = vtanh.pop %v5335
    %v5344 = vtanh.pop %v5336
    %v5345 = vtanh.pop %v5337
    %v5346 = vtanh.pop %v5338
    %v5347 = vtanh.pop %v5339
    %v5348 = vtanh.pop %v5340
    %v5349 = vtanh.pop %v5341
    %v5350 = vtanh.pop %v5342
    %v5351 = vmul.f32 %v5311, %v5343
    %v5352 = vmul.f32 %v5312, %v5344
    %v5353 = vmul.f32 %v5313, %v5345
    %v5354 = vmul.f32 %v5314, %v5346
    %v5355 = vmul.f32 %v5315, %v5347
    %v5356 = vmul.f32 %v5316, %v5348
    %v5357 = vmul.f32 %v5317, %v5349
    %v5358 = vmul.f32 %v5318, %v5350
    %v5359 = vld [vmem:[#allocation13] sm:$0xff]
    %v5360 = vld [vmem:[#allocation13 + $0x8] sm:$0xff]
    %v5361 = vld [vmem:[#allocation13 + $0x10] sm:$0xff]
    %v5362 = vld [vmem:[#allocation13 + $0x18] sm:$0xff]
    %v5363 = vld [vmem:[#allocation13 + $0x20] sm:$0xff]
    %v5364 = vld [vmem:[#allocation13 + $0x28] sm:$0xff]
    %v5365 = vld [vmem:[#allocation13 + $0x30] sm:$0xff]
    %v5366 = vld [vmem:[#allocation13 + $0x38] sm:$0xff]
    %v5367 = vld [vmem:[#allocation13 + $0x40] sm:$0xff]
    %v5368 = vld [vmem:[#allocation13 + $0x48] sm:$0xff]
    %v5369 = vld [vmem:[#allocation13 + $0x50] sm:$0xff]
    %v5370 = vld [vmem:[#allocation13 + $0x58] sm:$0xff]
    %v5371 = vld [vmem:[#allocation13 + $0x60] sm:$0xff]
    %v5372 = vld [vmem:[#allocation13 + $0x68] sm:$0xff]
    %v5373 = vld [vmem:[#allocation13 + $0x70] sm:$0xff]
    %v5374 = vld [vmem:[#allocation13 + $0x78] sm:$0xff]
    %v5375 = vld [vmem:[#allocation13 + $0x80] sm:$0xff]
    %v5376 = vld [vmem:[#allocation13 + $0x88] sm:$0xff]
    %v5377 = vld [vmem:[#allocation13 + $0x90] sm:$0xff]
    %v5378 = vld [vmem:[#allocation13 + $0x98] sm:$0xff]
    %v5379 = vld [vmem:[#allocation13 + $0xa0] sm:$0xff]
    %v5380 = vld [vmem:[#allocation13 + $0xa8] sm:$0xff]
    %v5381 = vld [vmem:[#allocation13 + $0xb0] sm:$0xff]
    %v5382 = vld [vmem:[#allocation13 + $0xb8] sm:$0xff]
    %v5383 = vld [vmem:[#allocation13 + $0xc0] sm:$0xff]
    %v5384 = vld [vmem:[#allocation13 + $0xc8] sm:$0xff]
    %v5385 = vld [vmem:[#allocation13 + $0xd0] sm:$0xff]
    %v5386 = vld [vmem:[#allocation13 + $0xd8] sm:$0xff]
    %v5387 = vld [vmem:[#allocation13 + $0xe0] sm:$0xff]
    %v5388 = vld [vmem:[#allocation13 + $0xe8] sm:$0xff]
    %v5389 = vld [vmem:[#allocation13 + $0xf0] sm:$0xff]
    %v5390 = vld [vmem:[#allocation13 + $0xf8] sm:$0xff]
    %v5391 = vld [vmem:[#allocation13 + $0x100] sm:$0xff]
    %v5392 = vld [vmem:[#allocation13 + $0x108] sm:$0xff]
    %v5393 = vld [vmem:[#allocation13 + $0x110] sm:$0xff]
    %v5394 = vld [vmem:[#allocation13 + $0x118] sm:$0xff]
    %v5395 = vld [vmem:[#allocation13 + $0x120] sm:$0xff]
    %v5396 = vld [vmem:[#allocation13 + $0x128] sm:$0xff]
    %v5397 = vld [vmem:[#allocation13 + $0x130] sm:$0xff]
    %v5398 = vld [vmem:[#allocation13 + $0x138] sm:$0xff]
    %v5399 = vld [vmem:[#allocation13 + $0x140] sm:$0xff]
    %v5400 = vld [vmem:[#allocation13 + $0x148] sm:$0xff]
    %v5401 = vld [vmem:[#allocation13 + $0x150] sm:$0xff]
    %v5402 = vld [vmem:[#allocation13 + $0x158] sm:$0xff]
    %v5403 = vld [vmem:[#allocation13 + $0x160] sm:$0xff]
    %v5404 = vld [vmem:[#allocation13 + $0x168] sm:$0xff]
    %v5405 = vld [vmem:[#allocation13 + $0x170] sm:$0xff]
    %v5406 = vld [vmem:[#allocation13 + $0x178] sm:$0xff]
    %v5407 = vld [vmem:[#allocation13 + $0x180] sm:$0xff]
    %v5408 = vld [vmem:[#allocation13 + $0x188] sm:$0xff]
    %v5409 = vld [vmem:[#allocation13 + $0x190] sm:$0xff]
    %v5410 = vld [vmem:[#allocation13 + $0x198] sm:$0xff]
    %v5411 = vld [vmem:[#allocation13 + $0x1a0] sm:$0xff]
    %v5412 = vld [vmem:[#allocation13 + $0x1a8] sm:$0xff]
    %v5413 = vld [vmem:[#allocation13 + $0x1b0] sm:$0xff]
    %v5414 = vld [vmem:[#allocation13 + $0x1b8] sm:$0xff]
    %v5415 = vld [vmem:[#allocation13 + $0x1c0] sm:$0xff]
    %v5416 = vld [vmem:[#allocation13 + $0x1c8] sm:$0xff]
    %v5417 = vld [vmem:[#allocation13 + $0x1d0] sm:$0xff]
    %v5418 = vld [vmem:[#allocation13 + $0x1d8] sm:$0xff]
    %v5419 = vld [vmem:[#allocation13 + $0x1e0] sm:$0xff]
    %v5420 = vld [vmem:[#allocation13 + $0x1e8] sm:$0xff]
    %v5421 = vld [vmem:[#allocation13 + $0x1f0] sm:$0xff]
    %v5422 = vld [vmem:[#allocation13 + $0x1f8] sm:$0xff]
    %v5423 = vld [vmem:[#allocation15] sm:$0xff]
    %v5424 = vld [vmem:[#allocation15 + $0x8] sm:$0xff]
    %v5425 = vld [vmem:[#allocation15 + $0x10] sm:$0xff]
    %v5426 = vld [vmem:[#allocation15 + $0x18] sm:$0xff]
    %v5427 = vld [vmem:[#allocation15 + $0x20] sm:$0xff]
    %v5428 = vld [vmem:[#allocation15 + $0x28] sm:$0xff]
    %v5429 = vld [vmem:[#allocation15 + $0x30] sm:$0xff]
    %v5430 = vld [vmem:[#allocation15 + $0x38] sm:$0xff]
    %v5431 = vld [vmem:[#allocation15 + $0x40] sm:$0xff]
    %v5432 = vld [vmem:[#allocation15 + $0x48] sm:$0xff]
    %v5433 = vld [vmem:[#allocation15 + $0x50] sm:$0xff]
    %v5434 = vld [vmem:[#allocation15 + $0x58] sm:$0xff]
    %v5435 = vld [vmem:[#allocation15 + $0x60] sm:$0xff]
    %v5436 = vld [vmem:[#allocation15 + $0x68] sm:$0xff]
    %v5437 = vld [vmem:[#allocation15 + $0x70] sm:$0xff]
    %v5438 = vld [vmem:[#allocation15 + $0x78] sm:$0xff]
    %v5439 = vld [vmem:[#allocation15 + $0x80] sm:$0xff]
    %v5440 = vld [vmem:[#allocation15 + $0x88] sm:$0xff]
    %v5441 = vld [vmem:[#allocation15 + $0x90] sm:$0xff]
    %v5442 = vld [vmem:[#allocation15 + $0x98] sm:$0xff]
    %v5443 = vld [vmem:[#allocation15 + $0xa0] sm:$0xff]
    %v5444 = vld [vmem:[#allocation15 + $0xa8] sm:$0xff]
    %v5445 = vld [vmem:[#allocation15 + $0xb0] sm:$0xff]
    %v5446 = vld [vmem:[#allocation15 + $0xb8] sm:$0xff]
    %v5447 = vld [vmem:[#allocation15 + $0xc0] sm:$0xff]
    %v5448 = vld [vmem:[#allocation15 + $0xc8] sm:$0xff]
    %v5449 = vld [vmem:[#allocation15 + $0xd0] sm:$0xff]
    %v5450 = vld [vmem:[#allocation15 + $0xd8] sm:$0xff]
    %v5451 = vld [vmem:[#allocation15 + $0xe0] sm:$0xff]
    %v5452 = vld [vmem:[#allocation15 + $0xe8] sm:$0xff]
    %v5453 = vld [vmem:[#allocation15 + $0xf0] sm:$0xff]
    %v5454 = vld [vmem:[#allocation15 + $0xf8] sm:$0xff]
    %v5455 = vld [vmem:[#allocation15 + $0x100] sm:$0xff]
    %v5456 = vld [vmem:[#allocation15 + $0x108] sm:$0xff]
    %v5457 = vld [vmem:[#allocation15 + $0x110] sm:$0xff]
    %v5458 = vld [vmem:[#allocation15 + $0x118] sm:$0xff]
    %v5459 = vld [vmem:[#allocation15 + $0x120] sm:$0xff]
    %v5460 = vld [vmem:[#allocation15 + $0x128] sm:$0xff]
    %v5461 = vld [vmem:[#allocation15 + $0x130] sm:$0xff]
    %v5462 = vld [vmem:[#allocation15 + $0x138] sm:$0xff]
    %v5463 = vld [vmem:[#allocation15 + $0x140] sm:$0xff]
    %v5464 = vld [vmem:[#allocation15 + $0x148] sm:$0xff]
    %v5465 = vld [vmem:[#allocation15 + $0x150] sm:$0xff]
    %v5466 = vld [vmem:[#allocation15 + $0x158] sm:$0xff]
    %v5467 = vld [vmem:[#allocation15 + $0x160] sm:$0xff]
    %v5468 = vld [vmem:[#allocation15 + $0x168] sm:$0xff]
    %v5469 = vld [vmem:[#allocation15 + $0x170] sm:$0xff]
    %v5470 = vld [vmem:[#allocation15 + $0x178] sm:$0xff]
    %v5471 = vld [vmem:[#allocation15 + $0x180] sm:$0xff]
    %v5472 = vld [vmem:[#allocation15 + $0x188] sm:$0xff]
    %v5473 = vld [vmem:[#allocation15 + $0x190] sm:$0xff]
    %v5474 = vld [vmem:[#allocation15 + $0x198] sm:$0xff]
    %v5475 = vld [vmem:[#allocation15 + $0x1a0] sm:$0xff]
    %v5476 = vld [vmem:[#allocation15 + $0x1a8] sm:$0xff]
    %v5477 = vld [vmem:[#allocation15 + $0x1b0] sm:$0xff]
    %v5478 = vld [vmem:[#allocation15 + $0x1b8] sm:$0xff]
    %v5479 = vld [vmem:[#allocation15 + $0x1c0] sm:$0xff]
    %v5480 = vld [vmem:[#allocation15 + $0x1c8] sm:$0xff]
    %v5481 = vld [vmem:[#allocation15 + $0x1d0] sm:$0xff]
    %v5482 = vld [vmem:[#allocation15 + $0x1d8] sm:$0xff]
    %v5483 = vld [vmem:[#allocation15 + $0x1e0] sm:$0xff]
    %v5484 = vld [vmem:[#allocation15 + $0x1e8] sm:$0xff]
    %v5485 = vld [vmem:[#allocation15 + $0x1f0] sm:$0xff]
    %v5486 = vld [vmem:[#allocation15 + $0x1f8] sm:$0xff]
    %5487 = vmatprep.subr.mxu0 %v5424
    %5488 = vmatpush1.msra.mxu0 %v5423
    %5489 = vmatprep.subr.mxu0 %v5428
    %5490 = vmatpush1.msra.mxu0 %v5427
    %5491 = vmatprep.subr.mxu0 %v5432
    %5492 = vmatpush1.msra.mxu0 %v5431
    %5493 = vmatprep.subr.mxu0 %v5436
    %5494 = vmatpush1.msra.mxu0 %v5435
    %5495 = vmatprep.subr.mxu0 %v5440
    %5496 = vmatpush1.msra.mxu0 %v5439
    %5497 = vmatprep.subr.mxu0 %v5444
    %5498 = vmatpush1.msra.mxu0 %v5443
    %5499 = vmatprep.subr.mxu0 %v5448
    %5500 = vmatpush1.msra.mxu0 %v5447
    %5501 = vmatprep.subr.mxu0 %v5452
    %5502 = vmatpush1.msra.mxu0 %v5451
    %5503 = vmatprep.subr.mxu0 %v5456
    %5504 = vmatpush1.msra.mxu0 %v5455
    %5505 = vmatprep.subr.mxu0 %v5460
    %5506 = vmatpush1.msra.mxu0 %v5459
    %5507 = vmatprep.subr.mxu0 %v5464
    %5508 = vmatpush1.msra.mxu0 %v5463
    %5509 = vmatprep.subr.mxu0 %v5468
    %5510 = vmatpush1.msra.mxu0 %v5467
    %5511 = vmatprep.subr.mxu0 %v5472
    %5512 = vmatpush1.msra.mxu0 %v5471
    %5513 = vmatprep.subr.mxu0 %v5476
    %5514 = vmatpush1.msra.mxu0 %v5475
    %5515 = vmatprep.subr.mxu0 %v5480
    %5516 = vmatpush1.msra.mxu0 %v5479
    %5517 = vmatprep.subr.mxu0 %v5484
    %5518 = vmatpush1.msra.mxu0 %v5483
    %5519 = vmatprep.subr.mxu0 0.0
    %5520 = vmatpush1.msra.mxu0 0.0
    %5521 = vmatprep.subr.mxu0 0.0
    %5522 = vmatpush1.msra.mxu0 0.0
    %5523 = vmatprep.subr.mxu0 0.0
    %5524 = vmatpush1.msra.mxu0 0.0
    %5525 = vmatprep.subr.mxu0 0.0
    %5526 = vmatpush1.msra.mxu0 0.0
    %5527 = vmatprep.subr.mxu0 0.0
    %5528 = vmatpush1.msra.mxu0 0.0
    %5529 = vmatprep.subr.mxu0 0.0
    %5530 = vmatpush1.msra.mxu0 0.0
    %5531 = vmatprep.subr.mxu0 0.0
    %5532 = vmatpush1.msra.mxu0 0.0
    %5533 = vmatprep.subr.mxu0 0.0
    %5534 = vmatpush1.msra.mxu0 0.0
    %5535 = vmatprep.subr.mxu0 0.0
    %5536 = vmatpush1.msra.mxu0 0.0
    %5537 = vmatprep.subr.mxu0 0.0
    %5538 = vmatpush1.msra.mxu0 0.0
    %5539 = vmatprep.subr.mxu0 0.0
    %5540 = vmatpush1.msra.mxu0 0.0
    %5541 = vmatprep.subr.mxu0 0.0
    %5542 = vmatpush1.msra.mxu0 0.0
    %5543 = vmatprep.subr.mxu0 0.0
    %5544 = vmatpush1.msra.mxu0 0.0
    %5545 = vmatprep.subr.mxu0 0.0
    %5546 = vmatpush1.msra.mxu0 0.0
    %5547 = vmatprep.subr.mxu0 0.0
    %5548 = vmatpush1.msra.mxu0 0.0
    %5549 = vmatprep.subr.mxu0 0.0
    %5550 = vmatpush1.msra.mxu0 0.0
    %5551 = vmatprep.mubr.f32.mxu0 0.0
    %5552 = vmatmul.mubr.f32.gmra.mrb[0].mxu0 %v4782
    %v5553 = vpop.f32.mrb[0].mxu0
    %v5554 = vadd.f32 0.0, %v5553
    %v5555 = vpop.f32.mrb[0].mxu0
    %v5556 = vadd.f32 0.0, %v5555
    %5557 = vdwg.mxu0
    %5558 = vmatprep.subr.mxu0 %v5426
    %5559 = vmatpush1.msra.mxu0 %v5425
    %5560 = vmatprep.subr.mxu0 %v5430
    %5561 = vmatpush1.msra.mxu0 %v5429
    %5562 = vmatprep.subr.mxu0 %v5434
    %5563 = vmatpush1.msra.mxu0 %v5433
    %5564 = vmatprep.subr.mxu0 %v5438
    %5565 = vmatpush1.msra.mxu0 %v5437
    %5566 = vmatprep.subr.mxu0 %v5442
    %5567 = vmatpush1.msra.mxu0 %v5441
    %5568 = vmatprep.subr.mxu0 %v5446
    %5569 = vmatpush1.msra.mxu0 %v5445
    %5570 = vmatprep.subr.mxu0 %v5450
    %5571 = vmatpush1.msra.mxu0 %v5449
    %5572 = vmatprep.subr.mxu0 %v5454
    %5573 = vmatpush1.msra.mxu0 %v5453
    %5574 = vmatprep.subr.mxu0 %v5458
    %5575 = vmatpush1.msra.mxu0 %v5457
    %5576 = vmatprep.subr.mxu0 %v5462
    %5577 = vmatpush1.msra.mxu0 %v5461
    %5578 = vmatprep.subr.mxu0 %v5466
    %5579 = vmatpush1.msra.mxu0 %v5465
    %5580 = vmatprep.subr.mxu0 %v5470
    %5581 = vmatpush1.msra.mxu0 %v5469
    %5582 = vmatprep.subr.mxu0 %v5474
    %5583 = vmatpush1.msra.mxu0 %v5473
    %5584 = vmatprep.subr.mxu0 %v5478
    %5585 = vmatpush1.msra.mxu0 %v5477
    %5586 = vmatprep.subr.mxu0 %v5482
    %5587 = vmatpush1.msra.mxu0 %v5481
    %5588 = vmatprep.subr.mxu0 %v5486
    %5589 = vmatpush1.msra.mxu0 %v5485
    %5590 = vmatprep.subr.mxu0 0.0
    %5591 = vmatpush1.msra.mxu0 0.0
    %5592 = vmatprep.subr.mxu0 0.0
    %5593 = vmatpush1.msra.mxu0 0.0
    %5594 = vmatprep.subr.mxu0 0.0
    %5595 = vmatpush1.msra.mxu0 0.0
    %5596 = vmatprep.subr.mxu0 0.0
    %5597 = vmatpush1.msra.mxu0 0.0
    %5598 = vmatprep.subr.mxu0 0.0
    %5599 = vmatpush1.msra.mxu0 0.0
    %5600 = vmatprep.subr.mxu0 0.0
    %5601 = vmatpush1.msra.mxu0 0.0
    %5602 = vmatprep.subr.mxu0 0.0
    %5603 = vmatpush1.msra.mxu0 0.0
    %5604 = vmatprep.subr.mxu0 0.0
    %5605 = vmatpush1.msra.mxu0 0.0
    %5606 = vmatprep.subr.mxu0 0.0
    %5607 = vmatpush1.msra.mxu0 0.0
    %5608 = vmatprep.subr.mxu0 0.0
    %5609 = vmatpush1.msra.mxu0 0.0
    %5610 = vmatprep.subr.mxu0 0.0
    %5611 = vmatpush1.msra.mxu0 0.0
    %5612 = vmatprep.subr.mxu0 0.0
    %5613 = vmatpush1.msra.mxu0 0.0
    %5614 = vmatprep.subr.mxu0 0.0
    %5615 = vmatpush1.msra.mxu0 0.0
    %5616 = vmatprep.subr.mxu0 0.0
    %5617 = vmatpush1.msra.mxu0 0.0
    %5618 = vmatprep.subr.mxu0 0.0
    %5619 = vmatpush1.msra.mxu0 0.0
    %5620 = vmatprep.subr.mxu0 0.0
    %5621 = vmatpush1.msra.mxu0 0.0
    %5622 = vmatprep.mubr.f32.mxu0 0.0
    %5623 = vmatmul.mubr.f32.gmra.mrb[0].mxu0 %v4782
    %v5624 = vpop.f32.mrb[0].mxu0
    %v5625 = vadd.f32 0.0, %v5624
    %v5626 = vpop.f32.mrb[0].mxu0
    %v5627 = vadd.f32 0.0, %v5626
    %5628 = vdwg.mxu0
    %v5637 = vcombine.low %v5351, %v5352
    %v5638 = vcombine.low %v5353, %v5354
    %v5639 = vcombine.low %v5355, %v5356
    %v5640 = vcombine.low %v5357, %v5358
    %v5642 = vunpack.c.l.s4 1966171168
    %v5643 = vunpack.c.0.s8 %v5642
    %v5644 = vlaneseq
    %v5645 = vshrl.u32 %v5644, 7
    %v5646 = vsub.s32 %v5643, %v5645
    %v5647 = vrot.slane %v5637, %v5646
    %v5649 = vunpack.c.l.s4 1966171168
    %v5650 = vunpack.c.0.s8 %v5649
    %v5651 = vlaneseq
    %v5652 = vshrl.u32 %v5651, 7
    %v5653 = vsub.s32 %v5650, %v5652
    %v5654 = vrot.slane %v5638, %v5653
    %v5656 = vunpack.c.l.s4 1966171168
    %v5657 = vunpack.c.0.s8 %v5656
    %v5658 = vlaneseq
    %v5659 = vshrl.u32 %v5658, 7
    %v5660 = vsub.s32 %v5657, %v5659
    %v5661 = vrot.slane %v5639, %v5660
    %v5663 = vunpack.c.l.s4 1966171168
    %v5664 = vunpack.c.0.s8 %v5663
    %v5665 = vlaneseq
    %v5666 = vshrl.u32 %v5665, 7
    %v5667 = vsub.s32 %v5664, %v5666
    %v5668 = vrot.slane %v5640, %v5667
    %v5669 = vcombine.low %v5647, %v5654
    %v5670 = vcombine.low %v5661, %v5668
    %v5672 = vunpack.c.l.s4 1966171168
    %v5673 = vunpack.c.0.s8 %v5672
    %v5674 = vlaneseq
    %v5675 = vshrl.u32 %v5674, 7
    %v5676 = vsub.s32 %v5673, %v5675
    %v5677 = vrot.slane %v5669, %v5676
    %v5679 = vunpack.c.l.s4 1966171168
    %v5680 = vunpack.c.0.s8 %v5679
    %v5681 = vlaneseq
    %v5682 = vshrl.u32 %v5681, 7
    %v5683 = vsub.s32 %v5680, %v5682
    %v5684 = vrot.slane %v5670, %v5683
    %v5685 = vcombine.low %v5677, %v5684
    %5687 = vmatprep.subr.mxu0 %v5360
    %5688 = vmatpush1.msra.mxu0 %v5359
    %5689 = vmatprep.subr.mxu0 %v5364
    %5690 = vmatpush1.msra.mxu0 %v5363
    %5691 = vmatprep.subr.mxu0 %v5368
    %5692 = vmatpush1.msra.mxu0 %v5367
    %5693 = vmatprep.subr.mxu0 %v5372
    %5694 = vmatpush1.msra.mxu0 %v5371
    %5695 = vmatprep.subr.mxu0 %v5376
    %5696 = vmatpush1.msra.mxu0 %v5375
    %5697 = vmatprep.subr.mxu0 %v5380
    %5698 = vmatpush1.msra.mxu0 %v5379
    %5699 = vmatprep.subr.mxu0 %v5384
    %5700 = vmatpush1.msra.mxu0 %v5383
    %5701 = vmatprep.subr.mxu0 %v5388
    %5702 = vmatpush1.msra.mxu0 %v5387
    %5703 = vmatprep.subr.mxu0 %v5392
    %5704 = vmatpush1.msra.mxu0 %v5391
    %5705 = vmatprep.subr.mxu0 %v5396
    %5706 = vmatpush1.msra.mxu0 %v5395
    %5707 = vmatprep.subr.mxu0 %v5400
    %5708 = vmatpush1.msra.mxu0 %v5399
    %5709 = vmatprep.subr.mxu0 %v5404
    %5710 = vmatpush1.msra.mxu0 %v5403
    %5711 = vmatprep.subr.mxu0 %v5408
    %5712 = vmatpush1.msra.mxu0 %v5407
    %5713 = vmatprep.subr.mxu0 %v5412
    %5714 = vmatpush1.msra.mxu0 %v5411
    %5715 = vmatprep.subr.mxu0 %v5416
    %5716 = vmatpush1.msra.mxu0 %v5415
    %5717 = vmatprep.subr.mxu0 %v5420
    %5718 = vmatpush1.msra.mxu0 %v5419
    %5719 = vmatprep.subr.mxu0 0.0
    %5720 = vmatpush1.msra.mxu0 0.0
    %5721 = vmatprep.subr.mxu0 0.0
    %5722 = vmatpush1.msra.mxu0 0.0
    %5723 = vmatprep.subr.mxu0 0.0
    %5724 = vmatpush1.msra.mxu0 0.0
    %5725 = vmatprep.subr.mxu0 0.0
    %5726 = vmatpush1.msra.mxu0 0.0
    %5727 = vmatprep.subr.mxu0 0.0
    %5728 = vmatpush1.msra.mxu0 0.0
    %5729 = vmatprep.subr.mxu0 0.0
    %5730 = vmatpush1.msra.mxu0 0.0
    %5731 = vmatprep.subr.mxu0 0.0
    %5732 = vmatpush1.msra.mxu0 0.0
    %5733 = vmatprep.subr.mxu0 0.0
    %5734 = vmatpush1.msra.mxu0 0.0
    %5735 = vmatprep.subr.mxu0 0.0
    %5736 = vmatpush1.msra.mxu0 0.0
    %5737 = vmatprep.subr.mxu0 0.0
    %5738 = vmatpush1.msra.mxu0 0.0
    %5739 = vmatprep.subr.mxu0 0.0
    %5740 = vmatpush1.msra.mxu0 0.0
    %5741 = vmatprep.subr.mxu0 0.0
    %5742 = vmatpush1.msra.mxu0 0.0
    %5743 = vmatprep.subr.mxu0 0.0
    %5744 = vmatpush1.msra.mxu0 0.0
    %5745 = vmatprep.subr.mxu0 0.0
    %5746 = vmatpush1.msra.mxu0 0.0
    %5747 = vmatprep.subr.mxu0 0.0
    %5748 = vmatpush1.msra.mxu0 0.0
    %5749 = vmatprep.subr.mxu0 0.0
    %5750 = vmatpush1.msra.mxu0 0.0
    %5751 = vmatprep.mubr.f32.mxu0 0.0
    %5752 = vmatmul.mubr.f32.gmra.mrb[0].mxu0 %v5685
    %v5753 = vpop.f32.mrb[0].mxu0
    %v5754 = vadd.f32 %v5554, %v5753
    %v5755 = vpop.f32.mrb[0].mxu0
    %v5756 = vadd.f32 %v5556, %v5755
    %5757 = vdwg.mxu0
    %5758 = vmatprep.subr.mxu0 %v5362
    %5759 = vmatpush1.msra.mxu0 %v5361
    %5760 = vmatprep.subr.mxu0 %v5366
    %5761 = vmatpush1.msra.mxu0 %v5365
    %5762 = vmatprep.subr.mxu0 %v5370
    %5763 = vmatpush1.msra.mxu0 %v5369
    %5764 = vmatprep.subr.mxu0 %v5374
    %5765 = vmatpush1.msra.mxu0 %v5373
    %5766 = vmatprep.subr.mxu0 %v5378
    %5767 = vmatpush1.msra.mxu0 %v5377
    %5768 = vmatprep.subr.mxu0 %v5382
    %5769 = vmatpush1.msra.mxu0 %v5381
    %5770 = vmatprep.subr.mxu0 %v5386
    %5771 = vmatpush1.msra.mxu0 %v5385
    %5772 = vmatprep.subr.mxu0 %v5390
    %5773 = vmatpush1.msra.mxu0 %v5389
    %5774 = vmatprep.subr.mxu0 %v5394
    %5775 = vmatpush1.msra.mxu0 %v5393
    %5776 = vmatprep.subr.mxu0 %v5398
    %5777 = vmatpush1.msra.mxu0 %v5397
    %5778 = vmatprep.subr.mxu0 %v5402
    %5779 = vmatpush1.msra.mxu0 %v5401
    %5780 = vmatprep.subr.mxu0 %v5406
    %5781 = vmatpush1.msra.mxu0 %v5405
    %5782 = vmatprep.subr.mxu0 %v5410
    %5783 = vmatpush1.msra.mxu0 %v5409
    %5784 = vmatprep.subr.mxu0 %v5414
    %5785 = vmatpush1.msra.mxu0 %v5413
    %5786 = vmatprep.subr.mxu0 %v5418
    %5787 = vmatpush1.msra.mxu0 %v5417
    %5788 = vmatprep.subr.mxu0 %v5422
    %5789 = vmatpush1.msra.mxu0 %v5421
    %5790 = vmatprep.subr.mxu0 0.0
    %5791 = vmatpush1.msra.mxu0 0.0
    %5792 = vmatprep.subr.mxu0 0.0
    %5793 = vmatpush1.msra.mxu0 0.0
    %5794 = vmatprep.subr.mxu0 0.0
    %5795 = vmatpush1.msra.mxu0 0.0
    %5796 = vmatprep.subr.mxu0 0.0
    %5797 = vmatpush1.msra.mxu0 0.0
    %5798 = vmatprep.subr.mxu0 0.0
    %5799 = vmatpush1.msra.mxu0 0.0
    %5800 = vmatprep.subr.mxu0 0.0
    %5801 = vmatpush1.msra.mxu0 0.0
    %5802 = vmatprep.subr.mxu0 0.0
    %5803 = vmatpush1.msra.mxu0 0.0
    %5804 = vmatprep.subr.mxu0 0.0
    %5805 = vmatpush1.msra.mxu0 0.0
    %5806 = vmatprep.subr.mxu0 0.0
    %5807 = vmatpush1.msra.mxu0 0.0
    %5808 = vmatprep.subr.mxu0 0.0
    %5809 = vmatpush1.msra.mxu0 0.0
    %5810 = vmatprep.subr.mxu0 0.0
    %5811 = vmatpush1.msra.mxu0 0.0
    %5812 = vmatprep.subr.mxu0 0.0
    %5813 = vmatpush1.msra.mxu0 0.0
    %5814 = vmatprep.subr.mxu0 0.0
    %5815 = vmatpush1.msra.mxu0 0.0
    %5816 = vmatprep.subr.mxu0 0.0
    %5817 = vmatpush1.msra.mxu0 0.0
    %5818 = vmatprep.subr.mxu0 0.0
    %5819 = vmatpush1.msra.mxu0 0.0
    %5820 = vmatprep.subr.mxu0 0.0
    %5821 = vmatpush1.msra.mxu0 0.0
    %5822 = vmatprep.mubr.f32.mxu0 0.0
    %5823 = vmatmul.mubr.f32.gmra.mrb[0].mxu0 %v5685
    %v5824 = vpop.f32.mrb[0].mxu0
    %v5825 = vadd.f32 %v5625, %v5824
    %v5826 = vpop.f32.mrb[0].mxu0
    %v5827 = vadd.f32 %v5627, %v5826
    %5828 = vdwg.mxu0
    %v5829 = vld [vmem:[%s6] sm:$0xf]
    %v5831 = vlaneseq
    %v5832 = vshrl.u32 %v5831, 7
    %v5833 = vsub.s32 0, %v5832
    %v5834 = vrot.slane %v5829, %v5833
    %v5835 = vlaneseq
    %v5836 = vshrl.u32 %v5835, 7
    %v5837 = vsub.s32 1, %v5836
    %v5838 = vrot.slane %v5829, %v5837
    %v5839 = vlaneseq
    %v5840 = vshrl.u32 %v5839, 7
    %v5841 = vsub.s32 2, %v5840
    %v5842 = vrot.slane %v5829, %v5841
    %v5843 = vlaneseq
    %v5844 = vshrl.u32 %v5843, 7
    %v5845 = vsub.s32 3, %v5844
    %v5846 = vrot.slane %v5829, %v5845
    %v5851 = vadd.f32 %v5754, %v5834
    %v5852 = vadd.f32 %v5756, %v5838
    %v5853 = vadd.f32 %v5825, %v5842
    %v5854 = vadd.f32 %v5827, %v5846
    %v5855 = vmul.f32 %v5851, 0.5
    %v5856 = vtanh.pop %v5855
    %v5857 = vmul.f32 %v5856, 0.5
    %v5858 = vadd.f32 %v5857, 0.5
    %v5859 = vmul.f32 %v5852, 0.5
    %v5860 = vtanh.pop %v5859
    %v5861 = vmul.f32 %v5860, 0.5
    %v5862 = vadd.f32 %v5861, 0.5
    %v5863 = vtanh.pop %v5853
    %v5864 = vmul.f32 %v5854, 0.5
    %v5865 = vtanh.pop %v5864
    %v5866 = vmul.f32 %v5865, 0.5
    %v5867 = vadd.f32 %v5866, 0.5
    %v5868 = vmul.f32 %v5862, %v4780
    %v5869 = vmul.f32 %v5858, %v5863
    %v5870 = vadd.f32 %v5868, %v5869
    %v5871 = vtanh.pop %v5870
    %v5872 = vmul.f32 %v5867, %v5871
    %v5874 = vcombine.high %v5872, %v5872
    %v5876 = vunpack.c.l.s4 1966171168
    %v5877 = vunpack.c.0.s8 %v5876
    %v5878 = vlaneseq
    %v5879 = vshrl.u32 %v5878, 7
    %v5880 = vsub.s32 %v5877, %v5879
    %v5881 = vrot.slane %v5872, %v5880
    %v5883 = vunpack.c.l.s4 1966171168
    %v5884 = vunpack.c.0.s8 %v5883
    %v5885 = vlaneseq
    %v5886 = vshrl.u32 %v5885, 7
    %v5887 = vsub.s32 %v5884, %v5886
    %v5888 = vrot.slane %v5874, %v5887
    %v5889 = vcombine.high %v5881, %v5881
    %v5890 = vcombine.high %v5888, %v5888
    %v5892 = vunpack.c.l.s4 1966171168
    %v5893 = vunpack.c.0.s8 %v5892
    %v5894 = vlaneseq
    %v5895 = vshrl.u32 %v5894, 7
    %v5896 = vsub.s32 %v5893, %v5895
    %v5897 = vrot.slane %v5881, %v5896
    %v5899 = vunpack.c.l.s4 1966171168
    %v5900 = vunpack.c.0.s8 %v5899
    %v5901 = vlaneseq
    %v5902 = vshrl.u32 %v5901, 7
    %v5903 = vsub.s32 %v5900, %v5902
    %v5904 = vrot.slane %v5888, %v5903
    %v5906 = vunpack.c.l.s4 1966171168
    %v5907 = vunpack.c.0.s8 %v5906
    %v5908 = vlaneseq
    %v5909 = vshrl.u32 %v5908, 7
    %v5910 = vsub.s32 %v5907, %v5909
    %v5911 = vrot.slane %v5889, %v5910
    %v5913 = vunpack.c.l.s4 1966171168
    %v5914 = vunpack.c.0.s8 %v5913
    %v5915 = vlaneseq
    %v5916 = vshrl.u32 %v5915, 7
    %v5917 = vsub.s32 %v5914, %v5916
    %v5918 = vrot.slane %v5890, %v5917
    %v5919 = vcombine.high %v5897, %v5897
    %v5920 = vcombine.high %v5904, %v5904
    %v5921 = vcombine.high %v5911, %v5911
    %v5922 = vcombine.high %v5918, %v5918
    %5931 = vst [vmem:[#allocation5 + $0x4] sm:$0x1] %v5897
    %5932 = vst [vmem:[#allocation5 + $0xc] sm:$0x1] %v5911
    %5933 = vst [vmem:[#allocation5 + $0x14] sm:$0x1] %v5919
    %5934 = vst [vmem:[#allocation5 + $0x1c] sm:$0x1] %v5921
    %5935 = vst [vmem:[#allocation5 + $0x24] sm:$0x1] %v5904
    %5936 = vst [vmem:[#allocation5 + $0x2c] sm:$0x1] %v5918
    %5937 = vst [vmem:[#allocation5 + $0x34] sm:$0x1] %v5920
    %5938 = vst [vmem:[#allocation5 + $0x3c] sm:$0x1] %v5922
    %s5939 = scalar_lea.vmem [#allocation4], 5
    %v5940 = vld [vmem:[%s5939] ss:$8 sm:$0xf]
    %s5941 = scalar_lea.vmem [#allocation4], 37
    %v5942 = vld [vmem:[%s5941] ss:$8 sm:$0xf]
    %s5943 = scalar_lea.vmem [#allocation4], 69
    %v5944 = vld [vmem:[%s5943] ss:$8 sm:$0xf]
    %s5945 = scalar_lea.vmem [#allocation4], 101
    %v5946 = vld [vmem:[%s5945] ss:$8 sm:$0xf]
    %s5947 = scalar_lea.vmem [#allocation4], 133
    %v5948 = vld [vmem:[%s5947] ss:$8 sm:$0xf]
    %s5949 = scalar_lea.vmem [#allocation4], 165
    %v5950 = vld [vmem:[%s5949] ss:$8 sm:$0xf]
    %s5951 = scalar_lea.vmem [#allocation4], 197
    %v5952 = vld [vmem:[%s5951] ss:$8 sm:$0xf]
    %s5953 = scalar_lea.vmem [#allocation4], 229
    %v5954 = vld [vmem:[%s5953] ss:$8 sm:$0xf]
    %v5955 = vld [vmem:[#allocation12] sm:$0xff]
    %v5956 = vld [vmem:[#allocation12 + $0x8] sm:$0xff]
    %v5957 = vld [vmem:[#allocation12 + $0x10] sm:$0xff]
    %v5958 = vld [vmem:[#allocation12 + $0x18] sm:$0xff]
    %v5959 = vld [vmem:[#allocation12 + $0x20] sm:$0xff]
    %v5960 = vld [vmem:[#allocation12 + $0x28] sm:$0xff]
    %v5961 = vld [vmem:[#allocation12 + $0x30] sm:$0xff]
    %v5962 = vld [vmem:[#allocation12 + $0x38] sm:$0xff]
    %v5963 = vld [vmem:[#allocation12 + $0x40] sm:$0xff]
    %v5964 = vld [vmem:[#allocation12 + $0x48] sm:$0xff]
    %v5965 = vld [vmem:[#allocation12 + $0x50] sm:$0xff]
    %v5966 = vld [vmem:[#allocation12 + $0x58] sm:$0xff]
    %v5967 = vld [vmem:[#allocation12 + $0x60] sm:$0xff]
    %v5968 = vld [vmem:[#allocation12 + $0x68] sm:$0xff]
    %v5969 = vld [vmem:[#allocation12 + $0x70] sm:$0xff]
    %v5970 = vld [vmem:[#allocation12 + $0x78] sm:$0xff]
    %v5971 = vld [vmem:[#allocation12 + $0x80] sm:$0xff]
    %v5972 = vld [vmem:[#allocation12 + $0x88] sm:$0xff]
    %v5973 = vld [vmem:[#allocation12 + $0x90] sm:$0xff]
    %v5974 = vld [vmem:[#allocation12 + $0x98] sm:$0xff]
    %v5975 = vld [vmem:[#allocation12 + $0xa0] sm:$0xff]
    %v5976 = vld [vmem:[#allocation12 + $0xa8] sm:$0xff]
    %v5977 = vld [vmem:[#allocation12 + $0xb0] sm:$0xff]
    %v5978 = vld [vmem:[#allocation12 + $0xb8] sm:$0xff]
    %v5979 = vld [vmem:[#allocation12 + $0xc0] sm:$0xff]
    %v5980 = vld [vmem:[#allocation12 + $0xc8] sm:$0xff]
    %v5981 = vld [vmem:[#allocation12 + $0xd0] sm:$0xff]
    %v5982 = vld [vmem:[#allocation12 + $0xd8] sm:$0xff]
    %v5983 = vld [vmem:[#allocation12 + $0xe0] sm:$0xff]
    %v5984 = vld [vmem:[#allocation12 + $0xe8] sm:$0xff]
    %v5985 = vld [vmem:[#allocation12 + $0xf0] sm:$0xff]
    %v5986 = vld [vmem:[#allocation12 + $0xf8] sm:$0xff]
    %v5987 = vld [vmem:[#allocation12 + $0x100] sm:$0xff]
    %v5988 = vld [vmem:[#allocation12 + $0x108] sm:$0xff]
    %v5989 = vld [vmem:[#allocation12 + $0x110] sm:$0xff]
    %v5990 = vld [vmem:[#allocation12 + $0x118] sm:$0xff]
    %v5991 = vld [vmem:[#allocation12 + $0x120] sm:$0xff]
    %v5992 = vld [vmem:[#allocation12 + $0x128] sm:$0xff]
    %v5993 = vld [vmem:[#allocation12 + $0x130] sm:$0xff]
    %v5994 = vld [vmem:[#allocation12 + $0x138] sm:$0xff]
    %v5995 = vld [vmem:[#allocation12 + $0x140] sm:$0xff]
    %v5996 = vld [vmem:[#allocation12 + $0x148] sm:$0xff]
    %v5997 = vld [vmem:[#allocation12 + $0x150] sm:$0xff]
    %v5998 = vld [vmem:[#allocation12 + $0x158] sm:$0xff]
    %v5999 = vld [vmem:[#allocation12 + $0x160] sm:$0xff]
    %v6000 = vld [vmem:[#allocation12 + $0x168] sm:$0xff]
    %v6001 = vld [vmem:[#allocation12 + $0x170] sm:$0xff]
    %v6002 = vld [vmem:[#allocation12 + $0x178] sm:$0xff]
    %v6003 = vld [vmem:[#allocation12 + $0x180] sm:$0xff]
    %v6004 = vld [vmem:[#allocation12 + $0x188] sm:$0xff]
    %v6005 = vld [vmem:[#allocation12 + $0x190] sm:$0xff]
    %v6006 = vld [vmem:[#allocation12 + $0x198] sm:$0xff]
    %v6007 = vld [vmem:[#allocation12 + $0x1a0] sm:$0xff]
    %v6008 = vld [vmem:[#allocation12 + $0x1a8] sm:$0xff]
    %v6009 = vld [vmem:[#allocation12 + $0x1b0] sm:$0xff]
    %v6010 = vld [vmem:[#allocation12 + $0x1b8] sm:$0xff]
    %v6011 = vld [vmem:[#allocation12 + $0x1c0] sm:$0xff]
    %v6012 = vld [vmem:[#allocation12 + $0x1c8] sm:$0xff]
    %v6013 = vld [vmem:[#allocation12 + $0x1d0] sm:$0xff]
    %v6014 = vld [vmem:[#allocation12 + $0x1d8] sm:$0xff]
    %v6015 = vld [vmem:[#allocation12 + $0x1e0] sm:$0xff]
    %v6016 = vld [vmem:[#allocation12 + $0x1e8] sm:$0xff]
    %v6017 = vld [vmem:[#allocation12 + $0x1f0] sm:$0xff]
    %v6018 = vld [vmem:[#allocation12 + $0x1f8] sm:$0xff]
    %6019 = vmatprep.subr.mxu0 %v5956
    %6020 = vmatpush1.msra.mxu0 %v5955
    %6021 = vmatprep.subr.mxu0 %v5960
    %6022 = vmatpush1.msra.mxu0 %v5959
    %6023 = vmatprep.subr.mxu0 %v5964
    %6024 = vmatpush1.msra.mxu0 %v5963
    %6025 = vmatprep.subr.mxu0 %v5968
    %6026 = vmatpush1.msra.mxu0 %v5967
    %6027 = vmatprep.subr.mxu0 %v5972
    %6028 = vmatpush1.msra.mxu0 %v5971
    %6029 = vmatprep.subr.mxu0 %v5976
    %6030 = vmatpush1.msra.mxu0 %v5975
    %6031 = vmatprep.subr.mxu0 %v5980
    %6032 = vmatpush1.msra.mxu0 %v5979
    %6033 = vmatprep.subr.mxu0 %v5984
    %6034 = vmatpush1.msra.mxu0 %v5983
    %6035 = vmatprep.subr.mxu0 %v5988
    %6036 = vmatpush1.msra.mxu0 %v5987
    %6037 = vmatprep.subr.mxu0 %v5992
    %6038 = vmatpush1.msra.mxu0 %v5991
    %6039 = vmatprep.subr.mxu0 %v5996
    %6040 = vmatpush1.msra.mxu0 %v5995
    %6041 = vmatprep.subr.mxu0 %v6000
    %6042 = vmatpush1.msra.mxu0 %v5999
    %6043 = vmatprep.subr.mxu0 %v6004
    %6044 = vmatpush1.msra.mxu0 %v6003
    %6045 = vmatprep.subr.mxu0 %v6008
    %6046 = vmatpush1.msra.mxu0 %v6007
    %6047 = vmatprep.subr.mxu0 %v6012
    %6048 = vmatpush1.msra.mxu0 %v6011
    %6049 = vmatprep.subr.mxu0 %v6016
    %6050 = vmatpush1.msra.mxu0 %v6015
    %6051 = vmatprep.subr.mxu0 0.0
    %6052 = vmatpush1.msra.mxu0 0.0
    %6053 = vmatprep.subr.mxu0 0.0
    %6054 = vmatpush1.msra.mxu0 0.0
    %6055 = vmatprep.subr.mxu0 0.0
    %6056 = vmatpush1.msra.mxu0 0.0
    %6057 = vmatprep.subr.mxu0 0.0
    %6058 = vmatpush1.msra.mxu0 0.0
    %6059 = vmatprep.subr.mxu0 0.0
    %6060 = vmatpush1.msra.mxu0 0.0
    %6061 = vmatprep.subr.mxu0 0.0
    %6062 = vmatpush1.msra.mxu0 0.0
    %6063 = vmatprep.subr.mxu0 0.0
    %6064 = vmatpush1.msra.mxu0 0.0
    %6065 = vmatprep.subr.mxu0 0.0
    %6066 = vmatpush1.msra.mxu0 0.0
    %6067 = vmatprep.subr.mxu0 0.0
    %6068 = vmatpush1.msra.mxu0 0.0
    %6069 = vmatprep.subr.mxu0 0.0
    %6070 = vmatpush1.msra.mxu0 0.0
    %6071 = vmatprep.subr.mxu0 0.0
    %6072 = vmatpush1.msra.mxu0 0.0
    %6073 = vmatprep.subr.mxu0 0.0
    %6074 = vmatpush1.msra.mxu0 0.0
    %6075 = vmatprep.subr.mxu0 0.0
    %6076 = vmatpush1.msra.mxu0 0.0
    %6077 = vmatprep.subr.mxu0 0.0
    %6078 = vmatpush1.msra.mxu0 0.0
    %6079 = vmatprep.subr.mxu0 0.0
    %6080 = vmatpush1.msra.mxu0 0.0
    %6081 = vmatprep.subr.mxu0 0.0
    %6082 = vmatpush1.msra.mxu0 0.0
    %6083 = vmatprep.mubr.f32.mxu0 0.0
    %6084 = vmatmul.mubr.f32.gmra.mrb[0].mxu0 %v5685
    %v6085 = vpop.f32.mrb[0].mxu0
    %v6086 = vadd.f32 0.0, %v6085
    %v6087 = vpop.f32.mrb[0].mxu0
    %v6088 = vadd.f32 0.0, %v6087
    %6089 = vdwg.mxu0
    %6090 = vmatprep.subr.mxu0 %v5958
    %6091 = vmatpush1.msra.mxu0 %v5957
    %6092 = vmatprep.subr.mxu0 %v5962
    %6093 = vmatpush1.msra.mxu0 %v5961
    %6094 = vmatprep.subr.mxu0 %v5966
    %6095 = vmatpush1.msra.mxu0 %v5965
    %6096 = vmatprep.subr.mxu0 %v5970
    %6097 = vmatpush1.msra.mxu0 %v5969
    %6098 = vmatprep.subr.mxu0 %v5974
    %6099 = vmatpush1.msra.mxu0 %v5973
    %6100 = vmatprep.subr.mxu0 %v5978
    %6101 = vmatpush1.msra.mxu0 %v5977
    %6102 = vmatprep.subr.mxu0 %v5982
    %6103 = vmatpush1.msra.mxu0 %v5981
    %6104 = vmatprep.subr.mxu0 %v5986
    %6105 = vmatpush1.msra.mxu0 %v5985
    %6106 = vmatprep.subr.mxu0 %v5990
    %6107 = vmatpush1.msra.mxu0 %v5989
    %6108 = vmatprep.subr.mxu0 %v5994
    %6109 = vmatpush1.msra.mxu0 %v5993
    %6110 = vmatprep.subr.mxu0 %v5998
    %6111 = vmatpush1.msra.mxu0 %v5997
    %6112 = vmatprep.subr.mxu0 %v6002
    %6113 = vmatpush1.msra.mxu0 %v6001
    %6114 = vmatprep.subr.mxu0 %v6006
    %6115 = vmatpush1.msra.mxu0 %v6005
    %6116 = vmatprep.subr.mxu0 %v6010
    %6117 = vmatpush1.msra.mxu0 %v6009
    %6118 = vmatprep.subr.mxu0 %v6014
    %6119 = vmatpush1.msra.mxu0 %v6013
    %6120 = vmatprep.subr.mxu0 %v6018
    %6121 = vmatpush1.msra.mxu0 %v6017
    %6122 = vmatprep.subr.mxu0 0.0
    %6123 = vmatpush1.msra.mxu0 0.0
    %6124 = vmatprep.subr.mxu0 0.0
    %6125 = vmatpush1.msra.mxu0 0.0
    %6126 = vmatprep.subr.mxu0 0.0
    %6127 = vmatpush1.msra.mxu0 0.0
    %6128 = vmatprep.subr.mxu0 0.0
    %6129 = vmatpush1.msra.mxu0 0.0
    %6130 = vmatprep.subr.mxu0 0.0
    %6131 = vmatpush1.msra.mxu0 0.0
    %6132 = vmatprep.subr.mxu0 0.0
    %6133 = vmatpush1.msra.mxu0 0.0
    %6134 = vmatprep.subr.mxu0 0.0
    %6135 = vmatpush1.msra.mxu0 0.0
    %6136 = vmatprep.subr.mxu0 0.0
    %6137 = vmatpush1.msra.mxu0 0.0
    %6138 = vmatprep.subr.mxu0 0.0
    %6139 = vmatpush1.msra.mxu0 0.0
    %6140 = vmatprep.subr.mxu0 0.0
    %6141 = vmatpush1.msra.mxu0 0.0
    %6142 = vmatprep.subr.mxu0 0.0
    %6143 = vmatpush1.msra.mxu0 0.0
    %6144 = vmatprep.subr.mxu0 0.0
    %6145 = vmatpush1.msra.mxu0 0.0
    %6146 = vmatprep.subr.mxu0 0.0
    %6147 = vmatpush1.msra.mxu0 0.0
    %6148 = vmatprep.subr.mxu0 0.0
    %6149 = vmatpush1.msra.mxu0 0.0
    %6150 = vmatprep.subr.mxu0 0.0
    %6151 = vmatpush1.msra.mxu0 0.0
    %6152 = vmatprep.subr.mxu0 0.0
    %6153 = vmatpush1.msra.mxu0 0.0
    %6154 = vmatprep.mubr.f32.mxu0 0.0
    %6155 = vmatmul.mubr.f32.gmra.mrb[0].mxu0 %v5685
    %v6156 = vpop.f32.mrb[0].mxu0
    %v6157 = vadd.f32 0.0, %v6156
    %v6158 = vpop.f32.mrb[0].mxu0
    %v6159 = vadd.f32 0.0, %v6158
    %6160 = vdwg.mxu0
    %v6165 = vcombine.low %v6086, %v6088
    %v6166 = vcombine.high %v6086, %v6088
    %v6167 = vcombine.low %v6157, %v6159
    %v6168 = vcombine.high %v6157, %v6159
    %v6170 = vunpack.c.l.s4 1966171168
    %v6171 = vunpack.c.0.s8 %v6170
    %v6172 = vlaneseq
    %v6173 = vshrl.u32 %v6172, 7
    %v6174 = vsub.s32 %v6171, %v6173
    %v6175 = vrot.slane %v6165, %v6174
    %v6177 = vunpack.c.l.s4 1966171168
    %v6178 = vunpack.c.0.s8 %v6177
    %v6179 = vlaneseq
    %v6180 = vshrl.u32 %v6179, 7
    %v6181 = vsub.s32 %v6178, %v6180
    %v6182 = vrot.slane %v6166, %v6181
    %v6184 = vunpack.c.l.s4 1966171168
    %v6185 = vunpack.c.0.s8 %v6184
    %v6186 = vlaneseq
    %v6187 = vshrl.u32 %v6186, 7
    %v6188 = vsub.s32 %v6185, %v6187
    %v6189 = vrot.slane %v6167, %v6188
    %v6191 = vunpack.c.l.s4 1966171168
    %v6192 = vunpack.c.0.s8 %v6191
    %v6193 = vlaneseq
    %v6194 = vshrl.u32 %v6193, 7
    %v6195 = vsub.s32 %v6192, %v6194
    %v6196 = vrot.slane %v6168, %v6195
    %v6197 = vcombine.low %v6175, %v6189
    %v6198 = vcombine.high %v6175, %v6189
    %v6199 = vcombine.low %v6182, %v6196
    %v6200 = vcombine.high %v6182, %v6196
    %v6202 = vunpack.c.l.s4 1966171168
    %v6203 = vunpack.c.0.s8 %v6202
    %v6204 = vlaneseq
    %v6205 = vshrl.u32 %v6204, 7
    %v6206 = vsub.s32 %v6203, %v6205
    %v6207 = vrot.slane %v6197, %v6206
    %v6209 = vunpack.c.l.s4 1966171168
    %v6210 = vunpack.c.0.s8 %v6209
    %v6211 = vlaneseq
    %v6212 = vshrl.u32 %v6211, 7
    %v6213 = vsub.s32 %v6210, %v6212
    %v6214 = vrot.slane %v6199, %v6213
    %v6216 = vunpack.c.l.s4 1966171168
    %v6217 = vunpack.c.0.s8 %v6216
    %v6218 = vlaneseq
    %v6219 = vshrl.u32 %v6218, 7
    %v6220 = vsub.s32 %v6217, %v6219
    %v6221 = vrot.slane %v6198, %v6220
    %v6223 = vunpack.c.l.s4 1966171168
    %v6224 = vunpack.c.0.s8 %v6223
    %v6225 = vlaneseq
    %v6226 = vshrl.u32 %v6225, 7
    %v6227 = vsub.s32 %v6224, %v6226
    %v6228 = vrot.slane %v6200, %v6227
    %v6229 = vcombine.high %v6207, %v6207
    %v6230 = vcombine.high %v6214, %v6214
    %v6231 = vcombine.high %v6221, %v6221
    %v6232 = vcombine.high %v6228, %v6228
    %v6241 = vadd.f32 %v5940, %v6207
    %v6242 = vadd.f32 %v5942, %v6221
    %v6243 = vadd.f32 %v5944, %v6229
    %v6244 = vadd.f32 %v5946, %v6231
    %v6245 = vadd.f32 %v5948, %v6214
    %v6246 = vadd.f32 %v5950, %v6228
    %v6247 = vadd.f32 %v5952, %v6230
    %v6248 = vadd.f32 %v5954, %v6232
    %v6249 = vmul.f32 %v6241, 0.5
    %v6250 = vmul.f32 %v6242, 0.5
    %v6251 = vmul.f32 %v6243, 0.5
    %v6252 = vmul.f32 %v6244, 0.5
    %v6253 = vmul.f32 %v6245, 0.5
    %v6254 = vmul.f32 %v6246, 0.5
    %v6255 = vmul.f32 %v6247, 0.5
    %v6256 = vmul.f32 %v6248, 0.5
    %v6257 = vtanh.pop %v6249
    %v6258 = vtanh.pop %v6250
    %v6259 = vtanh.pop %v6251
    %v6260 = vtanh.pop %v6252
    %v6261 = vtanh.pop %v6253
    %v6262 = vtanh.pop %v6254
    %v6263 = vtanh.pop %v6255
    %v6264 = vtanh.pop %v6256
    %v6265 = vmul.f32 %v6257, 0.5
    %v6266 = vmul.f32 %v6258, 0.5
    %v6267 = vmul.f32 %v6259, 0.5
    %v6268 = vmul.f32 %v6260, 0.5
    %v6269 = vmul.f32 %v6261, 0.5
    %v6270 = vmul.f32 %v6262, 0.5
    %v6271 = vmul.f32 %v6263, 0.5
    %v6272 = vmul.f32 %v6264, 0.5
    %v6273 = vadd.f32 %v6265, 0.5
    %v6274 = vadd.f32 %v6266, 0.5
    %v6275 = vadd.f32 %v6267, 0.5
    %v6276 = vadd.f32 %v6268, 0.5
    %v6277 = vadd.f32 %v6269, 0.5
    %v6278 = vadd.f32 %v6270, 0.5
    %v6279 = vadd.f32 %v6271, 0.5
    %v6280 = vadd.f32 %v6272, 0.5
    %v6289 = vrot.slane %v6241, 1
    %v6290 = vrot.slane %v6242, 1
    %v6291 = vrot.slane %v6243, 1
    %v6292 = vrot.slane %v6244, 1
    %v6293 = vrot.slane %v6245, 1
    %v6294 = vrot.slane %v6246, 1
    %v6295 = vrot.slane %v6247, 1
    %v6296 = vrot.slane %v6248, 1
    %v6305 = vmul.f32 %v6289, 0.5
    %v6306 = vmul.f32 %v6290, 0.5
    %v6307 = vmul.f32 %v6291, 0.5
    %v6308 = vmul.f32 %v6292, 0.5
    %v6309 = vmul.f32 %v6293, 0.5
    %v6310 = vmul.f32 %v6294, 0.5
    %v6311 = vmul.f32 %v6295, 0.5
    %v6312 = vmul.f32 %v6296, 0.5
    %v6313 = vtanh.pop %v6305
    %v6314 = vtanh.pop %v6306
    %v6315 = vtanh.pop %v6307
    %v6316 = vtanh.pop %v6308
    %v6317 = vtanh.pop %v6309
    %v6318 = vtanh.pop %v6310
    %v6319 = vtanh.pop %v6311
    %v6320 = vtanh.pop %v6312
    %v6321 = vmul.f32 %v6313, 0.5
    %v6322 = vmul.f32 %v6314, 0.5
    %v6323 = vmul.f32 %v6315, 0.5
    %v6324 = vmul.f32 %v6316, 0.5
    %v6325 = vmul.f32 %v6317, 0.5
    %v6326 = vmul.f32 %v6318, 0.5
    %v6327 = vmul.f32 %v6319, 0.5
    %v6328 = vmul.f32 %v6320, 0.5
    %v6329 = vadd.f32 %v6321, 0.5
    %v6330 = vadd.f32 %v6322, 0.5
    %v6331 = vadd.f32 %v6323, 0.5
    %v6332 = vadd.f32 %v6324, 0.5
    %v6333 = vadd.f32 %v6325, 0.5
    %v6334 = vadd.f32 %v6326, 0.5
    %v6335 = vadd.f32 %v6327, 0.5
    %v6336 = vadd.f32 %v6328, 0.5
    %v6337 = vrot.slane %v6241, 2
    %v6338 = vrot.slane %v6242, 2
    %v6339 = vrot.slane %v6243, 2
    %v6340 = vrot.slane %v6244, 2
    %v6341 = vrot.slane %v6245, 2
    %v6342 = vrot.slane %v6246, 2
    %v6343 = vrot.slane %v6247, 2
    %v6344 = vrot.slane %v6248, 2
    %v6353 = vtanh.pop %v6337
    %v6354 = vtanh.pop %v6338
    %v6355 = vtanh.pop %v6339
    %v6356 = vtanh.pop %v6340
    %v6357 = vtanh.pop %v6341
    %v6358 = vtanh.pop %v6342
    %v6359 = vtanh.pop %v6343
    %v6360 = vtanh.pop %v6344
    %v6361 = vrot.slane %v6241, 3
    %v6362 = vrot.slane %v6242, 3
    %v6363 = vrot.slane %v6243, 3
    %v6364 = vrot.slane %v6244, 3
    %v6365 = vrot.slane %v6245, 3
    %v6366 = vrot.slane %v6246, 3
    %v6367 = vrot.slane %v6247, 3
    %v6368 = vrot.slane %v6248, 3
    %v6377 = vmul.f32 %v6361, 0.5
    %v6378 = vmul.f32 %v6362, 0.5
    %v6379 = vmul.f32 %v6363, 0.5
    %v6380 = vmul.f32 %v6364, 0.5
    %v6381 = vmul.f32 %v6365, 0.5
    %v6382 = vmul.f32 %v6366, 0.5
    %v6383 = vmul.f32 %v6367, 0.5
    %v6384 = vmul.f32 %v6368, 0.5
    %v6385 = vtanh.pop %v6377
    %v6386 = vtanh.pop %v6378
    %v6387 = vtanh.pop %v6379
    %v6388 = vtanh.pop %v6380
    %v6389 = vtanh.pop %v6381
    %v6390 = vtanh.pop %v6382
    %v6391 = vtanh.pop %v6383
    %v6392 = vtanh.pop %v6384
    %v6393 = vmul.f32 %v6385, 0.5
    %v6394 = vmul.f32 %v6386, 0.5
    %v6395 = vmul.f32 %v6387, 0.5
    %v6396 = vmul.f32 %v6388, 0.5
    %v6397 = vmul.f32 %v6389, 0.5
    %v6398 = vmul.f32 %v6390, 0.5
    %v6399 = vmul.f32 %v6391, 0.5
    %v6400 = vmul.f32 %v6392, 0.5
    %v6401 = vadd.f32 %v6393, 0.5
    %v6402 = vadd.f32 %v6394, 0.5
    %v6403 = vadd.f32 %v6395, 0.5
    %v6404 = vadd.f32 %v6396, 0.5
    %v6405 = vadd.f32 %v6397, 0.5
    %v6406 = vadd.f32 %v6398, 0.5
    %v6407 = vadd.f32 %v6399, 0.5
    %v6408 = vadd.f32 %v6400, 0.5
    %v6409 = vmul.f32 %v6329, %v5335
    %v6410 = vmul.f32 %v6330, %v5336
    %v6411 = vmul.f32 %v6331, %v5337
    %v6412 = vmul.f32 %v6332, %v5338
    %v6413 = vmul.f32 %v6333, %v5339
    %v6414 = vmul.f32 %v6334, %v5340
    %v6415 = vmul.f32 %v6335, %v5341
    %v6416 = vmul.f32 %v6336, %v5342
    %v6417 = vmul.f32 %v6273, %v6353
    %v6418 = vmul.f32 %v6274, %v6354
    %v6419 = vmul.f32 %v6275, %v6355
    %v6420 = vmul.f32 %v6276, %v6356
    %v6421 = vmul.f32 %v6277, %v6357
    %v6422 = vmul.f32 %v6278, %v6358
    %v6423 = vmul.f32 %v6279, %v6359
    %v6424 = vmul.f32 %v6280, %v6360
    %v6425 = vadd.f32 %v6409, %v6417
    %v6426 = vadd.f32 %v6410, %v6418
    %v6427 = vadd.f32 %v6411, %v6419
    %v6428 = vadd.f32 %v6412, %v6420
    %v6429 = vadd.f32 %v6413, %v6421
    %v6430 = vadd.f32 %v6414, %v6422
    %v6431 = vadd.f32 %v6415, %v6423
    %v6432 = vadd.f32 %v6416, %v6424
    %v6433 = vtanh.pop %v6425
    %v6434 = vtanh.pop %v6426
    %v6435 = vtanh.pop %v6427
    %v6436 = vtanh.pop %v6428
    %v6437 = vtanh.pop %v6429
    %v6438 = vtanh.pop %v6430
    %v6439 = vtanh.pop %v6431
    %v6440 = vtanh.pop %v6432
    %v6441 = vmul.f32 %v6401, %v6433
    %v6442 = vmul.f32 %v6402, %v6434
    %v6443 = vmul.f32 %v6403, %v6435
    %v6444 = vmul.f32 %v6404, %v6436
    %v6445 = vmul.f32 %v6405, %v6437
    %v6446 = vmul.f32 %v6406, %v6438
    %v6447 = vmul.f32 %v6407, %v6439
    %v6448 = vmul.f32 %v6408, %v6440
    %v6449 = vld [vmem:[#allocation13] sm:$0xff]
    %v6450 = vld [vmem:[#allocation13 + $0x8] sm:$0xff]
    %v6451 = vld [vmem:[#allocation13 + $0x10] sm:$0xff]
    %v6452 = vld [vmem:[#allocation13 + $0x18] sm:$0xff]
    %v6453 = vld [vmem:[#allocation13 + $0x20] sm:$0xff]
    %v6454 = vld [vmem:[#allocation13 + $0x28] sm:$0xff]
    %v6455 = vld [vmem:[#allocation13 + $0x30] sm:$0xff]
    %v6456 = vld [vmem:[#allocation13 + $0x38] sm:$0xff]
    %v6457 = vld [vmem:[#allocation13 + $0x40] sm:$0xff]
    %v6458 = vld [vmem:[#allocation13 + $0x48] sm:$0xff]
    %v6459 = vld [vmem:[#allocation13 + $0x50] sm:$0xff]
    %v6460 = vld [vmem:[#allocation13 + $0x58] sm:$0xff]
    %v6461 = vld [vmem:[#allocation13 + $0x60] sm:$0xff]
    %v6462 = vld [vmem:[#allocation13 + $0x68] sm:$0xff]
    %v6463 = vld [vmem:[#allocation13 + $0x70] sm:$0xff]
    %v6464 = vld [vmem:[#allocation13 + $0x78] sm:$0xff]
    %v6465 = vld [vmem:[#allocation13 + $0x80] sm:$0xff]
    %v6466 = vld [vmem:[#allocation13 + $0x88] sm:$0xff]
    %v6467 = vld [vmem:[#allocation13 + $0x90] sm:$0xff]
    %v6468 = vld [vmem:[#allocation13 + $0x98] sm:$0xff]
    %v6469 = vld [vmem:[#allocation13 + $0xa0] sm:$0xff]
    %v6470 = vld [vmem:[#allocation13 + $0xa8] sm:$0xff]
    %v6471 = vld [vmem:[#allocation13 + $0xb0] sm:$0xff]
    %v6472 = vld [vmem:[#allocation13 + $0xb8] sm:$0xff]
    %v6473 = vld [vmem:[#allocation13 + $0xc0] sm:$0xff]
    %v6474 = vld [vmem:[#allocation13 + $0xc8] sm:$0xff]
    %v6475 = vld [vmem:[#allocation13 + $0xd0] sm:$0xff]
    %v6476 = vld [vmem:[#allocation13 + $0xd8] sm:$0xff]
    %v6477 = vld [vmem:[#allocation13 + $0xe0] sm:$0xff]
    %v6478 = vld [vmem:[#allocation13 + $0xe8] sm:$0xff]
    %v6479 = vld [vmem:[#allocation13 + $0xf0] sm:$0xff]
    %v6480 = vld [vmem:[#allocation13 + $0xf8] sm:$0xff]
    %v6481 = vld [vmem:[#allocation13 + $0x100] sm:$0xff]
    %v6482 = vld [vmem:[#allocation13 + $0x108] sm:$0xff]
    %v6483 = vld [vmem:[#allocation13 + $0x110] sm:$0xff]
    %v6484 = vld [vmem:[#allocation13 + $0x118] sm:$0xff]
    %v6485 = vld [vmem:[#allocation13 + $0x120] sm:$0xff]
    %v6486 = vld [vmem:[#allocation13 + $0x128] sm:$0xff]
    %v6487 = vld [vmem:[#allocation13 + $0x130] sm:$0xff]
    %v6488 = vld [vmem:[#allocation13 + $0x138] sm:$0xff]
    %v6489 = vld [vmem:[#allocation13 + $0x140] sm:$0xff]
    %v6490 = vld [vmem:[#allocation13 + $0x148] sm:$0xff]
    %v6491 = vld [vmem:[#allocation13 + $0x150] sm:$0xff]
    %v6492 = vld [vmem:[#allocation13 + $0x158] sm:$0xff]
    %v6493 = vld [vmem:[#allocation13 + $0x160] sm:$0xff]
    %v6494 = vld [vmem:[#allocation13 + $0x168] sm:$0xff]
    %v6495 = vld [vmem:[#allocation13 + $0x170] sm:$0xff]
    %v6496 = vld [vmem:[#allocation13 + $0x178] sm:$0xff]
    %v6497 = vld [vmem:[#allocation13 + $0x180] sm:$0xff]
    %v6498 = vld [vmem:[#allocation13 + $0x188] sm:$0xff]
    %v6499 = vld [vmem:[#allocation13 + $0x190] sm:$0xff]
    %v6500 = vld [vmem:[#allocation13 + $0x198] sm:$0xff]
    %v6501 = vld [vmem:[#allocation13 + $0x1a0] sm:$0xff]
    %v6502 = vld [vmem:[#allocation13 + $0x1a8] sm:$0xff]
    %v6503 = vld [vmem:[#allocation13 + $0x1b0] sm:$0xff]
    %v6504 = vld [vmem:[#allocation13 + $0x1b8] sm:$0xff]
    %v6505 = vld [vmem:[#allocation13 + $0x1c0] sm:$0xff]
    %v6506 = vld [vmem:[#allocation13 + $0x1c8] sm:$0xff]
    %v6507 = vld [vmem:[#allocation13 + $0x1d0] sm:$0xff]
    %v6508 = vld [vmem:[#allocation13 + $0x1d8] sm:$0xff]
    %v6509 = vld [vmem:[#allocation13 + $0x1e0] sm:$0xff]
    %v6510 = vld [vmem:[#allocation13 + $0x1e8] sm:$0xff]
    %v6511 = vld [vmem:[#allocation13 + $0x1f0] sm:$0xff]
    %v6512 = vld [vmem:[#allocation13 + $0x1f8] sm:$0xff]
    %v6513 = vld [vmem:[#allocation15] sm:$0xff]
    %v6514 = vld [vmem:[#allocation15 + $0x8] sm:$0xff]
    %v6515 = vld [vmem:[#allocation15 + $0x10] sm:$0xff]
    %v6516 = vld [vmem:[#allocation15 + $0x18] sm:$0xff]
    %v6517 = vld [vmem:[#allocation15 + $0x20] sm:$0xff]
    %v6518 = vld [vmem:[#allocation15 + $0x28] sm:$0xff]
    %v6519 = vld [vmem:[#allocation15 + $0x30] sm:$0xff]
    %v6520 = vld [vmem:[#allocation15 + $0x38] sm:$0xff]
    %v6521 = vld [vmem:[#allocation15 + $0x40] sm:$0xff]
    %v6522 = vld [vmem:[#allocation15 + $0x48] sm:$0xff]
    %v6523 = vld [vmem:[#allocation15 + $0x50] sm:$0xff]
    %v6524 = vld [vmem:[#allocation15 + $0x58] sm:$0xff]
    %v6525 = vld [vmem:[#allocation15 + $0x60] sm:$0xff]
    %v6526 = vld [vmem:[#allocation15 + $0x68] sm:$0xff]
    %v6527 = vld [vmem:[#allocation15 + $0x70] sm:$0xff]
    %v6528 = vld [vmem:[#allocation15 + $0x78] sm:$0xff]
    %v6529 = vld [vmem:[#allocation15 + $0x80] sm:$0xff]
    %v6530 = vld [vmem:[#allocation15 + $0x88] sm:$0xff]
    %v6531 = vld [vmem:[#allocation15 + $0x90] sm:$0xff]
    %v6532 = vld [vmem:[#allocation15 + $0x98] sm:$0xff]
    %v6533 = vld [vmem:[#allocation15 + $0xa0] sm:$0xff]
    %v6534 = vld [vmem:[#allocation15 + $0xa8] sm:$0xff]
    %v6535 = vld [vmem:[#allocation15 + $0xb0] sm:$0xff]
    %v6536 = vld [vmem:[#allocation15 + $0xb8] sm:$0xff]
    %v6537 = vld [vmem:[#allocation15 + $0xc0] sm:$0xff]
    %v6538 = vld [vmem:[#allocation15 + $0xc8] sm:$0xff]
    %v6539 = vld [vmem:[#allocation15 + $0xd0] sm:$0xff]
    %v6540 = vld [vmem:[#allocation15 + $0xd8] sm:$0xff]
    %v6541 = vld [vmem:[#allocation15 + $0xe0] sm:$0xff]
    %v6542 = vld [vmem:[#allocation15 + $0xe8] sm:$0xff]
    %v6543 = vld [vmem:[#allocation15 + $0xf0] sm:$0xff]
    %v6544 = vld [vmem:[#allocation15 + $0xf8] sm:$0xff]
    %v6545 = vld [vmem:[#allocation15 + $0x100] sm:$0xff]
    %v6546 = vld [vmem:[#allocation15 + $0x108] sm:$0xff]
    %v6547 = vld [vmem:[#allocation15 + $0x110] sm:$0xff]
    %v6548 = vld [vmem:[#allocation15 + $0x118] sm:$0xff]
    %v6549 = vld [vmem:[#allocation15 + $0x120] sm:$0xff]
    %v6550 = vld [vmem:[#allocation15 + $0x128] sm:$0xff]
    %v6551 = vld [vmem:[#allocation15 + $0x130] sm:$0xff]
    %v6552 = vld [vmem:[#allocation15 + $0x138] sm:$0xff]
    %v6553 = vld [vmem:[#allocation15 + $0x140] sm:$0xff]
    %v6554 = vld [vmem:[#allocation15 + $0x148] sm:$0xff]
    %v6555 = vld [vmem:[#allocation15 + $0x150] sm:$0xff]
    %v6556 = vld [vmem:[#allocation15 + $0x158] sm:$0xff]
    %v6557 = vld [vmem:[#allocation15 + $0x160] sm:$0xff]
    %v6558 = vld [vmem:[#allocation15 + $0x168] sm:$0xff]
    %v6559 = vld [vmem:[#allocation15 + $0x170] sm:$0xff]
    %v6560 = vld [vmem:[#allocation15 + $0x178] sm:$0xff]
    %v6561 = vld [vmem:[#allocation15 + $0x180] sm:$0xff]
    %v6562 = vld [vmem:[#allocation15 + $0x188] sm:$0xff]
    %v6563 = vld [vmem:[#allocation15 + $0x190] sm:$0xff]
    %v6564 = vld [vmem:[#allocation15 + $0x198] sm:$0xff]
    %v6565 = vld [vmem:[#allocation15 + $0x1a0] sm:$0xff]
    %v6566 = vld [vmem:[#allocation15 + $0x1a8] sm:$0xff]
    %v6567 = vld [vmem:[#allocation15 + $0x1b0] sm:$0xff]
    %v6568 = vld [vmem:[#allocation15 + $0x1b8] sm:$0xff]
    %v6569 = vld [vmem:[#allocation15 + $0x1c0] sm:$0xff]
    %v6570 = vld [vmem:[#allocation15 + $0x1c8] sm:$0xff]
    %v6571 = vld [vmem:[#allocation15 + $0x1d0] sm:$0xff]
    %v6572 = vld [vmem:[#allocation15 + $0x1d8] sm:$0xff]
    %v6573 = vld [vmem:[#allocation15 + $0x1e0] sm:$0xff]
    %v6574 = vld [vmem:[#allocation15 + $0x1e8] sm:$0xff]
    %v6575 = vld [vmem:[#allocation15 + $0x1f0] sm:$0xff]
    %v6576 = vld [vmem:[#allocation15 + $0x1f8] sm:$0xff]
    %6577 = vmatprep.subr.mxu0 %v6514
    %6578 = vmatpush1.msra.mxu0 %v6513
    %6579 = vmatprep.subr.mxu0 %v6518
    %6580 = vmatpush1.msra.mxu0 %v6517
    %6581 = vmatprep.subr.mxu0 %v6522
    %6582 = vmatpush1.msra.mxu0 %v6521
    %6583 = vmatprep.subr.mxu0 %v6526
    %6584 = vmatpush1.msra.mxu0 %v6525
    %6585 = vmatprep.subr.mxu0 %v6530
    %6586 = vmatpush1.msra.mxu0 %v6529
    %6587 = vmatprep.subr.mxu0 %v6534
    %6588 = vmatpush1.msra.mxu0 %v6533
    %6589 = vmatprep.subr.mxu0 %v6538
    %6590 = vmatpush1.msra.mxu0 %v6537
    %6591 = vmatprep.subr.mxu0 %v6542
    %6592 = vmatpush1.msra.mxu0 %v6541
    %6593 = vmatprep.subr.mxu0 %v6546
    %6594 = vmatpush1.msra.mxu0 %v6545
    %6595 = vmatprep.subr.mxu0 %v6550
    %6596 = vmatpush1.msra.mxu0 %v6549
    %6597 = vmatprep.subr.mxu0 %v6554
    %6598 = vmatpush1.msra.mxu0 %v6553
    %6599 = vmatprep.subr.mxu0 %v6558
    %6600 = vmatpush1.msra.mxu0 %v6557
    %6601 = vmatprep.subr.mxu0 %v6562
    %6602 = vmatpush1.msra.mxu0 %v6561
    %6603 = vmatprep.subr.mxu0 %v6566
    %6604 = vmatpush1.msra.mxu0 %v6565
    %6605 = vmatprep.subr.mxu0 %v6570
    %6606 = vmatpush1.msra.mxu0 %v6569
    %6607 = vmatprep.subr.mxu0 %v6574
    %6608 = vmatpush1.msra.mxu0 %v6573
    %6609 = vmatprep.subr.mxu0 0.0
    %6610 = vmatpush1.msra.mxu0 0.0
    %6611 = vmatprep.subr.mxu0 0.0
    %6612 = vmatpush1.msra.mxu0 0.0
    %6613 = vmatprep.subr.mxu0 0.0
    %6614 = vmatpush1.msra.mxu0 0.0
    %6615 = vmatprep.subr.mxu0 0.0
    %6616 = vmatpush1.msra.mxu0 0.0
    %6617 = vmatprep.subr.mxu0 0.0
    %6618 = vmatpush1.msra.mxu0 0.0
    %6619 = vmatprep.subr.mxu0 0.0
    %6620 = vmatpush1.msra.mxu0 0.0
    %6621 = vmatprep.subr.mxu0 0.0
    %6622 = vmatpush1.msra.mxu0 0.0
    %6623 = vmatprep.subr.mxu0 0.0
    %6624 = vmatpush1.msra.mxu0 0.0
    %6625 = vmatprep.subr.mxu0 0.0
    %6626 = vmatpush1.msra.mxu0 0.0
    %6627 = vmatprep.subr.mxu0 0.0
    %6628 = vmatpush1.msra.mxu0 0.0
    %6629 = vmatprep.subr.mxu0 0.0
    %6630 = vmatpush1.msra.mxu0 0.0
    %6631 = vmatprep.subr.mxu0 0.0
    %6632 = vmatpush1.msra.mxu0 0.0
    %6633 = vmatprep.subr.mxu0 0.0
    %6634 = vmatpush1.msra.mxu0 0.0
    %6635 = vmatprep.subr.mxu0 0.0
    %6636 = vmatpush1.msra.mxu0 0.0
    %6637 = vmatprep.subr.mxu0 0.0
    %6638 = vmatpush1.msra.mxu0 0.0
    %6639 = vmatprep.subr.mxu0 0.0
    %6640 = vmatpush1.msra.mxu0 0.0
    %6641 = vmatprep.mubr.f32.mxu0 0.0
    %6642 = vmatmul.mubr.f32.gmra.mrb[0].mxu0 %v5872
    %v6643 = vpop.f32.mrb[0].mxu0
    %v6644 = vadd.f32 0.0, %v6643
    %v6645 = vpop.f32.mrb[0].mxu0
    %v6646 = vadd.f32 0.0, %v6645
    %6647 = vdwg.mxu0
    %6648 = vmatprep.subr.mxu0 %v6516
    %6649 = vmatpush1.msra.mxu0 %v6515
    %6650 = vmatprep.subr.mxu0 %v6520
    %6651 = vmatpush1.msra.mxu0 %v6519
    %6652 = vmatprep.subr.mxu0 %v6524
    %6653 = vmatpush1.msra.mxu0 %v6523
    %6654 = vmatprep.subr.mxu0 %v6528
    %6655 = vmatpush1.msra.mxu0 %v6527
    %6656 = vmatprep.subr.mxu0 %v6532
    %6657 = vmatpush1.msra.mxu0 %v6531
    %6658 = vmatprep.subr.mxu0 %v6536
    %6659 = vmatpush1.msra.mxu0 %v6535
    %6660 = vmatprep.subr.mxu0 %v6540
    %6661 = vmatpush1.msra.mxu0 %v6539
    %6662 = vmatprep.subr.mxu0 %v6544
    %6663 = vmatpush1.msra.mxu0 %v6543
    %6664 = vmatprep.subr.mxu0 %v6548
    %6665 = vmatpush1.msra.mxu0 %v6547
    %6666 = vmatprep.subr.mxu0 %v6552
    %6667 = vmatpush1.msra.mxu0 %v6551
    %6668 = vmatprep.subr.mxu0 %v6556
    %6669 = vmatpush1.msra.mxu0 %v6555
    %6670 = vmatprep.subr.mxu0 %v6560
    %6671 = vmatpush1.msra.mxu0 %v6559
    %6672 = vmatprep.subr.mxu0 %v6564
    %6673 = vmatpush1.msra.mxu0 %v6563
    %6674 = vmatprep.subr.mxu0 %v6568
    %6675 = vmatpush1.msra.mxu0 %v6567
    %6676 = vmatprep.subr.mxu0 %v6572
    %6677 = vmatpush1.msra.mxu0 %v6571
    %6678 = vmatprep.subr.mxu0 %v6576
    %6679 = vmatpush1.msra.mxu0 %v6575
    %6680 = vmatprep.subr.mxu0 0.0
    %6681 = vmatpush1.msra.mxu0 0.0
    %6682 = vmatprep.subr.mxu0 0.0
    %6683 = vmatpush1.msra.mxu0 0.0
    %6684 = vmatprep.subr.mxu0 0.0
    %6685 = vmatpush1.msra.mxu0 0.0
    %6686 = vmatprep.subr.mxu0 0.0
    %6687 = vmatpush1.msra.mxu0 0.0
    %6688 = vmatprep.subr.mxu0 0.0
    %6689 = vmatpush1.msra.mxu0 0.0
    %6690 = vmatprep.subr.mxu0 0.0
    %6691 = vmatpush1.msra.mxu0 0.0
    %6692 = vmatprep.subr.mxu0 0.0
    %6693 = vmatpush1.msra.mxu0 0.0
    %6694 = vmatprep.subr.mxu0 0.0
    %6695 = vmatpush1.msra.mxu0 0.0
    %6696 = vmatprep.subr.mxu0 0.0
    %6697 = vmatpush1.msra.mxu0 0.0
    %6698 = vmatprep.subr.mxu0 0.0
    %6699 = vmatpush1.msra.mxu0 0.0
    %6700 = vmatprep.subr.mxu0 0.0
    %6701 = vmatpush1.msra.mxu0 0.0
    %6702 = vmatprep.subr.mxu0 0.0
    %6703 = vmatpush1.msra.mxu0 0.0
    %6704 = vmatprep.subr.mxu0 0.0
    %6705 = vmatpush1.msra.mxu0 0.0
    %6706 = vmatprep.subr.mxu0 0.0
    %6707 = vmatpush1.msra.mxu0 0.0
    %6708 = vmatprep.subr.mxu0 0.0
    %6709 = vmatpush1.msra.mxu0 0.0
    %6710 = vmatprep.subr.mxu0 0.0
    %6711 = vmatpush1.msra.mxu0 0.0
    %6712 = vmatprep.mubr.f32.mxu0 0.0
    %6713 = vmatmul.mubr.f32.gmra.mrb[0].mxu0 %v5872
    %v6714 = vpop.f32.mrb[0].mxu0
    %v6715 = vadd.f32 0.0, %v6714
    %v6716 = vpop.f32.mrb[0].mxu0
    %v6717 = vadd.f32 0.0, %v6716
    %6718 = vdwg.mxu0
    %v6727 = vcombine.low %v6441, %v6442
    %v6728 = vcombine.low %v6443, %v6444
    %v6729 = vcombine.low %v6445, %v6446
    %v6730 = vcombine.low %v6447, %v6448
    %v6732 = vunpack.c.l.s4 1966171168
    %v6733 = vunpack.c.0.s8 %v6732
    %v6734 = vlaneseq
    %v6735 = vshrl.u32 %v6734, 7
    %v6736 = vsub.s32 %v6733, %v6735
    %v6737 = vrot.slane %v6727, %v6736
    %v6739 = vunpack.c.l.s4 1966171168
    %v6740 = vunpack.c.0.s8 %v6739
    %v6741 = vlaneseq
    %v6742 = vshrl.u32 %v6741, 7
    %v6743 = vsub.s32 %v6740, %v6742
    %v6744 = vrot.slane %v6728, %v6743
    %v6746 = vunpack.c.l.s4 1966171168
    %v6747 = vunpack.c.0.s8 %v6746
    %v6748 = vlaneseq
    %v6749 = vshrl.u32 %v6748, 7
    %v6750 = vsub.s32 %v6747, %v6749
    %v6751 = vrot.slane %v6729, %v6750
    %v6753 = vunpack.c.l.s4 1966171168
    %v6754 = vunpack.c.0.s8 %v6753
    %v6755 = vlaneseq
    %v6756 = vshrl.u32 %v6755, 7
    %v6757 = vsub.s32 %v6754, %v6756
    %v6758 = vrot.slane %v6730, %v6757
    %v6759 = vcombine.low %v6737, %v6744
    %v6760 = vcombine.low %v6751, %v6758
    %v6762 = vunpack.c.l.s4 1966171168
    %v6763 = vunpack.c.0.s8 %v6762
    %v6764 = vlaneseq
    %v6765 = vshrl.u32 %v6764, 7
    %v6766 = vsub.s32 %v6763, %v6765
    %v6767 = vrot.slane %v6759, %v6766
    %v6769 = vunpack.c.l.s4 1966171168
    %v6770 = vunpack.c.0.s8 %v6769
    %v6771 = vlaneseq
    %v6772 = vshrl.u32 %v6771, 7
    %v6773 = vsub.s32 %v6770, %v6772
    %v6774 = vrot.slane %v6760, %v6773
    %v6775 = vcombine.low %v6767, %v6774
    %6777 = vmatprep.subr.mxu0 %v6450
    %6778 = vmatpush1.msra.mxu0 %v6449
    %6779 = vmatprep.subr.mxu0 %v6454
    %6780 = vmatpush1.msra.mxu0 %v6453
    %6781 = vmatprep.subr.mxu0 %v6458
    %6782 = vmatpush1.msra.mxu0 %v6457
    %6783 = vmatprep.subr.mxu0 %v6462
    %6784 = vmatpush1.msra.mxu0 %v6461
    %6785 = vmatprep.subr.mxu0 %v6466
    %6786 = vmatpush1.msra.mxu0 %v6465
    %6787 = vmatprep.subr.mxu0 %v6470
    %6788 = vmatpush1.msra.mxu0 %v6469
    %6789 = vmatprep.subr.mxu0 %v6474
    %6790 = vmatpush1.msra.mxu0 %v6473
    %6791 = vmatprep.subr.mxu0 %v6478
    %6792 = vmatpush1.msra.mxu0 %v6477
    %6793 = vmatprep.subr.mxu0 %v6482
    %6794 = vmatpush1.msra.mxu0 %v6481
    %6795 = vmatprep.subr.mxu0 %v6486
    %6796 = vmatpush1.msra.mxu0 %v6485
    %6797 = vmatprep.subr.mxu0 %v6490
    %6798 = vmatpush1.msra.mxu0 %v6489
    %6799 = vmatprep.subr.mxu0 %v6494
    %6800 = vmatpush1.msra.mxu0 %v6493
    %6801 = vmatprep.subr.mxu0 %v6498
    %6802 = vmatpush1.msra.mxu0 %v6497
    %6803 = vmatprep.subr.mxu0 %v6502
    %6804 = vmatpush1.msra.mxu0 %v6501
    %6805 = vmatprep.subr.mxu0 %v6506
    %6806 = vmatpush1.msra.mxu0 %v6505
    %6807 = vmatprep.subr.mxu0 %v6510
    %6808 = vmatpush1.msra.mxu0 %v6509
    %6809 = vmatprep.subr.mxu0 0.0
    %6810 = vmatpush1.msra.mxu0 0.0
    %6811 = vmatprep.subr.mxu0 0.0
    %6812 = vmatpush1.msra.mxu0 0.0
    %6813 = vmatprep.subr.mxu0 0.0
    %6814 = vmatpush1.msra.mxu0 0.0
    %6815 = vmatprep.subr.mxu0 0.0
    %6816 = vmatpush1.msra.mxu0 0.0
    %6817 = vmatprep.subr.mxu0 0.0
    %6818 = vmatpush1.msra.mxu0 0.0
    %6819 = vmatprep.subr.mxu0 0.0
    %6820 = vmatpush1.msra.mxu0 0.0
    %6821 = vmatprep.subr.mxu0 0.0
    %6822 = vmatpush1.msra.mxu0 0.0
    %6823 = vmatprep.subr.mxu0 0.0
    %6824 = vmatpush1.msra.mxu0 0.0
    %6825 = vmatprep.subr.mxu0 0.0
    %6826 = vmatpush1.msra.mxu0 0.0
    %6827 = vmatprep.subr.mxu0 0.0
    %6828 = vmatpush1.msra.mxu0 0.0
    %6829 = vmatprep.subr.mxu0 0.0
    %6830 = vmatpush1.msra.mxu0 0.0
    %6831 = vmatprep.subr.mxu0 0.0
    %6832 = vmatpush1.msra.mxu0 0.0
    %6833 = vmatprep.subr.mxu0 0.0
    %6834 = vmatpush1.msra.mxu0 0.0
    %6835 = vmatprep.subr.mxu0 0.0
    %6836 = vmatpush1.msra.mxu0 0.0
    %6837 = vmatprep.subr.mxu0 0.0
    %6838 = vmatpush1.msra.mxu0 0.0
    %6839 = vmatprep.subr.mxu0 0.0
    %6840 = vmatpush1.msra.mxu0 0.0
    %6841 = vmatprep.mubr.f32.mxu0 0.0
    %6842 = vmatmul.mubr.f32.gmra.mrb[0].mxu0 %v6775
    %v6843 = vpop.f32.mrb[0].mxu0
    %v6844 = vadd.f32 %v6644, %v6843
    %v6845 = vpop.f32.mrb[0].mxu0
    %v6846 = vadd.f32 %v6646, %v6845
    %6847 = vdwg.mxu0
    %6848 = vmatprep.subr.mxu0 %v6452
    %6849 = vmatpush1.msra.mxu0 %v6451
    %6850 = vmatprep.subr.mxu0 %v6456
    %6851 = vmatpush1.msra.mxu0 %v6455
    %6852 = vmatprep.subr.mxu0 %v6460
    %6853 = vmatpush1.msra.mxu0 %v6459
    %6854 = vmatprep.subr.mxu0 %v6464
    %6855 = vmatpush1.msra.mxu0 %v6463
    %6856 = vmatprep.subr.mxu0 %v6468
    %6857 = vmatpush1.msra.mxu0 %v6467
    %6858 = vmatprep.subr.mxu0 %v6472
    %6859 = vmatpush1.msra.mxu0 %v6471
    %6860 = vmatprep.subr.mxu0 %v6476
    %6861 = vmatpush1.msra.mxu0 %v6475
    %6862 = vmatprep.subr.mxu0 %v6480
    %6863 = vmatpush1.msra.mxu0 %v6479
    %6864 = vmatprep.subr.mxu0 %v6484
    %6865 = vmatpush1.msra.mxu0 %v6483
    %6866 = vmatprep.subr.mxu0 %v6488
    %6867 = vmatpush1.msra.mxu0 %v6487
    %6868 = vmatprep.subr.mxu0 %v6492
    %6869 = vmatpush1.msra.mxu0 %v6491
    %6870 = vmatprep.subr.mxu0 %v6496
    %6871 = vmatpush1.msra.mxu0 %v6495
    %6872 = vmatprep.subr.mxu0 %v6500
    %6873 = vmatpush1.msra.mxu0 %v6499
    %6874 = vmatprep.subr.mxu0 %v6504
    %6875 = vmatpush1.msra.mxu0 %v6503
    %6876 = vmatprep.subr.mxu0 %v6508
    %6877 = vmatpush1.msra.mxu0 %v6507
    %6878 = vmatprep.subr.mxu0 %v6512
    %6879 = vmatpush1.msra.mxu0 %v6511
    %6880 = vmatprep.subr.mxu0 0.0
    %6881 = vmatpush1.msra.mxu0 0.0
    %6882 = vmatprep.subr.mxu0 0.0
    %6883 = vmatpush1.msra.mxu0 0.0
    %6884 = vmatprep.subr.mxu0 0.0
    %6885 = vmatpush1.msra.mxu0 0.0
    %6886 = vmatprep.subr.mxu0 0.0
    %6887 = vmatpush1.msra.mxu0 0.0
    %6888 = vmatprep.subr.mxu0 0.0
    %6889 = vmatpush1.msra.mxu0 0.0
    %6890 = vmatprep.subr.mxu0 0.0
    %6891 = vmatpush1.msra.mxu0 0.0
    %6892 = vmatprep.subr.mxu0 0.0
    %6893 = vmatpush1.msra.mxu0 0.0
    %6894 = vmatprep.subr.mxu0 0.0
    %6895 = vmatpush1.msra.mxu0 0.0
    %6896 = vmatprep.subr.mxu0 0.0
    %6897 = vmatpush1.msra.mxu0 0.0
    %6898 = vmatprep.subr.mxu0 0.0
    %6899 = vmatpush1.msra.mxu0 0.0
    %6900 = vmatprep.subr.mxu0 0.0
    %6901 = vmatpush1.msra.mxu0 0.0
    %6902 = vmatprep.subr.mxu0 0.0
    %6903 = vmatpush1.msra.mxu0 0.0
    %6904 = vmatprep.subr.mxu0 0.0
    %6905 = vmatpush1.msra.mxu0 0.0
    %6906 = vmatprep.subr.mxu0 0.0
    %6907 = vmatpush1.msra.mxu0 0.0
    %6908 = vmatprep.subr.mxu0 0.0
    %6909 = vmatpush1.msra.mxu0 0.0
    %6910 = vmatprep.subr.mxu0 0.0
    %6911 = vmatpush1.msra.mxu0 0.0
    %6912 = vmatprep.mubr.f32.mxu0 0.0
    %6913 = vmatmul.mubr.f32.gmra.mrb[0].mxu0 %v6775
    %v6914 = vpop.f32.mrb[0].mxu0
    %v6915 = vadd.f32 %v6715, %v6914
    %v6916 = vpop.f32.mrb[0].mxu0
    %v6917 = vadd.f32 %v6717, %v6916
    %6918 = vdwg.mxu0
    %v6919 = vld [vmem:[%s6] sm:$0xf]
    %v6921 = vlaneseq
    %v6922 = vshrl.u32 %v6921, 7
    %v6923 = vsub.s32 0, %v6922
    %v6924 = vrot.slane %v6919, %v6923
    %v6925 = vlaneseq
    %v6926 = vshrl.u32 %v6925, 7
    %v6927 = vsub.s32 1, %v6926
    %v6928 = vrot.slane %v6919, %v6927
    %v6929 = vlaneseq
    %v6930 = vshrl.u32 %v6929, 7
    %v6931 = vsub.s32 2, %v6930
    %v6932 = vrot.slane %v6919, %v6931
    %v6933 = vlaneseq
    %v6934 = vshrl.u32 %v6933, 7
    %v6935 = vsub.s32 3, %v6934
    %v6936 = vrot.slane %v6919, %v6935
    %v6941 = vadd.f32 %v6844, %v6924
    %v6942 = vadd.f32 %v6846, %v6928
    %v6943 = vadd.f32 %v6915, %v6932
    %v6944 = vadd.f32 %v6917, %v6936
    %v6945 = vmul.f32 %v6941, 0.5
    %v6946 = vtanh.pop %v6945
    %v6947 = vmul.f32 %v6946, 0.5
    %v6948 = vadd.f32 %v6947, 0.5
    %v6949 = vmul.f32 %v6942, 0.5
    %v6950 = vtanh.pop %v6949
    %v6951 = vmul.f32 %v6950, 0.5
    %v6952 = vadd.f32 %v6951, 0.5
    %v6953 = vtanh.pop %v6943
    %v6954 = vmul.f32 %v6944, 0.5
    %v6955 = vtanh.pop %v6954
    %v6956 = vmul.f32 %v6955, 0.5
    %v6957 = vadd.f32 %v6956, 0.5
    %v6958 = vmul.f32 %v6952, %v5870
    %v6959 = vmul.f32 %v6948, %v6953
    %v6960 = vadd.f32 %v6958, %v6959
    %v6961 = vtanh.pop %v6960
    %v6962 = vmul.f32 %v6957, %v6961
    %v6964 = vcombine.high %v6962, %v6962
    %v6966 = vunpack.c.l.s4 1966171168
    %v6967 = vunpack.c.0.s8 %v6966
    %v6968 = vlaneseq
    %v6969 = vshrl.u32 %v6968, 7
    %v6970 = vsub.s32 %v6967, %v6969
    %v6971 = vrot.slane %v6962, %v6970
    %v6973 = vunpack.c.l.s4 1966171168
    %v6974 = vunpack.c.0.s8 %v6973
    %v6975 = vlaneseq
    %v6976 = vshrl.u32 %v6975, 7
    %v6977 = vsub.s32 %v6974, %v6976
    %v6978 = vrot.slane %v6964, %v6977
    %v6979 = vcombine.high %v6971, %v6971
    %v6980 = vcombine.high %v6978, %v6978
    %v6982 = vunpack.c.l.s4 1966171168
    %v6983 = vunpack.c.0.s8 %v6982
    %v6984 = vlaneseq
    %v6985 = vshrl.u32 %v6984, 7
    %v6986 = vsub.s32 %v6983, %v6985
    %v6987 = vrot.slane %v6971, %v6986
    %v6989 = vunpack.c.l.s4 1966171168
    %v6990 = vunpack.c.0.s8 %v6989
    %v6991 = vlaneseq
    %v6992 = vshrl.u32 %v6991, 7
    %v6993 = vsub.s32 %v6990, %v6992
    %v6994 = vrot.slane %v6978, %v6993
    %v6996 = vunpack.c.l.s4 1966171168
    %v6997 = vunpack.c.0.s8 %v6996
    %v6998 = vlaneseq
    %v6999 = vshrl.u32 %v6998, 7
    %v7000 = vsub.s32 %v6997, %v6999
    %v7001 = vrot.slane %v6979, %v7000
    %v7003 = vunpack.c.l.s4 1966171168
    %v7004 = vunpack.c.0.s8 %v7003
    %v7005 = vlaneseq
    %v7006 = vshrl.u32 %v7005, 7
    %v7007 = vsub.s32 %v7004, %v7006
    %v7008 = vrot.slane %v6980, %v7007
    %v7009 = vcombine.high %v6987, %v6987
    %v7010 = vcombine.high %v6994, %v6994
    %v7011 = vcombine.high %v7001, %v7001
    %v7012 = vcombine.high %v7008, %v7008
    %7021 = vst [vmem:[#allocation5 + $0x5] sm:$0x1] %v6987
    %7022 = vst [vmem:[#allocation5 + $0xd] sm:$0x1] %v7001
    %7023 = vst [vmem:[#allocation5 + $0x15] sm:$0x1] %v7009
    %7024 = vst [vmem:[#allocation5 + $0x1d] sm:$0x1] %v7011
    %7025 = vst [vmem:[#allocation5 + $0x25] sm:$0x1] %v6994
    %7026 = vst [vmem:[#allocation5 + $0x2d] sm:$0x1] %v7008
    %7027 = vst [vmem:[#allocation5 + $0x35] sm:$0x1] %v7010
    %7028 = vst [vmem:[#allocation5 + $0x3d] sm:$0x1] %v7012
    %s7029 = scalar_lea.vmem [#allocation4], 6
    %v7030 = vld [vmem:[%s7029] ss:$8 sm:$0xf]
    %s7031 = scalar_lea.vmem [#allocation4], 38
    %v7032 = vld [vmem:[%s7031] ss:$8 sm:$0xf]
    %s7033 = scalar_lea.vmem [#allocation4], 70
    %v7034 = vld [vmem:[%s7033] ss:$8 sm:$0xf]
    %s7035 = scalar_lea.vmem [#allocation4], 102
    %v7036 = vld [vmem:[%s7035] ss:$8 sm:$0xf]
    %s7037 = scalar_lea.vmem [#allocation4], 134
    %v7038 = vld [vmem:[%s7037] ss:$8 sm:$0xf]
    %s7039 = scalar_lea.vmem [#allocation4], 166
    %v7040 = vld [vmem:[%s7039] ss:$8 sm:$0xf]
    %s7041 = scalar_lea.vmem [#allocation4], 198
    %v7042 = vld [vmem:[%s7041] ss:$8 sm:$0xf]
    %s7043 = scalar_lea.vmem [#allocation4], 230
    %v7044 = vld [vmem:[%s7043] ss:$8 sm:$0xf]
    %v7045 = vld [vmem:[#allocation12] sm:$0xff]
    %v7046 = vld [vmem:[#allocation12 + $0x8] sm:$0xff]
    %v7047 = vld [vmem:[#allocation12 + $0x10] sm:$0xff]
    %v7048 = vld [vmem:[#allocation12 + $0x18] sm:$0xff]
    %v7049 = vld [vmem:[#allocation12 + $0x20] sm:$0xff]
    %v7050 = vld [vmem:[#allocation12 + $0x28] sm:$0xff]
    %v7051 = vld [vmem:[#allocation12 + $0x30] sm:$0xff]
    %v7052 = vld [vmem:[#allocation12 + $0x38] sm:$0xff]
    %v7053 = vld [vmem:[#allocation12 + $0x40] sm:$0xff]
    %v7054 = vld [vmem:[#allocation12 + $0x48] sm:$0xff]
    %v7055 = vld [vmem:[#allocation12 + $0x50] sm:$0xff]
    %v7056 = vld [vmem:[#allocation12 + $0x58] sm:$0xff]
    %v7057 = vld [vmem:[#allocation12 + $0x60] sm:$0xff]
    %v7058 = vld [vmem:[#allocation12 + $0x68] sm:$0xff]
    %v7059 = vld [vmem:[#allocation12 + $0x70] sm:$0xff]
    %v7060 = vld [vmem:[#allocation12 + $0x78] sm:$0xff]
    %v7061 = vld [vmem:[#allocation12 + $0x80] sm:$0xff]
    %v7062 = vld [vmem:[#allocation12 + $0x88] sm:$0xff]
    %v7063 = vld [vmem:[#allocation12 + $0x90] sm:$0xff]
    %v7064 = vld [vmem:[#allocation12 + $0x98] sm:$0xff]
    %v7065 = vld [vmem:[#allocation12 + $0xa0] sm:$0xff]
    %v7066 = vld [vmem:[#allocation12 + $0xa8] sm:$0xff]
    %v7067 = vld [vmem:[#allocation12 + $0xb0] sm:$0xff]
    %v7068 = vld [vmem:[#allocation12 + $0xb8] sm:$0xff]
    %v7069 = vld [vmem:[#allocation12 + $0xc0] sm:$0xff]
    %v7070 = vld [vmem:[#allocation12 + $0xc8] sm:$0xff]
    %v7071 = vld [vmem:[#allocation12 + $0xd0] sm:$0xff]
    %v7072 = vld [vmem:[#allocation12 + $0xd8] sm:$0xff]
    %v7073 = vld [vmem:[#allocation12 + $0xe0] sm:$0xff]
    %v7074 = vld [vmem:[#allocation12 + $0xe8] sm:$0xff]
    %v7075 = vld [vmem:[#allocation12 + $0xf0] sm:$0xff]
    %v7076 = vld [vmem:[#allocation12 + $0xf8] sm:$0xff]
    %v7077 = vld [vmem:[#allocation12 + $0x100] sm:$0xff]
    %v7078 = vld [vmem:[#allocation12 + $0x108] sm:$0xff]
    %v7079 = vld [vmem:[#allocation12 + $0x110] sm:$0xff]
    %v7080 = vld [vmem:[#allocation12 + $0x118] sm:$0xff]
    %v7081 = vld [vmem:[#allocation12 + $0x120] sm:$0xff]
    %v7082 = vld [vmem:[#allocation12 + $0x128] sm:$0xff]
    %v7083 = vld [vmem:[#allocation12 + $0x130] sm:$0xff]
    %v7084 = vld [vmem:[#allocation12 + $0x138] sm:$0xff]
    %v7085 = vld [vmem:[#allocation12 + $0x140] sm:$0xff]
    %v7086 = vld [vmem:[#allocation12 + $0x148] sm:$0xff]
    %v7087 = vld [vmem:[#allocation12 + $0x150] sm:$0xff]
    %v7088 = vld [vmem:[#allocation12 + $0x158] sm:$0xff]
    %v7089 = vld [vmem:[#allocation12 + $0x160] sm:$0xff]
    %v7090 = vld [vmem:[#allocation12 + $0x168] sm:$0xff]
    %v7091 = vld [vmem:[#allocation12 + $0x170] sm:$0xff]
    %v7092 = vld [vmem:[#allocation12 + $0x178] sm:$0xff]
    %v7093 = vld [vmem:[#allocation12 + $0x180] sm:$0xff]
    %v7094 = vld [vmem:[#allocation12 + $0x188] sm:$0xff]
    %v7095 = vld [vmem:[#allocation12 + $0x190] sm:$0xff]
    %v7096 = vld [vmem:[#allocation12 + $0x198] sm:$0xff]
    %v7097 = vld [vmem:[#allocation12 + $0x1a0] sm:$0xff]
    %v7098 = vld [vmem:[#allocation12 + $0x1a8] sm:$0xff]
    %v7099 = vld [vmem:[#allocation12 + $0x1b0] sm:$0xff]
    %v7100 = vld [vmem:[#allocation12 + $0x1b8] sm:$0xff]
    %v7101 = vld [vmem:[#allocation12 + $0x1c0] sm:$0xff]
    %v7102 = vld [vmem:[#allocation12 + $0x1c8] sm:$0xff]
    %v7103 = vld [vmem:[#allocation12 + $0x1d0] sm:$0xff]
    %v7104 = vld [vmem:[#allocation12 + $0x1d8] sm:$0xff]
    %v7105 = vld [vmem:[#allocation12 + $0x1e0] sm:$0xff]
    %v7106 = vld [vmem:[#allocation12 + $0x1e8] sm:$0xff]
    %v7107 = vld [vmem:[#allocation12 + $0x1f0] sm:$0xff]
    %v7108 = vld [vmem:[#allocation12 + $0x1f8] sm:$0xff]
    %7109 = vmatprep.subr.mxu0 %v7046
    %7110 = vmatpush1.msra.mxu0 %v7045
    %7111 = vmatprep.subr.mxu0 %v7050
    %7112 = vmatpush1.msra.mxu0 %v7049
    %7113 = vmatprep.subr.mxu0 %v7054
    %7114 = vmatpush1.msra.mxu0 %v7053
    %7115 = vmatprep.subr.mxu0 %v7058
    %7116 = vmatpush1.msra.mxu0 %v7057
    %7117 = vmatprep.subr.mxu0 %v7062
    %7118 = vmatpush1.msra.mxu0 %v7061
    %7119 = vmatprep.subr.mxu0 %v7066
    %7120 = vmatpush1.msra.mxu0 %v7065
    %7121 = vmatprep.subr.mxu0 %v7070
    %7122 = vmatpush1.msra.mxu0 %v7069
    %7123 = vmatprep.subr.mxu0 %v7074
    %7124 = vmatpush1.msra.mxu0 %v7073
    %7125 = vmatprep.subr.mxu0 %v7078
    %7126 = vmatpush1.msra.mxu0 %v7077
    %7127 = vmatprep.subr.mxu0 %v7082
    %7128 = vmatpush1.msra.mxu0 %v7081
    %7129 = vmatprep.subr.mxu0 %v7086
    %7130 = vmatpush1.msra.mxu0 %v7085
    %7131 = vmatprep.subr.mxu0 %v7090
    %7132 = vmatpush1.msra.mxu0 %v7089
    %7133 = vmatprep.subr.mxu0 %v7094
    %7134 = vmatpush1.msra.mxu0 %v7093
    %7135 = vmatprep.subr.mxu0 %v7098
    %7136 = vmatpush1.msra.mxu0 %v7097
    %7137 = vmatprep.subr.mxu0 %v7102
    %7138 = vmatpush1.msra.mxu0 %v7101
    %7139 = vmatprep.subr.mxu0 %v7106
    %7140 = vmatpush1.msra.mxu0 %v7105
    %7141 = vmatprep.subr.mxu0 0.0
    %7142 = vmatpush1.msra.mxu0 0.0
    %7143 = vmatprep.subr.mxu0 0.0
    %7144 = vmatpush1.msra.mxu0 0.0
    %7145 = vmatprep.subr.mxu0 0.0
    %7146 = vmatpush1.msra.mxu0 0.0
    %7147 = vmatprep.subr.mxu0 0.0
    %7148 = vmatpush1.msra.mxu0 0.0
    %7149 = vmatprep.subr.mxu0 0.0
    %7150 = vmatpush1.msra.mxu0 0.0
    %7151 = vmatprep.subr.mxu0 0.0
    %7152 = vmatpush1.msra.mxu0 0.0
    %7153 = vmatprep.subr.mxu0 0.0
    %7154 = vmatpush1.msra.mxu0 0.0
    %7155 = vmatprep.subr.mxu0 0.0
    %7156 = vmatpush1.msra.mxu0 0.0
    %7157 = vmatprep.subr.mxu0 0.0
    %7158 = vmatpush1.msra.mxu0 0.0
    %7159 = vmatprep.subr.mxu0 0.0
    %7160 = vmatpush1.msra.mxu0 0.0
    %7161 = vmatprep.subr.mxu0 0.0
    %7162 = vmatpush1.msra.mxu0 0.0
    %7163 = vmatprep.subr.mxu0 0.0
    %7164 = vmatpush1.msra.mxu0 0.0
    %7165 = vmatprep.subr.mxu0 0.0
    %7166 = vmatpush1.msra.mxu0 0.0
    %7167 = vmatprep.subr.mxu0 0.0
    %7168 = vmatpush1.msra.mxu0 0.0
    %7169 = vmatprep.subr.mxu0 0.0
    %7170 = vmatpush1.msra.mxu0 0.0
    %7171 = vmatprep.subr.mxu0 0.0
    %7172 = vmatpush1.msra.mxu0 0.0
    %7173 = vmatprep.mubr.f32.mxu0 0.0
    %7174 = vmatmul.mubr.f32.gmra.mrb[0].mxu0 %v6775
    %v7175 = vpop.f32.mrb[0].mxu0
    %v7176 = vadd.f32 0.0, %v7175
    %v7177 = vpop.f32.mrb[0].mxu0
    %v7178 = vadd.f32 0.0, %v7177
    %7179 = vdwg.mxu0
    %7180 = vmatprep.subr.mxu0 %v7048
    %7181 = vmatpush1.msra.mxu0 %v7047
    %7182 = vmatprep.subr.mxu0 %v7052
    %7183 = vmatpush1.msra.mxu0 %v7051
    %7184 = vmatprep.subr.mxu0 %v7056
    %7185 = vmatpush1.msra.mxu0 %v7055
    %7186 = vmatprep.subr.mxu0 %v7060
    %7187 = vmatpush1.msra.mxu0 %v7059
    %7188 = vmatprep.subr.mxu0 %v7064
    %7189 = vmatpush1.msra.mxu0 %v7063
    %7190 = vmatprep.subr.mxu0 %v7068
    %7191 = vmatpush1.msra.mxu0 %v7067
    %7192 = vmatprep.subr.mxu0 %v7072
    %7193 = vmatpush1.msra.mxu0 %v7071
    %7194 = vmatprep.subr.mxu0 %v7076
    %7195 = vmatpush1.msra.mxu0 %v7075
    %7196 = vmatprep.subr.mxu0 %v7080
    %7197 = vmatpush1.msra.mxu0 %v7079
    %7198 = vmatprep.subr.mxu0 %v7084
    %7199 = vmatpush1.msra.mxu0 %v7083
    %7200 = vmatprep.subr.mxu0 %v7088
    %7201 = vmatpush1.msra.mxu0 %v7087
    %7202 = vmatprep.subr.mxu0 %v7092
    %7203 = vmatpush1.msra.mxu0 %v7091
    %7204 = vmatprep.subr.mxu0 %v7096
    %7205 = vmatpush1.msra.mxu0 %v7095
    %7206 = vmatprep.subr.mxu0 %v7100
    %7207 = vmatpush1.msra.mxu0 %v7099
    %7208 = vmatprep.subr.mxu0 %v7104
    %7209 = vmatpush1.msra.mxu0 %v7103
    %7210 = vmatprep.subr.mxu0 %v7108
    %7211 = vmatpush1.msra.mxu0 %v7107
    %7212 = vmatprep.subr.mxu0 0.0
    %7213 = vmatpush1.msra.mxu0 0.0
    %7214 = vmatprep.subr.mxu0 0.0
    %7215 = vmatpush1.msra.mxu0 0.0
    %7216 = vmatprep.subr.mxu0 0.0
    %7217 = vmatpush1.msra.mxu0 0.0
    %7218 = vmatprep.subr.mxu0 0.0
    %7219 = vmatpush1.msra.mxu0 0.0
    %7220 = vmatprep.subr.mxu0 0.0
    %7221 = vmatpush1.msra.mxu0 0.0
    %7222 = vmatprep.subr.mxu0 0.0
    %7223 = vmatpush1.msra.mxu0 0.0
    %7224 = vmatprep.subr.mxu0 0.0
    %7225 = vmatpush1.msra.mxu0 0.0
    %7226 = vmatprep.subr.mxu0 0.0
    %7227 = vmatpush1.msra.mxu0 0.0
    %7228 = vmatprep.subr.mxu0 0.0
    %7229 = vmatpush1.msra.mxu0 0.0
    %7230 = vmatprep.subr.mxu0 0.0
    %7231 = vmatpush1.msra.mxu0 0.0
    %7232 = vmatprep.subr.mxu0 0.0
    %7233 = vmatpush1.msra.mxu0 0.0
    %7234 = vmatprep.subr.mxu0 0.0
    %7235 = vmatpush1.msra.mxu0 0.0
    %7236 = vmatprep.subr.mxu0 0.0
    %7237 = vmatpush1.msra.mxu0 0.0
    %7238 = vmatprep.subr.mxu0 0.0
    %7239 = vmatpush1.msra.mxu0 0.0
    %7240 = vmatprep.subr.mxu0 0.0
    %7241 = vmatpush1.msra.mxu0 0.0
    %7242 = vmatprep.subr.mxu0 0.0
    %7243 = vmatpush1.msra.mxu0 0.0
    %7244 = vmatprep.mubr.f32.mxu0 0.0
    %7245 = vmatmul.mubr.f32.gmra.mrb[0].mxu0 %v6775
    %v7246 = vpop.f32.mrb[0].mxu0
    %v7247 = vadd.f32 0.0, %v7246
    %v7248 = vpop.f32.mrb[0].mxu0
    %v7249 = vadd.f32 0.0, %v7248
    %7250 = vdwg.mxu0
    %v7255 = vcombine.low %v7176, %v7178
    %v7256 = vcombine.high %v7176, %v7178
    %v7257 = vcombine.low %v7247, %v7249
    %v7258 = vcombine.high %v7247, %v7249
    %v7260 = vunpack.c.l.s4 1966171168
    %v7261 = vunpack.c.0.s8 %v7260
    %v7262 = vlaneseq
    %v7263 = vshrl.u32 %v7262, 7
    %v7264 = vsub.s32 %v7261, %v7263
    %v7265 = vrot.slane %v7255, %v7264
    %v7267 = vunpack.c.l.s4 1966171168
    %v7268 = vunpack.c.0.s8 %v7267
    %v7269 = vlaneseq
    %v7270 = vshrl.u32 %v7269, 7
    %v7271 = vsub.s32 %v7268, %v7270
    %v7272 = vrot.slane %v7256, %v7271
    %v7274 = vunpack.c.l.s4 1966171168
    %v7275 = vunpack.c.0.s8 %v7274
    %v7276 = vlaneseq
    %v7277 = vshrl.u32 %v7276, 7
    %v7278 = vsub.s32 %v7275, %v7277
    %v7279 = vrot.slane %v7257, %v7278
    %v7281 = vunpack.c.l.s4 1966171168
    %v7282 = vunpack.c.0.s8 %v7281
    %v7283 = vlaneseq
    %v7284 = vshrl.u32 %v7283, 7
    %v7285 = vsub.s32 %v7282, %v7284
    %v7286 = vrot.slane %v7258, %v7285
    %v7287 = vcombine.low %v7265, %v7279
    %v7288 = vcombine.high %v7265, %v7279
    %v7289 = vcombine.low %v7272, %v7286
    %v7290 = vcombine.high %v7272, %v7286
    %v7292 = vunpack.c.l.s4 1966171168
    %v7293 = vunpack.c.0.s8 %v7292
    %v7294 = vlaneseq
    %v7295 = vshrl.u32 %v7294, 7
    %v7296 = vsub.s32 %v7293, %v7295
    %v7297 = vrot.slane %v7287, %v7296
    %v7299 = vunpack.c.l.s4 1966171168
    %v7300 = vunpack.c.0.s8 %v7299
    %v7301 = vlaneseq
    %v7302 = vshrl.u32 %v7301, 7
    %v7303 = vsub.s32 %v7300, %v7302
    %v7304 = vrot.slane %v7289, %v7303
    %v7306 = vunpack.c.l.s4 1966171168
    %v7307 = vunpack.c.0.s8 %v7306
    %v7308 = vlaneseq
    %v7309 = vshrl.u32 %v7308, 7
    %v7310 = vsub.s32 %v7307, %v7309
    %v7311 = vrot.slane %v7288, %v7310
    %v7313 = vunpack.c.l.s4 1966171168
    %v7314 = vunpack.c.0.s8 %v7313
    %v7315 = vlaneseq
    %v7316 = vshrl.u32 %v7315, 7
    %v7317 = vsub.s32 %v7314, %v7316
    %v7318 = vrot.slane %v7290, %v7317
    %v7319 = vcombine.high %v7297, %v7297
    %v7320 = vcombine.high %v7304, %v7304
    %v7321 = vcombine.high %v7311, %v7311
    %v7322 = vcombine.high %v7318, %v7318
    %v7331 = vadd.f32 %v7030, %v7297
    %v7332 = vadd.f32 %v7032, %v7311
    %v7333 = vadd.f32 %v7034, %v7319
    %v7334 = vadd.f32 %v7036, %v7321
    %v7335 = vadd.f32 %v7038, %v7304
    %v7336 = vadd.f32 %v7040, %v7318
    %v7337 = vadd.f32 %v7042, %v7320
    %v7338 = vadd.f32 %v7044, %v7322
    %v7339 = vmul.f32 %v7331, 0.5
    %v7340 = vmul.f32 %v7332, 0.5
    %v7341 = vmul.f32 %v7333, 0.5
    %v7342 = vmul.f32 %v7334, 0.5
    %v7343 = vmul.f32 %v7335, 0.5
    %v7344 = vmul.f32 %v7336, 0.5
    %v7345 = vmul.f32 %v7337, 0.5
    %v7346 = vmul.f32 %v7338, 0.5
    %v7347 = vtanh.pop %v7339
    %v7348 = vtanh.pop %v7340
    %v7349 = vtanh.pop %v7341
    %v7350 = vtanh.pop %v7342
    %v7351 = vtanh.pop %v7343
    %v7352 = vtanh.pop %v7344
    %v7353 = vtanh.pop %v7345
    %v7354 = vtanh.pop %v7346
    %v7355 = vmul.f32 %v7347, 0.5
    %v7356 = vmul.f32 %v7348, 0.5
    %v7357 = vmul.f32 %v7349, 0.5
    %v7358 = vmul.f32 %v7350, 0.5
    %v7359 = vmul.f32 %v7351, 0.5
    %v7360 = vmul.f32 %v7352, 0.5
    %v7361 = vmul.f32 %v7353, 0.5
    %v7362 = vmul.f32 %v7354, 0.5
    %v7363 = vadd.f32 %v7355, 0.5
    %v7364 = vadd.f32 %v7356, 0.5
    %v7365 = vadd.f32 %v7357, 0.5
    %v7366 = vadd.f32 %v7358, 0.5
    %v7367 = vadd.f32 %v7359, 0.5
    %v7368 = vadd.f32 %v7360, 0.5
    %v7369 = vadd.f32 %v7361, 0.5
    %v7370 = vadd.f32 %v7362, 0.5
    %v7379 = vrot.slane %v7331, 1
    %v7380 = vrot.slane %v7332, 1
    %v7381 = vrot.slane %v7333, 1
    %v7382 = vrot.slane %v7334, 1
    %v7383 = vrot.slane %v7335, 1
    %v7384 = vrot.slane %v7336, 1
    %v7385 = vrot.slane %v7337, 1
    %v7386 = vrot.slane %v7338, 1
    %v7395 = vmul.f32 %v7379, 0.5
    %v7396 = vmul.f32 %v7380, 0.5
    %v7397 = vmul.f32 %v7381, 0.5
    %v7398 = vmul.f32 %v7382, 0.5
    %v7399 = vmul.f32 %v7383, 0.5
    %v7400 = vmul.f32 %v7384, 0.5
    %v7401 = vmul.f32 %v7385, 0.5
    %v7402 = vmul.f32 %v7386, 0.5
    %v7403 = vtanh.pop %v7395
    %v7404 = vtanh.pop %v7396
    %v7405 = vtanh.pop %v7397
    %v7406 = vtanh.pop %v7398
    %v7407 = vtanh.pop %v7399
    %v7408 = vtanh.pop %v7400
    %v7409 = vtanh.pop %v7401
    %v7410 = vtanh.pop %v7402
    %v7411 = vmul.f32 %v7403, 0.5
    %v7412 = vmul.f32 %v7404, 0.5
    %v7413 = vmul.f32 %v7405, 0.5
    %v7414 = vmul.f32 %v7406, 0.5
    %v7415 = vmul.f32 %v7407, 0.5
    %v7416 = vmul.f32 %v7408, 0.5
    %v7417 = vmul.f32 %v7409, 0.5
    %v7418 = vmul.f32 %v7410, 0.5
    %v7419 = vadd.f32 %v7411, 0.5
    %v7420 = vadd.f32 %v7412, 0.5
    %v7421 = vadd.f32 %v7413, 0.5
    %v7422 = vadd.f32 %v7414, 0.5
    %v7423 = vadd.f32 %v7415, 0.5
    %v7424 = vadd.f32 %v7416, 0.5
    %v7425 = vadd.f32 %v7417, 0.5
    %v7426 = vadd.f32 %v7418, 0.5
    %v7427 = vrot.slane %v7331, 2
    %v7428 = vrot.slane %v7332, 2
    %v7429 = vrot.slane %v7333, 2
    %v7430 = vrot.slane %v7334, 2
    %v7431 = vrot.slane %v7335, 2
    %v7432 = vrot.slane %v7336, 2
    %v7433 = vrot.slane %v7337, 2
    %v7434 = vrot.slane %v7338, 2
    %v7443 = vtanh.pop %v7427
    %v7444 = vtanh.pop %v7428
    %v7445 = vtanh.pop %v7429
    %v7446 = vtanh.pop %v7430
    %v7447 = vtanh.pop %v7431
    %v7448 = vtanh.pop %v7432
    %v7449 = vtanh.pop %v7433
    %v7450 = vtanh.pop %v7434
    %v7451 = vrot.slane %v7331, 3
    %v7452 = vrot.slane %v7332, 3
    %v7453 = vrot.slane %v7333, 3
    %v7454 = vrot.slane %v7334, 3
    %v7455 = vrot.slane %v7335, 3
    %v7456 = vrot.slane %v7336, 3
    %v7457 = vrot.slane %v7337, 3
    %v7458 = vrot.slane %v7338, 3
    %v7467 = vmul.f32 %v7451, 0.5
    %v7468 = vmul.f32 %v7452, 0.5
    %v7469 = vmul.f32 %v7453, 0.5
    %v7470 = vmul.f32 %v7454, 0.5
    %v7471 = vmul.f32 %v7455, 0.5
    %v7472 = vmul.f32 %v7456, 0.5
    %v7473 = vmul.f32 %v7457, 0.5
    %v7474 = vmul.f32 %v7458, 0.5
    %v7475 = vtanh.pop %v7467
    %v7476 = vtanh.pop %v7468
    %v7477 = vtanh.pop %v7469
    %v7478 = vtanh.pop %v7470
    %v7479 = vtanh.pop %v7471
    %v7480 = vtanh.pop %v7472
    %v7481 = vtanh.pop %v7473
    %v7482 = vtanh.pop %v7474
    %v7483 = vmul.f32 %v7475, 0.5
    %v7484 = vmul.f32 %v7476, 0.5
    %v7485 = vmul.f32 %v7477, 0.5
    %v7486 = vmul.f32 %v7478, 0.5
    %v7487 = vmul.f32 %v7479, 0.5
    %v7488 = vmul.f32 %v7480, 0.5
    %v7489 = vmul.f32 %v7481, 0.5
    %v7490 = vmul.f32 %v7482, 0.5
    %v7491 = vadd.f32 %v7483, 0.5
    %v7492 = vadd.f32 %v7484, 0.5
    %v7493 = vadd.f32 %v7485, 0.5
    %v7494 = vadd.f32 %v7486, 0.5
    %v7495 = vadd.f32 %v7487, 0.5
    %v7496 = vadd.f32 %v7488, 0.5
    %v7497 = vadd.f32 %v7489, 0.5
    %v7498 = vadd.f32 %v7490, 0.5
    %v7499 = vmul.f32 %v7419, %v6425
    %v7500 = vmul.f32 %v7420, %v6426
    %v7501 = vmul.f32 %v7421, %v6427
    %v7502 = vmul.f32 %v7422, %v6428
    %v7503 = vmul.f32 %v7423, %v6429
    %v7504 = vmul.f32 %v7424, %v6430
    %v7505 = vmul.f32 %v7425, %v6431
    %v7506 = vmul.f32 %v7426, %v6432
    %v7507 = vmul.f32 %v7363, %v7443
    %v7508 = vmul.f32 %v7364, %v7444
    %v7509 = vmul.f32 %v7365, %v7445
    %v7510 = vmul.f32 %v7366, %v7446
    %v7511 = vmul.f32 %v7367, %v7447
    %v7512 = vmul.f32 %v7368, %v7448
    %v7513 = vmul.f32 %v7369, %v7449
    %v7514 = vmul.f32 %v7370, %v7450
    %v7515 = vadd.f32 %v7499, %v7507
    %v7516 = vadd.f32 %v7500, %v7508
    %v7517 = vadd.f32 %v7501, %v7509
    %v7518 = vadd.f32 %v7502, %v7510
    %v7519 = vadd.f32 %v7503, %v7511
    %v7520 = vadd.f32 %v7504, %v7512
    %v7521 = vadd.f32 %v7505, %v7513
    %v7522 = vadd.f32 %v7506, %v7514
    %v7523 = vtanh.pop %v7515
    %v7524 = vtanh.pop %v7516
    %v7525 = vtanh.pop %v7517
    %v7526 = vtanh.pop %v7518
    %v7527 = vtanh.pop %v7519
    %v7528 = vtanh.pop %v7520
    %v7529 = vtanh.pop %v7521
    %v7530 = vtanh.pop %v7522
    %v7531 = vmul.f32 %v7491, %v7523
    %v7532 = vmul.f32 %v7492, %v7524
    %v7533 = vmul.f32 %v7493, %v7525
    %v7534 = vmul.f32 %v7494, %v7526
    %v7535 = vmul.f32 %v7495, %v7527
    %v7536 = vmul.f32 %v7496, %v7528
    %v7537 = vmul.f32 %v7497, %v7529
    %v7538 = vmul.f32 %v7498, %v7530
    %v7539 = vld [vmem:[#allocation13] sm:$0xff]
    %v7540 = vld [vmem:[#allocation13 + $0x8] sm:$0xff]
    %v7541 = vld [vmem:[#allocation13 + $0x10] sm:$0xff]
    %v7542 = vld [vmem:[#allocation13 + $0x18] sm:$0xff]
    %v7543 = vld [vmem:[#allocation13 + $0x20] sm:$0xff]
    %v7544 = vld [vmem:[#allocation13 + $0x28] sm:$0xff]
    %v7545 = vld [vmem:[#allocation13 + $0x30] sm:$0xff]
    %v7546 = vld [vmem:[#allocation13 + $0x38] sm:$0xff]
    %v7547 = vld [vmem:[#allocation13 + $0x40] sm:$0xff]
    %v7548 = vld [vmem:[#allocation13 + $0x48] sm:$0xff]
    %v7549 = vld [vmem:[#allocation13 + $0x50] sm:$0xff]
    %v7550 = vld [vmem:[#allocation13 + $0x58] sm:$0xff]
    %v7551 = vld [vmem:[#allocation13 + $0x60] sm:$0xff]
    %v7552 = vld [vmem:[#allocation13 + $0x68] sm:$0xff]
    %v7553 = vld [vmem:[#allocation13 + $0x70] sm:$0xff]
    %v7554 = vld [vmem:[#allocation13 + $0x78] sm:$0xff]
    %v7555 = vld [vmem:[#allocation13 + $0x80] sm:$0xff]
    %v7556 = vld [vmem:[#allocation13 + $0x88] sm:$0xff]
    %v7557 = vld [vmem:[#allocation13 + $0x90] sm:$0xff]
    %v7558 = vld [vmem:[#allocation13 + $0x98] sm:$0xff]
    %v7559 = vld [vmem:[#allocation13 + $0xa0] sm:$0xff]
    %v7560 = vld [vmem:[#allocation13 + $0xa8] sm:$0xff]
    %v7561 = vld [vmem:[#allocation13 + $0xb0] sm:$0xff]
    %v7562 = vld [vmem:[#allocation13 + $0xb8] sm:$0xff]
    %v7563 = vld [vmem:[#allocation13 + $0xc0] sm:$0xff]
    %v7564 = vld [vmem:[#allocation13 + $0xc8] sm:$0xff]
    %v7565 = vld [vmem:[#allocation13 + $0xd0] sm:$0xff]
    %v7566 = vld [vmem:[#allocation13 + $0xd8] sm:$0xff]
    %v7567 = vld [vmem:[#allocation13 + $0xe0] sm:$0xff]
    %v7568 = vld [vmem:[#allocation13 + $0xe8] sm:$0xff]
    %v7569 = vld [vmem:[#allocation13 + $0xf0] sm:$0xff]
    %v7570 = vld [vmem:[#allocation13 + $0xf8] sm:$0xff]
    %v7571 = vld [vmem:[#allocation13 + $0x100] sm:$0xff]
    %v7572 = vld [vmem:[#allocation13 + $0x108] sm:$0xff]
    %v7573 = vld [vmem:[#allocation13 + $0x110] sm:$0xff]
    %v7574 = vld [vmem:[#allocation13 + $0x118] sm:$0xff]
    %v7575 = vld [vmem:[#allocation13 + $0x120] sm:$0xff]
    %v7576 = vld [vmem:[#allocation13 + $0x128] sm:$0xff]
    %v7577 = vld [vmem:[#allocation13 + $0x130] sm:$0xff]
    %v7578 = vld [vmem:[#allocation13 + $0x138] sm:$0xff]
    %v7579 = vld [vmem:[#allocation13 + $0x140] sm:$0xff]
    %v7580 = vld [vmem:[#allocation13 + $0x148] sm:$0xff]
    %v7581 = vld [vmem:[#allocation13 + $0x150] sm:$0xff]
    %v7582 = vld [vmem:[#allocation13 + $0x158] sm:$0xff]
    %v7583 = vld [vmem:[#allocation13 + $0x160] sm:$0xff]
    %v7584 = vld [vmem:[#allocation13 + $0x168] sm:$0xff]
    %v7585 = vld [vmem:[#allocation13 + $0x170] sm:$0xff]
    %v7586 = vld [vmem:[#allocation13 + $0x178] sm:$0xff]
    %v7587 = vld [vmem:[#allocation13 + $0x180] sm:$0xff]
    %v7588 = vld [vmem:[#allocation13 + $0x188] sm:$0xff]
    %v7589 = vld [vmem:[#allocation13 + $0x190] sm:$0xff]
    %v7590 = vld [vmem:[#allocation13 + $0x198] sm:$0xff]
    %v7591 = vld [vmem:[#allocation13 + $0x1a0] sm:$0xff]
    %v7592 = vld [vmem:[#allocation13 + $0x1a8] sm:$0xff]
    %v7593 = vld [vmem:[#allocation13 + $0x1b0] sm:$0xff]
    %v7594 = vld [vmem:[#allocation13 + $0x1b8] sm:$0xff]
    %v7595 = vld [vmem:[#allocation13 + $0x1c0] sm:$0xff]
    %v7596 = vld [vmem:[#allocation13 + $0x1c8] sm:$0xff]
    %v7597 = vld [vmem:[#allocation13 + $0x1d0] sm:$0xff]
    %v7598 = vld [vmem:[#allocation13 + $0x1d8] sm:$0xff]
    %v7599 = vld [vmem:[#allocation13 + $0x1e0] sm:$0xff]
    %v7600 = vld [vmem:[#allocation13 + $0x1e8] sm:$0xff]
    %v7601 = vld [vmem:[#allocation13 + $0x1f0] sm:$0xff]
    %v7602 = vld [vmem:[#allocation13 + $0x1f8] sm:$0xff]
    %v7603 = vld [vmem:[#allocation15] sm:$0xff]
    %v7604 = vld [vmem:[#allocation15 + $0x8] sm:$0xff]
    %v7605 = vld [vmem:[#allocation15 + $0x10] sm:$0xff]
    %v7606 = vld [vmem:[#allocation15 + $0x18] sm:$0xff]
    %v7607 = vld [vmem:[#allocation15 + $0x20] sm:$0xff]
    %v7608 = vld [vmem:[#allocation15 + $0x28] sm:$0xff]
    %v7609 = vld [vmem:[#allocation15 + $0x30] sm:$0xff]
    %v7610 = vld [vmem:[#allocation15 + $0x38] sm:$0xff]
    %v7611 = vld [vmem:[#allocation15 + $0x40] sm:$0xff]
    %v7612 = vld [vmem:[#allocation15 + $0x48] sm:$0xff]
    %v7613 = vld [vmem:[#allocation15 + $0x50] sm:$0xff]
    %v7614 = vld [vmem:[#allocation15 + $0x58] sm:$0xff]
    %v7615 = vld [vmem:[#allocation15 + $0x60] sm:$0xff]
    %v7616 = vld [vmem:[#allocation15 + $0x68] sm:$0xff]
    %v7617 = vld [vmem:[#allocation15 + $0x70] sm:$0xff]
    %v7618 = vld [vmem:[#allocation15 + $0x78] sm:$0xff]
    %v7619 = vld [vmem:[#allocation15 + $0x80] sm:$0xff]
    %v7620 = vld [vmem:[#allocation15 + $0x88] sm:$0xff]
    %v7621 = vld [vmem:[#allocation15 + $0x90] sm:$0xff]
    %v7622 = vld [vmem:[#allocation15 + $0x98] sm:$0xff]
    %v7623 = vld [vmem:[#allocation15 + $0xa0] sm:$0xff]
    %v7624 = vld [vmem:[#allocation15 + $0xa8] sm:$0xff]
    %v7625 = vld [vmem:[#allocation15 + $0xb0] sm:$0xff]
    %v7626 = vld [vmem:[#allocation15 + $0xb8] sm:$0xff]
    %v7627 = vld [vmem:[#allocation15 + $0xc0] sm:$0xff]
    %v7628 = vld [vmem:[#allocation15 + $0xc8] sm:$0xff]
    %v7629 = vld [vmem:[#allocation15 + $0xd0] sm:$0xff]
    %v7630 = vld [vmem:[#allocation15 + $0xd8] sm:$0xff]
    %v7631 = vld [vmem:[#allocation15 + $0xe0] sm:$0xff]
    %v7632 = vld [vmem:[#allocation15 + $0xe8] sm:$0xff]
    %v7633 = vld [vmem:[#allocation15 + $0xf0] sm:$0xff]
    %v7634 = vld [vmem:[#allocation15 + $0xf8] sm:$0xff]
    %v7635 = vld [vmem:[#allocation15 + $0x100] sm:$0xff]
    %v7636 = vld [vmem:[#allocation15 + $0x108] sm:$0xff]
    %v7637 = vld [vmem:[#allocation15 + $0x110] sm:$0xff]
    %v7638 = vld [vmem:[#allocation15 + $0x118] sm:$0xff]
    %v7639 = vld [vmem:[#allocation15 + $0x120] sm:$0xff]
    %v7640 = vld [vmem:[#allocation15 + $0x128] sm:$0xff]
    %v7641 = vld [vmem:[#allocation15 + $0x130] sm:$0xff]
    %v7642 = vld [vmem:[#allocation15 + $0x138] sm:$0xff]
    %v7643 = vld [vmem:[#allocation15 + $0x140] sm:$0xff]
    %v7644 = vld [vmem:[#allocation15 + $0x148] sm:$0xff]
    %v7645 = vld [vmem:[#allocation15 + $0x150] sm:$0xff]
    %v7646 = vld [vmem:[#allocation15 + $0x158] sm:$0xff]
    %v7647 = vld [vmem:[#allocation15 + $0x160] sm:$0xff]
    %v7648 = vld [vmem:[#allocation15 + $0x168] sm:$0xff]
    %v7649 = vld [vmem:[#allocation15 + $0x170] sm:$0xff]
    %v7650 = vld [vmem:[#allocation15 + $0x178] sm:$0xff]
    %v7651 = vld [vmem:[#allocation15 + $0x180] sm:$0xff]
    %v7652 = vld [vmem:[#allocation15 + $0x188] sm:$0xff]
    %v7653 = vld [vmem:[#allocation15 + $0x190] sm:$0xff]
    %v7654 = vld [vmem:[#allocation15 + $0x198] sm:$0xff]
    %v7655 = vld [vmem:[#allocation15 + $0x1a0] sm:$0xff]
    %v7656 = vld [vmem:[#allocation15 + $0x1a8] sm:$0xff]
    %v7657 = vld [vmem:[#allocation15 + $0x1b0] sm:$0xff]
    %v7658 = vld [vmem:[#allocation15 + $0x1b8] sm:$0xff]
    %v7659 = vld [vmem:[#allocation15 + $0x1c0] sm:$0xff]
    %v7660 = vld [vmem:[#allocation15 + $0x1c8] sm:$0xff]
    %v7661 = vld [vmem:[#allocation15 + $0x1d0] sm:$0xff]
    %v7662 = vld [vmem:[#allocation15 + $0x1d8] sm:$0xff]
    %v7663 = vld [vmem:[#allocation15 + $0x1e0] sm:$0xff]
    %v7664 = vld [vmem:[#allocation15 + $0x1e8] sm:$0xff]
    %v7665 = vld [vmem:[#allocation15 + $0x1f0] sm:$0xff]
    %v7666 = vld [vmem:[#allocation15 + $0x1f8] sm:$0xff]
    %7667 = vmatprep.subr.mxu0 %v7604
    %7668 = vmatpush1.msra.mxu0 %v7603
    %7669 = vmatprep.subr.mxu0 %v7608
    %7670 = vmatpush1.msra.mxu0 %v7607
    %7671 = vmatprep.subr.mxu0 %v7612
    %7672 = vmatpush1.msra.mxu0 %v7611
    %7673 = vmatprep.subr.mxu0 %v7616
    %7674 = vmatpush1.msra.mxu0 %v7615
    %7675 = vmatprep.subr.mxu0 %v7620
    %7676 = vmatpush1.msra.mxu0 %v7619
    %7677 = vmatprep.subr.mxu0 %v7624
    %7678 = vmatpush1.msra.mxu0 %v7623
    %7679 = vmatprep.subr.mxu0 %v7628
    %7680 = vmatpush1.msra.mxu0 %v7627
    %7681 = vmatprep.subr.mxu0 %v7632
    %7682 = vmatpush1.msra.mxu0 %v7631
    %7683 = vmatprep.subr.mxu0 %v7636
    %7684 = vmatpush1.msra.mxu0 %v7635
    %7685 = vmatprep.subr.mxu0 %v7640
    %7686 = vmatpush1.msra.mxu0 %v7639
    %7687 = vmatprep.subr.mxu0 %v7644
    %7688 = vmatpush1.msra.mxu0 %v7643
    %7689 = vmatprep.subr.mxu0 %v7648
    %7690 = vmatpush1.msra.mxu0 %v7647
    %7691 = vmatprep.subr.mxu0 %v7652
    %7692 = vmatpush1.msra.mxu0 %v7651
    %7693 = vmatprep.subr.mxu0 %v7656
    %7694 = vmatpush1.msra.mxu0 %v7655
    %7695 = vmatprep.subr.mxu0 %v7660
    %7696 = vmatpush1.msra.mxu0 %v7659
    %7697 = vmatprep.subr.mxu0 %v7664
    %7698 = vmatpush1.msra.mxu0 %v7663
    %7699 = vmatprep.subr.mxu0 0.0
    %7700 = vmatpush1.msra.mxu0 0.0
    %7701 = vmatprep.subr.mxu0 0.0
    %7702 = vmatpush1.msra.mxu0 0.0
    %7703 = vmatprep.subr.mxu0 0.0
    %7704 = vmatpush1.msra.mxu0 0.0
    %7705 = vmatprep.subr.mxu0 0.0
    %7706 = vmatpush1.msra.mxu0 0.0
    %7707 = vmatprep.subr.mxu0 0.0
    %7708 = vmatpush1.msra.mxu0 0.0
    %7709 = vmatprep.subr.mxu0 0.0
    %7710 = vmatpush1.msra.mxu0 0.0
    %7711 = vmatprep.subr.mxu0 0.0
    %7712 = vmatpush1.msra.mxu0 0.0
    %7713 = vmatprep.subr.mxu0 0.0
    %7714 = vmatpush1.msra.mxu0 0.0
    %7715 = vmatprep.subr.mxu0 0.0
    %7716 = vmatpush1.msra.mxu0 0.0
    %7717 = vmatprep.subr.mxu0 0.0
    %7718 = vmatpush1.msra.mxu0 0.0
    %7719 = vmatprep.subr.mxu0 0.0
    %7720 = vmatpush1.msra.mxu0 0.0
    %7721 = vmatprep.subr.mxu0 0.0
    %7722 = vmatpush1.msra.mxu0 0.0
    %7723 = vmatprep.subr.mxu0 0.0
    %7724 = vmatpush1.msra.mxu0 0.0
    %7725 = vmatprep.subr.mxu0 0.0
    %7726 = vmatpush1.msra.mxu0 0.0
    %7727 = vmatprep.subr.mxu0 0.0
    %7728 = vmatpush1.msra.mxu0 0.0
    %7729 = vmatprep.subr.mxu0 0.0
    %7730 = vmatpush1.msra.mxu0 0.0
    %7731 = vmatprep.mubr.f32.mxu0 0.0
    %7732 = vmatmul.mubr.f32.gmra.mrb[0].mxu0 %v6962
    %v7733 = vpop.f32.mrb[0].mxu0
    %v7734 = vadd.f32 0.0, %v7733
    %v7735 = vpop.f32.mrb[0].mxu0
    %v7736 = vadd.f32 0.0, %v7735
    %7737 = vdwg.mxu0
    %7738 = vmatprep.subr.mxu0 %v7606
    %7739 = vmatpush1.msra.mxu0 %v7605
    %7740 = vmatprep.subr.mxu0 %v7610
    %7741 = vmatpush1.msra.mxu0 %v7609
    %7742 = vmatprep.subr.mxu0 %v7614
    %7743 = vmatpush1.msra.mxu0 %v7613
    %7744 = vmatprep.subr.mxu0 %v7618
    %7745 = vmatpush1.msra.mxu0 %v7617
    %7746 = vmatprep.subr.mxu0 %v7622
    %7747 = vmatpush1.msra.mxu0 %v7621
    %7748 = vmatprep.subr.mxu0 %v7626
    %7749 = vmatpush1.msra.mxu0 %v7625
    %7750 = vmatprep.subr.mxu0 %v7630
    %7751 = vmatpush1.msra.mxu0 %v7629
    %7752 = vmatprep.subr.mxu0 %v7634
    %7753 = vmatpush1.msra.mxu0 %v7633
    %7754 = vmatprep.subr.mxu0 %v7638
    %7755 = vmatpush1.msra.mxu0 %v7637
    %7756 = vmatprep.subr.mxu0 %v7642
    %7757 = vmatpush1.msra.mxu0 %v7641
    %7758 = vmatprep.subr.mxu0 %v7646
    %7759 = vmatpush1.msra.mxu0 %v7645
    %7760 = vmatprep.subr.mxu0 %v7650
    %7761 = vmatpush1.msra.mxu0 %v7649
    %7762 = vmatprep.subr.mxu0 %v7654
    %7763 = vmatpush1.msra.mxu0 %v7653
    %7764 = vmatprep.subr.mxu0 %v7658
    %7765 = vmatpush1.msra.mxu0 %v7657
    %7766 = vmatprep.subr.mxu0 %v7662
    %7767 = vmatpush1.msra.mxu0 %v7661
    %7768 = vmatprep.subr.mxu0 %v7666
    %7769 = vmatpush1.msra.mxu0 %v7665
    %7770 = vmatprep.subr.mxu0 0.0
    %7771 = vmatpush1.msra.mxu0 0.0
    %7772 = vmatprep.subr.mxu0 0.0
    %7773 = vmatpush1.msra.mxu0 0.0
    %7774 = vmatprep.subr.mxu0 0.0
    %7775 = vmatpush1.msra.mxu0 0.0
    %7776 = vmatprep.subr.mxu0 0.0
    %7777 = vmatpush1.msra.mxu0 0.0
    %7778 = vmatprep.subr.mxu0 0.0
    %7779 = vmatpush1.msra.mxu0 0.0
    %7780 = vmatprep.subr.mxu0 0.0
    %7781 = vmatpush1.msra.mxu0 0.0
    %7782 = vmatprep.subr.mxu0 0.0
    %7783 = vmatpush1.msra.mxu0 0.0
    %7784 = vmatprep.subr.mxu0 0.0
    %7785 = vmatpush1.msra.mxu0 0.0
    %7786 = vmatprep.subr.mxu0 0.0
    %7787 = vmatpush1.msra.mxu0 0.0
    %7788 = vmatprep.subr.mxu0 0.0
    %7789 = vmatpush1.msra.mxu0 0.0
    %7790 = vmatprep.subr.mxu0 0.0
    %7791 = vmatpush1.msra.mxu0 0.0
    %7792 = vmatprep.subr.mxu0 0.0
    %7793 = vmatpush1.msra.mxu0 0.0
    %7794 = vmatprep.subr.mxu0 0.0
    %7795 = vmatpush1.msra.mxu0 0.0
    %7796 = vmatprep.subr.mxu0 0.0
    %7797 = vmatpush1.msra.mxu0 0.0
    %7798 = vmatprep.subr.mxu0 0.0
    %7799 = vmatpush1.msra.mxu0 0.0
    %7800 = vmatprep.subr.mxu0 0.0
    %7801 = vmatpush1.msra.mxu0 0.0
    %7802 = vmatprep.mubr.f32.mxu0 0.0
    %7803 = vmatmul.mubr.f32.gmra.mrb[0].mxu0 %v6962
    %v7804 = vpop.f32.mrb[0].mxu0
    %v7805 = vadd.f32 0.0, %v7804
    %v7806 = vpop.f32.mrb[0].mxu0
    %v7807 = vadd.f32 0.0, %v7806
    %7808 = vdwg.mxu0
    %v7817 = vcombine.low %v7531, %v7532
    %v7818 = vcombine.low %v7533, %v7534
    %v7819 = vcombine.low %v7535, %v7536
    %v7820 = vcombine.low %v7537, %v7538
    %v7822 = vunpack.c.l.s4 1966171168
    %v7823 = vunpack.c.0.s8 %v7822
    %v7824 = vlaneseq
    %v7825 = vshrl.u32 %v7824, 7
    %v7826 = vsub.s32 %v7823, %v7825
    %v7827 = vrot.slane %v7817, %v7826
    %v7829 = vunpack.c.l.s4 1966171168
    %v7830 = vunpack.c.0.s8 %v7829
    %v7831 = vlaneseq
    %v7832 = vshrl.u32 %v7831, 7
    %v7833 = vsub.s32 %v7830, %v7832
    %v7834 = vrot.slane %v7818, %v7833
    %v7836 = vunpack.c.l.s4 1966171168
    %v7837 = vunpack.c.0.s8 %v7836
    %v7838 = vlaneseq
    %v7839 = vshrl.u32 %v7838, 7
    %v7840 = vsub.s32 %v7837, %v7839
    %v7841 = vrot.slane %v7819, %v7840
    %v7843 = vunpack.c.l.s4 1966171168
    %v7844 = vunpack.c.0.s8 %v7843
    %v7845 = vlaneseq
    %v7846 = vshrl.u32 %v7845, 7
    %v7847 = vsub.s32 %v7844, %v7846
    %v7848 = vrot.slane %v7820, %v7847
    %v7849 = vcombine.low %v7827, %v7834
    %v7850 = vcombine.low %v7841, %v7848
    %v7852 = vunpack.c.l.s4 1966171168
    %v7853 = vunpack.c.0.s8 %v7852
    %v7854 = vlaneseq
    %v7855 = vshrl.u32 %v7854, 7
    %v7856 = vsub.s32 %v7853, %v7855
    %v7857 = vrot.slane %v7849, %v7856
    %v7859 = vunpack.c.l.s4 1966171168
    %v7860 = vunpack.c.0.s8 %v7859
    %v7861 = vlaneseq
    %v7862 = vshrl.u32 %v7861, 7
    %v7863 = vsub.s32 %v7860, %v7862
    %v7864 = vrot.slane %v7850, %v7863
    %v7865 = vcombine.low %v7857, %v7864
    %7867 = vmatprep.subr.mxu0 %v7540
    %7868 = vmatpush1.msra.mxu0 %v7539
    %7869 = vmatprep.subr.mxu0 %v7544
    %7870 = vmatpush1.msra.mxu0 %v7543
    %7871 = vmatprep.subr.mxu0 %v7548
    %7872 = vmatpush1.msra.mxu0 %v7547
    %7873 = vmatprep.subr.mxu0 %v7552
    %7874 = vmatpush1.msra.mxu0 %v7551
    %7875 = vmatprep.subr.mxu0 %v7556
    %7876 = vmatpush1.msra.mxu0 %v7555
    %7877 = vmatprep.subr.mxu0 %v7560
    %7878 = vmatpush1.msra.mxu0 %v7559
    %7879 = vmatprep.subr.mxu0 %v7564
    %7880 = vmatpush1.msra.mxu0 %v7563
    %7881 = vmatprep.subr.mxu0 %v7568
    %7882 = vmatpush1.msra.mxu0 %v7567
    %7883 = vmatprep.subr.mxu0 %v7572
    %7884 = vmatpush1.msra.mxu0 %v7571
    %7885 = vmatprep.subr.mxu0 %v7576
    %7886 = vmatpush1.msra.mxu0 %v7575
    %7887 = vmatprep.subr.mxu0 %v7580
    %7888 = vmatpush1.msra.mxu0 %v7579
    %7889 = vmatprep.subr.mxu0 %v7584
    %7890 = vmatpush1.msra.mxu0 %v7583
    %7891 = vmatprep.subr.mxu0 %v7588
    %7892 = vmatpush1.msra.mxu0 %v7587
    %7893 = vmatprep.subr.mxu0 %v7592
    %7894 = vmatpush1.msra.mxu0 %v7591
    %7895 = vmatprep.subr.mxu0 %v7596
    %7896 = vmatpush1.msra.mxu0 %v7595
    %7897 = vmatprep.subr.mxu0 %v7600
    %7898 = vmatpush1.msra.mxu0 %v7599
    %7899 = vmatprep.subr.mxu0 0.0
    %7900 = vmatpush1.msra.mxu0 0.0
    %7901 = vmatprep.subr.mxu0 0.0
    %7902 = vmatpush1.msra.mxu0 0.0
    %7903 = vmatprep.subr.mxu0 0.0
    %7904 = vmatpush1.msra.mxu0 0.0
    %7905 = vmatprep.subr.mxu0 0.0
    %7906 = vmatpush1.msra.mxu0 0.0
    %7907 = vmatprep.subr.mxu0 0.0
    %7908 = vmatpush1.msra.mxu0 0.0
    %7909 = vmatprep.subr.mxu0 0.0
    %7910 = vmatpush1.msra.mxu0 0.0
    %7911 = vmatprep.subr.mxu0 0.0
    %7912 = vmatpush1.msra.mxu0 0.0
    %7913 = vmatprep.subr.mxu0 0.0
    %7914 = vmatpush1.msra.mxu0 0.0
    %7915 = vmatprep.subr.mxu0 0.0
    %7916 = vmatpush1.msra.mxu0 0.0
    %7917 = vmatprep.subr.mxu0 0.0
    %7918 = vmatpush1.msra.mxu0 0.0
    %7919 = vmatprep.subr.mxu0 0.0
    %7920 = vmatpush1.msra.mxu0 0.0
    %7921 = vmatprep.subr.mxu0 0.0
    %7922 = vmatpush1.msra.mxu0 0.0
    %7923 = vmatprep.subr.mxu0 0.0
    %7924 = vmatpush1.msra.mxu0 0.0
    %7925 = vmatprep.subr.mxu0 0.0
    %7926 = vmatpush1.msra.mxu0 0.0
    %7927 = vmatprep.subr.mxu0 0.0
    %7928 = vmatpush1.msra.mxu0 0.0
    %7929 = vmatprep.subr.mxu0 0.0
    %7930 = vmatpush1.msra.mxu0 0.0
    %7931 = vmatprep.mubr.f32.mxu0 0.0
    %7932 = vmatmul.mubr.f32.gmra.mrb[0].mxu0 %v7865
    %v7933 = vpop.f32.mrb[0].mxu0
    %v7934 = vadd.f32 %v7734, %v7933
    %v7935 = vpop.f32.mrb[0].mxu0
    %v7936 = vadd.f32 %v7736, %v7935
    %7937 = vdwg.mxu0
    %7938 = vmatprep.subr.mxu0 %v7542
    %7939 = vmatpush1.msra.mxu0 %v7541
    %7940 = vmatprep.subr.mxu0 %v7546
    %7941 = vmatpush1.msra.mxu0 %v7545
    %7942 = vmatprep.subr.mxu0 %v7550
    %7943 = vmatpush1.msra.mxu0 %v7549
    %7944 = vmatprep.subr.mxu0 %v7554
    %7945 = vmatpush1.msra.mxu0 %v7553
    %7946 = vmatprep.subr.mxu0 %v7558
    %7947 = vmatpush1.msra.mxu0 %v7557
    %7948 = vmatprep.subr.mxu0 %v7562
    %7949 = vmatpush1.msra.mxu0 %v7561
    %7950 = vmatprep.subr.mxu0 %v7566
    %7951 = vmatpush1.msra.mxu0 %v7565
    %7952 = vmatprep.subr.mxu0 %v7570
    %7953 = vmatpush1.msra.mxu0 %v7569
    %7954 = vmatprep.subr.mxu0 %v7574
    %7955 = vmatpush1.msra.mxu0 %v7573
    %7956 = vmatprep.subr.mxu0 %v7578
    %7957 = vmatpush1.msra.mxu0 %v7577
    %7958 = vmatprep.subr.mxu0 %v7582
    %7959 = vmatpush1.msra.mxu0 %v7581
    %7960 = vmatprep.subr.mxu0 %v7586
    %7961 = vmatpush1.msra.mxu0 %v7585
    %7962 = vmatprep.subr.mxu0 %v7590
    %7963 = vmatpush1.msra.mxu0 %v7589
    %7964 = vmatprep.subr.mxu0 %v7594
    %7965 = vmatpush1.msra.mxu0 %v7593
    %7966 = vmatprep.subr.mxu0 %v7598
    %7967 = vmatpush1.msra.mxu0 %v7597
    %7968 = vmatprep.subr.mxu0 %v7602
    %7969 = vmatpush1.msra.mxu0 %v7601
    %7970 = vmatprep.subr.mxu0 0.0
    %7971 = vmatpush1.msra.mxu0 0.0
    %7972 = vmatprep.subr.mxu0 0.0
    %7973 = vmatpush1.msra.mxu0 0.0
    %7974 = vmatprep.subr.mxu0 0.0
    %7975 = vmatpush1.msra.mxu0 0.0
    %7976 = vmatprep.subr.mxu0 0.0
    %7977 = vmatpush1.msra.mxu0 0.0
    %7978 = vmatprep.subr.mxu0 0.0
    %7979 = vmatpush1.msra.mxu0 0.0
    %7980 = vmatprep.subr.mxu0 0.0
    %7981 = vmatpush1.msra.mxu0 0.0
    %7982 = vmatprep.subr.mxu0 0.0
    %7983 = vmatpush1.msra.mxu0 0.0
    %7984 = vmatprep.subr.mxu0 0.0
    %7985 = vmatpush1.msra.mxu0 0.0
    %7986 = vmatprep.subr.mxu0 0.0
    %7987 = vmatpush1.msra.mxu0 0.0
    %7988 = vmatprep.subr.mxu0 0.0
    %7989 = vmatpush1.msra.mxu0 0.0
    %7990 = vmatprep.subr.mxu0 0.0
    %7991 = vmatpush1.msra.mxu0 0.0
    %7992 = vmatprep.subr.mxu0 0.0
    %7993 = vmatpush1.msra.mxu0 0.0
    %7994 = vmatprep.subr.mxu0 0.0
    %7995 = vmatpush1.msra.mxu0 0.0
    %7996 = vmatprep.subr.mxu0 0.0
    %7997 = vmatpush1.msra.mxu0 0.0
    %7998 = vmatprep.subr.mxu0 0.0
    %7999 = vmatpush1.msra.mxu0 0.0
    %8000 = vmatprep.subr.mxu0 0.0
    %8001 = vmatpush1.msra.mxu0 0.0
    %8002 = vmatprep.mubr.f32.mxu0 0.0
    %8003 = vmatmul.mubr.f32.gmra.mrb[0].mxu0 %v7865
    %v8004 = vpop.f32.mrb[0].mxu0
    %v8005 = vadd.f32 %v7805, %v8004
    %v8006 = vpop.f32.mrb[0].mxu0
    %v8007 = vadd.f32 %v7807, %v8006
    %8008 = vdwg.mxu0
    %v8009 = vld [vmem:[%s6] sm:$0xf]
    %v8011 = vlaneseq
    %v8012 = vshrl.u32 %v8011, 7
    %v8013 = vsub.s32 0, %v8012
    %v8014 = vrot.slane %v8009, %v8013
    %v8015 = vlaneseq
    %v8016 = vshrl.u32 %v8015, 7
    %v8017 = vsub.s32 1, %v8016
    %v8018 = vrot.slane %v8009, %v8017
    %v8019 = vlaneseq
    %v8020 = vshrl.u32 %v8019, 7
    %v8021 = vsub.s32 2, %v8020
    %v8022 = vrot.slane %v8009, %v8021
    %v8023 = vlaneseq
    %v8024 = vshrl.u32 %v8023, 7
    %v8025 = vsub.s32 3, %v8024
    %v8026 = vrot.slane %v8009, %v8025
    %v8031 = vadd.f32 %v7934, %v8014
    %v8032 = vadd.f32 %v7936, %v8018
    %v8033 = vadd.f32 %v8005, %v8022
    %v8034 = vadd.f32 %v8007, %v8026
    %v8035 = vmul.f32 %v8031, 0.5
    %v8036 = vtanh.pop %v8035
    %v8037 = vmul.f32 %v8036, 0.5
    %v8038 = vadd.f32 %v8037, 0.5
    %v8039 = vmul.f32 %v8032, 0.5
    %v8040 = vtanh.pop %v8039
    %v8041 = vmul.f32 %v8040, 0.5
    %v8042 = vadd.f32 %v8041, 0.5
    %v8043 = vtanh.pop %v8033
    %v8044 = vmul.f32 %v8034, 0.5
    %v8045 = vtanh.pop %v8044
    %v8046 = vmul.f32 %v8045, 0.5
    %v8047 = vadd.f32 %v8046, 0.5
    %v8048 = vmul.f32 %v8042, %v6960
    %v8049 = vmul.f32 %v8038, %v8043
    %v8050 = vadd.f32 %v8048, %v8049
    %v8051 = vtanh.pop %v8050
    %v8052 = vmul.f32 %v8047, %v8051
    %v8054 = vcombine.high %v8052, %v8052
    %v8056 = vunpack.c.l.s4 1966171168
    %v8057 = vunpack.c.0.s8 %v8056
    %v8058 = vlaneseq
    %v8059 = vshrl.u32 %v8058, 7
    %v8060 = vsub.s32 %v8057, %v8059
    %v8061 = vrot.slane %v8052, %v8060
    %v8063 = vunpack.c.l.s4 1966171168
    %v8064 = vunpack.c.0.s8 %v8063
    %v8065 = vlaneseq
    %v8066 = vshrl.u32 %v8065, 7
    %v8067 = vsub.s32 %v8064, %v8066
    %v8068 = vrot.slane %v8054, %v8067
    %v8069 = vcombine.high %v8061, %v8061
    %v8070 = vcombine.high %v8068, %v8068
    %v8072 = vunpack.c.l.s4 1966171168
    %v8073 = vunpack.c.0.s8 %v8072
    %v8074 = vlaneseq
    %v8075 = vshrl.u32 %v8074, 7
    %v8076 = vsub.s32 %v8073, %v8075
    %v8077 = vrot.slane %v8061, %v8076
    %v8079 = vunpack.c.l.s4 1966171168
    %v8080 = vunpack.c.0.s8 %v8079
    %v8081 = vlaneseq
    %v8082 = vshrl.u32 %v8081, 7
    %v8083 = vsub.s32 %v8080, %v8082
    %v8084 = vrot.slane %v8068, %v8083
    %v8086 = vunpack.c.l.s4 1966171168
    %v8087 = vunpack.c.0.s8 %v8086
    %v8088 = vlaneseq
    %v8089 = vshrl.u32 %v8088, 7
    %v8090 = vsub.s32 %v8087, %v8089
    %v8091 = vrot.slane %v8069, %v8090
    %v8093 = vunpack.c.l.s4 1966171168
    %v8094 = vunpack.c.0.s8 %v8093
    %v8095 = vlaneseq
    %v8096 = vshrl.u32 %v8095, 7
    %v8097 = vsub.s32 %v8094, %v8096
    %v8098 = vrot.slane %v8070, %v8097
    %v8099 = vcombine.high %v8077, %v8077
    %v8100 = vcombine.high %v8084, %v8084
    %v8101 = vcombine.high %v8091, %v8091
    %v8102 = vcombine.high %v8098, %v8098
    %8111 = vst [vmem:[#allocation5 + $0x6] sm:$0x1] %v8077
    %8112 = vst [vmem:[#allocation5 + $0xe] sm:$0x1] %v8091
    %8113 = vst [vmem:[#allocation5 + $0x16] sm:$0x1] %v8099
    %8114 = vst [vmem:[#allocation5 + $0x1e] sm:$0x1] %v8101
    %8115 = vst [vmem:[#allocation5 + $0x26] sm:$0x1] %v8084
    %8116 = vst [vmem:[#allocation5 + $0x2e] sm:$0x1] %v8098
    %8117 = vst [vmem:[#allocation5 + $0x36] sm:$0x1] %v8100
    %8118 = vst [vmem:[#allocation5 + $0x3e] sm:$0x1] %v8102
    %s8119 = scalar_lea.vmem [#allocation4], 7
    %v8120 = vld [vmem:[%s8119] ss:$8 sm:$0xf]
    %s8121 = scalar_lea.vmem [#allocation4], 39
    %v8122 = vld [vmem:[%s8121] ss:$8 sm:$0xf]
    %s8123 = scalar_lea.vmem [#allocation4], 71
    %v8124 = vld [vmem:[%s8123] ss:$8 sm:$0xf]
    %s8125 = scalar_lea.vmem [#allocation4], 103
    %v8126 = vld [vmem:[%s8125] ss:$8 sm:$0xf]
    %s8127 = scalar_lea.vmem [#allocation4], 135
    %v8128 = vld [vmem:[%s8127] ss:$8 sm:$0xf]
    %s8129 = scalar_lea.vmem [#allocation4], 167
    %v8130 = vld [vmem:[%s8129] ss:$8 sm:$0xf]
    %s8131 = scalar_lea.vmem [#allocation4], 199
    %v8132 = vld [vmem:[%s8131] ss:$8 sm:$0xf]
    %s8133 = scalar_lea.vmem [#allocation4], 231
    %v8134 = vld [vmem:[%s8133] ss:$8 sm:$0xf]
    %v8135 = vld [vmem:[#allocation12] sm:$0xff]
    %v8136 = vld [vmem:[#allocation12 + $0x8] sm:$0xff]
    %v8137 = vld [vmem:[#allocation12 + $0x10] sm:$0xff]
    %v8138 = vld [vmem:[#allocation12 + $0x18] sm:$0xff]
    %v8139 = vld [vmem:[#allocation12 + $0x20] sm:$0xff]
    %v8140 = vld [vmem:[#allocation12 + $0x28] sm:$0xff]
    %v8141 = vld [vmem:[#allocation12 + $0x30] sm:$0xff]
    %v8142 = vld [vmem:[#allocation12 + $0x38] sm:$0xff]
    %v8143 = vld [vmem:[#allocation12 + $0x40] sm:$0xff]
    %v8144 = vld [vmem:[#allocation12 + $0x48] sm:$0xff]
    %v8145 = vld [vmem:[#allocation12 + $0x50] sm:$0xff]
    %v8146 = vld [vmem:[#allocation12 + $0x58] sm:$0xff]
    %v8147 = vld [vmem:[#allocation12 + $0x60] sm:$0xff]
    %v8148 = vld [vmem:[#allocation12 + $0x68] sm:$0xff]
    %v8149 = vld [vmem:[#allocation12 + $0x70] sm:$0xff]
    %v8150 = vld [vmem:[#allocation12 + $0x78] sm:$0xff]
    %v8151 = vld [vmem:[#allocation12 + $0x80] sm:$0xff]
    %v8152 = vld [vmem:[#allocation12 + $0x88] sm:$0xff]
    %v8153 = vld [vmem:[#allocation12 + $0x90] sm:$0xff]
    %v8154 = vld [vmem:[#allocation12 + $0x98] sm:$0xff]
    %v8155 = vld [vmem:[#allocation12 + $0xa0] sm:$0xff]
    %v8156 = vld [vmem:[#allocation12 + $0xa8] sm:$0xff]
    %v8157 = vld [vmem:[#allocation12 + $0xb0] sm:$0xff]
    %v8158 = vld [vmem:[#allocation12 + $0xb8] sm:$0xff]
    %v8159 = vld [vmem:[#allocation12 + $0xc0] sm:$0xff]
    %v8160 = vld [vmem:[#allocation12 + $0xc8] sm:$0xff]
    %v8161 = vld [vmem:[#allocation12 + $0xd0] sm:$0xff]
    %v8162 = vld [vmem:[#allocation12 + $0xd8] sm:$0xff]
    %v8163 = vld [vmem:[#allocation12 + $0xe0] sm:$0xff]
    %v8164 = vld [vmem:[#allocation12 + $0xe8] sm:$0xff]
    %v8165 = vld [vmem:[#allocation12 + $0xf0] sm:$0xff]
    %v8166 = vld [vmem:[#allocation12 + $0xf8] sm:$0xff]
    %v8167 = vld [vmem:[#allocation12 + $0x100] sm:$0xff]
    %v8168 = vld [vmem:[#allocation12 + $0x108] sm:$0xff]
    %v8169 = vld [vmem:[#allocation12 + $0x110] sm:$0xff]
    %v8170 = vld [vmem:[#allocation12 + $0x118] sm:$0xff]
    %v8171 = vld [vmem:[#allocation12 + $0x120] sm:$0xff]
    %v8172 = vld [vmem:[#allocation12 + $0x128] sm:$0xff]
    %v8173 = vld [vmem:[#allocation12 + $0x130] sm:$0xff]
    %v8174 = vld [vmem:[#allocation12 + $0x138] sm:$0xff]
    %v8175 = vld [vmem:[#allocation12 + $0x140] sm:$0xff]
    %v8176 = vld [vmem:[#allocation12 + $0x148] sm:$0xff]
    %v8177 = vld [vmem:[#allocation12 + $0x150] sm:$0xff]
    %v8178 = vld [vmem:[#allocation12 + $0x158] sm:$0xff]
    %v8179 = vld [vmem:[#allocation12 + $0x160] sm:$0xff]
    %v8180 = vld [vmem:[#allocation12 + $0x168] sm:$0xff]
    %v8181 = vld [vmem:[#allocation12 + $0x170] sm:$0xff]
    %v8182 = vld [vmem:[#allocation12 + $0x178] sm:$0xff]
    %v8183 = vld [vmem:[#allocation12 + $0x180] sm:$0xff]
    %v8184 = vld [vmem:[#allocation12 + $0x188] sm:$0xff]
    %v8185 = vld [vmem:[#allocation12 + $0x190] sm:$0xff]
    %v8186 = vld [vmem:[#allocation12 + $0x198] sm:$0xff]
    %v8187 = vld [vmem:[#allocation12 + $0x1a0] sm:$0xff]
    %v8188 = vld [vmem:[#allocation12 + $0x1a8] sm:$0xff]
    %v8189 = vld [vmem:[#allocation12 + $0x1b0] sm:$0xff]
    %v8190 = vld [vmem:[#allocation12 + $0x1b8] sm:$0xff]
    %v8191 = vld [vmem:[#allocation12 + $0x1c0] sm:$0xff]
    %v8192 = vld [vmem:[#allocation12 + $0x1c8] sm:$0xff]
    %v8193 = vld [vmem:[#allocation12 + $0x1d0] sm:$0xff]
    %v8194 = vld [vmem:[#allocation12 + $0x1d8] sm:$0xff]
    %v8195 = vld [vmem:[#allocation12 + $0x1e0] sm:$0xff]
    %v8196 = vld [vmem:[#allocation12 + $0x1e8] sm:$0xff]
    %v8197 = vld [vmem:[#allocation12 + $0x1f0] sm:$0xff]
    %v8198 = vld [vmem:[#allocation12 + $0x1f8] sm:$0xff]
    %8199 = vmatprep.subr.mxu0 %v8136
    %8200 = vmatpush1.msra.mxu0 %v8135
    %8201 = vmatprep.subr.mxu0 %v8140
    %8202 = vmatpush1.msra.mxu0 %v8139
    %8203 = vmatprep.subr.mxu0 %v8144
    %8204 = vmatpush1.msra.mxu0 %v8143
    %8205 = vmatprep.subr.mxu0 %v8148
    %8206 = vmatpush1.msra.mxu0 %v8147
    %8207 = vmatprep.subr.mxu0 %v8152
    %8208 = vmatpush1.msra.mxu0 %v8151
    %8209 = vmatprep.subr.mxu0 %v8156
    %8210 = vmatpush1.msra.mxu0 %v8155
    %8211 = vmatprep.subr.mxu0 %v8160
    %8212 = vmatpush1.msra.mxu0 %v8159
    %8213 = vmatprep.subr.mxu0 %v8164
    %8214 = vmatpush1.msra.mxu0 %v8163
    %8215 = vmatprep.subr.mxu0 %v8168
    %8216 = vmatpush1.msra.mxu0 %v8167
    %8217 = vmatprep.subr.mxu0 %v8172
    %8218 = vmatpush1.msra.mxu0 %v8171
    %8219 = vmatprep.subr.mxu0 %v8176
    %8220 = vmatpush1.msra.mxu0 %v8175
    %8221 = vmatprep.subr.mxu0 %v8180
    %8222 = vmatpush1.msra.mxu0 %v8179
    %8223 = vmatprep.subr.mxu0 %v8184
    %8224 = vmatpush1.msra.mxu0 %v8183
    %8225 = vmatprep.subr.mxu0 %v8188
    %8226 = vmatpush1.msra.mxu0 %v8187
    %8227 = vmatprep.subr.mxu0 %v8192
    %8228 = vmatpush1.msra.mxu0 %v8191
    %8229 = vmatprep.subr.mxu0 %v8196
    %8230 = vmatpush1.msra.mxu0 %v8195
    %8231 = vmatprep.subr.mxu0 0.0
    %8232 = vmatpush1.msra.mxu0 0.0
    %8233 = vmatprep.subr.mxu0 0.0
    %8234 = vmatpush1.msra.mxu0 0.0
    %8235 = vmatprep.subr.mxu0 0.0
    %8236 = vmatpush1.msra.mxu0 0.0
    %8237 = vmatprep.subr.mxu0 0.0
    %8238 = vmatpush1.msra.mxu0 0.0
    %8239 = vmatprep.subr.mxu0 0.0
    %8240 = vmatpush1.msra.mxu0 0.0
    %8241 = vmatprep.subr.mxu0 0.0
    %8242 = vmatpush1.msra.mxu0 0.0
    %8243 = vmatprep.subr.mxu0 0.0
    %8244 = vmatpush1.msra.mxu0 0.0
    %8245 = vmatprep.subr.mxu0 0.0
    %8246 = vmatpush1.msra.mxu0 0.0
    %8247 = vmatprep.subr.mxu0 0.0
    %8248 = vmatpush1.msra.mxu0 0.0
    %8249 = vmatprep.subr.mxu0 0.0
    %8250 = vmatpush1.msra.mxu0 0.0
    %8251 = vmatprep.subr.mxu0 0.0
    %8252 = vmatpush1.msra.mxu0 0.0
    %8253 = vmatprep.subr.mxu0 0.0
    %8254 = vmatpush1.msra.mxu0 0.0
    %8255 = vmatprep.subr.mxu0 0.0
    %8256 = vmatpush1.msra.mxu0 0.0
    %8257 = vmatprep.subr.mxu0 0.0
    %8258 = vmatpush1.msra.mxu0 0.0
    %8259 = vmatprep.subr.mxu0 0.0
    %8260 = vmatpush1.msra.mxu0 0.0
    %8261 = vmatprep.subr.mxu0 0.0
    %8262 = vmatpush1.msra.mxu0 0.0
    %8263 = vmatprep.mubr.f32.mxu0 0.0
    %8264 = vmatmul.mubr.f32.gmra.mrb[0].mxu0 %v7865
    %v8265 = vpop.f32.mrb[0].mxu0
    %v8266 = vadd.f32 0.0, %v8265
    %v8267 = vpop.f32.mrb[0].mxu0
    %v8268 = vadd.f32 0.0, %v8267
    %8269 = vdwg.mxu0
    %8270 = vmatprep.subr.mxu0 %v8138
    %8271 = vmatpush1.msra.mxu0 %v8137
    %8272 = vmatprep.subr.mxu0 %v8142
    %8273 = vmatpush1.msra.mxu0 %v8141
    %8274 = vmatprep.subr.mxu0 %v8146
    %8275 = vmatpush1.msra.mxu0 %v8145
    %8276 = vmatprep.subr.mxu0 %v8150
    %8277 = vmatpush1.msra.mxu0 %v8149
    %8278 = vmatprep.subr.mxu0 %v8154
    %8279 = vmatpush1.msra.mxu0 %v8153
    %8280 = vmatprep.subr.mxu0 %v8158
    %8281 = vmatpush1.msra.mxu0 %v8157
    %8282 = vmatprep.subr.mxu0 %v8162
    %8283 = vmatpush1.msra.mxu0 %v8161
    %8284 = vmatprep.subr.mxu0 %v8166
    %8285 = vmatpush1.msra.mxu0 %v8165
    %8286 = vmatprep.subr.mxu0 %v8170
    %8287 = vmatpush1.msra.mxu0 %v8169
    %8288 = vmatprep.subr.mxu0 %v8174
    %8289 = vmatpush1.msra.mxu0 %v8173
    %8290 = vmatprep.subr.mxu0 %v8178
    %8291 = vmatpush1.msra.mxu0 %v8177
    %8292 = vmatprep.subr.mxu0 %v8182
    %8293 = vmatpush1.msra.mxu0 %v8181
    %8294 = vmatprep.subr.mxu0 %v8186
    %8295 = vmatpush1.msra.mxu0 %v8185
    %8296 = vmatprep.subr.mxu0 %v8190
    %8297 = vmatpush1.msra.mxu0 %v8189
    %8298 = vmatprep.subr.mxu0 %v8194
    %8299 = vmatpush1.msra.mxu0 %v8193
    %8300 = vmatprep.subr.mxu0 %v8198
    %8301 = vmatpush1.msra.mxu0 %v8197
    %8302 = vmatprep.subr.mxu0 0.0
    %8303 = vmatpush1.msra.mxu0 0.0
    %8304 = vmatprep.subr.mxu0 0.0
    %8305 = vmatpush1.msra.mxu0 0.0
    %8306 = vmatprep.subr.mxu0 0.0
    %8307 = vmatpush1.msra.mxu0 0.0
    %8308 = vmatprep.subr.mxu0 0.0
    %8309 = vmatpush1.msra.mxu0 0.0
    %8310 = vmatprep.subr.mxu0 0.0
    %8311 = vmatpush1.msra.mxu0 0.0
    %8312 = vmatprep.subr.mxu0 0.0
    %8313 = vmatpush1.msra.mxu0 0.0
    %8314 = vmatprep.subr.mxu0 0.0
    %8315 = vmatpush1.msra.mxu0 0.0
    %8316 = vmatprep.subr.mxu0 0.0
    %8317 = vmatpush1.msra.mxu0 0.0
    %8318 = vmatprep.subr.mxu0 0.0
    %8319 = vmatpush1.msra.mxu0 0.0
    %8320 = vmatprep.subr.mxu0 0.0
    %8321 = vmatpush1.msra.mxu0 0.0
    %8322 = vmatprep.subr.mxu0 0.0
    %8323 = vmatpush1.msra.mxu0 0.0
    %8324 = vmatprep.subr.mxu0 0.0
    %8325 = vmatpush1.msra.mxu0 0.0
    %8326 = vmatprep.subr.mxu0 0.0
    %8327 = vmatpush1.msra.mxu0 0.0
    %8328 = vmatprep.subr.mxu0 0.0
    %8329 = vmatpush1.msra.mxu0 0.0
    %8330 = vmatprep.subr.mxu0 0.0
    %8331 = vmatpush1.msra.mxu0 0.0
    %8332 = vmatprep.subr.mxu0 0.0
    %8333 = vmatpush1.msra.mxu0 0.0
    %8334 = vmatprep.mubr.f32.mxu0 0.0
    %8335 = vmatmul.mubr.f32.gmra.mrb[0].mxu0 %v7865
    %v8336 = vpop.f32.mrb[0].mxu0
    %v8337 = vadd.f32 0.0, %v8336
    %v8338 = vpop.f32.mrb[0].mxu0
    %v8339 = vadd.f32 0.0, %v8338
    %8340 = vdwg.mxu0
    %v8345 = vcombine.low %v8266, %v8268
    %v8346 = vcombine.high %v8266, %v8268
    %v8347 = vcombine.low %v8337, %v8339
    %v8348 = vcombine.high %v8337, %v8339
    %v8350 = vunpack.c.l.s4 1966171168
    %v8351 = vunpack.c.0.s8 %v8350
    %v8352 = vlaneseq
    %v8353 = vshrl.u32 %v8352, 7
    %v8354 = vsub.s32 %v8351, %v8353
    %v8355 = vrot.slane %v8345, %v8354
    %v8357 = vunpack.c.l.s4 1966171168
    %v8358 = vunpack.c.0.s8 %v8357
    %v8359 = vlaneseq
    %v8360 = vshrl.u32 %v8359, 7
    %v8361 = vsub.s32 %v8358, %v8360
    %v8362 = vrot.slane %v8346, %v8361
    %v8364 = vunpack.c.l.s4 1966171168
    %v8365 = vunpack.c.0.s8 %v8364
    %v8366 = vlaneseq
    %v8367 = vshrl.u32 %v8366, 7
    %v8368 = vsub.s32 %v8365, %v8367
    %v8369 = vrot.slane %v8347, %v8368
    %v8371 = vunpack.c.l.s4 1966171168
    %v8372 = vunpack.c.0.s8 %v8371
    %v8373 = vlaneseq
    %v8374 = vshrl.u32 %v8373, 7
    %v8375 = vsub.s32 %v8372, %v8374
    %v8376 = vrot.slane %v8348, %v8375
    %v8377 = vcombine.low %v8355, %v8369
    %v8378 = vcombine.high %v8355, %v8369
    %v8379 = vcombine.low %v8362, %v8376
    %v8380 = vcombine.high %v8362, %v8376
    %v8382 = vunpack.c.l.s4 1966171168
    %v8383 = vunpack.c.0.s8 %v8382
    %v8384 = vlaneseq
    %v8385 = vshrl.u32 %v8384, 7
    %v8386 = vsub.s32 %v8383, %v8385
    %v8387 = vrot.slane %v8377, %v8386
    %v8389 = vunpack.c.l.s4 1966171168
    %v8390 = vunpack.c.0.s8 %v8389
    %v8391 = vlaneseq
    %v8392 = vshrl.u32 %v8391, 7
    %v8393 = vsub.s32 %v8390, %v8392
    %v8394 = vrot.slane %v8379, %v8393
    %v8396 = vunpack.c.l.s4 1966171168
    %v8397 = vunpack.c.0.s8 %v8396
    %v8398 = vlaneseq
    %v8399 = vshrl.u32 %v8398, 7
    %v8400 = vsub.s32 %v8397, %v8399
    %v8401 = vrot.slane %v8378, %v8400
    %v8403 = vunpack.c.l.s4 1966171168
    %v8404 = vunpack.c.0.s8 %v8403
    %v8405 = vlaneseq
    %v8406 = vshrl.u32 %v8405, 7
    %v8407 = vsub.s32 %v8404, %v8406
    %v8408 = vrot.slane %v8380, %v8407
    %v8409 = vcombine.high %v8387, %v8387
    %v8410 = vcombine.high %v8394, %v8394
    %v8411 = vcombine.high %v8401, %v8401
    %v8412 = vcombine.high %v8408, %v8408
    %v8421 = vadd.f32 %v8120, %v8387
    %v8422 = vadd.f32 %v8122, %v8401
    %v8423 = vadd.f32 %v8124, %v8409
    %v8424 = vadd.f32 %v8126, %v8411
    %v8425 = vadd.f32 %v8128, %v8394
    %v8426 = vadd.f32 %v8130, %v8408
    %v8427 = vadd.f32 %v8132, %v8410
    %v8428 = vadd.f32 %v8134, %v8412
    %v8429 = vmul.f32 %v8421, 0.5
    %v8430 = vmul.f32 %v8422, 0.5
    %v8431 = vmul.f32 %v8423, 0.5
    %v8432 = vmul.f32 %v8424, 0.5
    %v8433 = vmul.f32 %v8425, 0.5
    %v8434 = vmul.f32 %v8426, 0.5
    %v8435 = vmul.f32 %v8427, 0.5
    %v8436 = vmul.f32 %v8428, 0.5
    %v8437 = vtanh.pop %v8429
    %v8438 = vtanh.pop %v8430
    %v8439 = vtanh.pop %v8431
    %v8440 = vtanh.pop %v8432
    %v8441 = vtanh.pop %v8433
    %v8442 = vtanh.pop %v8434
    %v8443 = vtanh.pop %v8435
    %v8444 = vtanh.pop %v8436
    %v8445 = vmul.f32 %v8437, 0.5
    %v8446 = vmul.f32 %v8438, 0.5
    %v8447 = vmul.f32 %v8439, 0.5
    %v8448 = vmul.f32 %v8440, 0.5
    %v8449 = vmul.f32 %v8441, 0.5
    %v8450 = vmul.f32 %v8442, 0.5
    %v8451 = vmul.f32 %v8443, 0.5
    %v8452 = vmul.f32 %v8444, 0.5
    %v8453 = vadd.f32 %v8445, 0.5
    %v8454 = vadd.f32 %v8446, 0.5
    %v8455 = vadd.f32 %v8447, 0.5
    %v8456 = vadd.f32 %v8448, 0.5
    %v8457 = vadd.f32 %v8449, 0.5
    %v8458 = vadd.f32 %v8450, 0.5
    %v8459 = vadd.f32 %v8451, 0.5
    %v8460 = vadd.f32 %v8452, 0.5
    %v8469 = vrot.slane %v8421, 1
    %v8470 = vrot.slane %v8422, 1
    %v8471 = vrot.slane %v8423, 1
    %v8472 = vrot.slane %v8424, 1
    %v8473 = vrot.slane %v8425, 1
    %v8474 = vrot.slane %v8426, 1
    %v8475 = vrot.slane %v8427, 1
    %v8476 = vrot.slane %v8428, 1
    %v8485 = vmul.f32 %v8469, 0.5
    %v8486 = vmul.f32 %v8470, 0.5
    %v8487 = vmul.f32 %v8471, 0.5
    %v8488 = vmul.f32 %v8472, 0.5
    %v8489 = vmul.f32 %v8473, 0.5
    %v8490 = vmul.f32 %v8474, 0.5
    %v8491 = vmul.f32 %v8475, 0.5
    %v8492 = vmul.f32 %v8476, 0.5
    %v8493 = vtanh.pop %v8485
    %v8494 = vtanh.pop %v8486
    %v8495 = vtanh.pop %v8487
    %v8496 = vtanh.pop %v8488
    %v8497 = vtanh.pop %v8489
    %v8498 = vtanh.pop %v8490
    %v8499 = vtanh.pop %v8491
    %v8500 = vtanh.pop %v8492
    %v8501 = vmul.f32 %v8493, 0.5
    %v8502 = vmul.f32 %v8494, 0.5
    %v8503 = vmul.f32 %v8495, 0.5
    %v8504 = vmul.f32 %v8496, 0.5
    %v8505 = vmul.f32 %v8497, 0.5
    %v8506 = vmul.f32 %v8498, 0.5
    %v8507 = vmul.f32 %v8499, 0.5
    %v8508 = vmul.f32 %v8500, 0.5
    %v8509 = vadd.f32 %v8501, 0.5
    %v8510 = vadd.f32 %v8502, 0.5
    %v8511 = vadd.f32 %v8503, 0.5
    %v8512 = vadd.f32 %v8504, 0.5
    %v8513 = vadd.f32 %v8505, 0.5
    %v8514 = vadd.f32 %v8506, 0.5
    %v8515 = vadd.f32 %v8507, 0.5
    %v8516 = vadd.f32 %v8508, 0.5
    %v8517 = vrot.slane %v8421, 2
    %v8518 = vrot.slane %v8422, 2
    %v8519 = vrot.slane %v8423, 2
    %v8520 = vrot.slane %v8424, 2
    %v8521 = vrot.slane %v8425, 2
    %v8522 = vrot.slane %v8426, 2
    %v8523 = vrot.slane %v8427, 2
    %v8524 = vrot.slane %v8428, 2
    %v8533 = vtanh.pop %v8517
    %v8534 = vtanh.pop %v8518
    %v8535 = vtanh.pop %v8519
    %v8536 = vtanh.pop %v8520
    %v8537 = vtanh.pop %v8521
    %v8538 = vtanh.pop %v8522
    %v8539 = vtanh.pop %v8523
    %v8540 = vtanh.pop %v8524
    %v8541 = vrot.slane %v8421, 3
    %v8542 = vrot.slane %v8422, 3
    %v8543 = vrot.slane %v8423, 3
    %v8544 = vrot.slane %v8424, 3
    %v8545 = vrot.slane %v8425, 3
    %v8546 = vrot.slane %v8426, 3
    %v8547 = vrot.slane %v8427, 3
    %v8548 = vrot.slane %v8428, 3
    %v8557 = vmul.f32 %v8541, 0.5
    %v8558 = vmul.f32 %v8542, 0.5
    %v8559 = vmul.f32 %v8543, 0.5
    %v8560 = vmul.f32 %v8544, 0.5
    %v8561 = vmul.f32 %v8545, 0.5
    %v8562 = vmul.f32 %v8546, 0.5
    %v8563 = vmul.f32 %v8547, 0.5
    %v8564 = vmul.f32 %v8548, 0.5
    %v8565 = vtanh.pop %v8557
    %v8566 = vtanh.pop %v8558
    %v8567 = vtanh.pop %v8559
    %v8568 = vtanh.pop %v8560
    %v8569 = vtanh.pop %v8561
    %v8570 = vtanh.pop %v8562
    %v8571 = vtanh.pop %v8563
    %v8572 = vtanh.pop %v8564
    %v8573 = vmul.f32 %v8565, 0.5
    %v8574 = vmul.f32 %v8566, 0.5
    %v8575 = vmul.f32 %v8567, 0.5
    %v8576 = vmul.f32 %v8568, 0.5
    %v8577 = vmul.f32 %v8569, 0.5
    %v8578 = vmul.f32 %v8570, 0.5
    %v8579 = vmul.f32 %v8571, 0.5
    %v8580 = vmul.f32 %v8572, 0.5
    %v8581 = vadd.f32 %v8573, 0.5
    %v8582 = vadd.f32 %v8574, 0.5
    %v8583 = vadd.f32 %v8575, 0.5
    %v8584 = vadd.f32 %v8576, 0.5
    %v8585 = vadd.f32 %v8577, 0.5
    %v8586 = vadd.f32 %v8578, 0.5
    %v8587 = vadd.f32 %v8579, 0.5
    %v8588 = vadd.f32 %v8580, 0.5
    %v8589 = vmul.f32 %v8509, %v7515
    %v8590 = vmul.f32 %v8510, %v7516
    %v8591 = vmul.f32 %v8511, %v7517
    %v8592 = vmul.f32 %v8512, %v7518
    %v8593 = vmul.f32 %v8513, %v7519
    %v8594 = vmul.f32 %v8514, %v7520
    %v8595 = vmul.f32 %v8515, %v7521
    %v8596 = vmul.f32 %v8516, %v7522
    %v8597 = vmul.f32 %v8453, %v8533
    %v8598 = vmul.f32 %v8454, %v8534
    %v8599 = vmul.f32 %v8455, %v8535
    %v8600 = vmul.f32 %v8456, %v8536
    %v8601 = vmul.f32 %v8457, %v8537
    %v8602 = vmul.f32 %v8458, %v8538
    %v8603 = vmul.f32 %v8459, %v8539
    %v8604 = vmul.f32 %v8460, %v8540
    %v8605 = vadd.f32 %v8589, %v8597
    %v8606 = vadd.f32 %v8590, %v8598
    %v8607 = vadd.f32 %v8591, %v8599
    %v8608 = vadd.f32 %v8592, %v8600
    %v8609 = vadd.f32 %v8593, %v8601
    %v8610 = vadd.f32 %v8594, %v8602
    %v8611 = vadd.f32 %v8595, %v8603
    %v8612 = vadd.f32 %v8596, %v8604
    %v8613 = vtanh.pop %v8605
    %v8614 = vtanh.pop %v8606
    %v8615 = vtanh.pop %v8607
    %v8616 = vtanh.pop %v8608
    %v8617 = vtanh.pop %v8609
    %v8618 = vtanh.pop %v8610
    %v8619 = vtanh.pop %v8611
    %v8620 = vtanh.pop %v8612
    %v8621 = vmul.f32 %v8581, %v8613
    %v8622 = vmul.f32 %v8582, %v8614
    %v8623 = vmul.f32 %v8583, %v8615
    %v8624 = vmul.f32 %v8584, %v8616
    %v8625 = vmul.f32 %v8585, %v8617
    %v8626 = vmul.f32 %v8586, %v8618
    %v8627 = vmul.f32 %v8587, %v8619
    %v8628 = vmul.f32 %v8588, %v8620
    %v8629 = vld [vmem:[#allocation13] sm:$0xff]
    %v8630 = vld [vmem:[#allocation13 + $0x8] sm:$0xff]
    %v8631 = vld [vmem:[#allocation13 + $0x10] sm:$0xff]
    %v8632 = vld [vmem:[#allocation13 + $0x18] sm:$0xff]
    %v8633 = vld [vmem:[#allocation13 + $0x20] sm:$0xff]
    %v8634 = vld [vmem:[#allocation13 + $0x28] sm:$0xff]
    %v8635 = vld [vmem:[#allocation13 + $0x30] sm:$0xff]
    %v8636 = vld [vmem:[#allocation13 + $0x38] sm:$0xff]
    %v8637 = vld [vmem:[#allocation13 + $0x40] sm:$0xff]
    %v8638 = vld [vmem:[#allocation13 + $0x48] sm:$0xff]
    %v8639 = vld [vmem:[#allocation13 + $0x50] sm:$0xff]
    %v8640 = vld [vmem:[#allocation13 + $0x58] sm:$0xff]
    %v8641 = vld [vmem:[#allocation13 + $0x60] sm:$0xff]
    %v8642 = vld [vmem:[#allocation13 + $0x68] sm:$0xff]
    %v8643 = vld [vmem:[#allocation13 + $0x70] sm:$0xff]
    %v8644 = vld [vmem:[#allocation13 + $0x78] sm:$0xff]
    %v8645 = vld [vmem:[#allocation13 + $0x80] sm:$0xff]
    %v8646 = vld [vmem:[#allocation13 + $0x88] sm:$0xff]
    %v8647 = vld [vmem:[#allocation13 + $0x90] sm:$0xff]
    %v8648 = vld [vmem:[#allocation13 + $0x98] sm:$0xff]
    %v8649 = vld [vmem:[#allocation13 + $0xa0] sm:$0xff]
    %v8650 = vld [vmem:[#allocation13 + $0xa8] sm:$0xff]
    %v8651 = vld [vmem:[#allocation13 + $0xb0] sm:$0xff]
    %v8652 = vld [vmem:[#allocation13 + $0xb8] sm:$0xff]
    %v8653 = vld [vmem:[#allocation13 + $0xc0] sm:$0xff]
    %v8654 = vld [vmem:[#allocation13 + $0xc8] sm:$0xff]
    %v8655 = vld [vmem:[#allocation13 + $0xd0] sm:$0xff]
    %v8656 = vld [vmem:[#allocation13 + $0xd8] sm:$0xff]
    %v8657 = vld [vmem:[#allocation13 + $0xe0] sm:$0xff]
    %v8658 = vld [vmem:[#allocation13 + $0xe8] sm:$0xff]
    %v8659 = vld [vmem:[#allocation13 + $0xf0] sm:$0xff]
    %v8660 = vld [vmem:[#allocation13 + $0xf8] sm:$0xff]
    %v8661 = vld [vmem:[#allocation13 + $0x100] sm:$0xff]
    %v8662 = vld [vmem:[#allocation13 + $0x108] sm:$0xff]
    %v8663 = vld [vmem:[#allocation13 + $0x110] sm:$0xff]
    %v8664 = vld [vmem:[#allocation13 + $0x118] sm:$0xff]
    %v8665 = vld [vmem:[#allocation13 + $0x120] sm:$0xff]
    %v8666 = vld [vmem:[#allocation13 + $0x128] sm:$0xff]
    %v8667 = vld [vmem:[#allocation13 + $0x130] sm:$0xff]
    %v8668 = vld [vmem:[#allocation13 + $0x138] sm:$0xff]
    %v8669 = vld [vmem:[#allocation13 + $0x140] sm:$0xff]
    %v8670 = vld [vmem:[#allocation13 + $0x148] sm:$0xff]
    %v8671 = vld [vmem:[#allocation13 + $0x150] sm:$0xff]
    %v8672 = vld [vmem:[#allocation13 + $0x158] sm:$0xff]
    %v8673 = vld [vmem:[#allocation13 + $0x160] sm:$0xff]
    %v8674 = vld [vmem:[#allocation13 + $0x168] sm:$0xff]
    %v8675 = vld [vmem:[#allocation13 + $0x170] sm:$0xff]
    %v8676 = vld [vmem:[#allocation13 + $0x178] sm:$0xff]
    %v8677 = vld [vmem:[#allocation13 + $0x180] sm:$0xff]
    %v8678 = vld [vmem:[#allocation13 + $0x188] sm:$0xff]
    %v8679 = vld [vmem:[#allocation13 + $0x190] sm:$0xff]
    %v8680 = vld [vmem:[#allocation13 + $0x198] sm:$0xff]
    %v8681 = vld [vmem:[#allocation13 + $0x1a0] sm:$0xff]
    %v8682 = vld [vmem:[#allocation13 + $0x1a8] sm:$0xff]
    %v8683 = vld [vmem:[#allocation13 + $0x1b0] sm:$0xff]
    %v8684 = vld [vmem:[#allocation13 + $0x1b8] sm:$0xff]
    %v8685 = vld [vmem:[#allocation13 + $0x1c0] sm:$0xff]
    %v8686 = vld [vmem:[#allocation13 + $0x1c8] sm:$0xff]
    %v8687 = vld [vmem:[#allocation13 + $0x1d0] sm:$0xff]
    %v8688 = vld [vmem:[#allocation13 + $0x1d8] sm:$0xff]
    %v8689 = vld [vmem:[#allocation13 + $0x1e0] sm:$0xff]
    %v8690 = vld [vmem:[#allocation13 + $0x1e8] sm:$0xff]
    %v8691 = vld [vmem:[#allocation13 + $0x1f0] sm:$0xff]
    %v8692 = vld [vmem:[#allocation13 + $0x1f8] sm:$0xff]
    %v8693 = vld [vmem:[#allocation15] sm:$0xff]
    %v8694 = vld [vmem:[#allocation15 + $0x8] sm:$0xff]
    %v8695 = vld [vmem:[#allocation15 + $0x10] sm:$0xff]
    %v8696 = vld [vmem:[#allocation15 + $0x18] sm:$0xff]
    %v8697 = vld [vmem:[#allocation15 + $0x20] sm:$0xff]
    %v8698 = vld [vmem:[#allocation15 + $0x28] sm:$0xff]
    %v8699 = vld [vmem:[#allocation15 + $0x30] sm:$0xff]
    %v8700 = vld [vmem:[#allocation15 + $0x38] sm:$0xff]
    %v8701 = vld [vmem:[#allocation15 + $0x40] sm:$0xff]
    %v8702 = vld [vmem:[#allocation15 + $0x48] sm:$0xff]
    %v8703 = vld [vmem:[#allocation15 + $0x50] sm:$0xff]
    %v8704 = vld [vmem:[#allocation15 + $0x58] sm:$0xff]
    %v8705 = vld [vmem:[#allocation15 + $0x60] sm:$0xff]
    %v8706 = vld [vmem:[#allocation15 + $0x68] sm:$0xff]
    %v8707 = vld [vmem:[#allocation15 + $0x70] sm:$0xff]
    %v8708 = vld [vmem:[#allocation15 + $0x78] sm:$0xff]
    %v8709 = vld [vmem:[#allocation15 + $0x80] sm:$0xff]
    %v8710 = vld [vmem:[#allocation15 + $0x88] sm:$0xff]
    %v8711 = vld [vmem:[#allocation15 + $0x90] sm:$0xff]
    %v8712 = vld [vmem:[#allocation15 + $0x98] sm:$0xff]
    %v8713 = vld [vmem:[#allocation15 + $0xa0] sm:$0xff]
    %v8714 = vld [vmem:[#allocation15 + $0xa8] sm:$0xff]
    %v8715 = vld [vmem:[#allocation15 + $0xb0] sm:$0xff]
    %v8716 = vld [vmem:[#allocation15 + $0xb8] sm:$0xff]
    %v8717 = vld [vmem:[#allocation15 + $0xc0] sm:$0xff]
    %v8718 = vld [vmem:[#allocation15 + $0xc8] sm:$0xff]
    %v8719 = vld [vmem:[#allocation15 + $0xd0] sm:$0xff]
    %v8720 = vld [vmem:[#allocation15 + $0xd8] sm:$0xff]
    %v8721 = vld [vmem:[#allocation15 + $0xe0] sm:$0xff]
    %v8722 = vld [vmem:[#allocation15 + $0xe8] sm:$0xff]
    %v8723 = vld [vmem:[#allocation15 + $0xf0] sm:$0xff]
    %v8724 = vld [vmem:[#allocation15 + $0xf8] sm:$0xff]
    %v8725 = vld [vmem:[#allocation15 + $0x100] sm:$0xff]
    %v8726 = vld [vmem:[#allocation15 + $0x108] sm:$0xff]
    %v8727 = vld [vmem:[#allocation15 + $0x110] sm:$0xff]
    %v8728 = vld [vmem:[#allocation15 + $0x118] sm:$0xff]
    %v8729 = vld [vmem:[#allocation15 + $0x120] sm:$0xff]
    %v8730 = vld [vmem:[#allocation15 + $0x128] sm:$0xff]
    %v8731 = vld [vmem:[#allocation15 + $0x130] sm:$0xff]
    %v8732 = vld [vmem:[#allocation15 + $0x138] sm:$0xff]
    %v8733 = vld [vmem:[#allocation15 + $0x140] sm:$0xff]
    %v8734 = vld [vmem:[#allocation15 + $0x148] sm:$0xff]
    %v8735 = vld [vmem:[#allocation15 + $0x150] sm:$0xff]
    %v8736 = vld [vmem:[#allocation15 + $0x158] sm:$0xff]
    %v8737 = vld [vmem:[#allocation15 + $0x160] sm:$0xff]
    %v8738 = vld [vmem:[#allocation15 + $0x168] sm:$0xff]
    %v8739 = vld [vmem:[#allocation15 + $0x170] sm:$0xff]
    %v8740 = vld [vmem:[#allocation15 + $0x178] sm:$0xff]
    %v8741 = vld [vmem:[#allocation15 + $0x180] sm:$0xff]
    %v8742 = vld [vmem:[#allocation15 + $0x188] sm:$0xff]
    %v8743 = vld [vmem:[#allocation15 + $0x190] sm:$0xff]
    %v8744 = vld [vmem:[#allocation15 + $0x198] sm:$0xff]
    %v8745 = vld [vmem:[#allocation15 + $0x1a0] sm:$0xff]
    %v8746 = vld [vmem:[#allocation15 + $0x1a8] sm:$0xff]
    %v8747 = vld [vmem:[#allocation15 + $0x1b0] sm:$0xff]
    %v8748 = vld [vmem:[#allocation15 + $0x1b8] sm:$0xff]
    %v8749 = vld [vmem:[#allocation15 + $0x1c0] sm:$0xff]
    %v8750 = vld [vmem:[#allocation15 + $0x1c8] sm:$0xff]
    %v8751 = vld [vmem:[#allocation15 + $0x1d0] sm:$0xff]
    %v8752 = vld [vmem:[#allocation15 + $0x1d8] sm:$0xff]
    %v8753 = vld [vmem:[#allocation15 + $0x1e0] sm:$0xff]
    %v8754 = vld [vmem:[#allocation15 + $0x1e8] sm:$0xff]
    %v8755 = vld [vmem:[#allocation15 + $0x1f0] sm:$0xff]
    %v8756 = vld [vmem:[#allocation15 + $0x1f8] sm:$0xff]
    %8757 = vmatprep.subr.mxu0 %v8694
    %8758 = vmatpush1.msra.mxu0 %v8693
    %8759 = vmatprep.subr.mxu0 %v8698
    %8760 = vmatpush1.msra.mxu0 %v8697
    %8761 = vmatprep.subr.mxu0 %v8702
    %8762 = vmatpush1.msra.mxu0 %v8701
    %8763 = vmatprep.subr.mxu0 %v8706
    %8764 = vmatpush1.msra.mxu0 %v8705
    %8765 = vmatprep.subr.mxu0 %v8710
    %8766 = vmatpush1.msra.mxu0 %v8709
    %8767 = vmatprep.subr.mxu0 %v8714
    %8768 = vmatpush1.msra.mxu0 %v8713
    %8769 = vmatprep.subr.mxu0 %v8718
    %8770 = vmatpush1.msra.mxu0 %v8717
    %8771 = vmatprep.subr.mxu0 %v8722
    %8772 = vmatpush1.msra.mxu0 %v8721
    %8773 = vmatprep.subr.mxu0 %v8726
    %8774 = vmatpush1.msra.mxu0 %v8725
    %8775 = vmatprep.subr.mxu0 %v8730
    %8776 = vmatpush1.msra.mxu0 %v8729
    %8777 = vmatprep.subr.mxu0 %v8734
    %8778 = vmatpush1.msra.mxu0 %v8733
    %8779 = vmatprep.subr.mxu0 %v8738
    %8780 = vmatpush1.msra.mxu0 %v8737
    %8781 = vmatprep.subr.mxu0 %v8742
    %8782 = vmatpush1.msra.mxu0 %v8741
    %8783 = vmatprep.subr.mxu0 %v8746
    %8784 = vmatpush1.msra.mxu0 %v8745
    %8785 = vmatprep.subr.mxu0 %v8750
    %8786 = vmatpush1.msra.mxu0 %v8749
    %8787 = vmatprep.subr.mxu0 %v8754
    %8788 = vmatpush1.msra.mxu0 %v8753
    %8789 = vmatprep.subr.mxu0 0.0
    %8790 = vmatpush1.msra.mxu0 0.0
    %8791 = vmatprep.subr.mxu0 0.0
    %8792 = vmatpush1.msra.mxu0 0.0
    %8793 = vmatprep.subr.mxu0 0.0
    %8794 = vmatpush1.msra.mxu0 0.0
    %8795 = vmatprep.subr.mxu0 0.0
    %8796 = vmatpush1.msra.mxu0 0.0
    %8797 = vmatprep.subr.mxu0 0.0
    %8798 = vmatpush1.msra.mxu0 0.0
    %8799 = vmatprep.subr.mxu0 0.0
    %8800 = vmatpush1.msra.mxu0 0.0
    %8801 = vmatprep.subr.mxu0 0.0
    %8802 = vmatpush1.msra.mxu0 0.0
    %8803 = vmatprep.subr.mxu0 0.0
    %8804 = vmatpush1.msra.mxu0 0.0
    %8805 = vmatprep.subr.mxu0 0.0
    %8806 = vmatpush1.msra.mxu0 0.0
    %8807 = vmatprep.subr.mxu0 0.0
    %8808 = vmatpush1.msra.mxu0 0.0
    %8809 = vmatprep.subr.mxu0 0.0
    %8810 = vmatpush1.msra.mxu0 0.0
    %8811 = vmatprep.subr.mxu0 0.0
    %8812 = vmatpush1.msra.mxu0 0.0
    %8813 = vmatprep.subr.mxu0 0.0
    %8814 = vmatpush1.msra.mxu0 0.0
    %8815 = vmatprep.subr.mxu0 0.0
    %8816 = vmatpush1.msra.mxu0 0.0
    %8817 = vmatprep.subr.mxu0 0.0
    %8818 = vmatpush1.msra.mxu0 0.0
    %8819 = vmatprep.subr.mxu0 0.0
    %8820 = vmatpush1.msra.mxu0 0.0
    %8821 = vmatprep.mubr.f32.mxu0 0.0
    %8822 = vmatmul.mubr.f32.gmra.mrb[0].mxu0 %v8052
    %v8823 = vpop.f32.mrb[0].mxu0
    %v8824 = vadd.f32 0.0, %v8823
    %v8825 = vpop.f32.mrb[0].mxu0
    %v8826 = vadd.f32 0.0, %v8825
    %8827 = vdwg.mxu0
    %8828 = vmatprep.subr.mxu0 %v8696
    %8829 = vmatpush1.msra.mxu0 %v8695
    %8830 = vmatprep.subr.mxu0 %v8700
    %8831 = vmatpush1.msra.mxu0 %v8699
    %8832 = vmatprep.subr.mxu0 %v8704
    %8833 = vmatpush1.msra.mxu0 %v8703
    %8834 = vmatprep.subr.mxu0 %v8708
    %8835 = vmatpush1.msra.mxu0 %v8707
    %8836 = vmatprep.subr.mxu0 %v8712
    %8837 = vmatpush1.msra.mxu0 %v8711
    %8838 = vmatprep.subr.mxu0 %v8716
    %8839 = vmatpush1.msra.mxu0 %v8715
    %8840 = vmatprep.subr.mxu0 %v8720
    %8841 = vmatpush1.msra.mxu0 %v8719
    %8842 = vmatprep.subr.mxu0 %v8724
    %8843 = vmatpush1.msra.mxu0 %v8723
    %8844 = vmatprep.subr.mxu0 %v8728
    %8845 = vmatpush1.msra.mxu0 %v8727
    %8846 = vmatprep.subr.mxu0 %v8732
    %8847 = vmatpush1.msra.mxu0 %v8731
    %8848 = vmatprep.subr.mxu0 %v8736
    %8849 = vmatpush1.msra.mxu0 %v8735
    %8850 = vmatprep.subr.mxu0 %v8740
    %8851 = vmatpush1.msra.mxu0 %v8739
    %8852 = vmatprep.subr.mxu0 %v8744
    %8853 = vmatpush1.msra.mxu0 %v8743
    %8854 = vmatprep.subr.mxu0 %v8748
    %8855 = vmatpush1.msra.mxu0 %v8747
    %8856 = vmatprep.subr.mxu0 %v8752
    %8857 = vmatpush1.msra.mxu0 %v8751
    %8858 = vmatprep.subr.mxu0 %v8756
    %8859 = vmatpush1.msra.mxu0 %v8755
    %8860 = vmatprep.subr.mxu0 0.0
    %8861 = vmatpush1.msra.mxu0 0.0
    %8862 = vmatprep.subr.mxu0 0.0
    %8863 = vmatpush1.msra.mxu0 0.0
    %8864 = vmatprep.subr.mxu0 0.0
    %8865 = vmatpush1.msra.mxu0 0.0
    %8866 = vmatprep.subr.mxu0 0.0
    %8867 = vmatpush1.msra.mxu0 0.0
    %8868 = vmatprep.subr.mxu0 0.0
    %8869 = vmatpush1.msra.mxu0 0.0
    %8870 = vmatprep.subr.mxu0 0.0
    %8871 = vmatpush1.msra.mxu0 0.0
    %8872 = vmatprep.subr.mxu0 0.0
    %8873 = vmatpush1.msra.mxu0 0.0
    %8874 = vmatprep.subr.mxu0 0.0
    %8875 = vmatpush1.msra.mxu0 0.0
    %8876 = vmatprep.subr.mxu0 0.0
    %8877 = vmatpush1.msra.mxu0 0.0
    %8878 = vmatprep.subr.mxu0 0.0
    %8879 = vmatpush1.msra.mxu0 0.0
    %8880 = vmatprep.subr.mxu0 0.0
    %8881 = vmatpush1.msra.mxu0 0.0
    %8882 = vmatprep.subr.mxu0 0.0
    %8883 = vmatpush1.msra.mxu0 0.0
    %8884 = vmatprep.subr.mxu0 0.0
    %8885 = vmatpush1.msra.mxu0 0.0
    %8886 = vmatprep.subr.mxu0 0.0
    %8887 = vmatpush1.msra.mxu0 0.0
    %8888 = vmatprep.subr.mxu0 0.0
    %8889 = vmatpush1.msra.mxu0 0.0
    %8890 = vmatprep.subr.mxu0 0.0
    %8891 = vmatpush1.msra.mxu0 0.0
    %8892 = vmatprep.mubr.f32.mxu0 0.0
    %8893 = vmatmul.mubr.f32.gmra.mrb[0].mxu0 %v8052
    %v8894 = vpop.f32.mrb[0].mxu0
    %v8895 = vadd.f32 0.0, %v8894
    %v8896 = vpop.f32.mrb[0].mxu0
    %v8897 = vadd.f32 0.0, %v8896
    %8898 = vdwg.mxu0
    %v8907 = vcombine.low %v8621, %v8622
    %v8908 = vcombine.low %v8623, %v8624
    %v8909 = vcombine.low %v8625, %v8626
    %v8910 = vcombine.low %v8627, %v8628
    %v8912 = vunpack.c.l.s4 1966171168
    %v8913 = vunpack.c.0.s8 %v8912
    %v8914 = vlaneseq
    %v8915 = vshrl.u32 %v8914, 7
    %v8916 = vsub.s32 %v8913, %v8915
    %v8917 = vrot.slane %v8907, %v8916
    %v8919 = vunpack.c.l.s4 1966171168
    %v8920 = vunpack.c.0.s8 %v8919
    %v8921 = vlaneseq
    %v8922 = vshrl.u32 %v8921, 7
    %v8923 = vsub.s32 %v8920, %v8922
    %v8924 = vrot.slane %v8908, %v8923
    %v8926 = vunpack.c.l.s4 1966171168
    %v8927 = vunpack.c.0.s8 %v8926
    %v8928 = vlaneseq
    %v8929 = vshrl.u32 %v8928, 7
    %v8930 = vsub.s32 %v8927, %v8929
    %v8931 = vrot.slane %v8909, %v8930
    %v8933 = vunpack.c.l.s4 1966171168
    %v8934 = vunpack.c.0.s8 %v8933
    %v8935 = vlaneseq
    %v8936 = vshrl.u32 %v8935, 7
    %v8937 = vsub.s32 %v8934, %v8936
    %v8938 = vrot.slane %v8910, %v8937
    %v8939 = vcombine.low %v8917, %v8924
    %v8940 = vcombine.low %v8931, %v8938
    %v8942 = vunpack.c.l.s4 1966171168
    %v8943 = vunpack.c.0.s8 %v8942
    %v8944 = vlaneseq
    %v8945 = vshrl.u32 %v8944, 7
    %v8946 = vsub.s32 %v8943, %v8945
    %v8947 = vrot.slane %v8939, %v8946
    %v8949 = vunpack.c.l.s4 1966171168
    %v8950 = vunpack.c.0.s8 %v8949
    %v8951 = vlaneseq
    %v8952 = vshrl.u32 %v8951, 7
    %v8953 = vsub.s32 %v8950, %v8952
    %v8954 = vrot.slane %v8940, %v8953
    %v8955 = vcombine.low %v8947, %v8954
    %8957 = vmatprep.subr.mxu0 %v8630
    %8958 = vmatpush1.msra.mxu0 %v8629
    %8959 = vmatprep.subr.mxu0 %v8634
    %8960 = vmatpush1.msra.mxu0 %v8633
    %8961 = vmatprep.subr.mxu0 %v8638
    %8962 = vmatpush1.msra.mxu0 %v8637
    %8963 = vmatprep.subr.mxu0 %v8642
    %8964 = vmatpush1.msra.mxu0 %v8641
    %8965 = vmatprep.subr.mxu0 %v8646
    %8966 = vmatpush1.msra.mxu0 %v8645
    %8967 = vmatprep.subr.mxu0 %v8650
    %8968 = vmatpush1.msra.mxu0 %v8649
    %8969 = vmatprep.subr.mxu0 %v8654
    %8970 = vmatpush1.msra.mxu0 %v8653
    %8971 = vmatprep.subr.mxu0 %v8658
    %8972 = vmatpush1.msra.mxu0 %v8657
    %8973 = vmatprep.subr.mxu0 %v8662
    %8974 = vmatpush1.msra.mxu0 %v8661
    %8975 = vmatprep.subr.mxu0 %v8666
    %8976 = vmatpush1.msra.mxu0 %v8665
    %8977 = vmatprep.subr.mxu0 %v8670
    %8978 = vmatpush1.msra.mxu0 %v8669
    %8979 = vmatprep.subr.mxu0 %v8674
    %8980 = vmatpush1.msra.mxu0 %v8673
    %8981 = vmatprep.subr.mxu0 %v8678
    %8982 = vmatpush1.msra.mxu0 %v8677
    %8983 = vmatprep.subr.mxu0 %v8682
    %8984 = vmatpush1.msra.mxu0 %v8681
    %8985 = vmatprep.subr.mxu0 %v8686
    %8986 = vmatpush1.msra.mxu0 %v8685
    %8987 = vmatprep.subr.mxu0 %v8690
    %8988 = vmatpush1.msra.mxu0 %v8689
    %8989 = vmatprep.subr.mxu0 0.0
    %8990 = vmatpush1.msra.mxu0 0.0
    %8991 = vmatprep.subr.mxu0 0.0
    %8992 = vmatpush1.msra.mxu0 0.0
    %8993 = vmatprep.subr.mxu0 0.0
    %8994 = vmatpush1.msra.mxu0 0.0
    %8995 = vmatprep.subr.mxu0 0.0
    %8996 = vmatpush1.msra.mxu0 0.0
    %8997 = vmatprep.subr.mxu0 0.0
    %8998 = vmatpush1.msra.mxu0 0.0
    %8999 = vmatprep.subr.mxu0 0.0
    %9000 = vmatpush1.msra.mxu0 0.0
    %9001 = vmatprep.subr.mxu0 0.0
    %9002 = vmatpush1.msra.mxu0 0.0
    %9003 = vmatprep.subr.mxu0 0.0
    %9004 = vmatpush1.msra.mxu0 0.0
    %9005 = vmatprep.subr.mxu0 0.0
    %9006 = vmatpush1.msra.mxu0 0.0
    %9007 = vmatprep.subr.mxu0 0.0
    %9008 = vmatpush1.msra.mxu0 0.0
    %9009 = vmatprep.subr.mxu0 0.0
    %9010 = vmatpush1.msra.mxu0 0.0
    %9011 = vmatprep.subr.mxu0 0.0
    %9012 = vmatpush1.msra.mxu0 0.0
    %9013 = vmatprep.subr.mxu0 0.0
    %9014 = vmatpush1.msra.mxu0 0.0
    %9015 = vmatprep.subr.mxu0 0.0
    %9016 = vmatpush1.msra.mxu0 0.0
    %9017 = vmatprep.subr.mxu0 0.0
    %9018 = vmatpush1.msra.mxu0 0.0
    %9019 = vmatprep.subr.mxu0 0.0
    %9020 = vmatpush1.msra.mxu0 0.0
    %9021 = vmatprep.mubr.f32.mxu0 0.0
    %9022 = vmatmul.mubr.f32.gmra.mrb[0].mxu0 %v8955
    %v9023 = vpop.f32.mrb[0].mxu0
    %v9024 = vadd.f32 %v8824, %v9023
    %v9025 = vpop.f32.mrb[0].mxu0
    %v9026 = vadd.f32 %v8826, %v9025
    %9027 = vdwg.mxu0
    %9028 = vmatprep.subr.mxu0 %v8632
    %9029 = vmatpush1.msra.mxu0 %v8631
    %9030 = vmatprep.subr.mxu0 %v8636
    %9031 = vmatpush1.msra.mxu0 %v8635
    %9032 = vmatprep.subr.mxu0 %v8640
    %9033 = vmatpush1.msra.mxu0 %v8639
    %9034 = vmatprep.subr.mxu0 %v8644
    %9035 = vmatpush1.msra.mxu0 %v8643
    %9036 = vmatprep.subr.mxu0 %v8648
    %9037 = vmatpush1.msra.mxu0 %v8647
    %9038 = vmatprep.subr.mxu0 %v8652
    %9039 = vmatpush1.msra.mxu0 %v8651
    %9040 = vmatprep.subr.mxu0 %v8656
    %9041 = vmatpush1.msra.mxu0 %v8655
    %9042 = vmatprep.subr.mxu0 %v8660
    %9043 = vmatpush1.msra.mxu0 %v8659
    %9044 = vmatprep.subr.mxu0 %v8664
    %9045 = vmatpush1.msra.mxu0 %v8663
    %9046 = vmatprep.subr.mxu0 %v8668
    %9047 = vmatpush1.msra.mxu0 %v8667
    %9048 = vmatprep.subr.mxu0 %v8672
    %9049 = vmatpush1.msra.mxu0 %v8671
    %9050 = vmatprep.subr.mxu0 %v8676
    %9051 = vmatpush1.msra.mxu0 %v8675
    %9052 = vmatprep.subr.mxu0 %v8680
    %9053 = vmatpush1.msra.mxu0 %v8679
    %9054 = vmatprep.subr.mxu0 %v8684
    %9055 = vmatpush1.msra.mxu0 %v8683
    %9056 = vmatprep.subr.mxu0 %v8688
    %9057 = vmatpush1.msra.mxu0 %v8687
    %9058 = vmatprep.subr.mxu0 %v8692
    %9059 = vmatpush1.msra.mxu0 %v8691
    %9060 = vmatprep.subr.mxu0 0.0
    %9061 = vmatpush1.msra.mxu0 0.0
    %9062 = vmatprep.subr.mxu0 0.0
    %9063 = vmatpush1.msra.mxu0 0.0
    %9064 = vmatprep.subr.mxu0 0.0
    %9065 = vmatpush1.msra.mxu0 0.0
    %9066 = vmatprep.subr.mxu0 0.0
    %9067 = vmatpush1.msra.mxu0 0.0
    %9068 = vmatprep.subr.mxu0 0.0
    %9069 = vmatpush1.msra.mxu0 0.0
    %9070 = vmatprep.subr.mxu0 0.0
    %9071 = vmatpush1.msra.mxu0 0.0
    %9072 = vmatprep.subr.mxu0 0.0
    %9073 = vmatpush1.msra.mxu0 0.0
    %9074 = vmatprep.subr.mxu0 0.0
    %9075 = vmatpush1.msra.mxu0 0.0
    %9076 = vmatprep.subr.mxu0 0.0
    %9077 = vmatpush1.msra.mxu0 0.0
    %9078 = vmatprep.subr.mxu0 0.0
    %9079 = vmatpush1.msra.mxu0 0.0
    %9080 = vmatprep.subr.mxu0 0.0
    %9081 = vmatpush1.msra.mxu0 0.0
    %9082 = vmatprep.subr.mxu0 0.0
    %9083 = vmatpush1.msra.mxu0 0.0
    %9084 = vmatprep.subr.mxu0 0.0
    %9085 = vmatpush1.msra.mxu0 0.0
    %9086 = vmatprep.subr.mxu0 0.0
    %9087 = vmatpush1.msra.mxu0 0.0
    %9088 = vmatprep.subr.mxu0 0.0
    %9089 = vmatpush1.msra.mxu0 0.0
    %9090 = vmatprep.subr.mxu0 0.0
    %9091 = vmatpush1.msra.mxu0 0.0
    %9092 = vmatprep.mubr.f32.mxu0 0.0
    %9093 = vmatmul.mubr.f32.gmra.mrb[0].mxu0 %v8955
    %v9094 = vpop.f32.mrb[0].mxu0
    %v9095 = vadd.f32 %v8895, %v9094
    %v9096 = vpop.f32.mrb[0].mxu0
    %v9097 = vadd.f32 %v8897, %v9096
    %9098 = vdwg.mxu0
    %v9099 = vld [vmem:[%s6] sm:$0xf]
    %v9101 = vlaneseq
    %v9102 = vshrl.u32 %v9101, 7
    %v9103 = vsub.s32 0, %v9102
    %v9104 = vrot.slane %v9099, %v9103
    %v9105 = vlaneseq
    %v9106 = vshrl.u32 %v9105, 7
    %v9107 = vsub.s32 1, %v9106
    %v9108 = vrot.slane %v9099, %v9107
    %v9109 = vlaneseq
    %v9110 = vshrl.u32 %v9109, 7
    %v9111 = vsub.s32 2, %v9110
    %v9112 = vrot.slane %v9099, %v9111
    %v9113 = vlaneseq
    %v9114 = vshrl.u32 %v9113, 7
    %v9115 = vsub.s32 3, %v9114
    %v9116 = vrot.slane %v9099, %v9115
    %v9121 = vadd.f32 %v9024, %v9104
    %v9122 = vadd.f32 %v9026, %v9108
    %v9123 = vadd.f32 %v9095, %v9112
    %v9124 = vadd.f32 %v9097, %v9116
    %v9125 = vmul.f32 %v9121, 0.5
    %v9126 = vtanh.pop %v9125
    %v9127 = vmul.f32 %v9126, 0.5
    %v9128 = vadd.f32 %v9127, 0.5
    %v9129 = vmul.f32 %v9122, 0.5
    %v9130 = vtanh.pop %v9129
    %v9131 = vmul.f32 %v9130, 0.5
    %v9132 = vadd.f32 %v9131, 0.5
    %v9133 = vtanh.pop %v9123
    %v9134 = vmul.f32 %v9124, 0.5
    %v9135 = vtanh.pop %v9134
    %v9136 = vmul.f32 %v9135, 0.5
    %v9137 = vadd.f32 %v9136, 0.5
    %v9138 = vmul.f32 %v9132, %v8050
    %v9139 = vmul.f32 %v9128, %v9133
    %v9140 = vadd.f32 %v9138, %v9139
    %v9141 = vtanh.pop %v9140
    %v9142 = vmul.f32 %v9137, %v9141
    %v9144 = vcombine.high %v9142, %v9142
    %v9146 = vunpack.c.l.s4 1966171168
    %v9147 = vunpack.c.0.s8 %v9146
    %v9148 = vlaneseq
    %v9149 = vshrl.u32 %v9148, 7
    %v9150 = vsub.s32 %v9147, %v9149
    %v9151 = vrot.slane %v9142, %v9150
    %v9153 = vunpack.c.l.s4 1966171168
    %v9154 = vunpack.c.0.s8 %v9153
    %v9155 = vlaneseq
    %v9156 = vshrl.u32 %v9155, 7
    %v9157 = vsub.s32 %v9154, %v9156
    %v9158 = vrot.slane %v9144, %v9157
    %v9159 = vcombine.high %v9151, %v9151
    %v9160 = vcombine.high %v9158, %v9158
    %v9162 = vunpack.c.l.s4 1966171168
    %v9163 = vunpack.c.0.s8 %v9162
    %v9164 = vlaneseq
    %v9165 = vshrl.u32 %v9164, 7
    %v9166 = vsub.s32 %v9163, %v9165
    %v9167 = vrot.slane %v9151, %v9166
    %v9169 = vunpack.c.l.s4 1966171168
    %v9170 = vunpack.c.0.s8 %v9169
    %v9171 = vlaneseq
    %v9172 = vshrl.u32 %v9171, 7
    %v9173 = vsub.s32 %v9170, %v9172
    %v9174 = vrot.slane %v9158, %v9173
    %v9176 = vunpack.c.l.s4 1966171168
    %v9177 = vunpack.c.0.s8 %v9176
    %v9178 = vlaneseq
    %v9179 = vshrl.u32 %v9178, 7
    %v9180 = vsub.s32 %v9177, %v9179
    %v9181 = vrot.slane %v9159, %v9180
    %v9183 = vunpack.c.l.s4 1966171168
    %v9184 = vunpack.c.0.s8 %v9183
    %v9185 = vlaneseq
    %v9186 = vshrl.u32 %v9185, 7
    %v9187 = vsub.s32 %v9184, %v9186
    %v9188 = vrot.slane %v9160, %v9187
    %v9189 = vcombine.high %v9167, %v9167
    %v9190 = vcombine.high %v9174, %v9174
    %v9191 = vcombine.high %v9181, %v9181
    %v9192 = vcombine.high %v9188, %v9188
    %9201 = vst [vmem:[#allocation5 + $0x7] sm:$0x1] %v9167
    %9202 = vst [vmem:[#allocation5 + $0xf] sm:$0x1] %v9181
    %9203 = vst [vmem:[#allocation5 + $0x17] sm:$0x1] %v9189
    %9204 = vst [vmem:[#allocation5 + $0x1f] sm:$0x1] %v9191
    %9205 = vst [vmem:[#allocation5 + $0x27] sm:$0x1] %v9174
    %9206 = vst [vmem:[#allocation5 + $0x2f] sm:$0x1] %v9188
    %9207 = vst [vmem:[#allocation5 + $0x37] sm:$0x1] %v9190
    %9208 = vst [vmem:[#allocation5 + $0x3f] sm:$0x1] %v9192
    %9209 = vst [vmem:[#allocation2] sm:$0xff] %v8955
    %v9218 = vcombine.low %v8605, %v8606
    %v9219 = vcombine.low %v8607, %v8608
    %v9220 = vcombine.low %v8609, %v8610
    %v9221 = vcombine.low %v8611, %v8612
    %v9223 = vunpack.c.l.s4 1966171168
    %v9224 = vunpack.c.0.s8 %v9223
    %v9225 = vlaneseq
    %v9226 = vshrl.u32 %v9225, 7
    %v9227 = vsub.s32 %v9224, %v9226
    %v9228 = vrot.slane %v9218, %v9227
    %v9230 = vunpack.c.l.s4 1966171168
    %v9231 = vunpack.c.0.s8 %v9230
    %v9232 = vlaneseq
    %v9233 = vshrl.u32 %v9232, 7
    %v9234 = vsub.s32 %v9231, %v9233
    %v9235 = vrot.slane %v9219, %v9234
    %v9237 = vunpack.c.l.s4 1966171168
    %v9238 = vunpack.c.0.s8 %v9237
    %v9239 = vlaneseq
    %v9240 = vshrl.u32 %v9239, 7
    %v9241 = vsub.s32 %v9238, %v9240
    %v9242 = vrot.slane %v9220, %v9241
    %v9244 = vunpack.c.l.s4 1966171168
    %v9245 = vunpack.c.0.s8 %v9244
    %v9246 = vlaneseq
    %v9247 = vshrl.u32 %v9246, 7
    %v9248 = vsub.s32 %v9245, %v9247
    %v9249 = vrot.slane %v9221, %v9248
    %v9250 = vcombine.low %v9228, %v9235
    %v9251 = vcombine.low %v9242, %v9249
    %v9253 = vunpack.c.l.s4 1966171168
    %v9254 = vunpack.c.0.s8 %v9253
    %v9255 = vlaneseq
    %v9256 = vshrl.u32 %v9255, 7
    %v9257 = vsub.s32 %v9254, %v9256
    %v9258 = vrot.slane %v9250, %v9257
    %v9260 = vunpack.c.l.s4 1966171168
    %v9261 = vunpack.c.0.s8 %v9260
    %v9262 = vlaneseq
    %v9263 = vshrl.u32 %v9262, 7
    %v9264 = vsub.s32 %v9261, %v9263
    %v9265 = vrot.slane %v9251, %v9264
    %v9266 = vcombine.low %v9258, %v9265
    %9268 = vst [vmem:[#allocation3] sm:$0xff] %v9266
    %9269 = vst [vmem:[%s427] sm:$0xff] %v9142
    %9270 = vst [vmem:[%s430] sm:$0xff] %v9140
    %v9271 = vld [vmem:[#allocation5] sm:$0xff]
    %v9272 = vld [vmem:[#allocation5 + $0x8] sm:$0xff]
    %v9273 = vld [vmem:[#allocation5 + $0x10] sm:$0xff]
    %v9274 = vld [vmem:[#allocation5 + $0x18] sm:$0xff]
    %v9275 = vld [vmem:[#allocation5 + $0x20] sm:$0xff]
    %v9276 = vld [vmem:[#allocation5 + $0x28] sm:$0xff]
    %v9277 = vld [vmem:[#allocation5 + $0x30] sm:$0xff]
    %v9278 = vld [vmem:[#allocation5 + $0x38] sm:$0xff]
    %v9279 = vld [vmem:[%s7] sm:$0x1]
    %v9281 = vlaneseq
    %v9282 = vshrl.u32 %v9281, 7
    %v9283 = vsub.s32 0, %v9282
    %v9284 = vrot.slane %v9279, %v9283
    %v9286 = vmul.f32 %v9271, %v9284
    %v9287 = vmul.f32 %v9272, %v9284
    %v9288 = vmul.f32 %v9273, %v9284
    %v9289 = vmul.f32 %v9274, %v9284
    %v9290 = vmul.f32 %v9275, %v9284
    %v9291 = vmul.f32 %v9276, %v9284
    %v9292 = vmul.f32 %v9277, %v9284
    %v9293 = vmul.f32 %v9278, %v9284
    %9294 = vadd.xlane.f32.xlu0 %v9286
    %v9295 = vpop.xlane.xlu0 %9294
    %9296 = vadd.xlane.f32.xlu0 %v9287
    %v9297 = vpop.xlane.xlu0 %9296
    %9298 = vadd.xlane.f32.xlu0 %v9288
    %v9299 = vpop.xlane.xlu0 %9298
    %9300 = vadd.xlane.f32.xlu0 %v9289
    %v9301 = vpop.xlane.xlu0 %9300
    %9302 = vadd.xlane.f32.xlu0 %v9290
    %v9303 = vpop.xlane.xlu0 %9302
    %9304 = vadd.xlane.f32.xlu0 %v9291
    %v9305 = vpop.xlane.xlu0 %9304
    %9306 = vadd.xlane.f32.xlu0 %v9292
    %v9307 = vpop.xlane.xlu0 %9306
    %9308 = vadd.xlane.f32.xlu0 %v9293
    %v9309 = vpop.xlane.xlu0 %9308
    %v9310 = vld [vmem:[#allocation6] sm:$0x1]
    %v9312 = vlaneseq
    %v9313 = vshrl.u32 %v9312, 7
    %v9314 = vsub.s32 0, %v9313
    %v9315 = vrot.slane %v9310, %v9314
    %9316 = vset.pattern.permute.xlu0 0
    %9317 = vperm.xlu0 %9316, %v9315
    %v9318 = vpop.permute.xlu0 %9317
    %v9320 = vadd.f32 %v9295, %v9318
    %v9321 = vadd.f32 %v9297, %v9318
    %v9322 = vadd.f32 %v9299, %v9318
    %v9323 = vadd.f32 %v9301, %v9318
    %v9324 = vadd.f32 %v9303, %v9318
    %v9325 = vadd.f32 %v9305, %v9318
    %v9326 = vadd.f32 %v9307, %v9318
    %v9327 = vadd.f32 %v9309, %v9318
    %v9336 = vlaneseq
    %v9337 = vand.u32 %v9336, 127
    %v9338 = vlaneseq
    %v9339 = vshrl.u32 %v9338, 7
    %v9340 = vsub.s32 %v9337, %v9339
    %v9341 = vrot.slane %v9320, %v9340
    %v9342 = vlaneseq
    %v9343 = vshrl.u32 %v9342, 7
    %v9344 = vsub.s32 %v9337, %v9343
    %v9345 = vrot.slane %v9321, %v9344
    %v9346 = vlaneseq
    %v9347 = vshrl.u32 %v9346, 7
    %v9348 = vsub.s32 %v9337, %v9347
    %v9349 = vrot.slane %v9322, %v9348
    %v9350 = vlaneseq
    %v9351 = vshrl.u32 %v9350, 7
    %v9352 = vsub.s32 %v9337, %v9351
    %v9353 = vrot.slane %v9323, %v9352
    %v9354 = vlaneseq
    %v9355 = vshrl.u32 %v9354, 7
    %v9356 = vsub.s32 %v9337, %v9355
    %v9357 = vrot.slane %v9324, %v9356
    %v9358 = vlaneseq
    %v9359 = vshrl.u32 %v9358, 7
    %v9360 = vsub.s32 %v9337, %v9359
    %v9361 = vrot.slane %v9325, %v9360
    %v9362 = vlaneseq
    %v9363 = vshrl.u32 %v9362, 7
    %v9364 = vsub.s32 %v9337, %v9363
    %v9365 = vrot.slane %v9326, %v9364
    %v9366 = vlaneseq
    %v9367 = vshrl.u32 %v9366, 7
    %v9368 = vsub.s32 %v9337, %v9367
    %v9369 = vrot.slane %v9327, %v9368
    %vm9370 = vcmask 1041409
    %v9371 = vsel %vm9370, %v9345, %v9341
    %vm9372 = vcmask 1042434
    %v9373 = vsel %vm9372, %v9349, %v9371
    %vm9374 = vcmask 1043459
    %v9375 = vsel %vm9374, %v9353, %v9373
    %vm9376 = vcmask 1044484
    %v9377 = vsel %vm9376, %v9357, %v9375
    %vm9378 = vcmask 1045509
    %v9379 = vsel %vm9378, %v9361, %v9377
    %vm9380 = vcmask 1046534
    %v9381 = vsel %vm9380, %v9365, %v9379
    %vm9382 = vcmask 1047559
    %v9383 = vsel %vm9382, %v9369, %v9381
    %9385 = vst.msk [vmem:[#allocation16] sm:$0xff] %vm143, %v9383
    // Predicated region
    $region62: #{tpu_custom_call.1} parent=1 // pred_check
      _
    $region63: #{tpu_custom_call.1} parent=1 // pred_check_branch
      %9387 = sbr.rel (0) target = $region65
    $region64: #{tpu_custom_call.1} parent=1 // pred_region
      %s9389 = ssub.s32 128, 128
      %9390 = vsyncadd [#allocation9], %s9389
      %s9392 = sshll.u32 [#allocation16], 4
      %s9393 = int_to_ptr.vmem [resolvable:$true] %s9392
      %9395 = dma.vmem_to_hbm [thread:$0]  %s9393, 128, %s9, [#allocation9]
    $region65: #{tpu_custom_call.1} parent=1 // pred_fallthru
      _
    // Predicated region
    $region66: #{tpu_custom_call.1} parent=1 // pred_check
      _
    $region67: #{tpu_custom_call.1} parent=1 // pred_check_branch
      %9397 = sbr.rel (0) target = $region69
    $region68: #{tpu_custom_call.1} parent=1 // pred_region
      %9398 = dma.done [#allocation9], 128
    $region69: #{tpu_custom_call.1} parent=1 // pred_fallthru
      _
    %9399 = vsyncpa [#allocation8], 1
    %9400 = vsyncpa [#allocation11], 1
    %9401 = vsyncpa [#allocation14], 1
    %9402 = vsyncpa [#allocation9], 1

</llo_original>
